<compile_context>
chip_gen: v7x
topology: tpu7x:2x2x1
jax: 0.10.0
libtpu: 0.0.40
codegen_flags: <defaults>
</compile_context>

<pallas_src>
import functools

import numpy as np

import jax
import jax.numpy as jnp
from jax.experimental import pallas as pl
from jax.experimental.pallas import tpu as pltpu


# ----------------------------- in-kernel helpers ----------------------------

def _conv5_relu(x, stage_ref, w_ref, b_ref, width, cin):
    """Width-wise 5-tap conv (pad=2) + folded-BN bias + ReLU as ONE matmul.

    x:         (width, cin) f32 activation value.
    stage_ref: (>= width, 5*cin) bf16 VMEM scratch.  Column block kw holds the
               activation shifted so that row w contains x[w + kw - 2]
               (out-of-range rows are zero -> 'same' padding of 2).
    w_ref:     (5*cin, cout) bf16 weights, taps concatenated along K in the
               same kw-major order as the staging columns (BN scale folded).
    b_ref:     (1, cout) f32 folded bias.
    """
    xb = x.astype(jnp.bfloat16)            # cast once; scratch stays bf16
    c5 = 5 * cin
    # Zero only the halo rows (top 2 / bottom 2); the tap stores below
    # overwrite every position that should hold real data.  Done every grid
    # step on purpose (no program_id gating -> safe under v7x core split).
    stage_ref[0:2, :] = jnp.zeros((2, c5), jnp.bfloat16)
    stage_ref[width - 2:width, :] = jnp.zeros((2, c5), jnp.bfloat16)
    # Tap kw: row w <- x[w + kw - 2].
    stage_ref[2:width, 0 * cin:1 * cin] = xb[0:width - 2]
    stage_ref[1:width, 1 * cin:2 * cin] = xb[0:width - 1]
    stage_ref[0:width, 2 * cin:3 * cin] = xb
    stage_ref[0:width - 1, 3 * cin:4 * cin] = xb[1:width]
    stage_ref[0:width - 2, 4 * cin:5 * cin] = xb[2:width]
    acc = jnp.dot(stage_ref[0:width, :], w_ref[...],
                  preferred_element_type=jnp.float32)
    return jnp.maximum(acc + b_ref[...], 0.0)


def _maxpool4(y, ybuf_ref, sel_ref, width):
    """Non-overlapping (1, 4) max pool over the rows of y (width, c).

    Sliding-window max via 4 shifted VMEM loads + elementwise max (VPU, no
    MXU), then ONE 0/1 selection matmul with a host-precomputed bf16 mask
    picks every 4th row.  Selecting bf16 values through the MXU with f32
    accumulation is exact.
    """
    c = y.shape[1]
    ybuf_ref[0:width, :] = y
    # Keep the over-read tail finite; those rows only feed discarded outputs
    # (and y >= 0 after ReLU, so zeros never win a selected window anyway).
    ybuf_ref[width:width + 8, :] = jnp.zeros((8, c), jnp.float32)
    t = y
    for j in (1, 2, 3):
        t = jnp.maximum(t, ybuf_ref[j:j + width, :])
    return jnp.dot(sel_ref[...], t.astype(jnp.bfloat16),
                   preferred_element_type=jnp.float32)


# ------------------------------- fused kernel -------------------------------

def _mel_cnn_kernel(x_ref, w1_ref, b1_ref, w2_ref, b2_ref, w3_ref, b3_ref,
                    w4_hbm, b4_ref, sel1_ref, sel2_ref, sel3_ref,
                    f1w_hbm, f1b_ref, f2w_ref, f2b_ref, f3w_ref, f3b_ref,
                    o_ref,
                    st1, st2, st3, st4, yb1, yb2, yb3,
                    w4_vmem, f1w_vmem, dma_sem, *, widths):
    w0, w1, w2, w3 = widths

    # Background prefetch of the tail weights (conv4 + fc1, ~1.5 MB).  They
    # are only needed after conv1-conv3, so this DMA is fully hidden instead
    # of sitting in the exposed pallas prologue.  Re-issued (and re-hidden)
    # on every grid step, so it needs no program_id gating.
    w4_copy = pltpu.make_async_copy(w4_hbm, w4_vmem, dma_sem.at[0])
    f1_copy = pltpu.make_async_copy(f1w_hbm, f1w_vmem, dma_sem.at[1])
    w4_copy.start()
    f1_copy.start()

    # conv1 consumes all 128 mel bins (kernel (128, 5)); transpose the
    # (128, W) tile in-kernel (XLU) instead of a separate HBM transpose op.
    a = _conv5_relu(x_ref[0].T, st1, w1_ref, b1_ref, w0, 128)   # (W0, 64)
    a = _maxpool4(a, yb1, sel1_ref, w0)                         # (W1, 64)
    a = _conv5_relu(a, st2, w2_ref, b2_ref, w1, 64)             # (W1, 128)
    a = _maxpool4(a, yb2, sel2_ref, w1)                         # (W2, 128)
    a = _conv5_relu(a, st3, w3_ref, b3_ref, w2, 128)            # (W2, 256)
    a = _maxpool4(a, yb3, sel3_ref, w2)                         # (W3, 256)

    w4_copy.wait()                                              # weights landed
    a = _conv5_relu(a, st4, w4_vmem, b4_ref, w3, 256)           # (W3, 512)
    a = jnp.max(a, axis=0, keepdims=True)                       # (1, 512) pool (1,6)

    # TODO(synk): nn.Dropout() is identity here (inference mode); train-mode
    # stochastic dropout is not modeled.
    f1_copy.wait()
    z = jnp.dot(a.astype(jnp.bfloat16), f1w_vmem[...],
                preferred_element_type=jnp.float32) + f1b_ref[...]
    z = jnp.maximum(z, 0.0)
    z = jnp.dot(z.astype(jnp.bfloat16), f2w_ref[...],
                preferred_element_type=jnp.float32) + f2b_ref[...]
    z = jnp.maximum(z, 0.0)
    z = jnp.dot(z.astype(jnp.bfloat16), f3w_ref[...],
                preferred_element_type=jnp.float32) + f3b_ref[...]
    o_ref[0] = z                                                # (1, 8)


# ----------------------------- params / wrapper -----------------------------

def init_params(key):
    """Random MelCNNTemporal parameters with eval-mode BatchNorm folded in.

    Conv weights are stored K-concatenated in matmul layout (5*cin, cout) and
    cast to bf16; fc weights are (in, out) bf16; biases stay f32.
    """
    eps = 1e-5
    ks = jax.random.split(key, 14)
    p = {}

    def conv_block(kw, kb, cin, cout, kh, name):
        w = 0.05 * jax.random.normal(kw, (cout, cin, kh, 5), jnp.float32)
        b = 0.05 * jax.random.normal(kb, (cout,), jnp.float32)
        gamma = jnp.ones((cout,), jnp.float32)
        beta = jnp.zeros((cout,), jnp.float32)
        mean = jnp.zeros((cout,), jnp.float32)
        var = jnp.ones((cout,), jnp.float32)
        scale = gamma / jnp.sqrt(var + eps)
        wm = w.reshape(cout, cin * kh, 5).transpose(2, 1, 0)    # (5, C, cout)
        wm = wm * scale[None, None, :]
        p[f"w{name}"] = wm.reshape(5 * cin * kh, cout).astype(jnp.bfloat16)
        p[f"b{name}"] = ((b - mean) * scale + beta).reshape(1, cout)

    conv_block(ks[0], ks[1], 1, 64, 128, "1")    # Conv2d(1, 64, (128, 5), pad (0,2))
    conv_block(ks[2], ks[3], 64, 128, 1, "2")    # Conv2d(64, 128, (1, 5), pad (0,2))
    conv_block(ks[4], ks[5], 128, 256, 1, "3")
    conv_block(ks[6], ks[7], 256, 512, 1, "4")

    def fc(kw, kb, cin, cout, name):
        p[f"{name}_w"] = (0.05 * jax.random.normal(kw, (cin, cout), jnp.float32)
                          ).astype(jnp.bfloat16)
        p[f"{name}_b"] = (0.05 * jax.random.normal(kb, (cout,), jnp.float32)
                          ).reshape(1, cout)

    fc(ks[8], ks[9], 512, 256, "fc1")
    fc(ks[10], ks[11], 256, 32, "fc2")
    fc(ks[12], ks[13], 32, 8, "fc3")
    return p


def _sel_mask(w, k):
    """(w//k, w) 0/1 mask picking every k-th row (host-precomputed, bf16)."""
    wo = w // k
    m = np.zeros((wo, w), np.float32)
    m[np.arange(wo), np.arange(wo) * k] = 1.0
    return jnp.asarray(m, dtype=jnp.bfloat16)


def forward(x, params):
    """x: (B, 128, W) mel-spectrogram, float32 -> (B, 8) logits."""
    B, H, W0 = x.shape
    assert H == 128, "MelCNNTemporal expects 128 mel bins"
    W1, W2, W3 = W0 // 4, W0 // 16, W0 // 64     # floor-mode pool widths
    assert W3 == 6, (
        "view(-1, 512) in the reference model assumes the final temporal "
        "extent is exactly 1 (e.g. W = 384)")

    sel1 = _sel_mask(W0, 4)                      # (W1, W0)
    sel2 = _sel_mask(W1, 4)                      # (W2, W1)
    sel3 = _sel_mask(W2, 4)                      # (W3, W2)

    def full2(shape):
        return pl.BlockSpec(shape, lambda b: (0, 0))

    def pad8(n):
        return ((n + 7) // 8) * 8

    # Advisory cost estimate (conv + pool-select + fc matmuls).
    mkn = [(W0, 5 * 128, 64), (W1, 5 * 64, 128), (W2, 5 * 128, 256),
           (W3, 5 * 256, 512),
           (W1, W0, 64), (W2, W1, 128), (W3, W2, 256),
           (1, 512, 256), (1, 256, 32), (1, 32, 8)]
    flops = 2 * B * sum(m * k * n for m, k, n in mkn)
    bytes_accessed = int(
        x.size * x.dtype.itemsize
        + sum(int(v.size) * v.dtype.itemsize for v in params.values())
        + B * 8 * 4)

    out = pl.pallas_call(
        functools.partial(_mel_cnn_kernel, widths=(W0, W1, W2, W3)),
        out_shape=jax.ShapeDtypeStruct((B, 1, 8), jnp.float32),
        grid=(B,),
        in_specs=[
            pl.BlockSpec((1, 128, W0), lambda b: (b, 0, 0)),   # input sample
            full2((5 * 128, 64)), full2((1, 64)),              # conv1 (+BN)
            full2((5 * 64, 128)), full2((1, 128)),             # conv2 (+BN)
            full2((5 * 128, 256)), full2((1, 256)),            # conv3 (+BN)
            pl.BlockSpec(memory_space=pl.ANY),                 # conv4 weights (manual DMA)
            full2((1, 512)),                                   # conv4 bias
            full2((W1, W0)), full2((W2, W1)), full2((W3, W2)), # pool masks
            pl.BlockSpec(memory_space=pl.ANY),                 # fc1 weights (manual DMA)
            full2((1, 256)),                                   # fc1 bias
            full2((256, 32)), full2((1, 32)),                  # fc2
            full2((32, 8)), full2((1, 8)),                     # fc3
        ],
        out_specs=pl.BlockSpec((1, 1, 8), lambda b: (b, 0, 0)),
        scratch_shapes=[
            pltpu.VMEM((W0, 5 * 128), jnp.bfloat16),           # stage1
            pltpu.VMEM((W1, 5 * 64), jnp.bfloat16),            # stage2
            pltpu.VMEM((W2, 5 * 128), jnp.bfloat16),           # stage3
            pltpu.VMEM((pad8(W3), 5 * 256), jnp.bfloat16),     # stage4
            pltpu.VMEM((W0 + 8, 64), jnp.float32),             # pool buf 1
            pltpu.VMEM((W1 + 8, 128), jnp.float32),            # pool buf 2
            pltpu.VMEM((W2 + 8, 256), jnp.float32),            # pool buf 3
            pltpu.VMEM((5 * 256, 512), jnp.bfloat16),          # conv4 w (prefetched)
            pltpu.VMEM((512, 256), jnp.bfloat16),              # fc1 w (prefetched)
            pltpu.SemaphoreType.DMA((2,)),
        ],
        compiler_params=pltpu.CompilerParams(
            dimension_semantics=("parallel",)),
        cost_estimate=pl.CostEstimate(
            flops=flops, transcendentals=0, bytes_accessed=bytes_accessed),
    )(x, params["w1"], params["b1"], params["w2"], params["b2"],
      params["w3"], params["b3"], params["w4"], params["b4"],
      sel1, sel2, sel3,
      params["fc1_w"], params["fc1_b"], params["fc2_w"], params["fc2_b"],
      params["fc3_w"], params["fc3_b"])
    return out.reshape(B, 8)


if __name__ == "__main__":
    key = jax.random.PRNGKey(0)
    kx, kp = jax.random.split(key)
    # Smallest width compatible with view(-1, 512): 4*4*4*6 = 384 time frames.
    B, H, W = 2, 128, 384
    x = jax.random.normal(kx, (B, H, W), jnp.float32)
    params = init_params(kp)

    out = jax.jit(forward)(x, params)
    out = jax.block_until_ready(out)
    assert out.shape == (B, 8), out.shape
    assert out.dtype == jnp.float32
    assert bool(jnp.all(jnp.isfinite(out)))
    print("KERNEL_OK")
</pallas_src>

<mosaic_0001>
module attributes {stable_mosaic.version = 11 : i64} {
  func.func @_mel_cnn_kernel(%arg0: i32, %arg1: memref<1x128x384xf32, #tpu.memory_space<vmem>>, %arg2: memref<640x64xbf16, #tpu.memory_space<vmem>>, %arg3: memref<1x64xf32, #tpu.memory_space<vmem>>, %arg4: memref<320x128xbf16, #tpu.memory_space<vmem>>, %arg5: memref<1x128xf32, #tpu.memory_space<vmem>>, %arg6: memref<640x256xbf16, #tpu.memory_space<vmem>>, %arg7: memref<1x256xf32, #tpu.memory_space<vmem>>, %arg8: memref<1280x512xbf16, #tpu.memory_space<any>>, %arg9: memref<1x512xf32, #tpu.memory_space<vmem>>, %arg10: memref<96x384xbf16, #tpu.memory_space<vmem>>, %arg11: memref<24x96xbf16, #tpu.memory_space<vmem>>, %arg12: memref<6x24xbf16, #tpu.memory_space<vmem>>, %arg13: memref<512x256xbf16, #tpu.memory_space<any>>, %arg14: memref<1x256xf32, #tpu.memory_space<vmem>>, %arg15: memref<256x32xbf16, #tpu.memory_space<vmem>>, %arg16: memref<1x32xf32, #tpu.memory_space<vmem>>, %arg17: memref<32x8xbf16, #tpu.memory_space<vmem>>, %arg18: memref<1x8xf32, #tpu.memory_space<vmem>>, %arg19: memref<1x1x8xf32, #tpu.memory_space<vmem>>, %arg20: memref<384x640xbf16, #tpu.memory_space<vmem>>, %arg21: memref<96x320xbf16, #tpu.memory_space<vmem>>, %arg22: memref<24x640xbf16, #tpu.memory_space<vmem>>, %arg23: memref<8x1280xbf16, #tpu.memory_space<vmem>>, %arg24: memref<392x64xf32, #tpu.memory_space<vmem>>, %arg25: memref<104x128xf32, #tpu.memory_space<vmem>>, %arg26: memref<32x256xf32, #tpu.memory_space<vmem>>, %arg27: memref<1280x512xbf16, #tpu.memory_space<vmem>>, %arg28: memref<512x256xbf16, #tpu.memory_space<vmem>>, %arg29: memref<2x!tpu.dma_semaphore, #tpu.memory_space<semaphore_mem>>) attributes {dimension_semantics = [#tpu.dimension_semantics<parallel>], iteration_bounds = array<i64: 2>, scalar_prefetch = 0 : i64, scratch_operands = 10 : i64, tpu.core_type = #tpu.core_type<tc>, window_params = [{transform_indices = @transform_0, window_bounds = array<i64: 1, 128, 384>}, {pipeline_mode = #tpu.pipeline_mode<synchronous>, transform_indices = @transform_1, window_bounds = array<i64: 640, 64>}, {pipeline_mode = #tpu.pipeline_mode<synchronous>, transform_indices = @transform_2, window_bounds = array<i64: 1, 64>}, {pipeline_mode = #tpu.pipeline_mode<synchronous>, transform_indices = @transform_3, window_bounds = array<i64: 320, 128>}, {pipeline_mode = #tpu.pipeline_mode<synchronous>, transform_indices = @transform_4, window_bounds = array<i64: 1, 128>}, {pipeline_mode = #tpu.pipeline_mode<synchronous>, transform_indices = @transform_5, window_bounds = array<i64: 640, 256>}, {pipeline_mode = #tpu.pipeline_mode<synchronous>, transform_indices = @transform_6, window_bounds = array<i64: 1, 256>}, {}, {pipeline_mode = #tpu.pipeline_mode<synchronous>, transform_indices = @transform_8, window_bounds = array<i64: 1, 512>}, {pipeline_mode = #tpu.pipeline_mode<synchronous>, transform_indices = @transform_9, window_bounds = array<i64: 96, 384>}, {pipeline_mode = #tpu.pipeline_mode<synchronous>, transform_indices = @transform_10, window_bounds = array<i64: 24, 96>}, {pipeline_mode = #tpu.pipeline_mode<synchronous>, transform_indices = @transform_11, window_bounds = array<i64: 6, 24>}, {}, {pipeline_mode = #tpu.pipeline_mode<synchronous>, transform_indices = @transform_13, window_bounds = array<i64: 1, 256>}, {pipeline_mode = #tpu.pipeline_mode<synchronous>, transform_indices = @transform_14, window_bounds = array<i64: 256, 32>}, {pipeline_mode = #tpu.pipeline_mode<synchronous>, transform_indices = @transform_15, window_bounds = array<i64: 1, 32>}, {pipeline_mode = #tpu.pipeline_mode<synchronous>, transform_indices = @transform_16, window_bounds = array<i64: 32, 8>}, {pipeline_mode = #tpu.pipeline_mode<synchronous>, transform_indices = @transform_17, window_bounds = array<i64: 1, 8>}, {transform_indices = @transform_18, window_bounds = array<i64: 1, 1, 8>}]} {
    %c0_i32 = arith.constant 0 : i32
    %0 = tpu.memref_slice %arg29[%c0_i32] : memref<2x!tpu.dma_semaphore, #tpu.memory_space<semaphore_mem>> -> memref<1x!tpu.dma_semaphore, #tpu.memory_space<semaphore_mem>>
    %1 = tpu.memref_squeeze %0 : memref<1x!tpu.dma_semaphore, #tpu.memory_space<semaphore_mem>> -> memref<!tpu.dma_semaphore, #tpu.memory_space<semaphore_mem>>
    tpu.enqueue_dma source(%arg8 : memref<1280x512xbf16, #tpu.memory_space<any>>) target(%arg27 : memref<1280x512xbf16, #tpu.memory_space<vmem>>) target_semaphore(%1 : memref<!tpu.dma_semaphore, #tpu.memory_space<semaphore_mem>>)
    %c1_i32 = arith.constant 1 : i32
    %2 = tpu.memref_slice %arg29[%c1_i32] : memref<2x!tpu.dma_semaphore, #tpu.memory_space<semaphore_mem>> -> memref<1x!tpu.dma_semaphore, #tpu.memory_space<semaphore_mem>>
    %3 = tpu.memref_squeeze %2 : memref<1x!tpu.dma_semaphore, #tpu.memory_space<semaphore_mem>> -> memref<!tpu.dma_semaphore, #tpu.memory_space<semaphore_mem>>
    tpu.enqueue_dma source(%arg13 : memref<512x256xbf16, #tpu.memory_space<any>>) target(%arg28 : memref<512x256xbf16, #tpu.memory_space<vmem>>) target_semaphore(%3 : memref<!tpu.dma_semaphore, #tpu.memory_space<semaphore_mem>>)
    %c0 = arith.constant 0 : index
    %c0_0 = arith.constant 0 : index
    %c0_1 = arith.constant 0 : index
    %4 = vector.load %arg1[%c0, %c0_0, %c0_1] : memref<1x128x384xf32, #tpu.memory_space<vmem>>, vector<1x128x384xf32>
    %5 = vector.shape_cast %4 : vector<1x128x384xf32> to vector<128x384xf32>
    %6 = tpu.transpose %5, [1, 0] : vector<128x384xf32> -> vector<384x128xf32>
    %7 = arith.truncf %6 : vector<384x128xf32> to vector<384x128xbf16>
    %cst = arith.constant 0.000000e+00 : bf16
    %8 = vector.broadcast %cst : bf16 to vector<2x640xbf16>
    %c0_2 = arith.constant 0 : index
    %c0_3 = arith.constant 0 : index
    %9 = vector.load %arg20[%c0_2, %c0_3] : memref<384x640xbf16, #tpu.memory_space<vmem>>, vector<2x640xbf16>
    tpu.vector_store %arg20[%c0_2, %c0_3], %8 {strides = array<i32>} : memref<384x640xbf16, #tpu.memory_space<vmem>>, vector<2x640xbf16>,
    %cst_4 = arith.constant 0.000000e+00 : bf16
    %10 = vector.broadcast %cst_4 : bf16 to vector<2x640xbf16>
    %c382 = arith.constant 382 : index
    %c0_5 = arith.constant 0 : index
    %11 = vector.load %arg20[%c382, %c0_5] : memref<384x640xbf16, #tpu.memory_space<vmem>>, vector<2x640xbf16>
    tpu.vector_store %arg20[%c382, %c0_5], %10 {strides = array<i32>} : memref<384x640xbf16, #tpu.memory_space<vmem>>, vector<2x640xbf16>,
    %12 = vector.extract_strided_slice %7 {offsets = [0, 0], sizes = [382, 128], strides = [1, 1]} : vector<384x128xbf16> to vector<382x128xbf16>
    %c2 = arith.constant 2 : index
    %c0_6 = arith.constant 0 : index
    %13 = vector.load %arg20[%c2, %c0_6] : memref<384x640xbf16, #tpu.memory_space<vmem>>, vector<382x128xbf16>
    tpu.vector_store %arg20[%c2, %c0_6], %12 {strides = array<i32>} : memref<384x640xbf16, #tpu.memory_space<vmem>>, vector<382x128xbf16>,
    %14 = vector.extract_strided_slice %7 {offsets = [0, 0], sizes = [383, 128], strides = [1, 1]} : vector<384x128xbf16> to vector<383x128xbf16>
    %c1 = arith.constant 1 : index
    %c128 = arith.constant 128 : index
    %15 = vector.load %arg20[%c1, %c128] : memref<384x640xbf16, #tpu.memory_space<vmem>>, vector<383x128xbf16>
    tpu.vector_store %arg20[%c1, %c128], %14 {strides = array<i32>} : memref<384x640xbf16, #tpu.memory_space<vmem>>, vector<383x128xbf16>,
    %c0_7 = arith.constant 0 : index
    %c256 = arith.constant 256 : index
    %16 = vector.load %arg20[%c0_7, %c256] : memref<384x640xbf16, #tpu.memory_space<vmem>>, vector<384x128xbf16>
    tpu.vector_store %arg20[%c0_7, %c256], %7 {strides = array<i32>} : memref<384x640xbf16, #tpu.memory_space<vmem>>, vector<384x128xbf16>,
    %17 = vector.extract_strided_slice %7 {offsets = [1, 0], sizes = [383, 128], strides = [1, 1]} : vector<384x128xbf16> to vector<383x128xbf16>
    %c0_8 = arith.constant 0 : index
    %c384 = arith.constant 384 : index
    %18 = vector.load %arg20[%c0_8, %c384] : memref<384x640xbf16, #tpu.memory_space<vmem>>, vector<383x128xbf16>
    tpu.vector_store %arg20[%c0_8, %c384], %17 {strides = array<i32>} : memref<384x640xbf16, #tpu.memory_space<vmem>>, vector<383x128xbf16>,
    %19 = vector.extract_strided_slice %7 {offsets = [2, 0], sizes = [382, 128], strides = [1, 1]} : vector<384x128xbf16> to vector<382x128xbf16>
    %c0_9 = arith.constant 0 : index
    %c512 = arith.constant 512 : index
    %20 = vector.load %arg20[%c0_9, %c512] : memref<384x640xbf16, #tpu.memory_space<vmem>>, vector<382x128xbf16>
    tpu.vector_store %arg20[%c0_9, %c512], %19 {strides = array<i32>} : memref<384x640xbf16, #tpu.memory_space<vmem>>, vector<382x128xbf16>,
    %c0_10 = arith.constant 0 : index
    %c0_11 = arith.constant 0 : index
    %21 = vector.load %arg20[%c0_10, %c0_11] : memref<384x640xbf16, #tpu.memory_space<vmem>>, vector<384x640xbf16>
    %c0_12 = arith.constant 0 : index
    %c0_13 = arith.constant 0 : index
    %22 = vector.load %arg2[%c0_12, %c0_13] : memref<640x64xbf16, #tpu.memory_space<vmem>>, vector<640x64xbf16>
    %cst_14 = arith.constant dense<0.000000e+00> : vector<384x64xf32>
    %23 = tpu.matmul %21, %22, %cst_14 {dimension_numbers = #tpu.dot_dimension_numbers<[1], [0], [0], [1], [0, 0, 1, 1], [], []>} : vector<384x640xbf16>, vector<640x64xbf16>, vector<384x64xf32> -> vector<384x64xf32>
    %c0_15 = arith.constant 0 : index
    %c0_16 = arith.constant 0 : index
    %24 = vector.load %arg3[%c0_15, %c0_16] : memref<1x64xf32, #tpu.memory_space<vmem>>, vector<1x64xf32>
    %25 = vector.broadcast %24 : vector<1x64xf32> to vector<384x64xf32>
    %26 = arith.addf %23, %25 : vector<384x64xf32>
    %cst_17 = arith.constant 0.000000e+00 : f32
    %27 = vector.broadcast %cst_17 : f32 to vector<384x64xf32>
    %28 = arith.maximumf %26, %27 : vector<384x64xf32>
    %c0_18 = arith.constant 0 : index
    %c0_19 = arith.constant 0 : index
    %29 = vector.load %arg24[%c0_18, %c0_19] : memref<392x64xf32, #tpu.memory_space<vmem>>, vector<384x64xf32>
    tpu.vector_store %arg24[%c0_18, %c0_19], %28 {strides = array<i32>} : memref<392x64xf32, #tpu.memory_space<vmem>>, vector<384x64xf32>,
    %cst_20 = arith.constant 0.000000e+00 : f32
    %30 = vector.broadcast %cst_20 : f32 to vector<8x64xf32>
    %c384_21 = arith.constant 384 : index
    %c0_22 = arith.constant 0 : index
    %31 = vector.load %arg24[%c384_21, %c0_22] : memref<392x64xf32, #tpu.memory_space<vmem>>, vector<8x64xf32>
    tpu.vector_store %arg24[%c384_21, %c0_22], %30 {strides = array<i32>} : memref<392x64xf32, #tpu.memory_space<vmem>>, vector<8x64xf32>,
    %c1_23 = arith.constant 1 : index
    %c0_24 = arith.constant 0 : index
    %32 = vector.load %arg24[%c1_23, %c0_24] : memref<392x64xf32, #tpu.memory_space<vmem>>, vector<384x64xf32>
    %33 = arith.maximumf %28, %32 : vector<384x64xf32>
    %c2_25 = arith.constant 2 : index
    %c0_26 = arith.constant 0 : index
    %34 = vector.load %arg24[%c2_25, %c0_26] : memref<392x64xf32, #tpu.memory_space<vmem>>, vector<384x64xf32>
    %35 = arith.maximumf %33, %34 : vector<384x64xf32>
    %c3 = arith.constant 3 : index
    %c0_27 = arith.constant 0 : index
    %36 = vector.load %arg24[%c3, %c0_27] : memref<392x64xf32, #tpu.memory_space<vmem>>, vector<384x64xf32>
    %37 = arith.maximumf %35, %36 : vector<384x64xf32>
    %c0_28 = arith.constant 0 : index
    %c0_29 = arith.constant 0 : index
    %38 = vector.load %arg10[%c0_28, %c0_29] : memref<96x384xbf16, #tpu.memory_space<vmem>>, vector<96x384xbf16>
    %39 = arith.truncf %37 : vector<384x64xf32> to vector<384x64xbf16>
    %cst_30 = arith.constant dense<0.000000e+00> : vector<96x64xf32>
    %40 = tpu.matmul %38, %39, %cst_30 {dimension_numbers = #tpu.dot_dimension_numbers<[1], [0], [0], [1], [0, 0, 1, 1], [], []>} : vector<96x384xbf16>, vector<384x64xbf16>, vector<96x64xf32> -> vector<96x64xf32>
    %41 = arith.truncf %40 : vector<96x64xf32> to vector<96x64xbf16>
    %cst_31 = arith.constant 0.000000e+00 : bf16
    %42 = vector.broadcast %cst_31 : bf16 to vector<2x320xbf16>
    %c0_32 = arith.constant 0 : index
    %c0_33 = arith.constant 0 : index
    %43 = vector.load %arg21[%c0_32, %c0_33] : memref<96x320xbf16, #tpu.memory_space<vmem>>, vector<2x320xbf16>
    tpu.vector_store %arg21[%c0_32, %c0_33], %42 {strides = array<i32>} : memref<96x320xbf16, #tpu.memory_space<vmem>>, vector<2x320xbf16>,
    %cst_34 = arith.constant 0.000000e+00 : bf16
    %44 = vector.broadcast %cst_34 : bf16 to vector<2x320xbf16>
    %c94 = arith.constant 94 : index
    %c0_35 = arith.constant 0 : index
    %45 = vector.load %arg21[%c94, %c0_35] : memref<96x320xbf16, #tpu.memory_space<vmem>>, vector<2x320xbf16>
    tpu.vector_store %arg21[%c94, %c0_35], %44 {strides = array<i32>} : memref<96x320xbf16, #tpu.memory_space<vmem>>, vector<2x320xbf16>,
    %46 = vector.extract_strided_slice %41 {offsets = [0, 0], sizes = [94, 64], strides = [1, 1]} : vector<96x64xbf16> to vector<94x64xbf16>
    %c2_36 = arith.constant 2 : index
    %c0_37 = arith.constant 0 : index
    %47 = vector.load %arg21[%c2_36, %c0_37] : memref<96x320xbf16, #tpu.memory_space<vmem>>, vector<94x64xbf16>
    tpu.vector_store %arg21[%c2_36, %c0_37], %46 {strides = array<i32>} : memref<96x320xbf16, #tpu.memory_space<vmem>>, vector<94x64xbf16>,
    %48 = vector.extract_strided_slice %41 {offsets = [0, 0], sizes = [95, 64], strides = [1, 1]} : vector<96x64xbf16> to vector<95x64xbf16>
    %c1_38 = arith.constant 1 : index
    %c64 = arith.constant 64 : index
    %49 = vector.load %arg21[%c1_38, %c64] : memref<96x320xbf16, #tpu.memory_space<vmem>>, vector<95x64xbf16>
    tpu.vector_store %arg21[%c1_38, %c64], %48 {strides = array<i32>} : memref<96x320xbf16, #tpu.memory_space<vmem>>, vector<95x64xbf16>,
    %c0_39 = arith.constant 0 : index
    %c128_40 = arith.constant 128 : index
    %50 = vector.load %arg21[%c0_39, %c128_40] : memref<96x320xbf16, #tpu.memory_space<vmem>>, vector<96x64xbf16>
    tpu.vector_store %arg21[%c0_39, %c128_40], %41 {strides = array<i32>} : memref<96x320xbf16, #tpu.memory_space<vmem>>, vector<96x64xbf16>,
    %51 = vector.extract_strided_slice %41 {offsets = [1, 0], sizes = [95, 64], strides = [1, 1]} : vector<96x64xbf16> to vector<95x64xbf16>
    %c0_41 = arith.constant 0 : index
    %c192 = arith.constant 192 : index
    %52 = vector.load %arg21[%c0_41, %c192] : memref<96x320xbf16, #tpu.memory_space<vmem>>, vector<95x64xbf16>
    tpu.vector_store %arg21[%c0_41, %c192], %51 {strides = array<i32>} : memref<96x320xbf16, #tpu.memory_space<vmem>>, vector<95x64xbf16>,
    %53 = vector.extract_strided_slice %41 {offsets = [2, 0], sizes = [94, 64], strides = [1, 1]} : vector<96x64xbf16> to vector<94x64xbf16>
    %c0_42 = arith.constant 0 : index
    %c256_43 = arith.constant 256 : index
    %54 = vector.load %arg21[%c0_42, %c256_43] : memref<96x320xbf16, #tpu.memory_space<vmem>>, vector<94x64xbf16>
    tpu.vector_store %arg21[%c0_42, %c256_43], %53 {strides = array<i32>} : memref<96x320xbf16, #tpu.memory_space<vmem>>, vector<94x64xbf16>,
    %c0_44 = arith.constant 0 : index
    %c0_45 = arith.constant 0 : index
    %55 = vector.load %arg21[%c0_44, %c0_45] : memref<96x320xbf16, #tpu.memory_space<vmem>>, vector<96x320xbf16>
    %c0_46 = arith.constant 0 : index
    %c0_47 = arith.constant 0 : index
    %56 = vector.load %arg4[%c0_46, %c0_47] : memref<320x128xbf16, #tpu.memory_space<vmem>>, vector<320x128xbf16>
    %cst_48 = arith.constant dense<0.000000e+00> : vector<96x128xf32>
    %57 = tpu.matmul %55, %56, %cst_48 {dimension_numbers = #tpu.dot_dimension_numbers<[1], [0], [0], [1], [0, 0, 1, 1], [], []>} : vector<96x320xbf16>, vector<320x128xbf16>, vector<96x128xf32> -> vector<96x128xf32>
    %c0_49 = arith.constant 0 : index
    %c0_50 = arith.constant 0 : index
    %58 = vector.load %arg5[%c0_49, %c0_50] : memref<1x128xf32, #tpu.memory_space<vmem>>, vector<1x128xf32>
    %59 = vector.broadcast %58 : vector<1x128xf32> to vector<96x128xf32>
    %60 = arith.addf %57, %59 : vector<96x128xf32>
    %cst_51 = arith.constant 0.000000e+00 : f32
    %61 = vector.broadcast %cst_51 : f32 to vector<96x128xf32>
    %62 = arith.maximumf %60, %61 : vector<96x128xf32>
    %c0_52 = arith.constant 0 : index
    %c0_53 = arith.constant 0 : index
    %63 = vector.load %arg25[%c0_52, %c0_53] : memref<104x128xf32, #tpu.memory_space<vmem>>, vector<96x128xf32>
    tpu.vector_store %arg25[%c0_52, %c0_53], %62 {strides = array<i32>} : memref<104x128xf32, #tpu.memory_space<vmem>>, vector<96x128xf32>,
    %cst_54 = arith.constant 0.000000e+00 : f32
    %64 = vector.broadcast %cst_54 : f32 to vector<8x128xf32>
    %c96 = arith.constant 96 : index
    %c0_55 = arith.constant 0 : index
    %65 = vector.load %arg25[%c96, %c0_55] : memref<104x128xf32, #tpu.memory_space<vmem>>, vector<8x128xf32>
    tpu.vector_store %arg25[%c96, %c0_55], %64 {strides = array<i32>} : memref<104x128xf32, #tpu.memory_space<vmem>>, vector<8x128xf32>,
    %c1_56 = arith.constant 1 : index
    %c0_57 = arith.constant 0 : index
    %66 = vector.load %arg25[%c1_56, %c0_57] : memref<104x128xf32, #tpu.memory_space<vmem>>, vector<96x128xf32>
    %67 = arith.maximumf %62, %66 : vector<96x128xf32>
    %c2_58 = arith.constant 2 : index
    %c0_59 = arith.constant 0 : index
    %68 = vector.load %arg25[%c2_58, %c0_59] : memref<104x128xf32, #tpu.memory_space<vmem>>, vector<96x128xf32>
    %69 = arith.maximumf %67, %68 : vector<96x128xf32>
    %c3_60 = arith.constant 3 : index
    %c0_61 = arith.constant 0 : index
    %70 = vector.load %arg25[%c3_60, %c0_61] : memref<104x128xf32, #tpu.memory_space<vmem>>, vector<96x128xf32>
    %71 = arith.maximumf %69, %70 : vector<96x128xf32>
    %c0_62 = arith.constant 0 : index
    %c0_63 = arith.constant 0 : index
    %72 = vector.load %arg11[%c0_62, %c0_63] : memref<24x96xbf16, #tpu.memory_space<vmem>>, vector<24x96xbf16>
    %73 = arith.truncf %71 : vector<96x128xf32> to vector<96x128xbf16>
    %cst_64 = arith.constant dense<0.000000e+00> : vector<24x128xf32>
    %74 = tpu.matmul %72, %73, %cst_64 {dimension_numbers = #tpu.dot_dimension_numbers<[1], [0], [0], [1], [0, 0, 1, 1], [], []>} : vector<24x96xbf16>, vector<96x128xbf16>, vector<24x128xf32> -> vector<24x128xf32>
    %75 = arith.truncf %74 : vector<24x128xf32> to vector<24x128xbf16>
    %cst_65 = arith.constant 0.000000e+00 : bf16
    %76 = vector.broadcast %cst_65 : bf16 to vector<2x640xbf16>
    %c0_66 = arith.constant 0 : index
    %c0_67 = arith.constant 0 : index
    %77 = vector.load %arg22[%c0_66, %c0_67] : memref<24x640xbf16, #tpu.memory_space<vmem>>, vector<2x640xbf16>
    tpu.vector_store %arg22[%c0_66, %c0_67], %76 {strides = array<i32>} : memref<24x640xbf16, #tpu.memory_space<vmem>>, vector<2x640xbf16>,
    %cst_68 = arith.constant 0.000000e+00 : bf16
    %78 = vector.broadcast %cst_68 : bf16 to vector<2x640xbf16>
    %c22 = arith.constant 22 : index
    %c0_69 = arith.constant 0 : index
    %79 = vector.load %arg22[%c22, %c0_69] : memref<24x640xbf16, #tpu.memory_space<vmem>>, vector<2x640xbf16>
    tpu.vector_store %arg22[%c22, %c0_69], %78 {strides = array<i32>} : memref<24x640xbf16, #tpu.memory_space<vmem>>, vector<2x640xbf16>,
    %80 = vector.extract_strided_slice %75 {offsets = [0, 0], sizes = [22, 128], strides = [1, 1]} : vector<24x128xbf16> to vector<22x128xbf16>
    %c2_70 = arith.constant 2 : index
    %c0_71 = arith.constant 0 : index
    %81 = vector.load %arg22[%c2_70, %c0_71] : memref<24x640xbf16, #tpu.memory_space<vmem>>, vector<22x128xbf16>
    tpu.vector_store %arg22[%c2_70, %c0_71], %80 {strides = array<i32>} : memref<24x640xbf16, #tpu.memory_space<vmem>>, vector<22x128xbf16>,
    %82 = vector.extract_strided_slice %75 {offsets = [0, 0], sizes = [23, 128], strides = [1, 1]} : vector<24x128xbf16> to vector<23x128xbf16>
    %c1_72 = arith.constant 1 : index
    %c128_73 = arith.constant 128 : index
    %83 = vector.load %arg22[%c1_72, %c128_73] : memref<24x640xbf16, #tpu.memory_space<vmem>>, vector<23x128xbf16>
    tpu.vector_store %arg22[%c1_72, %c128_73], %82 {strides = array<i32>} : memref<24x640xbf16, #tpu.memory_space<vmem>>, vector<23x128xbf16>,
    %c0_74 = arith.constant 0 : index
    %c256_75 = arith.constant 256 : index
    %84 = vector.load %arg22[%c0_74, %c256_75] : memref<24x640xbf16, #tpu.memory_space<vmem>>, vector<24x128xbf16>
    tpu.vector_store %arg22[%c0_74, %c256_75], %75 {strides = array<i32>} : memref<24x640xbf16, #tpu.memory_space<vmem>>, vector<24x128xbf16>,
    %85 = vector.extract_strided_slice %75 {offsets = [1, 0], sizes = [23, 128], strides = [1, 1]} : vector<24x128xbf16> to vector<23x128xbf16>
    %c0_76 = arith.constant 0 : index
    %c384_77 = arith.constant 384 : index
    %86 = vector.load %arg22[%c0_76, %c384_77] : memref<24x640xbf16, #tpu.memory_space<vmem>>, vector<23x128xbf16>
    tpu.vector_store %arg22[%c0_76, %c384_77], %85 {strides = array<i32>} : memref<24x640xbf16, #tpu.memory_space<vmem>>, vector<23x128xbf16>,
    %87 = vector.extract_strided_slice %75 {offsets = [2, 0], sizes = [22, 128], strides = [1, 1]} : vector<24x128xbf16> to vector<22x128xbf16>
    %c0_78 = arith.constant 0 : index
    %c512_79 = arith.constant 512 : index
    %88 = vector.load %arg22[%c0_78, %c512_79] : memref<24x640xbf16, #tpu.memory_space<vmem>>, vector<22x128xbf16>
    tpu.vector_store %arg22[%c0_78, %c512_79], %87 {strides = array<i32>} : memref<24x640xbf16, #tpu.memory_space<vmem>>, vector<22x128xbf16>,
    %c0_80 = arith.constant 0 : index
    %c0_81 = arith.constant 0 : index
    %89 = vector.load %arg22[%c0_80, %c0_81] : memref<24x640xbf16, #tpu.memory_space<vmem>>, vector<24x640xbf16>
    %c0_82 = arith.constant 0 : index
    %c0_83 = arith.constant 0 : index
    %90 = vector.load %arg6[%c0_82, %c0_83] : memref<640x256xbf16, #tpu.memory_space<vmem>>, vector<640x256xbf16>
    %cst_84 = arith.constant dense<0.000000e+00> : vector<24x256xf32>
    %91 = tpu.matmul %89, %90, %cst_84 {dimension_numbers = #tpu.dot_dimension_numbers<[1], [0], [0], [1], [0, 0, 1, 1], [], []>} : vector<24x640xbf16>, vector<640x256xbf16>, vector<24x256xf32> -> vector<24x256xf32>
    %c0_85 = arith.constant 0 : index
    %c0_86 = arith.constant 0 : index
    %92 = vector.load %arg7[%c0_85, %c0_86] : memref<1x256xf32, #tpu.memory_space<vmem>>, vector<1x256xf32>
    %93 = vector.broadcast %92 : vector<1x256xf32> to vector<24x256xf32>
    %94 = arith.addf %91, %93 : vector<24x256xf32>
    %cst_87 = arith.constant 0.000000e+00 : f32
    %95 = vector.broadcast %cst_87 : f32 to vector<24x256xf32>
    %96 = arith.maximumf %94, %95 : vector<24x256xf32>
    %c0_88 = arith.constant 0 : index
    %c0_89 = arith.constant 0 : index
    %97 = vector.load %arg26[%c0_88, %c0_89] : memref<32x256xf32, #tpu.memory_space<vmem>>, vector<24x256xf32>
    tpu.vector_store %arg26[%c0_88, %c0_89], %96 {strides = array<i32>} : memref<32x256xf32, #tpu.memory_space<vmem>>, vector<24x256xf32>,
    %cst_90 = arith.constant 0.000000e+00 : f32
    %98 = vector.broadcast %cst_90 : f32 to vector<8x256xf32>
    %c24 = arith.constant 24 : index
    %c0_91 = arith.constant 0 : index
    %99 = vector.load %arg26[%c24, %c0_91] : memref<32x256xf32, #tpu.memory_space<vmem>>, vector<8x256xf32>
    tpu.vector_store %arg26[%c24, %c0_91], %98 {strides = array<i32>} : memref<32x256xf32, #tpu.memory_space<vmem>>, vector<8x256xf32>,
    %c1_92 = arith.constant 1 : index
    %c0_93 = arith.constant 0 : index
    %100 = vector.load %arg26[%c1_92, %c0_93] : memref<32x256xf32, #tpu.memory_space<vmem>>, vector<24x256xf32>
    %101 = arith.maximumf %96, %100 : vector<24x256xf32>
    %c2_94 = arith.constant 2 : index
    %c0_95 = arith.constant 0 : index
    %102 = vector.load %arg26[%c2_94, %c0_95] : memref<32x256xf32, #tpu.memory_space<vmem>>, vector<24x256xf32>
    %103 = arith.maximumf %101, %102 : vector<24x256xf32>
    %c3_96 = arith.constant 3 : index
    %c0_97 = arith.constant 0 : index
    %104 = vector.load %arg26[%c3_96, %c0_97] : memref<32x256xf32, #tpu.memory_space<vmem>>, vector<24x256xf32>
    %105 = arith.maximumf %103, %104 : vector<24x256xf32>
    %c0_98 = arith.constant 0 : index
    %c0_99 = arith.constant 0 : index
    %106 = vector.load %arg12[%c0_98, %c0_99] : memref<6x24xbf16, #tpu.memory_space<vmem>>, vector<6x24xbf16>
    %107 = arith.truncf %105 : vector<24x256xf32> to vector<24x256xbf16>
    %cst_100 = arith.constant dense<0.000000e+00> : vector<6x256xf32>
    %108 = tpu.matmul %106, %107, %cst_100 {dimension_numbers = #tpu.dot_dimension_numbers<[1], [0], [0], [1], [0, 0, 1, 1], [], []>} : vector<6x24xbf16>, vector<24x256xbf16>, vector<6x256xf32> -> vector<6x256xf32>
    %c0_i32_101 = arith.constant 0 : i32
    %109 = tpu.memref_slice %arg29[%c0_i32_101] : memref<2x!tpu.dma_semaphore, #tpu.memory_space<semaphore_mem>> -> memref<1x!tpu.dma_semaphore, #tpu.memory_space<semaphore_mem>>
    %110 = tpu.memref_squeeze %109 : memref<1x!tpu.dma_semaphore, #tpu.memory_space<semaphore_mem>> -> memref<!tpu.dma_semaphore, #tpu.memory_space<semaphore_mem>>
    tpu.wait_dma2 semaphore(%110 : memref<!tpu.dma_semaphore, #tpu.memory_space<semaphore_mem>>) src(%arg8 : memref<1280x512xbf16, #tpu.memory_space<any>>) dst(%arg27 : memref<1280x512xbf16, #tpu.memory_space<vmem>>)
    %111 = arith.truncf %108 : vector<6x256xf32> to vector<6x256xbf16>
    %cst_102 = arith.constant 0.000000e+00 : bf16
    %112 = vector.broadcast %cst_102 : bf16 to vector<2x1280xbf16>
    %c0_103 = arith.constant 0 : index
    %c0_104 = arith.constant 0 : index
    %113 = vector.load %arg23[%c0_103, %c0_104] : memref<8x1280xbf16, #tpu.memory_space<vmem>>, vector<2x1280xbf16>
    tpu.vector_store %arg23[%c0_103, %c0_104], %112 {strides = array<i32>} : memref<8x1280xbf16, #tpu.memory_space<vmem>>, vector<2x1280xbf16>,
    %cst_105 = arith.constant 0.000000e+00 : bf16
    %114 = vector.broadcast %cst_105 : bf16 to vector<2x1280xbf16>
    %c4 = arith.constant 4 : index
    %c0_106 = arith.constant 0 : index
    %115 = vector.load %arg23[%c4, %c0_106] : memref<8x1280xbf16, #tpu.memory_space<vmem>>, vector<2x1280xbf16>
    tpu.vector_store %arg23[%c4, %c0_106], %114 {strides = array<i32>} : memref<8x1280xbf16, #tpu.memory_space<vmem>>, vector<2x1280xbf16>,
    %116 = vector.extract_strided_slice %111 {offsets = [0, 0], sizes = [4, 256], strides = [1, 1]} : vector<6x256xbf16> to vector<4x256xbf16>
    %c2_107 = arith.constant 2 : index
    %c0_108 = arith.constant 0 : index
    %117 = vector.load %arg23[%c2_107, %c0_108] : memref<8x1280xbf16, #tpu.memory_space<vmem>>, vector<4x256xbf16>
    tpu.vector_store %arg23[%c2_107, %c0_108], %116 {strides = array<i32>} : memref<8x1280xbf16, #tpu.memory_space<vmem>>, vector<4x256xbf16>,
    %118 = vector.extract_strided_slice %111 {offsets = [0, 0], sizes = [5, 256], strides = [1, 1]} : vector<6x256xbf16> to vector<5x256xbf16>
    %c1_109 = arith.constant 1 : index
    %c256_110 = arith.constant 256 : index
    %119 = vector.load %arg23[%c1_109, %c256_110] : memref<8x1280xbf16, #tpu.memory_space<vmem>>, vector<5x256xbf16>
    tpu.vector_store %arg23[%c1_109, %c256_110], %118 {strides = array<i32>} : memref<8x1280xbf16, #tpu.memory_space<vmem>>, vector<5x256xbf16>,
    %c0_111 = arith.constant 0 : index
    %c512_112 = arith.constant 512 : index
    %120 = vector.load %arg23[%c0_111, %c512_112] : memref<8x1280xbf16, #tpu.memory_space<vmem>>, vector<6x256xbf16>
    tpu.vector_store %arg23[%c0_111, %c512_112], %111 {strides = array<i32>} : memref<8x1280xbf16, #tpu.memory_space<vmem>>, vector<6x256xbf16>,
    %121 = vector.extract_strided_slice %111 {offsets = [1, 0], sizes = [5, 256], strides = [1, 1]} : vector<6x256xbf16> to vector<5x256xbf16>
    %c0_113 = arith.constant 0 : index
    %c768 = arith.constant 768 : index
    %122 = vector.load %arg23[%c0_113, %c768] : memref<8x1280xbf16, #tpu.memory_space<vmem>>, vector<5x256xbf16>
    tpu.vector_store %arg23[%c0_113, %c768], %121 {strides = array<i32>} : memref<8x1280xbf16, #tpu.memory_space<vmem>>, vector<5x256xbf16>,
    %123 = vector.extract_strided_slice %111 {offsets = [2, 0], sizes = [4, 256], strides = [1, 1]} : vector<6x256xbf16> to vector<4x256xbf16>
    %c0_114 = arith.constant 0 : index
    %c1024 = arith.constant 1024 : index
    %124 = vector.load %arg23[%c0_114, %c1024] : memref<8x1280xbf16, #tpu.memory_space<vmem>>, vector<4x256xbf16>
    tpu.vector_store %arg23[%c0_114, %c1024], %123 {strides = array<i32>} : memref<8x1280xbf16, #tpu.memory_space<vmem>>, vector<4x256xbf16>,
    %c0_115 = arith.constant 0 : index
    %c0_116 = arith.constant 0 : index
    %125 = vector.load %arg23[%c0_115, %c0_116] : memref<8x1280xbf16, #tpu.memory_space<vmem>>, vector<6x1280xbf16>
    %c0_117 = arith.constant 0 : index
    %c0_118 = arith.constant 0 : index
    %126 = vector.load %arg27[%c0_117, %c0_118] : memref<1280x512xbf16, #tpu.memory_space<vmem>>, vector<1280x512xbf16>
    %cst_119 = arith.constant dense<0.000000e+00> : vector<6x512xf32>
    %127 = tpu.matmul %125, %126, %cst_119 {dimension_numbers = #tpu.dot_dimension_numbers<[1], [0], [0], [1], [0, 0, 1, 1], [], []>} : vector<6x1280xbf16>, vector<1280x512xbf16>, vector<6x512xf32> -> vector<6x512xf32>
    %c0_120 = arith.constant 0 : index
    %c0_121 = arith.constant 0 : index
    %128 = vector.load %arg9[%c0_120, %c0_121] : memref<1x512xf32, #tpu.memory_space<vmem>>, vector<1x512xf32>
    %129 = vector.broadcast %128 : vector<1x512xf32> to vector<6x512xf32>
    %130 = arith.addf %127, %129 : vector<6x512xf32>
    %cst_122 = arith.constant 0.000000e+00 : f32
    %131 = vector.broadcast %cst_122 : f32 to vector<6x512xf32>
    %132 = arith.maximumf %130, %131 : vector<6x512xf32>
    %cst_123 = arith.constant dense<0xFF800000> : vector<512xf32>
    %133 = vector.multi_reduction <maximumf>, %132, %cst_123 [0] : vector<6x512xf32> to vector<512xf32>
    %134 = vector.shape_cast %133 : vector<512xf32> to vector<1x512xf32>
    %c1_i32_124 = arith.constant 1 : i32
    %135 = tpu.memref_slice %arg29[%c1_i32_124] : memref<2x!tpu.dma_semaphore, #tpu.memory_space<semaphore_mem>> -> memref<1x!tpu.dma_semaphore, #tpu.memory_space<semaphore_mem>>
    %136 = tpu.memref_squeeze %135 : memref<1x!tpu.dma_semaphore, #tpu.memory_space<semaphore_mem>> -> memref<!tpu.dma_semaphore, #tpu.memory_space<semaphore_mem>>
    tpu.wait_dma2 semaphore(%136 : memref<!tpu.dma_semaphore, #tpu.memory_space<semaphore_mem>>) src(%arg13 : memref<512x256xbf16, #tpu.memory_space<any>>) dst(%arg28 : memref<512x256xbf16, #tpu.memory_space<vmem>>)
    %137 = arith.truncf %134 : vector<1x512xf32> to vector<1x512xbf16>
    %c0_125 = arith.constant 0 : index
    %c0_126 = arith.constant 0 : index
    %138 = vector.load %arg28[%c0_125, %c0_126] : memref<512x256xbf16, #tpu.memory_space<vmem>>, vector<512x256xbf16>
    %cst_127 = arith.constant dense<0.000000e+00> : vector<1x256xf32>
    %139 = tpu.matmul %137, %138, %cst_127 {dimension_numbers = #tpu.dot_dimension_numbers<[1], [0], [0], [1], [0, 0, 1, 1], [], []>} : vector<1x512xbf16>, vector<512x256xbf16>, vector<1x256xf32> -> vector<1x256xf32>
    %c0_128 = arith.constant 0 : index
    %c0_129 = arith.constant 0 : index
    %140 = vector.load %arg14[%c0_128, %c0_129] : memref<1x256xf32, #tpu.memory_space<vmem>>, vector<1x256xf32>
    %141 = arith.addf %139, %140 : vector<1x256xf32>
    %cst_130 = arith.constant 0.000000e+00 : f32
    %142 = vector.broadcast %cst_130 : f32 to vector<1x256xf32>
    %143 = arith.maximumf %141, %142 : vector<1x256xf32>
    %144 = arith.truncf %143 : vector<1x256xf32> to vector<1x256xbf16>
    %c0_131 = arith.constant 0 : index
    %c0_132 = arith.constant 0 : index
    %145 = vector.load %arg15[%c0_131, %c0_132] : memref<256x32xbf16, #tpu.memory_space<vmem>>, vector<256x32xbf16>
    %cst_133 = arith.constant dense<0.000000e+00> : vector<1x32xf32>
    %146 = tpu.matmul %144, %145, %cst_133 {dimension_numbers = #tpu.dot_dimension_numbers<[1], [0], [0], [1], [0, 0, 1, 1], [], []>} : vector<1x256xbf16>, vector<256x32xbf16>, vector<1x32xf32> -> vector<1x32xf32>
    %c0_134 = arith.constant 0 : index
    %c0_135 = arith.constant 0 : index
    %147 = vector.load %arg16[%c0_134, %c0_135] : memref<1x32xf32, #tpu.memory_space<vmem>>, vector<1x32xf32>
    %148 = arith.addf %146, %147 : vector<1x32xf32>
    %cst_136 = arith.constant 0.000000e+00 : f32
    %149 = vector.broadcast %cst_136 : f32 to vector<1x32xf32>
    %150 = arith.maximumf %148, %149 : vector<1x32xf32>
    %151 = arith.truncf %150 : vector<1x32xf32> to vector<1x32xbf16>
    %c0_137 = arith.constant 0 : index
    %c0_138 = arith.constant 0 : index
    %152 = vector.load %arg17[%c0_137, %c0_138] : memref<32x8xbf16, #tpu.memory_space<vmem>>, vector<32x8xbf16>
    %cst_139 = arith.constant dense<0.000000e+00> : vector<1x8xf32>
    %153 = tpu.matmul %151, %152, %cst_139 {dimension_numbers = #tpu.dot_dimension_numbers<[1], [0], [0], [1], [0, 0, 1, 1], [], []>} : vector<1x32xbf16>, vector<32x8xbf16>, vector<1x8xf32> -> vector<1x8xf32>
    %c0_140 = arith.constant 0 : index
    %c0_141 = arith.constant 0 : index
    %154 = vector.load %arg18[%c0_140, %c0_141] : memref<1x8xf32, #tpu.memory_space<vmem>>, vector<1x8xf32>
    %155 = arith.addf %153, %154 : vector<1x8xf32>
    %c0_142 = arith.constant 0 : index
    %c0_143 = arith.constant 0 : index
    %c0_144 = arith.constant 0 : index
    %156 = vector.load %arg19[%c0_142, %c0_143, %c0_144] : memref<1x1x8xf32, #tpu.memory_space<vmem>>, vector<1x1x8xf32>
    %157 = vector.shape_cast %156 : vector<1x1x8xf32> to vector<1x8xf32>
    %158 = vector.shape_cast %155 : vector<1x8xf32> to vector<1x1x8xf32>
    tpu.vector_store %arg19[%c0_142, %c0_143, %c0_144], %158 {strides = array<i32>} : memref<1x1x8xf32, #tpu.memory_space<vmem>>, vector<1x1x8xf32>,
    return
  }
  func.func @transform_0(%arg0: i32) -> (i32, i32, i32) {
    %c0_i32 = arith.constant 0 : i32
    %c0_i32_0 = arith.constant 0 : i32
    %c0_i32_1 = arith.constant 0 : i32
    return %arg0, %c0_i32, %c0_i32_0 : i32, i32, i32
  }
  func.func @transform_1(%arg0: i32) -> (i32, i32) {
    %c0_i32 = arith.constant 0 : i32
    %c0_i32_0 = arith.constant 0 : i32
    %c0_i32_1 = arith.constant 0 : i32
    return %c0_i32, %c0_i32_0 : i32, i32
  }
  func.func @transform_2(%arg0: i32) -> (i32, i32) {
    %c0_i32 = arith.constant 0 : i32
    %c0_i32_0 = arith.constant 0 : i32
    %c0_i32_1 = arith.constant 0 : i32
    return %c0_i32, %c0_i32_0 : i32, i32
  }
  func.func @transform_3(%arg0: i32) -> (i32, i32) {
    %c0_i32 = arith.constant 0 : i32
    %c0_i32_0 = arith.constant 0 : i32
    %c0_i32_1 = arith.constant 0 : i32
    return %c0_i32, %c0_i32_0 : i32, i32
  }
  func.func @transform_4(%arg0: i32) -> (i32, i32) {
    %c0_i32 = arith.constant 0 : i32
    %c0_i32_0 = arith.constant 0 : i32
    %c0_i32_1 = arith.constant 0 : i32
    return %c0_i32, %c0_i32_0 : i32, i32
  }
  func.func @transform_5(%arg0: i32) -> (i32, i32) {
    %c0_i32 = arith.constant 0 : i32
    %c0_i32_0 = arith.constant 0 : i32
    %c0_i32_1 = arith.constant 0 : i32
    return %c0_i32, %c0_i32_0 : i32, i32
  }
  func.func @transform_6(%arg0: i32) -> (i32, i32) {
    %c0_i32 = arith.constant 0 : i32
    %c0_i32_0 = arith.constant 0 : i32
    %c0_i32_1 = arith.constant 0 : i32
    return %c0_i32, %c0_i32_0 : i32, i32
  }
  func.func @transform_8(%arg0: i32) -> (i32, i32) {
    %c0_i32 = arith.constant 0 : i32
    %c0_i32_0 = arith.constant 0 : i32
    %c0_i32_1 = arith.constant 0 : i32
    return %c0_i32, %c0_i32_0 : i32, i32
  }
  func.func @transform_9(%arg0: i32) -> (i32, i32) {
    %c0_i32 = arith.constant 0 : i32
    %c0_i32_0 = arith.constant 0 : i32
    %c0_i32_1 = arith.constant 0 : i32
    return %c0_i32, %c0_i32_0 : i32, i32
  }
  func.func @transform_10(%arg0: i32) -> (i32, i32) {
    %c0_i32 = arith.constant 0 : i32
    %c0_i32_0 = arith.constant 0 : i32
    %c0_i32_1 = arith.constant 0 : i32
    return %c0_i32, %c0_i32_0 : i32, i32
  }
  func.func @transform_11(%arg0: i32) -> (i32, i32) {
    %c0_i32 = arith.constant 0 : i32
    %c0_i32_0 = arith.constant 0 : i32
    %c0_i32_1 = arith.constant 0 : i32
    return %c0_i32, %c0_i32_0 : i32, i32
  }
  func.func @transform_13(%arg0: i32) -> (i32, i32) {
    %c0_i32 = arith.constant 0 : i32
    %c0_i32_0 = arith.constant 0 : i32
    %c0_i32_1 = arith.constant 0 : i32
    return %c0_i32, %c0_i32_0 : i32, i32
  }
  func.func @transform_14(%arg0: i32) -> (i32, i32) {
    %c0_i32 = arith.constant 0 : i32
    %c0_i32_0 = arith.constant 0 : i32
    %c0_i32_1 = arith.constant 0 : i32
    return %c0_i32, %c0_i32_0 : i32, i32
  }
  func.func @transform_15(%arg0: i32) -> (i32, i32) {
    %c0_i32 = arith.constant 0 : i32
    %c0_i32_0 = arith.constant 0 : i32
    %c0_i32_1 = arith.constant 0 : i32
    return %c0_i32, %c0_i32_0 : i32, i32
  }
  func.func @transform_16(%arg0: i32) -> (i32, i32) {
    %c0_i32 = arith.constant 0 : i32
    %c0_i32_0 = arith.constant 0 : i32
    %c0_i32_1 = arith.constant 0 : i32
    return %c0_i32, %c0_i32_0 : i32, i32
  }
  func.func @transform_17(%arg0: i32) -> (i32, i32) {
    %c0_i32 = arith.constant 0 : i32
    %c0_i32_0 = arith.constant 0 : i32
    %c0_i32_1 = arith.constant 0 : i32
    return %c0_i32, %c0_i32_0 : i32, i32
  }
  func.func @transform_18(%arg0: i32) -> (i32, i32, i32) {
    %c0_i32 = arith.constant 0 : i32
    %c0_i32_0 = arith.constant 0 : i32
    %c0_i32_1 = arith.constant 0 : i32
    return %arg0, %c0_i32, %c0_i32_0 : i32, i32, i32
  }
}

</mosaic_0001>

<llo_original>
// kernel: forward.1
$region0: #{forward.1}
  #allocation0 [shape = 'u32[]', space=smem, size = 0x4, offset = 0x4, fixed_abs, tag = 'smem constant byte address 0x4 - core index']
  #allocation1 [shape = 'u32[144,128]{1,0:T(1,128)}', space=vmem, size = 0x12000, scoped, tag = 'internal scratch']
  #allocation2 [shape = 'bf16[384,640]{1,0:T(16,128)(2,1)}', space=vmem, size = 0x78000, scoped, tag = 'scratch operand']
  #allocation3 [shape = 'bf16[96,320]{1,0:T(16,128)(2,1)}', space=vmem, size = 0x12000, scoped, tag = 'scratch operand']
  #allocation4 [shape = 'bf16[24,640]{1,0:T(8,128)(2,1)}', space=vmem, size = 0x7800, scoped, tag = 'scratch operand']
  #allocation5 [shape = 'bf16[8,1280]{1,0:T(8,128)(2,1)}', space=vmem, size = 0x5000, scoped, tag = 'scratch operand']
  #allocation6 [shape = 'f32[392,64]{1,0:T(8,128)}', space=vmem, size = 0x31000, scoped, tag = 'scratch operand']
  #allocation7 [shape = 'f32[104,128]{1,0:T(8,128)}', space=vmem, size = 0xd000, scoped, tag = 'scratch operand']
  #allocation8 [shape = 'f32[32,256]{1,0:T(8,128)}', space=vmem, size = 0x8000, scoped, tag = 'scratch operand']
  #allocation9 [shape = 'bf16[1280,512]{1,0:T(16,128)(2,1)}', space=vmem, size = 0x140000, scoped, tag = 'scratch operand']
  #allocation10 [shape = 'bf16[512,256]{1,0:T(16,128)(2,1)}', space=vmem, size = 0x40000, scoped, tag = 'scratch operand']
  #allocation11 [shape = 's32[2]{0}', space=sflag, size = 0x8, scoped, tag = 'scratch operand']
  #allocation33 [shape = 's32[]', space=sflag, size = 0x4, offset = 0, fixed_abs, tag = 'sflag constant byte address 0x0 - dummy sync flag']
  #allocation35 [shape = 's32[]', space=sflag, size = 0x4, offset = 0, fixed_abs, tag = 'sflag constant byte address 0x0 - dummy sync flag']
  %s0 = inlined_call_operand.hbm [shape: f32[2,128,384], index: 0, kind: input, shape index: {}]
  %s1 = inlined_call_operand.vmem [shape: bf16[640,64], index: 1, kind: input, shape index: {}]
  %s2 = inlined_call_operand.hbm [shape: f32[1,64], index: 2, kind: input, shape index: {}]
  %s3 = inlined_call_operand.hbm [shape: bf16[320,128], index: 3, kind: input, shape index: {}]
  %s4 = inlined_call_operand.hbm [shape: f32[1,128], index: 4, kind: input, shape index: {}]
  %s5 = inlined_call_operand.hbm [shape: bf16[640,256], index: 5, kind: input, shape index: {}]
  %s6 = inlined_call_operand.hbm [shape: f32[1,256], index: 6, kind: input, shape index: {}]
  %s7 = inlined_call_operand.hbm [shape: bf16[1280,512], index: 7, kind: input, shape index: {}]
  %s8 = inlined_call_operand.hbm [shape: f32[1,512], index: 8, kind: input, shape index: {}]
  %s9 = inlined_call_operand.vmem [shape: bf16[96,384], index: 9, kind: input, shape index: {}]
  %s10 = inlined_call_operand.hbm [shape: bf16[24,96], index: 10, kind: input, shape index: {}]
  %s11 = inlined_call_operand.hbm [shape: bf16[6,24], index: 11, kind: input, shape index: {}]
  %s12 = inlined_call_operand.hbm [shape: bf16[512,256], index: 12, kind: input, shape index: {}]
  %s13 = inlined_call_operand.hbm [shape: f32[1,256], index: 13, kind: input, shape index: {}]
  %s14 = inlined_call_operand.vmem [shape: bf16[256,32], index: 14, kind: input, shape index: {}]
  %s15 = inlined_call_operand.hbm [shape: f32[1,32], index: 15, kind: input, shape index: {}]
  %s16 = inlined_call_operand.vmem [shape: bf16[32,8], index: 16, kind: input, shape index: {}]
  %s17 = inlined_call_operand.hbm [shape: f32[1,8], index: 17, kind: input, shape index: {}]
  %s18 = inlined_call_operand.hbm [shape: f32[2,1,8], index: 18, kind: output, shape index: {}]
  %s19 = sld [smem:[#allocation0]]
  $region145: #{forward.1} parent=0
    _
  %s21 = ssub.s32 1, %s19
  %s22 = scalar_select 0, %s21, %s19
  $region1: #{forward.1} parent=0
    #allocation12 [shape = 'u8[393216]{0}', space=vmem, size = 0x60000, scoped, tag = 'input window, operand 0']
    #allocation13 [shape = 's32[2]{0}', space=sflag, size = 0x8, scoped, tag = 'scoped memory for forward.1']
    #allocation14 [shape = 's32[2]{0}', space=sflag, size = 0x8, scoped, tag = 'scoped memory for forward.1']
    #allocation15 [shape = 'u8[512]{0}', space=vmem, size = 0x400, scoped, tag = 'input window, operand 2, single buffered']
    #allocation16 [shape = 's32[1]{0}', space=sflag, size = 0x4, scoped, tag = 'scoped memory for forward.1']
    #allocation17 [shape = 'u8[81920]{0}', space=vmem, size = 0x14000, scoped, tag = 'input window, operand 3, single buffered']
    #allocation18 [shape = 'u8[512]{0}', space=vmem, size = 0x400, scoped, tag = 'input window, operand 4, single buffered']
    #allocation19 [shape = 's32[1]{0}', space=sflag, size = 0x4, scoped, tag = 'scoped memory for forward.1']
    #allocation20 [shape = 'u8[327680]{0}', space=vmem, size = 0x50000, scoped, tag = 'input window, operand 5, single buffered']
    #allocation21 [shape = 'u8[1024]{0}', space=vmem, size = 0x400, scoped, tag = 'input window, operand 6, single buffered']
    #allocation22 [shape = 's32[1]{0}', space=sflag, size = 0x4, scoped, tag = 'scoped memory for forward.1']
    #allocation23 [shape = 'u8[2048]{0}', space=vmem, size = 0x800, scoped, tag = 'input window, operand 8, single buffered']
    #allocation24 [shape = 'u8[6144]{0}', space=vmem, size = 0x1800, scoped, tag = 'input window, operand 10, single buffered']
    #allocation25 [shape = 's32[1]{0}', space=sflag, size = 0x4, scoped, tag = 'scoped memory for forward.1']
    #allocation26 [shape = 'u8[2048]{0}', space=vmem, size = 0x800, scoped, tag = 'input window, operand 11, single buffered']
    #allocation27 [shape = 'u8[1024]{0}', space=vmem, size = 0x400, scoped, tag = 'input window, operand 13, single buffered']
    #allocation28 [shape = 's32[1]{0}', space=sflag, size = 0x4, scoped, tag = 'scoped memory for forward.1']
    #allocation29 [shape = 'u8[512]{0}', space=vmem, size = 0x400, scoped, tag = 'input window, operand 15, single buffered']
    #allocation30 [shape = 'u8[512]{0}', space=vmem, size = 0x400, scoped, tag = 'input window, operand 17, single buffered']
    #allocation31 [shape = 's32[1]{0}', space=sflag, size = 0x4, scoped, tag = 'scoped memory for forward.1']
    #allocation32 [shape = 'u8[1024]{0}', space=vmem, size = 0x400, scoped, tag = 'output window, operand 0']
    %23 = vsyncpa [#allocation13], 0
    %s24 = scalar_lea.sflag [#allocation13], 1
    %25 = vsyncpa %s24, 0
    %26 = vsyncpa [#allocation16], 0
    %27 = vsyncpa [#allocation19], 0
    %28 = vsyncpa [#allocation22], 0
    %29 = vsyncpa [#allocation25], 0
    %30 = vsyncpa [#allocation28], 0
    %31 = vsyncpa [#allocation31], 0
    %32 = vsyncpa [#allocation14], 0
    %s33 = scalar_lea.sflag [#allocation14], 1
    %34 = vsyncpa %s33, 0
    loop: start=0, step=1, limit=4
    $region2: #{forward.1} parent=1 // loop_pre_header
      _
    $region3: #{forward.1} parent=1 // loop_header
      %s36 = sphi 0, %s40
      %p37 = scmp.ge.s32.totalorder %s36, 4
      %s46 = sphi 0, %s48
      %s49 = sphi 0, %s46
      %s50 = sphi 0, %s49
      %s66 = sphi 0, %s50
      %s70 = sphi 0, %s70
      %s72 = sphi 0, %s70
      %s73 = sphi 0, %s72
      %s87 = sphi 0, %s73
      %s91 = sphi 0, %s91
      %s93 = sphi 0, %s91
      %s94 = sphi 0, %s93
      %s108 = sphi 0, %s94
      %s112 = sphi 0, %s112
      %s114 = sphi 0, %s112
      %s115 = sphi 0, %s114
      %s129 = sphi 0, %s115
      %s133 = sphi 0, %s133
      %s135 = sphi 0, %s133
      %s136 = sphi 0, %s135
      %s150 = sphi 0, %s136
      %s154 = sphi 0, %s154
      %s156 = sphi 0, %s154
      %s157 = sphi 0, %s156
      %s171 = sphi 0, %s157
      %s175 = sphi 0, %s175
      %s177 = sphi 0, %s175
      %s178 = sphi 0, %s177
      %s192 = sphi 0, %s178
      %s196 = sphi 0, %s196
      %s198 = sphi 0, %s196
      %s199 = sphi 0, %s198
      %s213 = sphi 0, %s199
      %s217 = sphi 0, %s217
      %s219 = sphi 0, %s217
      %s220 = sphi 0, %s219
      %s234 = sphi 0, %s220
      %s238 = sphi 0, %s238
      %s240 = sphi 0, %s238
      %s241 = sphi 0, %s240
      %s255 = sphi 0, %s241
      %s259 = sphi 0, %s259
      %s261 = sphi 0, %s259
      %s262 = sphi 0, %s261
      %s276 = sphi 0, %s262
      %s280 = sphi 0, %s280
      %s282 = sphi 0, %s280
      %s283 = sphi 0, %s282
      %s297 = sphi 0, %s283
      %s301 = sphi 0, %s301
      %s303 = sphi 0, %s301
      %s304 = sphi 0, %s303
      %s318 = sphi 0, %s304
      %s322 = sphi 0, %s322
      %s324 = sphi 0, %s322
      %s325 = sphi 0, %s324
      %s339 = sphi 0, %s325
      %s343 = sphi 0, %s343
      %s345 = sphi 0, %s343
      %s346 = sphi 0, %s345
      %s360 = sphi 0, %s346
      %s364 = sphi 0, %s364
      %s366 = sphi 0, %s364
      %s367 = sphi 0, %s366
      %s381 = sphi 0, %s367
      %s387 = sphi 0, %s389
      %s390 = sphi 0, %s387
      %s391 = sphi 0, %s390
      %s407 = sphi 0, %s391
    $region4: #{forward.1} parent=1 // loop_header_branch
      %39 = sbr.rel (%p37) target = $region8
    $region5: #{forward.1} parent=1 // loop_body
      %s41 = ssub.s32 %s36, 1
      %s42 = ssub.s32 %s36, 2
      %s43 = sadd.s32 %s36, 1
      %s44 = ssub.s32 %s36, %s43
      %p45 = scmp.eq.s32.totalorder %s44, 0
      %s47 = sadd.s32 %s46, 1
      %s48 = scalar_select %p45, %s46, %s47
      %p51 = pneg %p45
      %p52 = scmp.eq.s32.totalorder %s36, 1
      %p53 = por %p51, %p52
      %p54 = scmp.ne.s32.totalorder %s46, %s49
      %p55 = scmp.eq.s32.totalorder %s36, 0
      %p56 = por %p54, %p55
      %p57 = scmp.ne.s32.totalorder %s46, %s49
      %p58 = scmp.eq.s32.totalorder %s41, 1
      %p59 = por %p57, %p58
      %p60 = scmp.ne.s32.totalorder %s49, %s50
      %p61 = scmp.eq.s32.totalorder %s41, 0
      %p62 = por %p60, %p61
      %p63 = scmp.ne.s32.totalorder %s49, %s50
      %p64 = scmp.eq.s32.totalorder %s42, 1
      %p65 = por %p63, %p64
      %p67 = scmp.ne.s32.totalorder %s50, %s66
      %p68 = scmp.eq.s32.totalorder %s42, 0
      %p69 = por %p67, %p68
      %s71 = sadd.s32 %s70, 1
      %p74 = scmp.eq.s32.totalorder %s36, 1
      %p75 = scmp.ne.s32.totalorder %s70, %s72
      %p76 = scmp.eq.s32.totalorder %s36, 0
      %p77 = por %p75, %p76
      %p78 = scmp.ne.s32.totalorder %s70, %s72
      %p79 = scmp.eq.s32.totalorder %s41, 1
      %p80 = por %p78, %p79
      %p81 = scmp.ne.s32.totalorder %s72, %s73
      %p82 = scmp.eq.s32.totalorder %s41, 0
      %p83 = por %p81, %p82
      %p84 = scmp.ne.s32.totalorder %s72, %s73
      %p85 = scmp.eq.s32.totalorder %s42, 1
      %p86 = por %p84, %p85
      %p88 = scmp.ne.s32.totalorder %s73, %s87
      %p89 = scmp.eq.s32.totalorder %s42, 0
      %p90 = por %p88, %p89
      %s92 = sadd.s32 %s91, 1
      %p95 = scmp.eq.s32.totalorder %s36, 1
      %p96 = scmp.ne.s32.totalorder %s91, %s93
      %p97 = scmp.eq.s32.totalorder %s36, 0
      %p98 = por %p96, %p97
      %p99 = scmp.ne.s32.totalorder %s91, %s93
      %p100 = scmp.eq.s32.totalorder %s41, 1
      %p101 = por %p99, %p100
      %p102 = scmp.ne.s32.totalorder %s93, %s94
      %p103 = scmp.eq.s32.totalorder %s41, 0
      %p104 = por %p102, %p103
      %p105 = scmp.ne.s32.totalorder %s93, %s94
      %p106 = scmp.eq.s32.totalorder %s42, 1
      %p107 = por %p105, %p106
      %p109 = scmp.ne.s32.totalorder %s94, %s108
      %p110 = scmp.eq.s32.totalorder %s42, 0
      %p111 = por %p109, %p110
      %s113 = sadd.s32 %s112, 1
      %p116 = scmp.eq.s32.totalorder %s36, 1
      %p117 = scmp.ne.s32.totalorder %s112, %s114
      %p118 = scmp.eq.s32.totalorder %s36, 0
      %p119 = por %p117, %p118
      %p120 = scmp.ne.s32.totalorder %s112, %s114
      %p121 = scmp.eq.s32.totalorder %s41, 1
      %p122 = por %p120, %p121
      %p123 = scmp.ne.s32.totalorder %s114, %s115
      %p124 = scmp.eq.s32.totalorder %s41, 0
      %p125 = por %p123, %p124
      %p126 = scmp.ne.s32.totalorder %s114, %s115
      %p127 = scmp.eq.s32.totalorder %s42, 1
      %p128 = por %p126, %p127
      %p130 = scmp.ne.s32.totalorder %s115, %s129
      %p131 = scmp.eq.s32.totalorder %s42, 0
      %p132 = por %p130, %p131
      %s134 = sadd.s32 %s133, 1
      %p137 = scmp.eq.s32.totalorder %s36, 1
      %p138 = scmp.ne.s32.totalorder %s133, %s135
      %p139 = scmp.eq.s32.totalorder %s36, 0
      %p140 = por %p138, %p139
      %p141 = scmp.ne.s32.totalorder %s133, %s135
      %p142 = scmp.eq.s32.totalorder %s41, 1
      %p143 = por %p141, %p142
      %p144 = scmp.ne.s32.totalorder %s135, %s136
      %p145 = scmp.eq.s32.totalorder %s41, 0
      %p146 = por %p144, %p145
      %p147 = scmp.ne.s32.totalorder %s135, %s136
      %p148 = scmp.eq.s32.totalorder %s42, 1
      %p149 = por %p147, %p148
      %p151 = scmp.ne.s32.totalorder %s136, %s150
      %p152 = scmp.eq.s32.totalorder %s42, 0
      %p153 = por %p151, %p152
      %s155 = sadd.s32 %s154, 1
      %p158 = scmp.eq.s32.totalorder %s36, 1
      %p159 = scmp.ne.s32.totalorder %s154, %s156
      %p160 = scmp.eq.s32.totalorder %s36, 0
      %p161 = por %p159, %p160
      %p162 = scmp.ne.s32.totalorder %s154, %s156
      %p163 = scmp.eq.s32.totalorder %s41, 1
      %p164 = por %p162, %p163
      %p165 = scmp.ne.s32.totalorder %s156, %s157
      %p166 = scmp.eq.s32.totalorder %s41, 0
      %p167 = por %p165, %p166
      %p168 = scmp.ne.s32.totalorder %s156, %s157
      %p169 = scmp.eq.s32.totalorder %s42, 1
      %p170 = por %p168, %p169
      %p172 = scmp.ne.s32.totalorder %s157, %s171
      %p173 = scmp.eq.s32.totalorder %s42, 0
      %p174 = por %p172, %p173
      %s176 = sadd.s32 %s175, 1
      %p179 = scmp.eq.s32.totalorder %s36, 1
      %p180 = scmp.ne.s32.totalorder %s175, %s177
      %p181 = scmp.eq.s32.totalorder %s36, 0
      %p182 = por %p180, %p181
      %p183 = scmp.ne.s32.totalorder %s175, %s177
      %p184 = scmp.eq.s32.totalorder %s41, 1
      %p185 = por %p183, %p184
      %p186 = scmp.ne.s32.totalorder %s177, %s178
      %p187 = scmp.eq.s32.totalorder %s41, 0
      %p188 = por %p186, %p187
      %p189 = scmp.ne.s32.totalorder %s177, %s178
      %p190 = scmp.eq.s32.totalorder %s42, 1
      %p191 = por %p189, %p190
      %p193 = scmp.ne.s32.totalorder %s178, %s192
      %p194 = scmp.eq.s32.totalorder %s42, 0
      %p195 = por %p193, %p194
      %s197 = sadd.s32 %s196, 1
      %p200 = scmp.eq.s32.totalorder %s36, 1
      %p201 = scmp.ne.s32.totalorder %s196, %s198
      %p202 = scmp.eq.s32.totalorder %s36, 0
      %p203 = por %p201, %p202
      %p204 = scmp.ne.s32.totalorder %s196, %s198
      %p205 = scmp.eq.s32.totalorder %s41, 1
      %p206 = por %p204, %p205
      %p207 = scmp.ne.s32.totalorder %s198, %s199
      %p208 = scmp.eq.s32.totalorder %s41, 0
      %p209 = por %p207, %p208
      %p210 = scmp.ne.s32.totalorder %s198, %s199
      %p211 = scmp.eq.s32.totalorder %s42, 1
      %p212 = por %p210, %p211
      %p214 = scmp.ne.s32.totalorder %s199, %s213
      %p215 = scmp.eq.s32.totalorder %s42, 0
      %p216 = por %p214, %p215
      %s218 = sadd.s32 %s217, 1
      %p221 = scmp.eq.s32.totalorder %s36, 1
      %p222 = scmp.ne.s32.totalorder %s217, %s219
      %p223 = scmp.eq.s32.totalorder %s36, 0
      %p224 = por %p222, %p223
      %p225 = scmp.ne.s32.totalorder %s217, %s219
      %p226 = scmp.eq.s32.totalorder %s41, 1
      %p227 = por %p225, %p226
      %p228 = scmp.ne.s32.totalorder %s219, %s220
      %p229 = scmp.eq.s32.totalorder %s41, 0
      %p230 = por %p228, %p229
      %p231 = scmp.ne.s32.totalorder %s219, %s220
      %p232 = scmp.eq.s32.totalorder %s42, 1
      %p233 = por %p231, %p232
      %p235 = scmp.ne.s32.totalorder %s220, %s234
      %p236 = scmp.eq.s32.totalorder %s42, 0
      %p237 = por %p235, %p236
      %s239 = sadd.s32 %s238, 1
      %p242 = scmp.eq.s32.totalorder %s36, 1
      %p243 = scmp.ne.s32.totalorder %s238, %s240
      %p244 = scmp.eq.s32.totalorder %s36, 0
      %p245 = por %p243, %p244
      %p246 = scmp.ne.s32.totalorder %s238, %s240
      %p247 = scmp.eq.s32.totalorder %s41, 1
      %p248 = por %p246, %p247
      %p249 = scmp.ne.s32.totalorder %s240, %s241
      %p250 = scmp.eq.s32.totalorder %s41, 0
      %p251 = por %p249, %p250
      %p252 = scmp.ne.s32.totalorder %s240, %s241
      %p253 = scmp.eq.s32.totalorder %s42, 1
      %p254 = por %p252, %p253
      %p256 = scmp.ne.s32.totalorder %s241, %s255
      %p257 = scmp.eq.s32.totalorder %s42, 0
      %p258 = por %p256, %p257
      %s260 = sadd.s32 %s259, 1
      %p263 = scmp.eq.s32.totalorder %s36, 1
      %p264 = scmp.ne.s32.totalorder %s259, %s261
      %p265 = scmp.eq.s32.totalorder %s36, 0
      %p266 = por %p264, %p265
      %p267 = scmp.ne.s32.totalorder %s259, %s261
      %p268 = scmp.eq.s32.totalorder %s41, 1
      %p269 = por %p267, %p268
      %p270 = scmp.ne.s32.totalorder %s261, %s262
      %p271 = scmp.eq.s32.totalorder %s41, 0
      %p272 = por %p270, %p271
      %p273 = scmp.ne.s32.totalorder %s261, %s262
      %p274 = scmp.eq.s32.totalorder %s42, 1
      %p275 = por %p273, %p274
      %p277 = scmp.ne.s32.totalorder %s262, %s276
      %p278 = scmp.eq.s32.totalorder %s42, 0
      %p279 = por %p277, %p278
      %s281 = sadd.s32 %s280, 1
      %p284 = scmp.eq.s32.totalorder %s36, 1
      %p285 = scmp.ne.s32.totalorder %s280, %s282
      %p286 = scmp.eq.s32.totalorder %s36, 0
      %p287 = por %p285, %p286
      %p288 = scmp.ne.s32.totalorder %s280, %s282
      %p289 = scmp.eq.s32.totalorder %s41, 1
      %p290 = por %p288, %p289
      %p291 = scmp.ne.s32.totalorder %s282, %s283
      %p292 = scmp.eq.s32.totalorder %s41, 0
      %p293 = por %p291, %p292
      %p294 = scmp.ne.s32.totalorder %s282, %s283
      %p295 = scmp.eq.s32.totalorder %s42, 1
      %p296 = por %p294, %p295
      %p298 = scmp.ne.s32.totalorder %s283, %s297
      %p299 = scmp.eq.s32.totalorder %s42, 0
      %p300 = por %p298, %p299
      %s302 = sadd.s32 %s301, 1
      %p305 = scmp.eq.s32.totalorder %s36, 1
      %p306 = scmp.ne.s32.totalorder %s301, %s303
      %p307 = scmp.eq.s32.totalorder %s36, 0
      %p308 = por %p306, %p307
      %p309 = scmp.ne.s32.totalorder %s301, %s303
      %p310 = scmp.eq.s32.totalorder %s41, 1
      %p311 = por %p309, %p310
      %p312 = scmp.ne.s32.totalorder %s303, %s304
      %p313 = scmp.eq.s32.totalorder %s41, 0
      %p314 = por %p312, %p313
      %p315 = scmp.ne.s32.totalorder %s303, %s304
      %p316 = scmp.eq.s32.totalorder %s42, 1
      %p317 = por %p315, %p316
      %p319 = scmp.ne.s32.totalorder %s304, %s318
      %p320 = scmp.eq.s32.totalorder %s42, 0
      %p321 = por %p319, %p320
      %s323 = sadd.s32 %s322, 1
      %p326 = scmp.eq.s32.totalorder %s36, 1
      %p327 = scmp.ne.s32.totalorder %s322, %s324
      %p328 = scmp.eq.s32.totalorder %s36, 0
      %p329 = por %p327, %p328
      %p330 = scmp.ne.s32.totalorder %s322, %s324
      %p331 = scmp.eq.s32.totalorder %s41, 1
      %p332 = por %p330, %p331
      %p333 = scmp.ne.s32.totalorder %s324, %s325
      %p334 = scmp.eq.s32.totalorder %s41, 0
      %p335 = por %p333, %p334
      %p336 = scmp.ne.s32.totalorder %s324, %s325
      %p337 = scmp.eq.s32.totalorder %s42, 1
      %p338 = por %p336, %p337
      %p340 = scmp.ne.s32.totalorder %s325, %s339
      %p341 = scmp.eq.s32.totalorder %s42, 0
      %p342 = por %p340, %p341
      %s344 = sadd.s32 %s343, 1
      %p347 = scmp.eq.s32.totalorder %s36, 1
      %p348 = scmp.ne.s32.totalorder %s343, %s345
      %p349 = scmp.eq.s32.totalorder %s36, 0
      %p350 = por %p348, %p349
      %p351 = scmp.ne.s32.totalorder %s343, %s345
      %p352 = scmp.eq.s32.totalorder %s41, 1
      %p353 = por %p351, %p352
      %p354 = scmp.ne.s32.totalorder %s345, %s346
      %p355 = scmp.eq.s32.totalorder %s41, 0
      %p356 = por %p354, %p355
      %p357 = scmp.ne.s32.totalorder %s345, %s346
      %p358 = scmp.eq.s32.totalorder %s42, 1
      %p359 = por %p357, %p358
      %p361 = scmp.ne.s32.totalorder %s346, %s360
      %p362 = scmp.eq.s32.totalorder %s42, 0
      %p363 = por %p361, %p362
      %s365 = sadd.s32 %s364, 1
      %p368 = scmp.eq.s32.totalorder %s36, 1
      %p369 = scmp.ne.s32.totalorder %s364, %s366
      %p370 = scmp.eq.s32.totalorder %s36, 0
      %p371 = por %p369, %p370
      %p372 = scmp.ne.s32.totalorder %s364, %s366
      %p373 = scmp.eq.s32.totalorder %s41, 1
      %p374 = por %p372, %p373
      %p375 = scmp.ne.s32.totalorder %s366, %s367
      %p376 = scmp.eq.s32.totalorder %s41, 0
      %p377 = por %p375, %p376
      %p378 = scmp.ne.s32.totalorder %s366, %s367
      %p379 = scmp.eq.s32.totalorder %s42, 1
      %p380 = por %p378, %p379
      %p382 = scmp.ne.s32.totalorder %s367, %s381
      %p383 = scmp.eq.s32.totalorder %s42, 0
      %p384 = por %p382, %p383
      %s385 = ssub.s32 %s36, %s43
      %p386 = scmp.eq.s32.totalorder %s385, 0
      %s388 = sadd.s32 %s387, 1
      %s389 = scalar_select %p386, %s387, %s388
      %p392 = pneg %p386
      %p393 = scmp.eq.s32.totalorder %s36, 1
      %p394 = por %p392, %p393
      %p395 = scmp.ne.s32.totalorder %s387, %s390
      %p396 = scmp.eq.s32.totalorder %s36, 0
      %p397 = por %p395, %p396
      %p398 = scmp.ne.s32.totalorder %s387, %s390
      %p399 = scmp.eq.s32.totalorder %s41, 1
      %p400 = por %p398, %p399
      %p401 = scmp.ne.s32.totalorder %s390, %s391
      %p402 = scmp.eq.s32.totalorder %s41, 0
      %p403 = por %p401, %p402
      %p404 = scmp.ne.s32.totalorder %s390, %s391
      %p405 = scmp.eq.s32.totalorder %s42, 1
      %p406 = por %p404, %p405
      %p408 = scmp.ne.s32.totalorder %s391, %s407
      %p409 = scmp.eq.s32.totalorder %s42, 0
      %p410 = por %p408, %p409
      %p411 = scmp.le.s32.totalorder 1, %s36
      %p412 = scmp.lt.s32.totalorder %s36, 3
      %p413 = pnand %p411, %p412
      %p414 = pneg %p413
      // Predicated region
      $region9: #{forward.1} parent=5 // pred_check
        _
      $region10: #{forward.1} parent=5 // pred_check_branch
        %416 = sbr.rel (%p413) target = $region12
      $region11: #{forward.1} parent=5 // pred_region
        %s417 = ssub.s32 %s36, 1
        // Predicated region
        $region13: #{forward.1} parent=11 // pred_check
          %p418 = pneg %p83
        $region14: #{forward.1} parent=11 // pred_check_branch
          %420 = sbr.rel (%p418) target = $region16
        $region15: #{forward.1} parent=11 // pred_region
          _
        $region16: #{forward.1} parent=11 // pred_fallthru
          _
        // Predicated region
        $region17: #{forward.1} parent=11 // pred_check
          %p421 = pneg %p104
        $region18: #{forward.1} parent=11 // pred_check_branch
          %423 = sbr.rel (%p421) target = $region20
        $region19: #{forward.1} parent=11 // pred_region
          %s425 = ssub.s32 16, 16
          %426 = vsyncadd [#allocation16], %s425
          %s428 = sshll.u32 [#allocation15], 4
          %s429 = int_to_ptr.vmem [resolvable:$true] %s428
          %431 = dma.hbm_to_vmem [thread:$0]  %s2, 16, %s429, [#allocation16]
        $region20: #{forward.1} parent=11 // pred_fallthru
          _
        // Predicated region
        $region21: #{forward.1} parent=11 // pred_check
          %p432 = pneg %p125
        $region22: #{forward.1} parent=11 // pred_check_branch
          %434 = sbr.rel (%p432) target = $region24
        $region23: #{forward.1} parent=11 // pred_region
          %s436 = ssub.s32 2560, 2560
          %437 = vsyncadd [#allocation16], %s436
          %s438 = sshll.u32 [#allocation17], 4
          %s439 = int_to_ptr.vmem [resolvable:$true] %s438
          %444 = dma.hbm_to_vmem [thread:$0]  %s3, 2560, %s439, [#allocation16], 64, 64, 4
        $region24: #{forward.1} parent=11 // pred_fallthru
          _
        // Predicated region
        $region25: #{forward.1} parent=11 // pred_check
          %p445 = pneg %p146
        $region26: #{forward.1} parent=11 // pred_check_branch
          %447 = sbr.rel (%p445) target = $region28
        $region27: #{forward.1} parent=11 // pred_region
          %s449 = ssub.s32 16, 16
          %450 = vsyncadd [#allocation19], %s449
          %s452 = sshll.u32 [#allocation18], 4
          %s453 = int_to_ptr.vmem [resolvable:$true] %s452
          %455 = dma.hbm_to_vmem [thread:$0]  %s4, 16, %s453, [#allocation19]
        $region28: #{forward.1} parent=11 // pred_fallthru
          _
        // Predicated region
        $region29: #{forward.1} parent=11 // pred_check
          %p456 = pneg %p167
        $region30: #{forward.1} parent=11 // pred_check_branch
          %458 = sbr.rel (%p456) target = $region32
        $region31: #{forward.1} parent=11 // pred_region
          %s460 = ssub.s32 10240, 10240
          %461 = vsyncadd [#allocation19], %s460
          %s462 = sshll.u32 [#allocation20], 4
          %s463 = int_to_ptr.vmem [resolvable:$true] %s462
          %468 = dma.hbm_to_vmem [thread:$0]  %s5, 10240, %s463, [#allocation19], 128, 128, 8
        $region32: #{forward.1} parent=11 // pred_fallthru
          _
        // Predicated region
        $region33: #{forward.1} parent=11 // pred_check
          %p469 = pneg %p188
        $region34: #{forward.1} parent=11 // pred_check_branch
          %471 = sbr.rel (%p469) target = $region36
        $region35: #{forward.1} parent=11 // pred_region
          %s473 = ssub.s32 32, 32
          %474 = vsyncadd [#allocation22], %s473
          %s476 = sshll.u32 [#allocation21], 4
          %s477 = int_to_ptr.vmem [resolvable:$true] %s476
          %479 = dma.hbm_to_vmem [thread:$0]  %s6, 32, %s477, [#allocation22]
        $region36: #{forward.1} parent=11 // pred_fallthru
          _
        // Predicated region
        $region37: #{forward.1} parent=11 // pred_check
          %p480 = pneg %p209
        $region38: #{forward.1} parent=11 // pred_check_branch
          %482 = sbr.rel (%p480) target = $region40
        $region39: #{forward.1} parent=11 // pred_region
          %s484 = ssub.s32 64, 64
          %485 = vsyncadd [#allocation22], %s484
          %s487 = sshll.u32 [#allocation23], 4
          %s488 = int_to_ptr.vmem [resolvable:$true] %s487
          %490 = dma.hbm_to_vmem [thread:$0]  %s8, 64, %s488, [#allocation22]
        $region40: #{forward.1} parent=11 // pred_fallthru
          _
        // Predicated region
        $region41: #{forward.1} parent=11 // pred_check
          %p491 = pneg %p230
        $region42: #{forward.1} parent=11 // pred_check_branch
          %493 = sbr.rel (%p491) target = $region44
        $region43: #{forward.1} parent=11 // pred_region
          _
        $region44: #{forward.1} parent=11 // pred_fallthru
          _
        // Predicated region
        $region45: #{forward.1} parent=11 // pred_check
          %p494 = pneg %p251
        $region46: #{forward.1} parent=11 // pred_check_branch
          %496 = sbr.rel (%p494) target = $region48
        $region47: #{forward.1} parent=11 // pred_region
          %s498 = ssub.s32 192, 192
          %499 = vsyncadd [#allocation25], %s498
          %s500 = sshll.u32 [#allocation24], 4
          %s501 = int_to_ptr.vmem [resolvable:$true] %s500
          %506 = dma.hbm_to_vmem [thread:$0]  %s10, 192, %s501, [#allocation25], 64, 64, 4
        $region48: #{forward.1} parent=11 // pred_fallthru
          _
        // Predicated region
        $region49: #{forward.1} parent=11 // pred_check
          %p507 = pneg %p272
        $region50: #{forward.1} parent=11 // pred_check_branch
          %509 = sbr.rel (%p507) target = $region52
        $region51: #{forward.1} parent=11 // pred_region
          %s511 = ssub.s32 64, 64
          %512 = vsyncadd [#allocation25], %s511
          %s514 = sshll.u32 [#allocation26], 4
          %s515 = int_to_ptr.vmem [resolvable:$true] %s514
          %517 = dma.hbm_to_vmem [thread:$0]  %s11, 64, %s515, [#allocation25]
        $region52: #{forward.1} parent=11 // pred_fallthru
          _
        // Predicated region
        $region53: #{forward.1} parent=11 // pred_check
          %p518 = pneg %p293
        $region54: #{forward.1} parent=11 // pred_check_branch
          %520 = sbr.rel (%p518) target = $region56
        $region55: #{forward.1} parent=11 // pred_region
          %s522 = ssub.s32 32, 32
          %523 = vsyncadd [#allocation28], %s522
          %s525 = sshll.u32 [#allocation27], 4
          %s526 = int_to_ptr.vmem [resolvable:$true] %s525
          %528 = dma.hbm_to_vmem [thread:$0]  %s13, 32, %s526, [#allocation28]
        $region56: #{forward.1} parent=11 // pred_fallthru
          _
        // Predicated region
        $region57: #{forward.1} parent=11 // pred_check
          %p529 = pneg %p314
        $region58: #{forward.1} parent=11 // pred_check_branch
          %531 = sbr.rel (%p529) target = $region60
        $region59: #{forward.1} parent=11 // pred_region
          _
        $region60: #{forward.1} parent=11 // pred_fallthru
          _
        // Predicated region
        $region61: #{forward.1} parent=11 // pred_check
          %p532 = pneg %p335
        $region62: #{forward.1} parent=11 // pred_check_branch
          %534 = sbr.rel (%p532) target = $region64
        $region63: #{forward.1} parent=11 // pred_region
          %s536 = ssub.s32 16, 16
          %537 = vsyncadd [#allocation28], %s536
          %s539 = sshll.u32 [#allocation29], 4
          %s540 = int_to_ptr.vmem [resolvable:$true] %s539
          %542 = dma.hbm_to_vmem [thread:$0]  %s15, 16, %s540, [#allocation28]
        $region64: #{forward.1} parent=11 // pred_fallthru
          _
        // Predicated region
        $region65: #{forward.1} parent=11 // pred_check
          %p543 = pneg %p356
        $region66: #{forward.1} parent=11 // pred_check_branch
          %545 = sbr.rel (%p543) target = $region68
        $region67: #{forward.1} parent=11 // pred_region
          _
        $region68: #{forward.1} parent=11 // pred_fallthru
          _
        // Predicated region
        $region69: #{forward.1} parent=11 // pred_check
          %p546 = pneg %p377
        $region70: #{forward.1} parent=11 // pred_check_branch
          %548 = sbr.rel (%p546) target = $region72
        $region71: #{forward.1} parent=11 // pred_region
          %s550 = ssub.s32 16, 16
          %551 = vsyncadd [#allocation31], %s550
          %s553 = sshll.u32 [#allocation30], 4
          %s554 = int_to_ptr.vmem [resolvable:$true] %s553
          %556 = dma.hbm_to_vmem [thread:$0]  %s17, 16, %s554, [#allocation31]
        $region72: #{forward.1} parent=11 // pred_fallthru
          _
      $region12: #{forward.1} parent=5 // pred_fallthru
        _
      %p557 = scmp.lt.s32.totalorder %s36, 2
      // Predicated region
      $region73: #{forward.1} parent=5 // pred_check
        %p558 = pneg %p557
      $region74: #{forward.1} parent=5 // pred_check_branch
        %560 = sbr.rel (%p558) target = $region76
      $region75: #{forward.1} parent=5 // pred_region
        // Predicated region
        $region77: #{forward.1} parent=75 // pred_check
          %p561 = pneg %p56
        $region78: #{forward.1} parent=75 // pred_check_branch
          %563 = sbr.rel (%p561) target = $region80
        $region79: #{forward.1} parent=75 // pred_region
          %s564 = sand.u32 %s46, 1
          %s565 = scalar_lea.sflag [#allocation13], %s564
          %s566 = sand.u32 %s46, 1
          %s567 = smul.addr %s566, 384
          %s568 = scalar_lea.vmem [#allocation12], %s567
          %s570 = ssub.s32 6144, 6144
          %571 = vsyncadd %s565, %s570
          %s572 = smul.addr %s36, 48
          %s573 = smul.addr %s572, 128
          %s574 = scalar_lea.hbm %s0, %s573
          %s575 = sshll.u32 %s568, 4
          %s576 = int_to_ptr.vmem [resolvable:$true] %s575
          %581 = dma.hbm_to_vmem [thread:$0]  %s574, 6144, %s576, %s565, 384, 384, 24
        $region80: #{forward.1} parent=75 // pred_fallthru
          _
      $region76: #{forward.1} parent=5 // pred_fallthru
        _
      %p582 = scmp.le.s32.totalorder 1, %s36
      %p583 = scmp.lt.s32.totalorder %s36, 3
      %p584 = pnand %p582, %p583
      %p585 = pneg %p584
      // Predicated region
      $region81: #{forward.1} parent=5 // pred_check
        _
      $region82: #{forward.1} parent=5 // pred_check_branch
        %587 = sbr.rel (%p584) target = $region84
      $region83: #{forward.1} parent=5 // pred_region
        #allocation34 [shape = 'u32[9]{0}', space=smem, size = 0x24, scoped, tag = 'DMA stride descriptor']
        #allocation36 [shape = 'u32[9]{0}', space=smem, size = 0x24, scoped, tag = 'DMA stride descriptor']
        %s588 = ssub.s32 %s36, 1
        %s589 = sand.u32 %s49, 1
        %s590 = scalar_lea.sflag [#allocation13], %s589
        %s591 = sand.u32 %s49, 1
        %s592 = smul.addr %s591, 384
        %s593 = scalar_lea.vmem [#allocation12], %s592
        // Predicated region
        $region85: #{forward.1} parent=83 // pred_check
          %p594 = pneg %p62
        $region86: #{forward.1} parent=83 // pred_check_branch
          %596 = sbr.rel (%p594) target = $region88
        $region87: #{forward.1} parent=83 // pred_region
          %597 = dma.done %s590, 6144
        $region88: #{forward.1} parent=83 // pred_fallthru
          _
        // Predicated region
        $region89: #{forward.1} parent=83 // pred_check
          %p598 = pneg %p104
        $region90: #{forward.1} parent=83 // pred_check_branch
          %600 = sbr.rel (%p598) target = $region92
        $region91: #{forward.1} parent=83 // pred_region
          %601 = dma.done [#allocation16], 16
        $region92: #{forward.1} parent=83 // pred_fallthru
          _
        // Predicated region
        $region93: #{forward.1} parent=83 // pred_check
          %p602 = pneg %p125
        $region94: #{forward.1} parent=83 // pred_check_branch
          %604 = sbr.rel (%p602) target = $region96
        $region95: #{forward.1} parent=83 // pred_region
          %605 = dma.done [#allocation16], 2560
        $region96: #{forward.1} parent=83 // pred_fallthru
          _
        // Predicated region
        $region97: #{forward.1} parent=83 // pred_check
          %p606 = pneg %p146
        $region98: #{forward.1} parent=83 // pred_check_branch
          %608 = sbr.rel (%p606) target = $region100
        $region99: #{forward.1} parent=83 // pred_region
          %609 = dma.done [#allocation19], 16
        $region100: #{forward.1} parent=83 // pred_fallthru
          _
        // Predicated region
        $region101: #{forward.1} parent=83 // pred_check
          %p610 = pneg %p167
        $region102: #{forward.1} parent=83 // pred_check_branch
          %612 = sbr.rel (%p610) target = $region104
        $region103: #{forward.1} parent=83 // pred_region
          %613 = dma.done [#allocation19], 10240
        $region104: #{forward.1} parent=83 // pred_fallthru
          _
        // Predicated region
        $region105: #{forward.1} parent=83 // pred_check
          %p614 = pneg %p188
        $region106: #{forward.1} parent=83 // pred_check_branch
          %616 = sbr.rel (%p614) target = $region108
        $region107: #{forward.1} parent=83 // pred_region
          %617 = dma.done [#allocation22], 32
        $region108: #{forward.1} parent=83 // pred_fallthru
          _
        // Predicated region
        $region109: #{forward.1} parent=83 // pred_check
          %p618 = pneg %p209
        $region110: #{forward.1} parent=83 // pred_check_branch
          %620 = sbr.rel (%p618) target = $region112
        $region111: #{forward.1} parent=83 // pred_region
          %621 = dma.done [#allocation22], 64
        $region112: #{forward.1} parent=83 // pred_fallthru
          _
        // Predicated region
        $region113: #{forward.1} parent=83 // pred_check
          %p622 = pneg %p251
        $region114: #{forward.1} parent=83 // pred_check_branch
          %624 = sbr.rel (%p622) target = $region116
        $region115: #{forward.1} parent=83 // pred_region
          %625 = dma.done [#allocation25], 192
        $region116: #{forward.1} parent=83 // pred_fallthru
          _
        // Predicated region
        $region117: #{forward.1} parent=83 // pred_check
          %p626 = pneg %p272
        $region118: #{forward.1} parent=83 // pred_check_branch
          %628 = sbr.rel (%p626) target = $region120
        $region119: #{forward.1} parent=83 // pred_region
          %629 = dma.done [#allocation25], 64
        $region120: #{forward.1} parent=83 // pred_fallthru
          _
        // Predicated region
        $region121: #{forward.1} parent=83 // pred_check
          %p630 = pneg %p293
        $region122: #{forward.1} parent=83 // pred_check_branch
          %632 = sbr.rel (%p630) target = $region124
        $region123: #{forward.1} parent=83 // pred_region
          %633 = dma.done [#allocation28], 32
        $region124: #{forward.1} parent=83 // pred_fallthru
          _
        // Predicated region
        $region125: #{forward.1} parent=83 // pred_check
          %p634 = pneg %p335
        $region126: #{forward.1} parent=83 // pred_check_branch
          %636 = sbr.rel (%p634) target = $region128
        $region127: #{forward.1} parent=83 // pred_region
          %637 = dma.done [#allocation28], 16
        $region128: #{forward.1} parent=83 // pred_fallthru
          _
        // Predicated region
        $region129: #{forward.1} parent=83 // pred_check
          %p638 = pneg %p377
        $region130: #{forward.1} parent=83 // pred_check_branch
          %640 = sbr.rel (%p638) target = $region132
        $region131: #{forward.1} parent=83 // pred_region
          %641 = dma.done [#allocation31], 16
        $region132: #{forward.1} parent=83 // pred_fallthru
          _
        %s642 = sand.u32 %s49, 1
        %s643 = scalar_lea.sflag [#allocation13], %s642
        %s644 = sand.u32 %s49, 1
        %s645 = smul.addr %s644, 384
        %s646 = scalar_lea.vmem [#allocation12], %s645
        %p647 = pneg %p62
        %p648 = pneg %p59
        %p649 = pneg %p83
        %p650 = pneg %p80
        %p651 = pneg %p104
        %p652 = pneg %p101
        %p653 = pneg %p125
        %p654 = pneg %p122
        %p655 = pneg %p146
        %p656 = pneg %p143
        %p657 = pneg %p167
        %p658 = pneg %p164
        %p659 = pneg %p188
        %p660 = pneg %p185
        %p661 = pneg %p209
        %p662 = pneg %p206
        %p663 = pneg %p230
        %p664 = pneg %p227
        %p665 = pneg %p251
        %p666 = pneg %p248
        %p667 = pneg %p272
        %p668 = pneg %p269
        %p669 = pneg %p293
        %p670 = pneg %p290
        %p671 = pneg %p314
        %p672 = pneg %p311
        %p673 = pneg %p335
        %p674 = pneg %p332
        %p675 = pneg %p356
        %p676 = pneg %p353
        %p677 = pneg %p377
        %p678 = pneg %p374
        %p679 = pneg %p403
        %p680 = pneg %p400
        %s681 = sand.u32 %s390, 1
        %s682 = scalar_lea.sflag [#allocation14], %s681
        %s683 = sand.u32 %s390, 1
        %s684 = scalar_lea.vmem [#allocation32], %s683
        %s687 = sshll.u32 1, 14
        %s688 = sxor.u32 4294967295, %s687
        %s690 = sld [smem:[#allocation0]]
        %s691 = sadd.s32 2, %s690
        %s693 = sshll.u32 7, 26
        %s694 = sxor.u32 4294967295, %s693
        %s695 = sand.u32 0, %s694
        %s696 = sshll.u32 %s691, 26
        %s697 = sor.u32 %s695, %s696
        %s698 = sshll.u32 [#allocation9], 4
        %s699 = int_to_ptr.vmem [resolvable:$true] %s698
        %702 = sst [smem:[#allocation34]] 512
        %s703 = scalar_lea.smem [#allocation34], 1
        %704 = sst [smem:[%s703]] 512
        %s705 = scalar_lea.smem [#allocation34], 2
        %706 = sst [smem:[%s705]] 4
        %s707 = scalar_lea.smem [#allocation34], 3
        %708 = sst [smem:[%s707]] 64
        %s709 = scalar_lea.smem [#allocation34], 4
        %710 = sst [smem:[%s709]] 128
        %s711 = scalar_lea.smem [#allocation34], 5
        %712 = sst [smem:[%s711]] 2
        %s713 = scalar_lea.smem [#allocation34], 6
        %714 = sst [smem:[%s713]] 256
        %s715 = scalar_lea.smem [#allocation34], 7
        %716 = sst [smem:[%s715]] 64
        %s717 = scalar_lea.smem [#allocation34], 8
        %718 = sst [smem:[%s717]] 4
        %720 = dma.general %s7, 40960, %s699, [#allocation11], [#allocation33], [#allocation34], %s697, 0
        %s721 = scalar_lea.sflag [#allocation11], 1
        %s723 = sshll.u32 1, 14
        %s724 = sxor.u32 4294967295, %s723
        %s726 = sadd.s32 2, %s690
        %s728 = sshll.u32 7, 26
        %s729 = sxor.u32 4294967295, %s728
        %s730 = sand.u32 0, %s729
        %s731 = sshll.u32 %s726, 26
        %s732 = sor.u32 %s730, %s731
        %s733 = sshll.u32 [#allocation10], 4
        %s734 = int_to_ptr.vmem [resolvable:$true] %s733
        %737 = sst [smem:[#allocation36]] 256
        %s738 = scalar_lea.smem [#allocation36], 1
        %739 = sst [smem:[%s738]] 256
        %s740 = scalar_lea.smem [#allocation36], 2
        %741 = sst [smem:[%s740]] 2
        %s742 = scalar_lea.smem [#allocation36], 3
        %743 = sst [smem:[%s742]] 64
        %s744 = scalar_lea.smem [#allocation36], 4
        %745 = sst [smem:[%s744]] 128
        %s746 = scalar_lea.smem [#allocation36], 5
        %747 = sst [smem:[%s746]] 2
        %s748 = scalar_lea.smem [#allocation36], 6
        %749 = sst [smem:[%s748]] 128
        %s750 = scalar_lea.smem [#allocation36], 7
        %751 = sst [smem:[%s750]] 64
        %s752 = scalar_lea.smem [#allocation36], 8
        %753 = sst [smem:[%s752]] 4
        %755 = dma.general %s12, 8192, %s734, %s721, [#allocation35], [#allocation36], %s732, 0
        %v756 = vld [vmem:[%s593] sm:$0xff]
        %v757 = vld [vmem:[%s593 + $0x8] sm:$0xff]
        %v758 = vld [vmem:[%s593 + $0x10] sm:$0xff]
        %v759 = vld [vmem:[%s593 + $0x18] sm:$0xff]
        %v760 = vld [vmem:[%s593 + $0x20] sm:$0xff]
        %v761 = vld [vmem:[%s593 + $0x28] sm:$0xff]
        %v762 = vld [vmem:[%s593 + $0x30] sm:$0xff]
        %v763 = vld [vmem:[%s593 + $0x38] sm:$0xff]
        %v764 = vld [vmem:[%s593 + $0x40] sm:$0xff]
        %v765 = vld [vmem:[%s593 + $0x48] sm:$0xff]
        %v766 = vld [vmem:[%s593 + $0x50] sm:$0xff]
        %v767 = vld [vmem:[%s593 + $0x58] sm:$0xff]
        %v768 = vld [vmem:[%s593 + $0x60] sm:$0xff]
        %v769 = vld [vmem:[%s593 + $0x68] sm:$0xff]
        %v770 = vld [vmem:[%s593 + $0x70] sm:$0xff]
        %v771 = vld [vmem:[%s593 + $0x78] sm:$0xff]
        %v772 = vld [vmem:[%s593 + $0x80] sm:$0xff]
        %v773 = vld [vmem:[%s593 + $0x88] sm:$0xff]
        %v774 = vld [vmem:[%s593 + $0x90] sm:$0xff]
        %v775 = vld [vmem:[%s593 + $0x98] sm:$0xff]
        %v776 = vld [vmem:[%s593 + $0xa0] sm:$0xff]
        %v777 = vld [vmem:[%s593 + $0xa8] sm:$0xff]
        %v778 = vld [vmem:[%s593 + $0xb0] sm:$0xff]
        %v779 = vld [vmem:[%s593 + $0xb8] sm:$0xff]
        %v780 = vld [vmem:[%s593 + $0xc0] sm:$0xff]
        %v781 = vld [vmem:[%s593 + $0xc8] sm:$0xff]
        %v782 = vld [vmem:[%s593 + $0xd0] sm:$0xff]
        %v783 = vld [vmem:[%s593 + $0xd8] sm:$0xff]
        %v784 = vld [vmem:[%s593 + $0xe0] sm:$0xff]
        %v785 = vld [vmem:[%s593 + $0xe8] sm:$0xff]
        %v786 = vld [vmem:[%s593 + $0xf0] sm:$0xff]
        %v787 = vld [vmem:[%s593 + $0xf8] sm:$0xff]
        %v788 = vld [vmem:[%s593 + $0x100] sm:$0xff]
        %v789 = vld [vmem:[%s593 + $0x108] sm:$0xff]
        %v790 = vld [vmem:[%s593 + $0x110] sm:$0xff]
        %v791 = vld [vmem:[%s593 + $0x118] sm:$0xff]
        %v792 = vld [vmem:[%s593 + $0x120] sm:$0xff]
        %v793 = vld [vmem:[%s593 + $0x128] sm:$0xff]
        %v794 = vld [vmem:[%s593 + $0x130] sm:$0xff]
        %v795 = vld [vmem:[%s593 + $0x138] sm:$0xff]
        %v796 = vld [vmem:[%s593 + $0x140] sm:$0xff]
        %v797 = vld [vmem:[%s593 + $0x148] sm:$0xff]
        %v798 = vld [vmem:[%s593 + $0x150] sm:$0xff]
        %v799 = vld [vmem:[%s593 + $0x158] sm:$0xff]
        %v800 = vld [vmem:[%s593 + $0x160] sm:$0xff]
        %v801 = vld [vmem:[%s593 + $0x168] sm:$0xff]
        %v802 = vld [vmem:[%s593 + $0x170] sm:$0xff]
        %v803 = vld [vmem:[%s593 + $0x178] sm:$0xff]
        %804 = vxpose.xlu0.b32.start [1/16] %v756, 128
        %805 = vxpose.xlu0.b32.cont [2/16] %v759, 128
        %806 = vxpose.xlu0.b32.cont [3/16] %v762, 128
        %807 = vxpose.xlu0.b32.cont [4/16] %v765, 128
        %808 = vxpose.xlu0.b32.cont [5/16] %v768, 128
        %809 = vxpose.xlu0.b32.cont [6/16] %v771, 128
        %810 = vxpose.xlu0.b32.cont [7/16] %v774, 128
        %811 = vxpose.xlu0.b32.cont [8/16] %v777, 128
        %812 = vxpose.xlu0.b32.cont [9/16] %v780, 128
        %813 = vxpose.xlu0.b32.cont [10/16] %v783, 128
        %814 = vxpose.xlu0.b32.cont [11/16] %v786, 128
        %815 = vxpose.xlu0.b32.cont [12/16] %v789, 128
        %816 = vxpose.xlu0.b32.cont [13/16] %v792, 128
        %817 = vxpose.xlu0.b32.cont [14/16] %v795, 128
        %818 = vxpose.xlu0.b32.cont [15/16] %v798, 128
        %819 = vxpose.xlu0.b32.end [16/16] %v801, 128
        %v820 = vpop.trf.xlu0
        %v821 = vpop.trf.xlu0
        %v822 = vpop.trf.xlu0
        %v823 = vpop.trf.xlu0
        %v824 = vpop.trf.xlu0
        %v825 = vpop.trf.xlu0
        %v826 = vpop.trf.xlu0
        %v827 = vpop.trf.xlu0
        %v828 = vpop.trf.xlu0
        %v829 = vpop.trf.xlu0
        %v830 = vpop.trf.xlu0
        %v831 = vpop.trf.xlu0
        %v832 = vpop.trf.xlu0
        %v833 = vpop.trf.xlu0
        %v834 = vpop.trf.xlu0
        %v835 = vpop.trf.xlu0
        %836 = vxpose.xlu0.b32.start [1/16] %v757, 128
        %837 = vxpose.xlu0.b32.cont [2/16] %v760, 128
        %838 = vxpose.xlu0.b32.cont [3/16] %v763, 128
        %839 = vxpose.xlu0.b32.cont [4/16] %v766, 128
        %840 = vxpose.xlu0.b32.cont [5/16] %v769, 128
        %841 = vxpose.xlu0.b32.cont [6/16] %v772, 128
        %842 = vxpose.xlu0.b32.cont [7/16] %v775, 128
        %843 = vxpose.xlu0.b32.cont [8/16] %v778, 128
        %844 = vxpose.xlu0.b32.cont [9/16] %v781, 128
        %845 = vxpose.xlu0.b32.cont [10/16] %v784, 128
        %846 = vxpose.xlu0.b32.cont [11/16] %v787, 128
        %847 = vxpose.xlu0.b32.cont [12/16] %v790, 128
        %848 = vxpose.xlu0.b32.cont [13/16] %v793, 128
        %849 = vxpose.xlu0.b32.cont [14/16] %v796, 128
        %850 = vxpose.xlu0.b32.cont [15/16] %v799, 128
        %851 = vxpose.xlu0.b32.end [16/16] %v802, 128
        %v852 = vpop.trf.xlu0
        %v853 = vpop.trf.xlu0
        %v854 = vpop.trf.xlu0
        %v855 = vpop.trf.xlu0
        %v856 = vpop.trf.xlu0
        %v857 = vpop.trf.xlu0
        %v858 = vpop.trf.xlu0
        %v859 = vpop.trf.xlu0
        %v860 = vpop.trf.xlu0
        %v861 = vpop.trf.xlu0
        %v862 = vpop.trf.xlu0
        %v863 = vpop.trf.xlu0
        %v864 = vpop.trf.xlu0
        %v865 = vpop.trf.xlu0
        %v866 = vpop.trf.xlu0
        %v867 = vpop.trf.xlu0
        %868 = vxpose.xlu0.b32.start [1/16] %v758, 128
        %869 = vxpose.xlu0.b32.cont [2/16] %v761, 128
        %870 = vxpose.xlu0.b32.cont [3/16] %v764, 128
        %871 = vxpose.xlu0.b32.cont [4/16] %v767, 128
        %872 = vxpose.xlu0.b32.cont [5/16] %v770, 128
        %873 = vxpose.xlu0.b32.cont [6/16] %v773, 128
        %874 = vxpose.xlu0.b32.cont [7/16] %v776, 128
        %875 = vxpose.xlu0.b32.cont [8/16] %v779, 128
        %876 = vxpose.xlu0.b32.cont [9/16] %v782, 128
        %877 = vxpose.xlu0.b32.cont [10/16] %v785, 128
        %878 = vxpose.xlu0.b32.cont [11/16] %v788, 128
        %879 = vxpose.xlu0.b32.cont [12/16] %v791, 128
        %880 = vxpose.xlu0.b32.cont [13/16] %v794, 128
        %881 = vxpose.xlu0.b32.cont [14/16] %v797, 128
        %882 = vxpose.xlu0.b32.cont [15/16] %v800, 128
        %883 = vxpose.xlu0.b32.end [16/16] %v803, 128
        %v884 = vpop.trf.xlu0
        %v885 = vpop.trf.xlu0
        %v886 = vpop.trf.xlu0
        %v887 = vpop.trf.xlu0
        %v888 = vpop.trf.xlu0
        %v889 = vpop.trf.xlu0
        %v890 = vpop.trf.xlu0
        %v891 = vpop.trf.xlu0
        %v892 = vpop.trf.xlu0
        %v893 = vpop.trf.xlu0
        %v894 = vpop.trf.xlu0
        %v895 = vpop.trf.xlu0
        %v896 = vpop.trf.xlu0
        %v897 = vpop.trf.xlu0
        %v898 = vpop.trf.xlu0
        %v899 = vpop.trf.xlu0
        %v900 = vpack.c.bf16 %v821, %v820
        %v901 = vpack.c.bf16 %v823, %v822
        %v902 = vpack.c.bf16 %v825, %v824
        %v903 = vpack.c.bf16 %v827, %v826
        %v904 = vpack.c.bf16 %v829, %v828
        %v905 = vpack.c.bf16 %v831, %v830
        %v906 = vpack.c.bf16 %v833, %v832
        %v907 = vpack.c.bf16 %v835, %v834
        %v908 = vpack.c.bf16 %v853, %v852
        %v909 = vpack.c.bf16 %v855, %v854
        %v910 = vpack.c.bf16 %v857, %v856
        %v911 = vpack.c.bf16 %v859, %v858
        %v912 = vpack.c.bf16 %v861, %v860
        %v913 = vpack.c.bf16 %v863, %v862
        %v914 = vpack.c.bf16 %v865, %v864
        %v915 = vpack.c.bf16 %v867, %v866
        %v916 = vpack.c.bf16 %v885, %v884
        %v917 = vpack.c.bf16 %v887, %v886
        %v918 = vpack.c.bf16 %v889, %v888
        %v919 = vpack.c.bf16 %v891, %v890
        %v920 = vpack.c.bf16 %v893, %v892
        %v921 = vpack.c.bf16 %v895, %v894
        %v922 = vpack.c.bf16 %v897, %v896
        %v923 = vpack.c.bf16 %v899, %v898
        %924 = vst [vmem:[#allocation2] sm:$0x1] 0
        %925 = vst [vmem:[#allocation2 + $0x8] sm:$0x1] 0
        %926 = vst [vmem:[#allocation2 + $0x10] sm:$0x1] 0
        %927 = vst [vmem:[#allocation2 + $0x18] sm:$0x1] 0
        %928 = vst [vmem:[#allocation2 + $0x20] sm:$0x1] 0
        %929 = vst [vmem:[#allocation2 + $0x398] sm:$0x80] 0
        %930 = vst [vmem:[#allocation2 + $0x3a0] sm:$0x80] 0
        %931 = vst [vmem:[#allocation2 + $0x3a8] sm:$0x80] 0
        %932 = vst [vmem:[#allocation2 + $0x3b0] sm:$0x80] 0
        %933 = vst [vmem:[#allocation2 + $0x3b8] sm:$0x80] 0
        %vm958 = vcmask 1040384
        %v959 = vrot.slane %v900, 7
        %v960 = vrot.slane %v901, 7
        %v961 = vsel %vm958, %v959, %v960
        %v962 = vrot.slane %v902, 7
        %v963 = vsel %vm958, %v960, %v962
        %v964 = vrot.slane %v903, 7
        %v965 = vsel %vm958, %v962, %v964
        %v966 = vrot.slane %v904, 7
        %v967 = vsel %vm958, %v964, %v966
        %v968 = vrot.slane %v905, 7
        %v969 = vsel %vm958, %v966, %v968
        %v970 = vrot.slane %v906, 7
        %v971 = vsel %vm958, %v968, %v970
        %v972 = vrot.slane %v907, 7
        %v973 = vsel %vm958, %v970, %v972
        %v974 = vrot.slane %v908, 7
        %v975 = vsel %vm958, %v972, %v974
        %v976 = vrot.slane %v909, 7
        %v977 = vsel %vm958, %v974, %v976
        %v978 = vrot.slane %v910, 7
        %v979 = vsel %vm958, %v976, %v978
        %v980 = vrot.slane %v911, 7
        %v981 = vsel %vm958, %v978, %v980
        %v982 = vrot.slane %v912, 7
        %v983 = vsel %vm958, %v980, %v982
        %v984 = vrot.slane %v913, 7
        %v985 = vsel %vm958, %v982, %v984
        %v986 = vrot.slane %v914, 7
        %v987 = vsel %vm958, %v984, %v986
        %v988 = vrot.slane %v915, 7
        %v989 = vsel %vm958, %v986, %v988
        %v990 = vrot.slane %v916, 7
        %v991 = vsel %vm958, %v988, %v990
        %v992 = vrot.slane %v917, 7
        %v993 = vsel %vm958, %v990, %v992
        %v994 = vrot.slane %v918, 7
        %v995 = vsel %vm958, %v992, %v994
        %v996 = vrot.slane %v919, 7
        %v997 = vsel %vm958, %v994, %v996
        %v998 = vrot.slane %v920, 7
        %v999 = vsel %vm958, %v996, %v998
        %v1000 = vrot.slane %v921, 7
        %v1001 = vsel %vm958, %v998, %v1000
        %v1002 = vrot.slane %v922, 7
        %v1003 = vsel %vm958, %v1000, %v1002
        %v1004 = vrot.slane %v923, 7
        %v1005 = vsel %vm958, %v1002, %v1004
        %1030 = vst [vmem:[#allocation2] sm:$0xfe] %v959
        %1031 = vst [vmem:[#allocation2 + $0x28] sm:$0xff] %v961
        %1032 = vst [vmem:[#allocation2 + $0x50] sm:$0xff] %v963
        %1033 = vst [vmem:[#allocation2 + $0x78] sm:$0xff] %v965
        %1034 = vst [vmem:[#allocation2 + $0xa0] sm:$0xff] %v967
        %1035 = vst [vmem:[#allocation2 + $0xc8] sm:$0xff] %v969
        %1036 = vst [vmem:[#allocation2 + $0xf0] sm:$0xff] %v971
        %1037 = vst [vmem:[#allocation2 + $0x118] sm:$0xff] %v973
        %1038 = vst [vmem:[#allocation2 + $0x140] sm:$0xff] %v975
        %1039 = vst [vmem:[#allocation2 + $0x168] sm:$0xff] %v977
        %1040 = vst [vmem:[#allocation2 + $0x190] sm:$0xff] %v979
        %1041 = vst [vmem:[#allocation2 + $0x1b8] sm:$0xff] %v981
        %1042 = vst [vmem:[#allocation2 + $0x1e0] sm:$0xff] %v983
        %1043 = vst [vmem:[#allocation2 + $0x208] sm:$0xff] %v985
        %1044 = vst [vmem:[#allocation2 + $0x230] sm:$0xff] %v987
        %1045 = vst [vmem:[#allocation2 + $0x258] sm:$0xff] %v989
        %1046 = vst [vmem:[#allocation2 + $0x280] sm:$0xff] %v991
        %1047 = vst [vmem:[#allocation2 + $0x2a8] sm:$0xff] %v993
        %1048 = vst [vmem:[#allocation2 + $0x2d0] sm:$0xff] %v995
        %1049 = vst [vmem:[#allocation2 + $0x2f8] sm:$0xff] %v997
        %1050 = vst [vmem:[#allocation2 + $0x320] sm:$0xff] %v999
        %1051 = vst [vmem:[#allocation2 + $0x348] sm:$0xff] %v1001
        %1052 = vst [vmem:[#allocation2 + $0x370] sm:$0xff] %v1003
        %1053 = vst [vmem:[#allocation2 + $0x398] sm:$0xff] %v1005
        %vm1054 = vsmask.f32 256
        %v1056 = vshrl.u32 %v900, 16
        %v1058 = vrot.slane %v1056, 7
        %v1059 = vshll.u32 %v900, 16
        %v1061 = vor.u32 %v1058, %v1059
        %v1063 = vshrl.u32 %v901, 16
        %v1065 = vrot.slane %v1063, 7
        %v1066 = vshll.u32 %v901, 16
        %v1068 = vor.u32 %v1065, %v1066
        %v1069 = vsel %vm1054, %v1058, %v1068
        %v1071 = vshrl.u32 %v902, 16
        %v1073 = vrot.slane %v1071, 7
        %v1074 = vshll.u32 %v902, 16
        %v1076 = vor.u32 %v1073, %v1074
        %v1077 = vsel %vm1054, %v1065, %v1076
        %v1079 = vshrl.u32 %v903, 16
        %v1081 = vrot.slane %v1079, 7
        %v1082 = vshll.u32 %v903, 16
        %v1084 = vor.u32 %v1081, %v1082
        %v1085 = vsel %vm1054, %v1073, %v1084
        %v1087 = vshrl.u32 %v904, 16
        %v1089 = vrot.slane %v1087, 7
        %v1090 = vshll.u32 %v904, 16
        %v1092 = vor.u32 %v1089, %v1090
        %v1093 = vsel %vm1054, %v1081, %v1092
        %v1095 = vshrl.u32 %v905, 16
        %v1097 = vrot.slane %v1095, 7
        %v1098 = vshll.u32 %v905, 16
        %v1100 = vor.u32 %v1097, %v1098
        %v1101 = vsel %vm1054, %v1089, %v1100
        %v1103 = vshrl.u32 %v906, 16
        %v1105 = vrot.slane %v1103, 7
        %v1106 = vshll.u32 %v906, 16
        %v1108 = vor.u32 %v1105, %v1106
        %v1109 = vsel %vm1054, %v1097, %v1108
        %v1111 = vshrl.u32 %v907, 16
        %v1113 = vrot.slane %v1111, 7
        %v1114 = vshll.u32 %v907, 16
        %v1116 = vor.u32 %v1113, %v1114
        %v1117 = vsel %vm1054, %v1105, %v1116
        %v1119 = vshrl.u32 %v908, 16
        %v1121 = vrot.slane %v1119, 7
        %v1122 = vshll.u32 %v908, 16
        %v1124 = vor.u32 %v1121, %v1122
        %v1125 = vsel %vm1054, %v1113, %v1124
        %v1127 = vshrl.u32 %v909, 16
        %v1129 = vrot.slane %v1127, 7
        %v1130 = vshll.u32 %v909, 16
        %v1132 = vor.u32 %v1129, %v1130
        %v1133 = vsel %vm1054, %v1121, %v1132
        %v1135 = vshrl.u32 %v910, 16
        %v1137 = vrot.slane %v1135, 7
        %v1138 = vshll.u32 %v910, 16
        %v1140 = vor.u32 %v1137, %v1138
        %v1141 = vsel %vm1054, %v1129, %v1140
        %v1143 = vshrl.u32 %v911, 16
        %v1145 = vrot.slane %v1143, 7
        %v1146 = vshll.u32 %v911, 16
        %v1148 = vor.u32 %v1145, %v1146
        %v1149 = vsel %vm1054, %v1137, %v1148
        %v1151 = vshrl.u32 %v912, 16
        %v1153 = vrot.slane %v1151, 7
        %v1154 = vshll.u32 %v912, 16
        %v1156 = vor.u32 %v1153, %v1154
        %v1157 = vsel %vm1054, %v1145, %v1156
        %v1159 = vshrl.u32 %v913, 16
        %v1161 = vrot.slane %v1159, 7
        %v1162 = vshll.u32 %v913, 16
        %v1164 = vor.u32 %v1161, %v1162
        %v1165 = vsel %vm1054, %v1153, %v1164
        %v1167 = vshrl.u32 %v914, 16
        %v1169 = vrot.slane %v1167, 7
        %v1170 = vshll.u32 %v914, 16
        %v1172 = vor.u32 %v1169, %v1170
        %v1173 = vsel %vm1054, %v1161, %v1172
        %v1175 = vshrl.u32 %v915, 16
        %v1177 = vrot.slane %v1175, 7
        %v1178 = vshll.u32 %v915, 16
        %v1180 = vor.u32 %v1177, %v1178
        %v1181 = vsel %vm1054, %v1169, %v1180
        %v1183 = vshrl.u32 %v916, 16
        %v1185 = vrot.slane %v1183, 7
        %v1186 = vshll.u32 %v916, 16
        %v1188 = vor.u32 %v1185, %v1186
        %v1189 = vsel %vm1054, %v1177, %v1188
        %v1191 = vshrl.u32 %v917, 16
        %v1193 = vrot.slane %v1191, 7
        %v1194 = vshll.u32 %v917, 16
        %v1196 = vor.u32 %v1193, %v1194
        %v1197 = vsel %vm1054, %v1185, %v1196
        %v1199 = vshrl.u32 %v918, 16
        %v1201 = vrot.slane %v1199, 7
        %v1202 = vshll.u32 %v918, 16
        %v1204 = vor.u32 %v1201, %v1202
        %v1205 = vsel %vm1054, %v1193, %v1204
        %v1207 = vshrl.u32 %v919, 16
        %v1209 = vrot.slane %v1207, 7
        %v1210 = vshll.u32 %v919, 16
        %v1212 = vor.u32 %v1209, %v1210
        %v1213 = vsel %vm1054, %v1201, %v1212
        %v1215 = vshrl.u32 %v920, 16
        %v1217 = vrot.slane %v1215, 7
        %v1218 = vshll.u32 %v920, 16
        %v1220 = vor.u32 %v1217, %v1218
        %v1221 = vsel %vm1054, %v1209, %v1220
        %v1223 = vshrl.u32 %v921, 16
        %v1225 = vrot.slane %v1223, 7
        %v1226 = vshll.u32 %v921, 16
        %v1228 = vor.u32 %v1225, %v1226
        %v1229 = vsel %vm1054, %v1217, %v1228
        %v1231 = vshrl.u32 %v922, 16
        %v1233 = vrot.slane %v1231, 7
        %v1234 = vshll.u32 %v922, 16
        %v1236 = vor.u32 %v1233, %v1234
        %v1237 = vsel %vm1054, %v1225, %v1236
        %v1239 = vshrl.u32 %v923, 16
        %v1241 = vrot.slane %v1239, 7
        %v1242 = vshll.u32 %v923, 16
        %v1244 = vor.u32 %v1241, %v1242
        %v1245 = vsel %vm1054, %v1233, %v1244
        %vm1270 = vcmask 1047552
        %vm1271 = vsmask.f32 7938
        %vm1272 = vmand %vm1270, %vm1271
        %v1273 = vld [vmem:[#allocation2 + $0x8] sm:$0xff]
        %v1274 = vsel %vm1272, %v1061, %v1273
        %1275 = vst [vmem:[#allocation2 + $0x8] sm:$0xff] %v1274
        %1276 = vst [vmem:[#allocation2 + $0x30] sm:$0xff] %v1069
        %1277 = vst [vmem:[#allocation2 + $0x58] sm:$0xff] %v1077
        %1278 = vst [vmem:[#allocation2 + $0x80] sm:$0xff] %v1085
        %1279 = vst [vmem:[#allocation2 + $0xa8] sm:$0xff] %v1093
        %1280 = vst [vmem:[#allocation2 + $0xd0] sm:$0xff] %v1101
        %1281 = vst [vmem:[#allocation2 + $0xf8] sm:$0xff] %v1109
        %1282 = vst [vmem:[#allocation2 + $0x120] sm:$0xff] %v1117
        %1283 = vst [vmem:[#allocation2 + $0x148] sm:$0xff] %v1125
        %1284 = vst [vmem:[#allocation2 + $0x170] sm:$0xff] %v1133
        %1285 = vst [vmem:[#allocation2 + $0x198] sm:$0xff] %v1141
        %1286 = vst [vmem:[#allocation2 + $0x1c0] sm:$0xff] %v1149
        %1287 = vst [vmem:[#allocation2 + $0x1e8] sm:$0xff] %v1157
        %1288 = vst [vmem:[#allocation2 + $0x210] sm:$0xff] %v1165
        %1289 = vst [vmem:[#allocation2 + $0x238] sm:$0xff] %v1173
        %1290 = vst [vmem:[#allocation2 + $0x260] sm:$0xff] %v1181
        %1291 = vst [vmem:[#allocation2 + $0x288] sm:$0xff] %v1189
        %1292 = vst [vmem:[#allocation2 + $0x2b0] sm:$0xff] %v1197
        %1293 = vst [vmem:[#allocation2 + $0x2d8] sm:$0xff] %v1205
        %1294 = vst [vmem:[#allocation2 + $0x300] sm:$0xff] %v1213
        %1295 = vst [vmem:[#allocation2 + $0x328] sm:$0xff] %v1221
        %1296 = vst [vmem:[#allocation2 + $0x350] sm:$0xff] %v1229
        %1297 = vst [vmem:[#allocation2 + $0x378] sm:$0xff] %v1237
        %1298 = vst [vmem:[#allocation2 + $0x3a0] sm:$0xff] %v1245
        %1299 = vst [vmem:[#allocation2 + $0x10] sm:$0xff] %v900
        %1300 = vst [vmem:[#allocation2 + $0x38] sm:$0xff] %v901
        %1301 = vst [vmem:[#allocation2 + $0x60] sm:$0xff] %v902
        %1302 = vst [vmem:[#allocation2 + $0x88] sm:$0xff] %v903
        %1303 = vst [vmem:[#allocation2 + $0xb0] sm:$0xff] %v904
        %1304 = vst [vmem:[#allocation2 + $0xd8] sm:$0xff] %v905
        %1305 = vst [vmem:[#allocation2 + $0x100] sm:$0xff] %v906
        %1306 = vst [vmem:[#allocation2 + $0x128] sm:$0xff] %v907
        %1307 = vst [vmem:[#allocation2 + $0x150] sm:$0xff] %v908
        %1308 = vst [vmem:[#allocation2 + $0x178] sm:$0xff] %v909
        %1309 = vst [vmem:[#allocation2 + $0x1a0] sm:$0xff] %v910
        %1310 = vst [vmem:[#allocation2 + $0x1c8] sm:$0xff] %v911
        %1311 = vst [vmem:[#allocation2 + $0x1f0] sm:$0xff] %v912
        %1312 = vst [vmem:[#allocation2 + $0x218] sm:$0xff] %v913
        %1313 = vst [vmem:[#allocation2 + $0x240] sm:$0xff] %v914
        %1314 = vst [vmem:[#allocation2 + $0x268] sm:$0xff] %v915
        %1315 = vst [vmem:[#allocation2 + $0x290] sm:$0xff] %v916
        %1316 = vst [vmem:[#allocation2 + $0x2b8] sm:$0xff] %v917
        %1317 = vst [vmem:[#allocation2 + $0x2e0] sm:$0xff] %v918
        %1318 = vst [vmem:[#allocation2 + $0x308] sm:$0xff] %v919
        %1319 = vst [vmem:[#allocation2 + $0x330] sm:$0xff] %v920
        %1320 = vst [vmem:[#allocation2 + $0x358] sm:$0xff] %v921
        %1321 = vst [vmem:[#allocation2 + $0x380] sm:$0xff] %v922
        %1322 = vst [vmem:[#allocation2 + $0x3a8] sm:$0xff] %v923
        %vm1323 = vsmask.f32 7424
        %v1324 = vrot.slane %v1059, 1
        %v1325 = vor.u32 %v1056, %v1324
        %v1326 = vrot.slane %v1066, 1
        %v1327 = vsel %vm1323, %v1325, %v1326
        %v1328 = vor.u32 %v1063, %v1326
        %v1329 = vrot.slane %v1074, 1
        %v1330 = vsel %vm1323, %v1328, %v1329
        %v1331 = vor.u32 %v1071, %v1329
        %v1332 = vrot.slane %v1082, 1
        %v1333 = vsel %vm1323, %v1331, %v1332
        %v1334 = vor.u32 %v1079, %v1332
        %v1335 = vrot.slane %v1090, 1
        %v1336 = vsel %vm1323, %v1334, %v1335
        %v1337 = vor.u32 %v1087, %v1335
        %v1338 = vrot.slane %v1098, 1
        %v1339 = vsel %vm1323, %v1337, %v1338
        %v1340 = vor.u32 %v1095, %v1338
        %v1341 = vrot.slane %v1106, 1
        %v1342 = vsel %vm1323, %v1340, %v1341
        %v1343 = vor.u32 %v1103, %v1341
        %v1344 = vrot.slane %v1114, 1
        %v1345 = vsel %vm1323, %v1343, %v1344
        %v1346 = vor.u32 %v1111, %v1344
        %v1347 = vrot.slane %v1122, 1
        %v1348 = vsel %vm1323, %v1346, %v1347
        %v1349 = vor.u32 %v1119, %v1347
        %v1350 = vrot.slane %v1130, 1
        %v1351 = vsel %vm1323, %v1349, %v1350
        %v1352 = vor.u32 %v1127, %v1350
        %v1353 = vrot.slane %v1138, 1
        %v1354 = vsel %vm1323, %v1352, %v1353
        %v1355 = vor.u32 %v1135, %v1353
        %v1356 = vrot.slane %v1146, 1
        %v1357 = vsel %vm1323, %v1355, %v1356
        %v1358 = vor.u32 %v1143, %v1356
        %v1359 = vrot.slane %v1154, 1
        %v1360 = vsel %vm1323, %v1358, %v1359
        %v1361 = vor.u32 %v1151, %v1359
        %v1362 = vrot.slane %v1162, 1
        %v1363 = vsel %vm1323, %v1361, %v1362
        %v1364 = vor.u32 %v1159, %v1362
        %v1365 = vrot.slane %v1170, 1
        %v1366 = vsel %vm1323, %v1364, %v1365
        %v1367 = vor.u32 %v1167, %v1365
        %v1368 = vrot.slane %v1178, 1
        %v1369 = vsel %vm1323, %v1367, %v1368
        %v1370 = vor.u32 %v1175, %v1368
        %v1371 = vrot.slane %v1186, 1
        %v1372 = vsel %vm1323, %v1370, %v1371
        %v1373 = vor.u32 %v1183, %v1371
        %v1374 = vrot.slane %v1194, 1
        %v1375 = vsel %vm1323, %v1373, %v1374
        %v1376 = vor.u32 %v1191, %v1374
        %v1377 = vrot.slane %v1202, 1
        %v1378 = vsel %vm1323, %v1376, %v1377
        %v1379 = vor.u32 %v1199, %v1377
        %v1380 = vrot.slane %v1210, 1
        %v1381 = vsel %vm1323, %v1379, %v1380
        %v1382 = vor.u32 %v1207, %v1380
        %v1383 = vrot.slane %v1218, 1
        %v1384 = vsel %vm1323, %v1382, %v1383
        %v1385 = vor.u32 %v1215, %v1383
        %v1386 = vrot.slane %v1226, 1
        %v1387 = vsel %vm1323, %v1385, %v1386
        %v1388 = vor.u32 %v1223, %v1386
        %v1389 = vrot.slane %v1234, 1
        %v1390 = vsel %vm1323, %v1388, %v1389
        %v1391 = vor.u32 %v1231, %v1389
        %v1392 = vrot.slane %v1242, 1
        %v1393 = vsel %vm1323, %v1391, %v1392
        %v1394 = vor.u32 %v1239, %v1392
        %1419 = vst [vmem:[#allocation2 + $0x18] sm:$0xff] %v1327
        %1420 = vst [vmem:[#allocation2 + $0x40] sm:$0xff] %v1330
        %1421 = vst [vmem:[#allocation2 + $0x68] sm:$0xff] %v1333
        %1422 = vst [vmem:[#allocation2 + $0x90] sm:$0xff] %v1336
        %1423 = vst [vmem:[#allocation2 + $0xb8] sm:$0xff] %v1339
        %1424 = vst [vmem:[#allocation2 + $0xe0] sm:$0xff] %v1342
        %1425 = vst [vmem:[#allocation2 + $0x108] sm:$0xff] %v1345
        %1426 = vst [vmem:[#allocation2 + $0x130] sm:$0xff] %v1348
        %1427 = vst [vmem:[#allocation2 + $0x158] sm:$0xff] %v1351
        %1428 = vst [vmem:[#allocation2 + $0x180] sm:$0xff] %v1354
        %1429 = vst [vmem:[#allocation2 + $0x1a8] sm:$0xff] %v1357
        %1430 = vst [vmem:[#allocation2 + $0x1d0] sm:$0xff] %v1360
        %1431 = vst [vmem:[#allocation2 + $0x1f8] sm:$0xff] %v1363
        %1432 = vst [vmem:[#allocation2 + $0x220] sm:$0xff] %v1366
        %1433 = vst [vmem:[#allocation2 + $0x248] sm:$0xff] %v1369
        %1434 = vst [vmem:[#allocation2 + $0x270] sm:$0xff] %v1372
        %1435 = vst [vmem:[#allocation2 + $0x298] sm:$0xff] %v1375
        %1436 = vst [vmem:[#allocation2 + $0x2c0] sm:$0xff] %v1378
        %1437 = vst [vmem:[#allocation2 + $0x2e8] sm:$0xff] %v1381
        %1438 = vst [vmem:[#allocation2 + $0x310] sm:$0xff] %v1384
        %1439 = vst [vmem:[#allocation2 + $0x338] sm:$0xff] %v1387
        %1440 = vst [vmem:[#allocation2 + $0x360] sm:$0xff] %v1390
        %1441 = vst [vmem:[#allocation2 + $0x388] sm:$0xff] %v1393
        %vm1442 = vmand %vm1270, %vm1323
        %v1443 = vld [vmem:[#allocation2 + $0x3b0] sm:$0xff]
        %v1444 = vsel %vm1442, %v1394, %v1443
        %1445 = vst [vmem:[#allocation2 + $0x3b0] sm:$0xff] %v1444
        %vm1446 = vcmask 1046528
        %v1447 = vrot.slane %v900, 1
        %v1448 = vrot.slane %v901, 1
        %v1449 = vsel %vm1446, %v1447, %v1448
        %v1450 = vrot.slane %v902, 1
        %v1451 = vsel %vm1446, %v1448, %v1450
        %v1452 = vrot.slane %v903, 1
        %v1453 = vsel %vm1446, %v1450, %v1452
        %v1454 = vrot.slane %v904, 1
        %v1455 = vsel %vm1446, %v1452, %v1454
        %v1456 = vrot.slane %v905, 1
        %v1457 = vsel %vm1446, %v1454, %v1456
        %v1458 = vrot.slane %v906, 1
        %v1459 = vsel %vm1446, %v1456, %v1458
        %v1460 = vrot.slane %v907, 1
        %v1461 = vsel %vm1446, %v1458, %v1460
        %v1462 = vrot.slane %v908, 1
        %v1463 = vsel %vm1446, %v1460, %v1462
        %v1464 = vrot.slane %v909, 1
        %v1465 = vsel %vm1446, %v1462, %v1464
        %v1466 = vrot.slane %v910, 1
        %v1467 = vsel %vm1446, %v1464, %v1466
        %v1468 = vrot.slane %v911, 1
        %v1469 = vsel %vm1446, %v1466, %v1468
        %v1470 = vrot.slane %v912, 1
        %v1471 = vsel %vm1446, %v1468, %v1470
        %v1472 = vrot.slane %v913, 1
        %v1473 = vsel %vm1446, %v1470, %v1472
        %v1474 = vrot.slane %v914, 1
        %v1475 = vsel %vm1446, %v1472, %v1474
        %v1476 = vrot.slane %v915, 1
        %v1477 = vsel %vm1446, %v1474, %v1476
        %v1478 = vrot.slane %v916, 1
        %v1479 = vsel %vm1446, %v1476, %v1478
        %v1480 = vrot.slane %v917, 1
        %v1481 = vsel %vm1446, %v1478, %v1480
        %v1482 = vrot.slane %v918, 1
        %v1483 = vsel %vm1446, %v1480, %v1482
        %v1484 = vrot.slane %v919, 1
        %v1485 = vsel %vm1446, %v1482, %v1484
        %v1486 = vrot.slane %v920, 1
        %v1487 = vsel %vm1446, %v1484, %v1486
        %v1488 = vrot.slane %v921, 1
        %v1489 = vsel %vm1446, %v1486, %v1488
        %v1490 = vrot.slane %v922, 1
        %v1491 = vsel %vm1446, %v1488, %v1490
        %v1492 = vrot.slane %v923, 1
        %v1493 = vsel %vm1446, %v1490, %v1492
        %1518 = vst [vmem:[#allocation2 + $0x20] sm:$0xff] %v1449
        %1519 = vst [vmem:[#allocation2 + $0x48] sm:$0xff] %v1451
        %1520 = vst [vmem:[#allocation2 + $0x70] sm:$0xff] %v1453
        %1521 = vst [vmem:[#allocation2 + $0x98] sm:$0xff] %v1455
        %1522 = vst [vmem:[#allocation2 + $0xc0] sm:$0xff] %v1457
        %1523 = vst [vmem:[#allocation2 + $0xe8] sm:$0xff] %v1459
        %1524 = vst [vmem:[#allocation2 + $0x110] sm:$0xff] %v1461
        %1525 = vst [vmem:[#allocation2 + $0x138] sm:$0xff] %v1463
        %1526 = vst [vmem:[#allocation2 + $0x160] sm:$0xff] %v1465
        %1527 = vst [vmem:[#allocation2 + $0x188] sm:$0xff] %v1467
        %1528 = vst [vmem:[#allocation2 + $0x1b0] sm:$0xff] %v1469
        %1529 = vst [vmem:[#allocation2 + $0x1d8] sm:$0xff] %v1471
        %1530 = vst [vmem:[#allocation2 + $0x200] sm:$0xff] %v1473
        %1531 = vst [vmem:[#allocation2 + $0x228] sm:$0xff] %v1475
        %1532 = vst [vmem:[#allocation2 + $0x250] sm:$0xff] %v1477
        %1533 = vst [vmem:[#allocation2 + $0x278] sm:$0xff] %v1479
        %1534 = vst [vmem:[#allocation2 + $0x2a0] sm:$0xff] %v1481
        %1535 = vst [vmem:[#allocation2 + $0x2c8] sm:$0xff] %v1483
        %1536 = vst [vmem:[#allocation2 + $0x2f0] sm:$0xff] %v1485
        %1537 = vst [vmem:[#allocation2 + $0x318] sm:$0xff] %v1487
        %1538 = vst [vmem:[#allocation2 + $0x340] sm:$0xff] %v1489
        %1539 = vst [vmem:[#allocation2 + $0x368] sm:$0xff] %v1491
        %1540 = vst [vmem:[#allocation2 + $0x390] sm:$0xff] %v1493
        %1541 = vst [vmem:[#allocation2 + $0x3b8] sm:$0x7f] %v1492
        %v1542 = vld [vmem:[#allocation2] sm:$0xff]
        %v1543 = vld [vmem:[#allocation2 + $0x8] sm:$0xff]
        %v1544 = vld [vmem:[#allocation2 + $0x10] sm:$0xff]
        %v1545 = vld [vmem:[#allocation2 + $0x18] sm:$0xff]
        %v1546 = vld [vmem:[#allocation2 + $0x20] sm:$0xff]
        %v1547 = vld [vmem:[#allocation2 + $0x28] sm:$0xff]
        %v1548 = vld [vmem:[#allocation2 + $0x30] sm:$0xff]
        %v1549 = vld [vmem:[#allocation2 + $0x38] sm:$0xff]
        %v1550 = vld [vmem:[#allocation2 + $0x40] sm:$0xff]
        %v1551 = vld [vmem:[#allocation2 + $0x48] sm:$0xff]
        %v1552 = vld [vmem:[#allocation2 + $0x50] sm:$0xff]
        %v1553 = vld [vmem:[#allocation2 + $0x58] sm:$0xff]
        %v1554 = vld [vmem:[#allocation2 + $0x60] sm:$0xff]
        %v1555 = vld [vmem:[#allocation2 + $0x68] sm:$0xff]
        %v1556 = vld [vmem:[#allocation2 + $0x70] sm:$0xff]
        %v1557 = vld [vmem:[#allocation2 + $0x78] sm:$0xff]
        %v1558 = vld [vmem:[#allocation2 + $0x80] sm:$0xff]
        %v1559 = vld [vmem:[#allocation2 + $0x88] sm:$0xff]
        %v1560 = vld [vmem:[#allocation2 + $0x90] sm:$0xff]
        %v1561 = vld [vmem:[#allocation2 + $0x98] sm:$0xff]
        %v1562 = vld [vmem:[#allocation2 + $0xa0] sm:$0xff]
        %v1563 = vld [vmem:[#allocation2 + $0xa8] sm:$0xff]
        %v1564 = vld [vmem:[#allocation2 + $0xb0] sm:$0xff]
        %v1565 = vld [vmem:[#allocation2 + $0xb8] sm:$0xff]
        %v1566 = vld [vmem:[#allocation2 + $0xc0] sm:$0xff]
        %v1567 = vld [vmem:[#allocation2 + $0xc8] sm:$0xff]
        %v1568 = vld [vmem:[#allocation2 + $0xd0] sm:$0xff]
        %v1569 = vld [vmem:[#allocation2 + $0xd8] sm:$0xff]
        %v1570 = vld [vmem:[#allocation2 + $0xe0] sm:$0xff]
        %v1571 = vld [vmem:[#allocation2 + $0xe8] sm:$0xff]
        %v1572 = vld [vmem:[#allocation2 + $0xf0] sm:$0xff]
        %v1573 = vld [vmem:[#allocation2 + $0xf8] sm:$0xff]
        %v1574 = vld [vmem:[#allocation2 + $0x100] sm:$0xff]
        %v1575 = vld [vmem:[#allocation2 + $0x108] sm:$0xff]
        %v1576 = vld [vmem:[#allocation2 + $0x110] sm:$0xff]
        %v1577 = vld [vmem:[#allocation2 + $0x118] sm:$0xff]
        %v1578 = vld [vmem:[#allocation2 + $0x120] sm:$0xff]
        %v1579 = vld [vmem:[#allocation2 + $0x128] sm:$0xff]
        %v1580 = vld [vmem:[#allocation2 + $0x130] sm:$0xff]
        %v1581 = vld [vmem:[#allocation2 + $0x138] sm:$0xff]
        %v1582 = vld [vmem:[#allocation2 + $0x140] sm:$0xff]
        %v1583 = vld [vmem:[#allocation2 + $0x148] sm:$0xff]
        %v1584 = vld [vmem:[#allocation2 + $0x150] sm:$0xff]
        %v1585 = vld [vmem:[#allocation2 + $0x158] sm:$0xff]
        %v1586 = vld [vmem:[#allocation2 + $0x160] sm:$0xff]
        %v1587 = vld [vmem:[#allocation2 + $0x168] sm:$0xff]
        %v1588 = vld [vmem:[#allocation2 + $0x170] sm:$0xff]
        %v1589 = vld [vmem:[#allocation2 + $0x178] sm:$0xff]
        %v1590 = vld [vmem:[#allocation2 + $0x180] sm:$0xff]
        %v1591 = vld [vmem:[#allocation2 + $0x188] sm:$0xff]
        %v1592 = vld [vmem:[#allocation2 + $0x190] sm:$0xff]
        %v1593 = vld [vmem:[#allocation2 + $0x198] sm:$0xff]
        %v1594 = vld [vmem:[#allocation2 + $0x1a0] sm:$0xff]
        %v1595 = vld [vmem:[#allocation2 + $0x1a8] sm:$0xff]
        %v1596 = vld [vmem:[#allocation2 + $0x1b0] sm:$0xff]
        %v1597 = vld [vmem:[#allocation2 + $0x1b8] sm:$0xff]
        %v1598 = vld [vmem:[#allocation2 + $0x1c0] sm:$0xff]
        %v1599 = vld [vmem:[#allocation2 + $0x1c8] sm:$0xff]
        %v1600 = vld [vmem:[#allocation2 + $0x1d0] sm:$0xff]
        %v1601 = vld [vmem:[#allocation2 + $0x1d8] sm:$0xff]
        %v1602 = vld [vmem:[#allocation2 + $0x1e0] sm:$0xff]
        %v1603 = vld [vmem:[#allocation2 + $0x1e8] sm:$0xff]
        %v1604 = vld [vmem:[#allocation2 + $0x1f0] sm:$0xff]
        %v1605 = vld [vmem:[#allocation2 + $0x1f8] sm:$0xff]
        %v1606 = vld [vmem:[#allocation2 + $0x200] sm:$0xff]
        %v1607 = vld [vmem:[#allocation2 + $0x208] sm:$0xff]
        %v1608 = vld [vmem:[#allocation2 + $0x210] sm:$0xff]
        %v1609 = vld [vmem:[#allocation2 + $0x218] sm:$0xff]
        %v1610 = vld [vmem:[#allocation2 + $0x220] sm:$0xff]
        %v1611 = vld [vmem:[#allocation2 + $0x228] sm:$0xff]
        %v1612 = vld [vmem:[#allocation2 + $0x230] sm:$0xff]
        %v1613 = vld [vmem:[#allocation2 + $0x238] sm:$0xff]
        %v1614 = vld [vmem:[#allocation2 + $0x240] sm:$0xff]
        %v1615 = vld [vmem:[#allocation2 + $0x248] sm:$0xff]
        %v1616 = vld [vmem:[#allocation2 + $0x250] sm:$0xff]
        %v1617 = vld [vmem:[#allocation2 + $0x258] sm:$0xff]
        %v1618 = vld [vmem:[#allocation2 + $0x260] sm:$0xff]
        %v1619 = vld [vmem:[#allocation2 + $0x268] sm:$0xff]
        %v1620 = vld [vmem:[#allocation2 + $0x270] sm:$0xff]
        %v1621 = vld [vmem:[#allocation2 + $0x278] sm:$0xff]
        %v1622 = vld [vmem:[#allocation2 + $0x280] sm:$0xff]
        %v1623 = vld [vmem:[#allocation2 + $0x288] sm:$0xff]
        %v1624 = vld [vmem:[#allocation2 + $0x290] sm:$0xff]
        %v1625 = vld [vmem:[#allocation2 + $0x298] sm:$0xff]
        %v1626 = vld [vmem:[#allocation2 + $0x2a0] sm:$0xff]
        %v1627 = vld [vmem:[#allocation2 + $0x2a8] sm:$0xff]
        %v1628 = vld [vmem:[#allocation2 + $0x2b0] sm:$0xff]
        %v1629 = vld [vmem:[#allocation2 + $0x2b8] sm:$0xff]
        %v1630 = vld [vmem:[#allocation2 + $0x2c0] sm:$0xff]
        %v1631 = vld [vmem:[#allocation2 + $0x2c8] sm:$0xff]
        %v1632 = vld [vmem:[#allocation2 + $0x2d0] sm:$0xff]
        %v1633 = vld [vmem:[#allocation2 + $0x2d8] sm:$0xff]
        %v1634 = vld [vmem:[#allocation2 + $0x2e0] sm:$0xff]
        %v1635 = vld [vmem:[#allocation2 + $0x2e8] sm:$0xff]
        %v1636 = vld [vmem:[#allocation2 + $0x2f0] sm:$0xff]
        %v1637 = vld [vmem:[#allocation2 + $0x2f8] sm:$0xff]
        %v1638 = vld [vmem:[#allocation2 + $0x300] sm:$0xff]
        %v1639 = vld [vmem:[#allocation2 + $0x308] sm:$0xff]
        %v1640 = vld [vmem:[#allocation2 + $0x310] sm:$0xff]
        %v1641 = vld [vmem:[#allocation2 + $0x318] sm:$0xff]
        %v1642 = vld [vmem:[#allocation2 + $0x320] sm:$0xff]
        %v1643 = vld [vmem:[#allocation2 + $0x328] sm:$0xff]
        %v1644 = vld [vmem:[#allocation2 + $0x330] sm:$0xff]
        %v1645 = vld [vmem:[#allocation2 + $0x338] sm:$0xff]
        %v1646 = vld [vmem:[#allocation2 + $0x340] sm:$0xff]
        %v1647 = vld [vmem:[#allocation2 + $0x348] sm:$0xff]
        %v1648 = vld [vmem:[#allocation2 + $0x350] sm:$0xff]
        %v1649 = vld [vmem:[#allocation2 + $0x358] sm:$0xff]
        %v1650 = vld [vmem:[#allocation2 + $0x360] sm:$0xff]
        %v1651 = vld [vmem:[#allocation2 + $0x368] sm:$0xff]
        %v1652 = vld [vmem:[#allocation2 + $0x370] sm:$0xff]
        %v1653 = vld [vmem:[#allocation2 + $0x378] sm:$0xff]
        %v1654 = vld [vmem:[#allocation2 + $0x380] sm:$0xff]
        %v1655 = vld [vmem:[#allocation2 + $0x388] sm:$0xff]
        %v1656 = vld [vmem:[#allocation2 + $0x390] sm:$0xff]
        %v1657 = vld [vmem:[#allocation2 + $0x398] sm:$0xff]
        %v1658 = vld [vmem:[#allocation2 + $0x3a0] sm:$0xff]
        %v1659 = vld [vmem:[#allocation2 + $0x3a8] sm:$0xff]
        %v1660 = vld [vmem:[#allocation2 + $0x3b0] sm:$0xff]
        %v1661 = vld [vmem:[#allocation2 + $0x3b8] sm:$0xff]
        %v1662 = vld [vmem:[%s1] sm:$0xf]
        %v1663 = vld [vmem:[%s1 + $0x4] sm:$0xf]
        %v1664 = vld [vmem:[%s1 + $0x8] sm:$0xf]
        %v1665 = vld [vmem:[%s1 + $0xc] sm:$0xf]
        %v1666 = vld [vmem:[%s1 + $0x10] sm:$0xf]
        %v1667 = vld [vmem:[%s1 + $0x14] sm:$0xf]
        %v1668 = vld [vmem:[%s1 + $0x18] sm:$0xf]
        %v1669 = vld [vmem:[%s1 + $0x1c] sm:$0xf]
        %v1670 = vld [vmem:[%s1 + $0x20] sm:$0xf]
        %v1671 = vld [vmem:[%s1 + $0x24] sm:$0xf]
        %v1672 = vld [vmem:[%s1 + $0x28] sm:$0xf]
        %v1673 = vld [vmem:[%s1 + $0x2c] sm:$0xf]
        %v1674 = vld [vmem:[%s1 + $0x30] sm:$0xf]
        %v1675 = vld [vmem:[%s1 + $0x34] sm:$0xf]
        %v1676 = vld [vmem:[%s1 + $0x38] sm:$0xf]
        %v1677 = vld [vmem:[%s1 + $0x3c] sm:$0xf]
        %v1678 = vld [vmem:[%s1 + $0x40] sm:$0xf]
        %v1679 = vld [vmem:[%s1 + $0x44] sm:$0xf]
        %v1680 = vld [vmem:[%s1 + $0x48] sm:$0xf]
        %v1681 = vld [vmem:[%s1 + $0x4c] sm:$0xf]
        %v1682 = vld [vmem:[%s1 + $0x50] sm:$0xf]
        %v1683 = vld [vmem:[%s1 + $0x54] sm:$0xf]
        %v1684 = vld [vmem:[%s1 + $0x58] sm:$0xf]
        %v1685 = vld [vmem:[%s1 + $0x5c] sm:$0xf]
        %v1686 = vld [vmem:[%s1 + $0x60] sm:$0xf]
        %v1687 = vld [vmem:[%s1 + $0x64] sm:$0xf]
        %v1688 = vld [vmem:[%s1 + $0x68] sm:$0xf]
        %v1689 = vld [vmem:[%s1 + $0x6c] sm:$0xf]
        %v1690 = vld [vmem:[%s1 + $0x70] sm:$0xf]
        %v1691 = vld [vmem:[%s1 + $0x74] sm:$0xf]
        %v1692 = vld [vmem:[%s1 + $0x78] sm:$0xf]
        %v1693 = vld [vmem:[%s1 + $0x7c] sm:$0xf]
        %v1694 = vld [vmem:[%s1 + $0x80] sm:$0xf]
        %v1695 = vld [vmem:[%s1 + $0x84] sm:$0xf]
        %v1696 = vld [vmem:[%s1 + $0x88] sm:$0xf]
        %v1697 = vld [vmem:[%s1 + $0x8c] sm:$0xf]
        %v1698 = vld [vmem:[%s1 + $0x90] sm:$0xf]
        %v1699 = vld [vmem:[%s1 + $0x94] sm:$0xf]
        %v1700 = vld [vmem:[%s1 + $0x98] sm:$0xf]
        %v1701 = vld [vmem:[%s1 + $0x9c] sm:$0xf]
        %v1702 = vld [vmem:[%s1 + $0xa0] sm:$0xf]
        %v1703 = vld [vmem:[%s1 + $0xa4] sm:$0xf]
        %v1704 = vld [vmem:[%s1 + $0xa8] sm:$0xf]
        %v1705 = vld [vmem:[%s1 + $0xac] sm:$0xf]
        %v1706 = vld [vmem:[%s1 + $0xb0] sm:$0xf]
        %v1707 = vld [vmem:[%s1 + $0xb4] sm:$0xf]
        %v1708 = vld [vmem:[%s1 + $0xb8] sm:$0xf]
        %v1709 = vld [vmem:[%s1 + $0xbc] sm:$0xf]
        %v1710 = vld [vmem:[%s1 + $0xc0] sm:$0xf]
        %v1711 = vld [vmem:[%s1 + $0xc4] sm:$0xf]
        %v1712 = vld [vmem:[%s1 + $0xc8] sm:$0xf]
        %v1713 = vld [vmem:[%s1 + $0xcc] sm:$0xf]
        %v1714 = vld [vmem:[%s1 + $0xd0] sm:$0xf]
        %v1715 = vld [vmem:[%s1 + $0xd4] sm:$0xf]
        %v1716 = vld [vmem:[%s1 + $0xd8] sm:$0xf]
        %v1717 = vld [vmem:[%s1 + $0xdc] sm:$0xf]
        %v1718 = vld [vmem:[%s1 + $0xe0] sm:$0xf]
        %v1719 = vld [vmem:[%s1 + $0xe4] sm:$0xf]
        %v1720 = vld [vmem:[%s1 + $0xe8] sm:$0xf]
        %v1721 = vld [vmem:[%s1 + $0xec] sm:$0xf]
        %v1722 = vld [vmem:[%s1 + $0xf0] sm:$0xf]
        %v1723 = vld [vmem:[%s1 + $0xf4] sm:$0xf]
        %v1724 = vld [vmem:[%s1 + $0xf8] sm:$0xf]
        %v1725 = vld [vmem:[%s1 + $0xfc] sm:$0xf]
        %v1726 = vld [vmem:[%s1 + $0x100] sm:$0xf]
        %v1727 = vld [vmem:[%s1 + $0x104] sm:$0xf]
        %v1728 = vld [vmem:[%s1 + $0x108] sm:$0xf]
        %v1729 = vld [vmem:[%s1 + $0x10c] sm:$0xf]
        %v1730 = vld [vmem:[%s1 + $0x110] sm:$0xf]
        %v1731 = vld [vmem:[%s1 + $0x114] sm:$0xf]
        %v1732 = vld [vmem:[%s1 + $0x118] sm:$0xf]
        %v1733 = vld [vmem:[%s1 + $0x11c] sm:$0xf]
        %v1734 = vld [vmem:[%s1 + $0x120] sm:$0xf]
        %v1735 = vld [vmem:[%s1 + $0x124] sm:$0xf]
        %v1736 = vld [vmem:[%s1 + $0x128] sm:$0xf]
        %v1737 = vld [vmem:[%s1 + $0x12c] sm:$0xf]
        %v1738 = vld [vmem:[%s1 + $0x130] sm:$0xf]
        %v1739 = vld [vmem:[%s1 + $0x134] sm:$0xf]
        %v1740 = vld [vmem:[%s1 + $0x138] sm:$0xf]
        %v1741 = vld [vmem:[%s1 + $0x13c] sm:$0xf]
        %v1742 = vld [vmem:[#allocation15] sm:$0x1]
        %v1744 = vlaneseq
        %v1745 = vshrl.u32 %v1744, 7
        %v1746 = vsub.s32 0, %v1745
        %v1747 = vrot.slane %v1742, %v1746
        %v1829 = vunpack.c.l.b16 %v1662
        %v1830 = vunpack.c.l.b16 %v1663
        %v1831 = vunpack.c.l.b16 %v1664
        %v1832 = vunpack.c.l.b16 %v1665
        %v1833 = vunpack.c.l.b16 %v1666
        %v1834 = vunpack.c.l.b16 %v1667
        %v1835 = vunpack.c.l.b16 %v1668
        %v1836 = vunpack.c.l.b16 %v1669
        %v1837 = vunpack.c.l.b16 %v1670
        %v1838 = vunpack.c.l.b16 %v1671
        %v1839 = vunpack.c.l.b16 %v1672
        %v1840 = vunpack.c.l.b16 %v1673
        %v1841 = vunpack.c.l.b16 %v1674
        %v1842 = vunpack.c.l.b16 %v1675
        %v1843 = vunpack.c.l.b16 %v1676
        %v1844 = vunpack.c.l.b16 %v1677
        %v1845 = vunpack.c.l.b16 %v1678
        %v1846 = vunpack.c.l.b16 %v1679
        %v1847 = vunpack.c.l.b16 %v1680
        %v1848 = vunpack.c.l.b16 %v1681
        %v1849 = vunpack.c.l.b16 %v1682
        %v1850 = vunpack.c.l.b16 %v1683
        %v1851 = vunpack.c.l.b16 %v1684
        %v1852 = vunpack.c.l.b16 %v1685
        %v1853 = vunpack.c.l.b16 %v1686
        %v1854 = vunpack.c.l.b16 %v1687
        %v1855 = vunpack.c.l.b16 %v1688
        %v1856 = vunpack.c.l.b16 %v1689
        %v1857 = vunpack.c.l.b16 %v1690
        %v1858 = vunpack.c.l.b16 %v1691
        %v1859 = vunpack.c.l.b16 %v1692
        %v1860 = vunpack.c.l.b16 %v1693
        %v1861 = vunpack.c.l.b16 %v1694
        %v1862 = vunpack.c.l.b16 %v1695
        %v1863 = vunpack.c.l.b16 %v1696
        %v1864 = vunpack.c.l.b16 %v1697
        %v1865 = vunpack.c.l.b16 %v1698
        %v1866 = vunpack.c.l.b16 %v1699
        %v1867 = vunpack.c.l.b16 %v1700
        %v1868 = vunpack.c.l.b16 %v1701
        %v1869 = vunpack.c.l.b16 %v1702
        %v1870 = vunpack.c.l.b16 %v1703
        %v1871 = vunpack.c.l.b16 %v1704
        %v1872 = vunpack.c.l.b16 %v1705
        %v1873 = vunpack.c.l.b16 %v1706
        %v1874 = vunpack.c.l.b16 %v1707
        %v1875 = vunpack.c.l.b16 %v1708
        %v1876 = vunpack.c.l.b16 %v1709
        %v1877 = vunpack.c.l.b16 %v1710
        %v1878 = vunpack.c.l.b16 %v1711
        %v1879 = vunpack.c.l.b16 %v1712
        %v1880 = vunpack.c.l.b16 %v1713
        %v1881 = vunpack.c.l.b16 %v1714
        %v1882 = vunpack.c.l.b16 %v1715
        %v1883 = vunpack.c.l.b16 %v1716
        %v1884 = vunpack.c.l.b16 %v1717
        %v1885 = vunpack.c.l.b16 %v1718
        %v1886 = vunpack.c.l.b16 %v1719
        %v1887 = vunpack.c.l.b16 %v1720
        %v1888 = vunpack.c.l.b16 %v1721
        %v1889 = vunpack.c.l.b16 %v1722
        %v1890 = vunpack.c.l.b16 %v1723
        %v1891 = vunpack.c.l.b16 %v1724
        %v1892 = vunpack.c.l.b16 %v1725
        %v1893 = vunpack.c.l.b16 %v1726
        %v1894 = vunpack.c.l.b16 %v1727
        %v1895 = vunpack.c.l.b16 %v1728
        %v1896 = vunpack.c.l.b16 %v1729
        %v1897 = vunpack.c.l.b16 %v1730
        %v1898 = vunpack.c.l.b16 %v1731
        %v1899 = vunpack.c.l.b16 %v1732
        %v1900 = vunpack.c.l.b16 %v1733
        %v1901 = vunpack.c.l.b16 %v1734
        %v1902 = vunpack.c.l.b16 %v1735
        %v1903 = vunpack.c.l.b16 %v1736
        %v1904 = vunpack.c.l.b16 %v1737
        %v1905 = vunpack.c.l.b16 %v1738
        %v1906 = vunpack.c.l.b16 %v1739
        %v1907 = vunpack.c.l.b16 %v1740
        %v1908 = vunpack.c.l.b16 %v1741
        %v1909 = vpack.c.b16 %v1830, %v1829
        %v1910 = vpack.c.b16 %v1832, %v1831
        %v1911 = vpack.c.b16 %v1834, %v1833
        %v1912 = vpack.c.b16 %v1836, %v1835
        %v1913 = vpack.c.b16 %v1838, %v1837
        %v1914 = vpack.c.b16 %v1840, %v1839
        %v1915 = vpack.c.b16 %v1842, %v1841
        %v1916 = vpack.c.b16 %v1844, %v1843
        %v1917 = vpack.c.b16 %v1846, %v1845
        %v1918 = vpack.c.b16 %v1848, %v1847
        %v1919 = vpack.c.b16 %v1850, %v1849
        %v1920 = vpack.c.b16 %v1852, %v1851
        %v1921 = vpack.c.b16 %v1854, %v1853
        %v1922 = vpack.c.b16 %v1856, %v1855
        %v1923 = vpack.c.b16 %v1858, %v1857
        %v1924 = vpack.c.b16 %v1860, %v1859
        %v1925 = vpack.c.b16 %v1862, %v1861
        %v1926 = vpack.c.b16 %v1864, %v1863
        %v1927 = vpack.c.b16 %v1866, %v1865
        %v1928 = vpack.c.b16 %v1868, %v1867
        %v1929 = vpack.c.b16 %v1870, %v1869
        %v1930 = vpack.c.b16 %v1872, %v1871
        %v1931 = vpack.c.b16 %v1874, %v1873
        %v1932 = vpack.c.b16 %v1876, %v1875
        %v1933 = vpack.c.b16 %v1878, %v1877
        %v1934 = vpack.c.b16 %v1880, %v1879
        %v1935 = vpack.c.b16 %v1882, %v1881
        %v1936 = vpack.c.b16 %v1884, %v1883
        %v1937 = vpack.c.b16 %v1886, %v1885
        %v1938 = vpack.c.b16 %v1888, %v1887
        %v1939 = vpack.c.b16 %v1890, %v1889
        %v1940 = vpack.c.b16 %v1892, %v1891
        %v1941 = vpack.c.b16 %v1894, %v1893
        %v1942 = vpack.c.b16 %v1896, %v1895
        %v1943 = vpack.c.b16 %v1898, %v1897
        %v1944 = vpack.c.b16 %v1900, %v1899
        %v1945 = vpack.c.b16 %v1902, %v1901
        %v1946 = vpack.c.b16 %v1904, %v1903
        %v1947 = vpack.c.b16 %v1906, %v1905
        %v1948 = vpack.c.b16 %v1908, %v1907
        %1989 = vmatprep.subr.bf16.mxu0 0
        %1990 = vmatpush1.bf16.msra.mxu0 %v1909
        %1991 = vmatprep.subr.bf16.mxu0 0
        %1992 = vmatpush1.bf16.msra.mxu0 %v1910
        %1993 = vmatprep.subr.bf16.mxu0 0
        %1994 = vmatpush1.bf16.msra.mxu0 %v1911
        %1995 = vmatprep.subr.bf16.mxu0 0
        %1996 = vmatpush1.bf16.msra.mxu0 %v1912
        %1997 = vmatprep.subr.bf16.mxu0 0
        %1998 = vmatpush1.bf16.msra.mxu0 %v1913
        %1999 = vmatprep.subr.bf16.mxu0 0
        %2000 = vmatpush1.bf16.msra.mxu0 %v1914
        %2001 = vmatprep.subr.bf16.mxu0 0
        %2002 = vmatpush1.bf16.msra.mxu0 %v1915
        %2003 = vmatprep.subr.bf16.mxu0 0
        %2004 = vmatpush1.bf16.msra.mxu0 %v1916
        %2005 = vmatprep.subr.bf16.mxu0 0
        %2006 = vmatpush1.bf16.msra.mxu0 %v1917
        %2007 = vmatprep.subr.bf16.mxu0 0
        %2008 = vmatpush1.bf16.msra.mxu0 %v1918
        %2009 = vmatprep.subr.bf16.mxu0 0
        %2010 = vmatpush1.bf16.msra.mxu0 %v1919
        %2011 = vmatprep.subr.bf16.mxu0 0
        %2012 = vmatpush1.bf16.msra.mxu0 %v1920
        %2013 = vmatprep.subr.bf16.mxu0 0
        %2014 = vmatpush1.bf16.msra.mxu0 %v1921
        %2015 = vmatprep.subr.bf16.mxu0 0
        %2016 = vmatpush1.bf16.msra.mxu0 %v1922
        %2017 = vmatprep.subr.bf16.mxu0 0
        %2018 = vmatpush1.bf16.msra.mxu0 %v1923
        %2019 = vmatprep.subr.bf16.mxu0 0
        %2020 = vmatpush1.bf16.msra.mxu0 %v1924
        %2021 = vmatprep.mubr.bf16.mxu0 %v1543
        %2022 = vmatmul.mubr.bf16.gmra.mrb[0].mxu0 %v1542
        %v2023 = vpop.f32.mrb[0].mxu0
        %v2024 = vadd.f32 %v1747, %v2023
        %v2025 = vpop.f32.mrb[0].mxu0
        %v2026 = vpop.f32.mrb[0].mxu0
        %v2027 = vadd.f32 %v1747, %v2026
        %v2028 = vpop.f32.mrb[0].mxu0
        %2029 = vmatprep.mubr.bf16.mxu0 %v1548
        %2030 = vmatmul.mubr.bf16.gmra.mrb[0].mxu0 %v1547
        %v2031 = vpop.f32.mrb[0].mxu0
        %v2032 = vadd.f32 %v1747, %v2031
        %v2033 = vpop.f32.mrb[0].mxu0
        %v2034 = vpop.f32.mrb[0].mxu0
        %v2035 = vadd.f32 %v1747, %v2034
        %v2036 = vpop.f32.mrb[0].mxu0
        %2037 = vmatprep.mubr.bf16.mxu0 %v1553
        %2038 = vmatmul.mubr.bf16.gmra.mrb[0].mxu0 %v1552
        %v2039 = vpop.f32.mrb[0].mxu0
        %v2040 = vadd.f32 %v1747, %v2039
        %v2041 = vpop.f32.mrb[0].mxu0
        %v2042 = vpop.f32.mrb[0].mxu0
        %v2043 = vadd.f32 %v1747, %v2042
        %v2044 = vpop.f32.mrb[0].mxu0
        %2045 = vmatprep.mubr.bf16.mxu0 %v1558
        %2046 = vmatmul.mubr.bf16.gmra.mrb[0].mxu0 %v1557
        %v2047 = vpop.f32.mrb[0].mxu0
        %v2048 = vadd.f32 %v1747, %v2047
        %v2049 = vpop.f32.mrb[0].mxu0
        %v2050 = vpop.f32.mrb[0].mxu0
        %v2051 = vadd.f32 %v1747, %v2050
        %v2052 = vpop.f32.mrb[0].mxu0
        %2053 = vmatprep.mubr.bf16.mxu0 %v1563
        %2054 = vmatmul.mubr.bf16.gmra.mrb[0].mxu0 %v1562
        %v2055 = vpop.f32.mrb[0].mxu0
        %v2056 = vadd.f32 %v1747, %v2055
        %v2057 = vpop.f32.mrb[0].mxu0
        %v2058 = vpop.f32.mrb[0].mxu0
        %v2059 = vadd.f32 %v1747, %v2058
        %v2060 = vpop.f32.mrb[0].mxu0
        %2061 = vmatprep.mubr.bf16.mxu0 %v1568
        %2062 = vmatmul.mubr.bf16.gmra.mrb[0].mxu0 %v1567
        %v2063 = vpop.f32.mrb[0].mxu0
        %v2064 = vadd.f32 %v1747, %v2063
        %v2065 = vpop.f32.mrb[0].mxu0
        %v2066 = vpop.f32.mrb[0].mxu0
        %v2067 = vadd.f32 %v1747, %v2066
        %v2068 = vpop.f32.mrb[0].mxu0
        %2069 = vmatprep.mubr.bf16.mxu0 %v1573
        %2070 = vmatmul.mubr.bf16.gmra.mrb[0].mxu0 %v1572
        %v2071 = vpop.f32.mrb[0].mxu0
        %v2072 = vadd.f32 %v1747, %v2071
        %v2073 = vpop.f32.mrb[0].mxu0
        %v2074 = vpop.f32.mrb[0].mxu0
        %v2075 = vadd.f32 %v1747, %v2074
        %v2076 = vpop.f32.mrb[0].mxu0
        %2077 = vmatprep.mubr.bf16.mxu0 %v1578
        %2078 = vmatmul.mubr.bf16.gmra.mrb[0].mxu0 %v1577
        %v2079 = vpop.f32.mrb[0].mxu0
        %v2080 = vadd.f32 %v1747, %v2079
        %v2081 = vpop.f32.mrb[0].mxu0
        %v2082 = vpop.f32.mrb[0].mxu0
        %v2083 = vadd.f32 %v1747, %v2082
        %v2084 = vpop.f32.mrb[0].mxu0
        %2085 = vmatprep.mubr.bf16.mxu0 %v1583
        %2086 = vmatmul.mubr.bf16.gmra.mrb[0].mxu0 %v1582
        %v2087 = vpop.f32.mrb[0].mxu0
        %v2088 = vadd.f32 %v1747, %v2087
        %v2089 = vpop.f32.mrb[0].mxu0
        %v2090 = vpop.f32.mrb[0].mxu0
        %v2091 = vadd.f32 %v1747, %v2090
        %v2092 = vpop.f32.mrb[0].mxu0
        %2093 = vmatprep.mubr.bf16.mxu0 %v1588
        %2094 = vmatmul.mubr.bf16.gmra.mrb[0].mxu0 %v1587
        %v2095 = vpop.f32.mrb[0].mxu0
        %v2096 = vadd.f32 %v1747, %v2095
        %v2097 = vpop.f32.mrb[0].mxu0
        %v2098 = vpop.f32.mrb[0].mxu0
        %v2099 = vadd.f32 %v1747, %v2098
        %v2100 = vpop.f32.mrb[0].mxu0
        %2101 = vmatprep.mubr.bf16.mxu0 %v1593
        %2102 = vmatmul.mubr.bf16.gmra.mrb[0].mxu0 %v1592
        %v2103 = vpop.f32.mrb[0].mxu0
        %v2104 = vadd.f32 %v1747, %v2103
        %v2105 = vpop.f32.mrb[0].mxu0
        %v2106 = vpop.f32.mrb[0].mxu0
        %v2107 = vadd.f32 %v1747, %v2106
        %v2108 = vpop.f32.mrb[0].mxu0
        %2109 = vmatprep.mubr.bf16.mxu0 %v1598
        %2110 = vmatmul.mubr.bf16.gmra.mrb[0].mxu0 %v1597
        %v2111 = vpop.f32.mrb[0].mxu0
        %v2112 = vadd.f32 %v1747, %v2111
        %v2113 = vpop.f32.mrb[0].mxu0
        %v2114 = vpop.f32.mrb[0].mxu0
        %v2115 = vadd.f32 %v1747, %v2114
        %v2116 = vpop.f32.mrb[0].mxu0
        %2117 = vmatprep.mubr.bf16.mxu0 %v1603
        %2118 = vmatmul.mubr.bf16.gmra.mrb[0].mxu0 %v1602
        %v2119 = vpop.f32.mrb[0].mxu0
        %v2120 = vadd.f32 %v1747, %v2119
        %v2121 = vpop.f32.mrb[0].mxu0
        %v2122 = vpop.f32.mrb[0].mxu0
        %v2123 = vadd.f32 %v1747, %v2122
        %v2124 = vpop.f32.mrb[0].mxu0
        %2125 = vmatprep.mubr.bf16.mxu0 %v1608
        %2126 = vmatmul.mubr.bf16.gmra.mrb[0].mxu0 %v1607
        %v2127 = vpop.f32.mrb[0].mxu0
        %v2128 = vadd.f32 %v1747, %v2127
        %v2129 = vpop.f32.mrb[0].mxu0
        %v2130 = vpop.f32.mrb[0].mxu0
        %v2131 = vadd.f32 %v1747, %v2130
        %v2132 = vpop.f32.mrb[0].mxu0
        %2133 = vmatprep.mubr.bf16.mxu0 %v1613
        %2134 = vmatmul.mubr.bf16.gmra.mrb[0].mxu0 %v1612
        %v2135 = vpop.f32.mrb[0].mxu0
        %v2136 = vadd.f32 %v1747, %v2135
        %v2137 = vpop.f32.mrb[0].mxu0
        %v2138 = vpop.f32.mrb[0].mxu0
        %v2139 = vadd.f32 %v1747, %v2138
        %v2140 = vpop.f32.mrb[0].mxu0
        %2141 = vmatprep.mubr.bf16.mxu0 %v1618
        %2142 = vmatmul.mubr.bf16.gmra.mrb[0].mxu0 %v1617
        %v2143 = vpop.f32.mrb[0].mxu0
        %v2144 = vadd.f32 %v1747, %v2143
        %v2145 = vpop.f32.mrb[0].mxu0
        %v2146 = vpop.f32.mrb[0].mxu0
        %v2147 = vadd.f32 %v1747, %v2146
        %v2148 = vpop.f32.mrb[0].mxu0
        %2149 = vmatprep.mubr.bf16.mxu0 %v1623
        %2150 = vmatmul.mubr.bf16.gmra.mrb[0].mxu0 %v1622
        %v2151 = vpop.f32.mrb[0].mxu0
        %v2152 = vadd.f32 %v1747, %v2151
        %v2153 = vpop.f32.mrb[0].mxu0
        %v2154 = vpop.f32.mrb[0].mxu0
        %v2155 = vadd.f32 %v1747, %v2154
        %v2156 = vpop.f32.mrb[0].mxu0
        %2157 = vmatprep.mubr.bf16.mxu0 %v1628
        %2158 = vmatmul.mubr.bf16.gmra.mrb[0].mxu0 %v1627
        %v2159 = vpop.f32.mrb[0].mxu0
        %v2160 = vadd.f32 %v1747, %v2159
        %v2161 = vpop.f32.mrb[0].mxu0
        %v2162 = vpop.f32.mrb[0].mxu0
        %v2163 = vadd.f32 %v1747, %v2162
        %v2164 = vpop.f32.mrb[0].mxu0
        %2165 = vmatprep.mubr.bf16.mxu0 %v1633
        %2166 = vmatmul.mubr.bf16.gmra.mrb[0].mxu0 %v1632
        %v2167 = vpop.f32.mrb[0].mxu0
        %v2168 = vadd.f32 %v1747, %v2167
        %v2169 = vpop.f32.mrb[0].mxu0
        %v2170 = vpop.f32.mrb[0].mxu0
        %v2171 = vadd.f32 %v1747, %v2170
        %v2172 = vpop.f32.mrb[0].mxu0
        %2173 = vmatprep.mubr.bf16.mxu0 %v1638
        %2174 = vmatmul.mubr.bf16.gmra.mrb[0].mxu0 %v1637
        %v2175 = vpop.f32.mrb[0].mxu0
        %v2176 = vadd.f32 %v1747, %v2175
        %v2177 = vpop.f32.mrb[0].mxu0
        %v2178 = vpop.f32.mrb[0].mxu0
        %v2179 = vadd.f32 %v1747, %v2178
        %v2180 = vpop.f32.mrb[0].mxu0
        %2181 = vmatprep.mubr.bf16.mxu0 %v1643
        %2182 = vmatmul.mubr.bf16.gmra.mrb[0].mxu0 %v1642
        %v2183 = vpop.f32.mrb[0].mxu0
        %v2184 = vadd.f32 %v1747, %v2183
        %v2185 = vpop.f32.mrb[0].mxu0
        %v2186 = vpop.f32.mrb[0].mxu0
        %v2187 = vadd.f32 %v1747, %v2186
        %v2188 = vpop.f32.mrb[0].mxu0
        %2189 = vmatprep.mubr.bf16.mxu0 %v1648
        %2190 = vmatmul.mubr.bf16.gmra.mrb[0].mxu0 %v1647
        %v2191 = vpop.f32.mrb[0].mxu0
        %v2192 = vadd.f32 %v1747, %v2191
        %v2193 = vpop.f32.mrb[0].mxu0
        %v2194 = vpop.f32.mrb[0].mxu0
        %v2195 = vadd.f32 %v1747, %v2194
        %v2196 = vpop.f32.mrb[0].mxu0
        %2197 = vmatprep.mubr.bf16.mxu0 %v1653
        %2198 = vmatmul.mubr.bf16.gmra.mrb[0].mxu0 %v1652
        %v2199 = vpop.f32.mrb[0].mxu0
        %v2200 = vadd.f32 %v1747, %v2199
        %v2201 = vpop.f32.mrb[0].mxu0
        %v2202 = vpop.f32.mrb[0].mxu0
        %v2203 = vadd.f32 %v1747, %v2202
        %v2204 = vpop.f32.mrb[0].mxu0
        %2205 = vmatprep.mubr.bf16.mxu0 %v1658
        %2206 = vmatmul.mubr.bf16.gmra.mrb[0].mxu0 %v1657
        %v2207 = vpop.f32.mrb[0].mxu0
        %v2208 = vadd.f32 %v1747, %v2207
        %v2209 = vpop.f32.mrb[0].mxu0
        %v2210 = vpop.f32.mrb[0].mxu0
        %v2211 = vadd.f32 %v1747, %v2210
        %v2212 = vpop.f32.mrb[0].mxu0
        %2213 = vdwg.mxu0
        %2214 = vmatprep.subr.bf16.mxu0 0
        %2215 = vmatpush1.bf16.msra.mxu0 %v1925
        %2216 = vmatprep.subr.bf16.mxu0 0
        %2217 = vmatpush1.bf16.msra.mxu0 %v1926
        %2218 = vmatprep.subr.bf16.mxu0 0
        %2219 = vmatpush1.bf16.msra.mxu0 %v1927
        %2220 = vmatprep.subr.bf16.mxu0 0
        %2221 = vmatpush1.bf16.msra.mxu0 %v1928
        %2222 = vmatprep.subr.bf16.mxu0 0
        %2223 = vmatpush1.bf16.msra.mxu0 %v1929
        %2224 = vmatprep.subr.bf16.mxu0 0
        %2225 = vmatpush1.bf16.msra.mxu0 %v1930
        %2226 = vmatprep.subr.bf16.mxu0 0
        %2227 = vmatpush1.bf16.msra.mxu0 %v1931
        %2228 = vmatprep.subr.bf16.mxu0 0
        %2229 = vmatpush1.bf16.msra.mxu0 %v1932
        %2230 = vmatprep.subr.bf16.mxu0 0
        %2231 = vmatpush1.bf16.msra.mxu0 %v1933
        %2232 = vmatprep.subr.bf16.mxu0 0
        %2233 = vmatpush1.bf16.msra.mxu0 %v1934
        %2234 = vmatprep.subr.bf16.mxu0 0
        %2235 = vmatpush1.bf16.msra.mxu0 %v1935
        %2236 = vmatprep.subr.bf16.mxu0 0
        %2237 = vmatpush1.bf16.msra.mxu0 %v1936
        %2238 = vmatprep.subr.bf16.mxu0 0
        %2239 = vmatpush1.bf16.msra.mxu0 %v1937
        %2240 = vmatprep.subr.bf16.mxu0 0
        %2241 = vmatpush1.bf16.msra.mxu0 %v1938
        %2242 = vmatprep.subr.bf16.mxu0 0
        %2243 = vmatpush1.bf16.msra.mxu0 %v1939
        %2244 = vmatprep.subr.bf16.mxu0 0
        %2245 = vmatpush1.bf16.msra.mxu0 %v1940
        %2246 = vmatprep.mubr.bf16.mxu0 %v1545
        %2247 = vmatmul.mubr.bf16.gmra.mrb[0].mxu0 %v1544
        %v2248 = vpop.f32.mrb[0].mxu0
        %v2249 = vadd.f32 %v2024, %v2248
        %v2250 = vpop.f32.mrb[0].mxu0
        %v2251 = vpop.f32.mrb[0].mxu0
        %v2252 = vadd.f32 %v2027, %v2251
        %v2253 = vpop.f32.mrb[0].mxu0
        %2254 = vmatprep.mubr.bf16.mxu0 %v1550
        %2255 = vmatmul.mubr.bf16.gmra.mrb[0].mxu0 %v1549
        %v2256 = vpop.f32.mrb[0].mxu0
        %v2257 = vadd.f32 %v2032, %v2256
        %v2258 = vpop.f32.mrb[0].mxu0
        %v2259 = vpop.f32.mrb[0].mxu0
        %v2260 = vadd.f32 %v2035, %v2259
        %v2261 = vpop.f32.mrb[0].mxu0
        %2262 = vmatprep.mubr.bf16.mxu0 %v1555
        %2263 = vmatmul.mubr.bf16.gmra.mrb[0].mxu0 %v1554
        %v2264 = vpop.f32.mrb[0].mxu0
        %v2265 = vadd.f32 %v2040, %v2264
        %v2266 = vpop.f32.mrb[0].mxu0
        %v2267 = vpop.f32.mrb[0].mxu0
        %v2268 = vadd.f32 %v2043, %v2267
        %v2269 = vpop.f32.mrb[0].mxu0
        %2270 = vmatprep.mubr.bf16.mxu0 %v1560
        %2271 = vmatmul.mubr.bf16.gmra.mrb[0].mxu0 %v1559
        %v2272 = vpop.f32.mrb[0].mxu0
        %v2273 = vadd.f32 %v2048, %v2272
        %v2274 = vpop.f32.mrb[0].mxu0
        %v2275 = vpop.f32.mrb[0].mxu0
        %v2276 = vadd.f32 %v2051, %v2275
        %v2277 = vpop.f32.mrb[0].mxu0
        %2278 = vmatprep.mubr.bf16.mxu0 %v1565
        %2279 = vmatmul.mubr.bf16.gmra.mrb[0].mxu0 %v1564
        %v2280 = vpop.f32.mrb[0].mxu0
        %v2281 = vadd.f32 %v2056, %v2280
        %v2282 = vpop.f32.mrb[0].mxu0
        %v2283 = vpop.f32.mrb[0].mxu0
        %v2284 = vadd.f32 %v2059, %v2283
        %v2285 = vpop.f32.mrb[0].mxu0
        %2286 = vmatprep.mubr.bf16.mxu0 %v1570
        %2287 = vmatmul.mubr.bf16.gmra.mrb[0].mxu0 %v1569
        %v2288 = vpop.f32.mrb[0].mxu0
        %v2289 = vadd.f32 %v2064, %v2288
        %v2290 = vpop.f32.mrb[0].mxu0
        %v2291 = vpop.f32.mrb[0].mxu0
        %v2292 = vadd.f32 %v2067, %v2291
        %v2293 = vpop.f32.mrb[0].mxu0
        %2294 = vmatprep.mubr.bf16.mxu0 %v1575
        %2295 = vmatmul.mubr.bf16.gmra.mrb[0].mxu0 %v1574
        %v2296 = vpop.f32.mrb[0].mxu0
        %v2297 = vadd.f32 %v2072, %v2296
        %v2298 = vpop.f32.mrb[0].mxu0
        %v2299 = vpop.f32.mrb[0].mxu0
        %v2300 = vadd.f32 %v2075, %v2299
        %v2301 = vpop.f32.mrb[0].mxu0
        %2302 = vmatprep.mubr.bf16.mxu0 %v1580
        %2303 = vmatmul.mubr.bf16.gmra.mrb[0].mxu0 %v1579
        %v2304 = vpop.f32.mrb[0].mxu0
        %v2305 = vadd.f32 %v2080, %v2304
        %v2306 = vpop.f32.mrb[0].mxu0
        %v2307 = vpop.f32.mrb[0].mxu0
        %v2308 = vadd.f32 %v2083, %v2307
        %v2309 = vpop.f32.mrb[0].mxu0
        %2310 = vmatprep.mubr.bf16.mxu0 %v1585
        %2311 = vmatmul.mubr.bf16.gmra.mrb[0].mxu0 %v1584
        %v2312 = vpop.f32.mrb[0].mxu0
        %v2313 = vadd.f32 %v2088, %v2312
        %v2314 = vpop.f32.mrb[0].mxu0
        %v2315 = vpop.f32.mrb[0].mxu0
        %v2316 = vadd.f32 %v2091, %v2315
        %v2317 = vpop.f32.mrb[0].mxu0
        %2318 = vmatprep.mubr.bf16.mxu0 %v1590
        %2319 = vmatmul.mubr.bf16.gmra.mrb[0].mxu0 %v1589
        %v2320 = vpop.f32.mrb[0].mxu0
        %v2321 = vadd.f32 %v2096, %v2320
        %v2322 = vpop.f32.mrb[0].mxu0
        %v2323 = vpop.f32.mrb[0].mxu0
        %v2324 = vadd.f32 %v2099, %v2323
        %v2325 = vpop.f32.mrb[0].mxu0
        %2326 = vmatprep.mubr.bf16.mxu0 %v1595
        %2327 = vmatmul.mubr.bf16.gmra.mrb[0].mxu0 %v1594
        %v2328 = vpop.f32.mrb[0].mxu0
        %v2329 = vadd.f32 %v2104, %v2328
        %v2330 = vpop.f32.mrb[0].mxu0
        %v2331 = vpop.f32.mrb[0].mxu0
        %v2332 = vadd.f32 %v2107, %v2331
        %v2333 = vpop.f32.mrb[0].mxu0
        %2334 = vmatprep.mubr.bf16.mxu0 %v1600
        %2335 = vmatmul.mubr.bf16.gmra.mrb[0].mxu0 %v1599
        %v2336 = vpop.f32.mrb[0].mxu0
        %v2337 = vadd.f32 %v2112, %v2336
        %v2338 = vpop.f32.mrb[0].mxu0
        %v2339 = vpop.f32.mrb[0].mxu0
        %v2340 = vadd.f32 %v2115, %v2339
        %v2341 = vpop.f32.mrb[0].mxu0
        %2342 = vmatprep.mubr.bf16.mxu0 %v1605
        %2343 = vmatmul.mubr.bf16.gmra.mrb[0].mxu0 %v1604
        %v2344 = vpop.f32.mrb[0].mxu0
        %v2345 = vadd.f32 %v2120, %v2344
        %v2346 = vpop.f32.mrb[0].mxu0
        %v2347 = vpop.f32.mrb[0].mxu0
        %v2348 = vadd.f32 %v2123, %v2347
        %v2349 = vpop.f32.mrb[0].mxu0
        %2350 = vmatprep.mubr.bf16.mxu0 %v1610
        %2351 = vmatmul.mubr.bf16.gmra.mrb[0].mxu0 %v1609
        %v2352 = vpop.f32.mrb[0].mxu0
        %v2353 = vadd.f32 %v2128, %v2352
        %v2354 = vpop.f32.mrb[0].mxu0
        %v2355 = vpop.f32.mrb[0].mxu0
        %v2356 = vadd.f32 %v2131, %v2355
        %v2357 = vpop.f32.mrb[0].mxu0
        %2358 = vmatprep.mubr.bf16.mxu0 %v1615
        %2359 = vmatmul.mubr.bf16.gmra.mrb[0].mxu0 %v1614
        %v2360 = vpop.f32.mrb[0].mxu0
        %v2361 = vadd.f32 %v2136, %v2360
        %v2362 = vpop.f32.mrb[0].mxu0
        %v2363 = vpop.f32.mrb[0].mxu0
        %v2364 = vadd.f32 %v2139, %v2363
        %v2365 = vpop.f32.mrb[0].mxu0
        %2366 = vmatprep.mubr.bf16.mxu0 %v1620
        %2367 = vmatmul.mubr.bf16.gmra.mrb[0].mxu0 %v1619
        %v2368 = vpop.f32.mrb[0].mxu0
        %v2369 = vadd.f32 %v2144, %v2368
        %v2370 = vpop.f32.mrb[0].mxu0
        %v2371 = vpop.f32.mrb[0].mxu0
        %v2372 = vadd.f32 %v2147, %v2371
        %v2373 = vpop.f32.mrb[0].mxu0
        %2374 = vmatprep.mubr.bf16.mxu0 %v1625
        %2375 = vmatmul.mubr.bf16.gmra.mrb[0].mxu0 %v1624
        %v2376 = vpop.f32.mrb[0].mxu0
        %v2377 = vadd.f32 %v2152, %v2376
        %v2378 = vpop.f32.mrb[0].mxu0
        %v2379 = vpop.f32.mrb[0].mxu0
        %v2380 = vadd.f32 %v2155, %v2379
        %v2381 = vpop.f32.mrb[0].mxu0
        %2382 = vmatprep.mubr.bf16.mxu0 %v1630
        %2383 = vmatmul.mubr.bf16.gmra.mrb[0].mxu0 %v1629
        %v2384 = vpop.f32.mrb[0].mxu0
        %v2385 = vadd.f32 %v2160, %v2384
        %v2386 = vpop.f32.mrb[0].mxu0
        %v2387 = vpop.f32.mrb[0].mxu0
        %v2388 = vadd.f32 %v2163, %v2387
        %v2389 = vpop.f32.mrb[0].mxu0
        %2390 = vmatprep.mubr.bf16.mxu0 %v1635
        %2391 = vmatmul.mubr.bf16.gmra.mrb[0].mxu0 %v1634
        %v2392 = vpop.f32.mrb[0].mxu0
        %v2393 = vadd.f32 %v2168, %v2392
        %v2394 = vpop.f32.mrb[0].mxu0
        %v2395 = vpop.f32.mrb[0].mxu0
        %v2396 = vadd.f32 %v2171, %v2395
        %v2397 = vpop.f32.mrb[0].mxu0
        %2398 = vmatprep.mubr.bf16.mxu0 %v1640
        %2399 = vmatmul.mubr.bf16.gmra.mrb[0].mxu0 %v1639
        %v2400 = vpop.f32.mrb[0].mxu0
        %v2401 = vadd.f32 %v2176, %v2400
        %v2402 = vpop.f32.mrb[0].mxu0
        %v2403 = vpop.f32.mrb[0].mxu0
        %v2404 = vadd.f32 %v2179, %v2403
        %v2405 = vpop.f32.mrb[0].mxu0
        %2406 = vmatprep.mubr.bf16.mxu0 %v1645
        %2407 = vmatmul.mubr.bf16.gmra.mrb[0].mxu0 %v1644
        %v2408 = vpop.f32.mrb[0].mxu0
        %v2409 = vadd.f32 %v2184, %v2408
        %v2410 = vpop.f32.mrb[0].mxu0
        %v2411 = vpop.f32.mrb[0].mxu0
        %v2412 = vadd.f32 %v2187, %v2411
        %v2413 = vpop.f32.mrb[0].mxu0
        %2414 = vmatprep.mubr.bf16.mxu0 %v1650
        %2415 = vmatmul.mubr.bf16.gmra.mrb[0].mxu0 %v1649
        %v2416 = vpop.f32.mrb[0].mxu0
        %v2417 = vadd.f32 %v2192, %v2416
        %v2418 = vpop.f32.mrb[0].mxu0
        %v2419 = vpop.f32.mrb[0].mxu0
        %v2420 = vadd.f32 %v2195, %v2419
        %v2421 = vpop.f32.mrb[0].mxu0
        %2422 = vmatprep.mubr.bf16.mxu0 %v1655
        %2423 = vmatmul.mubr.bf16.gmra.mrb[0].mxu0 %v1654
        %v2424 = vpop.f32.mrb[0].mxu0
        %v2425 = vadd.f32 %v2200, %v2424
        %v2426 = vpop.f32.mrb[0].mxu0
        %v2427 = vpop.f32.mrb[0].mxu0
        %v2428 = vadd.f32 %v2203, %v2427
        %v2429 = vpop.f32.mrb[0].mxu0
        %2430 = vmatprep.mubr.bf16.mxu0 %v1660
        %2431 = vmatmul.mubr.bf16.gmra.mrb[0].mxu0 %v1659
        %v2432 = vpop.f32.mrb[0].mxu0
        %v2433 = vadd.f32 %v2208, %v2432
        %v2434 = vpop.f32.mrb[0].mxu0
        %v2435 = vpop.f32.mrb[0].mxu0
        %v2436 = vadd.f32 %v2211, %v2435
        %v2437 = vpop.f32.mrb[0].mxu0
        %2438 = vdwg.mxu0
        %2439 = vmatprep.subr.bf16.mxu0 0
        %2440 = vmatpush1.bf16.msra.mxu0 %v1941
        %2441 = vmatprep.subr.bf16.mxu0 0
        %2442 = vmatpush1.bf16.msra.mxu0 %v1942
        %2443 = vmatprep.subr.bf16.mxu0 0
        %2444 = vmatpush1.bf16.msra.mxu0 %v1943
        %2445 = vmatprep.subr.bf16.mxu0 0
        %2446 = vmatpush1.bf16.msra.mxu0 %v1944
        %2447 = vmatprep.subr.bf16.mxu0 0
        %2448 = vmatpush1.bf16.msra.mxu0 %v1945
        %2449 = vmatprep.subr.bf16.mxu0 0
        %2450 = vmatpush1.bf16.msra.mxu0 %v1946
        %2451 = vmatprep.subr.bf16.mxu0 0
        %2452 = vmatpush1.bf16.msra.mxu0 %v1947
        %2453 = vmatprep.subr.bf16.mxu0 0
        %2454 = vmatpush1.bf16.msra.mxu0 %v1948
        %2455 = vmatprep.subr.bf16.mxu0 0
        %2456 = vmatpush1.bf16.msra.mxu0 0
        %2457 = vmatprep.subr.bf16.mxu0 0
        %2458 = vmatpush1.bf16.msra.mxu0 0
        %2459 = vmatprep.subr.bf16.mxu0 0
        %2460 = vmatpush1.bf16.msra.mxu0 0
        %2461 = vmatprep.subr.bf16.mxu0 0
        %2462 = vmatpush1.bf16.msra.mxu0 0
        %2463 = vmatprep.subr.bf16.mxu0 0
        %2464 = vmatpush1.bf16.msra.mxu0 0
        %2465 = vmatprep.subr.bf16.mxu0 0
        %2466 = vmatpush1.bf16.msra.mxu0 0
        %2467 = vmatprep.subr.bf16.mxu0 0
        %2468 = vmatpush1.bf16.msra.mxu0 0
        %2469 = vmatprep.subr.bf16.mxu0 0
        %2470 = vmatpush1.bf16.msra.mxu0 0
        %2471 = vmatprep.mubr.bf16.mxu0 0
        %2472 = vmatmul.mubr.bf16.gmra.mrb[0].mxu0 %v1546
        %v2473 = vpop.f32.mrb[0].mxu0
        %v2474 = vadd.f32 %v2249, %v2473
        %v2475 = vpop.f32.mrb[0].mxu0
        %v2476 = vpop.f32.mrb[0].mxu0
        %v2477 = vadd.f32 %v2252, %v2476
        %v2478 = vpop.f32.mrb[0].mxu0
        %2479 = vmatprep.mubr.bf16.mxu0 0
        %2480 = vmatmul.mubr.bf16.gmra.mrb[0].mxu0 %v1551
        %v2481 = vpop.f32.mrb[0].mxu0
        %v2482 = vadd.f32 %v2257, %v2481
        %v2483 = vpop.f32.mrb[0].mxu0
        %v2484 = vpop.f32.mrb[0].mxu0
        %v2485 = vadd.f32 %v2260, %v2484
        %v2486 = vpop.f32.mrb[0].mxu0
        %2487 = vmatprep.mubr.bf16.mxu0 0
        %2488 = vmatmul.mubr.bf16.gmra.mrb[0].mxu0 %v1556
        %v2489 = vpop.f32.mrb[0].mxu0
        %v2490 = vadd.f32 %v2265, %v2489
        %v2491 = vpop.f32.mrb[0].mxu0
        %v2492 = vpop.f32.mrb[0].mxu0
        %v2493 = vadd.f32 %v2268, %v2492
        %v2494 = vpop.f32.mrb[0].mxu0
        %2495 = vmatprep.mubr.bf16.mxu0 0
        %2496 = vmatmul.mubr.bf16.gmra.mrb[0].mxu0 %v1561
        %v2497 = vpop.f32.mrb[0].mxu0
        %v2498 = vadd.f32 %v2273, %v2497
        %v2499 = vpop.f32.mrb[0].mxu0
        %v2500 = vpop.f32.mrb[0].mxu0
        %v2501 = vadd.f32 %v2276, %v2500
        %v2502 = vpop.f32.mrb[0].mxu0
        %2503 = vmatprep.mubr.bf16.mxu0 0
        %2504 = vmatmul.mubr.bf16.gmra.mrb[0].mxu0 %v1566
        %v2505 = vpop.f32.mrb[0].mxu0
        %v2506 = vadd.f32 %v2281, %v2505
        %v2507 = vpop.f32.mrb[0].mxu0
        %v2508 = vpop.f32.mrb[0].mxu0
        %v2509 = vadd.f32 %v2284, %v2508
        %v2510 = vpop.f32.mrb[0].mxu0
        %2511 = vmatprep.mubr.bf16.mxu0 0
        %2512 = vmatmul.mubr.bf16.gmra.mrb[0].mxu0 %v1571
        %v2513 = vpop.f32.mrb[0].mxu0
        %v2514 = vadd.f32 %v2289, %v2513
        %v2515 = vpop.f32.mrb[0].mxu0
        %v2516 = vpop.f32.mrb[0].mxu0
        %v2517 = vadd.f32 %v2292, %v2516
        %v2518 = vpop.f32.mrb[0].mxu0
        %2519 = vmatprep.mubr.bf16.mxu0 0
        %2520 = vmatmul.mubr.bf16.gmra.mrb[0].mxu0 %v1576
        %v2521 = vpop.f32.mrb[0].mxu0
        %v2522 = vadd.f32 %v2297, %v2521
        %v2523 = vpop.f32.mrb[0].mxu0
        %v2524 = vpop.f32.mrb[0].mxu0
        %v2525 = vadd.f32 %v2300, %v2524
        %v2526 = vpop.f32.mrb[0].mxu0
        %2527 = vmatprep.mubr.bf16.mxu0 0
        %2528 = vmatmul.mubr.bf16.gmra.mrb[0].mxu0 %v1581
        %v2529 = vpop.f32.mrb[0].mxu0
        %v2530 = vadd.f32 %v2305, %v2529
        %v2531 = vpop.f32.mrb[0].mxu0
        %v2532 = vpop.f32.mrb[0].mxu0
        %v2533 = vadd.f32 %v2308, %v2532
        %v2534 = vpop.f32.mrb[0].mxu0
        %2535 = vmatprep.mubr.bf16.mxu0 0
        %2536 = vmatmul.mubr.bf16.gmra.mrb[0].mxu0 %v1586
        %v2537 = vpop.f32.mrb[0].mxu0
        %v2538 = vadd.f32 %v2313, %v2537
        %v2539 = vpop.f32.mrb[0].mxu0
        %v2540 = vpop.f32.mrb[0].mxu0
        %v2541 = vadd.f32 %v2316, %v2540
        %v2542 = vpop.f32.mrb[0].mxu0
        %2543 = vmatprep.mubr.bf16.mxu0 0
        %2544 = vmatmul.mubr.bf16.gmra.mrb[0].mxu0 %v1591
        %v2545 = vpop.f32.mrb[0].mxu0
        %v2546 = vadd.f32 %v2321, %v2545
        %v2547 = vpop.f32.mrb[0].mxu0
        %v2548 = vpop.f32.mrb[0].mxu0
        %v2549 = vadd.f32 %v2324, %v2548
        %v2550 = vpop.f32.mrb[0].mxu0
        %2551 = vmatprep.mubr.bf16.mxu0 0
        %2552 = vmatmul.mubr.bf16.gmra.mrb[0].mxu0 %v1596
        %v2553 = vpop.f32.mrb[0].mxu0
        %v2554 = vadd.f32 %v2329, %v2553
        %v2555 = vpop.f32.mrb[0].mxu0
        %v2556 = vpop.f32.mrb[0].mxu0
        %v2557 = vadd.f32 %v2332, %v2556
        %v2558 = vpop.f32.mrb[0].mxu0
        %2559 = vmatprep.mubr.bf16.mxu0 0
        %2560 = vmatmul.mubr.bf16.gmra.mrb[0].mxu0 %v1601
        %v2561 = vpop.f32.mrb[0].mxu0
        %v2562 = vadd.f32 %v2337, %v2561
        %v2563 = vpop.f32.mrb[0].mxu0
        %v2564 = vpop.f32.mrb[0].mxu0
        %v2565 = vadd.f32 %v2340, %v2564
        %v2566 = vpop.f32.mrb[0].mxu0
        %2567 = vmatprep.mubr.bf16.mxu0 0
        %2568 = vmatmul.mubr.bf16.gmra.mrb[0].mxu0 %v1606
        %v2569 = vpop.f32.mrb[0].mxu0
        %v2570 = vadd.f32 %v2345, %v2569
        %v2571 = vpop.f32.mrb[0].mxu0
        %v2572 = vpop.f32.mrb[0].mxu0
        %v2573 = vadd.f32 %v2348, %v2572
        %v2574 = vpop.f32.mrb[0].mxu0
        %2575 = vmatprep.mubr.bf16.mxu0 0
        %2576 = vmatmul.mubr.bf16.gmra.mrb[0].mxu0 %v1611
        %v2577 = vpop.f32.mrb[0].mxu0
        %v2578 = vadd.f32 %v2353, %v2577
        %v2579 = vpop.f32.mrb[0].mxu0
        %v2580 = vpop.f32.mrb[0].mxu0
        %v2581 = vadd.f32 %v2356, %v2580
        %v2582 = vpop.f32.mrb[0].mxu0
        %2583 = vmatprep.mubr.bf16.mxu0 0
        %2584 = vmatmul.mubr.bf16.gmra.mrb[0].mxu0 %v1616
        %v2585 = vpop.f32.mrb[0].mxu0
        %v2586 = vadd.f32 %v2361, %v2585
        %v2587 = vpop.f32.mrb[0].mxu0
        %v2588 = vpop.f32.mrb[0].mxu0
        %v2589 = vadd.f32 %v2364, %v2588
        %v2590 = vpop.f32.mrb[0].mxu0
        %2591 = vmatprep.mubr.bf16.mxu0 0
        %2592 = vmatmul.mubr.bf16.gmra.mrb[0].mxu0 %v1621
        %v2593 = vpop.f32.mrb[0].mxu0
        %v2594 = vadd.f32 %v2369, %v2593
        %v2595 = vpop.f32.mrb[0].mxu0
        %v2596 = vpop.f32.mrb[0].mxu0
        %v2597 = vadd.f32 %v2372, %v2596
        %v2598 = vpop.f32.mrb[0].mxu0
        %2599 = vmatprep.mubr.bf16.mxu0 0
        %2600 = vmatmul.mubr.bf16.gmra.mrb[0].mxu0 %v1626
        %v2601 = vpop.f32.mrb[0].mxu0
        %v2602 = vadd.f32 %v2377, %v2601
        %v2603 = vpop.f32.mrb[0].mxu0
        %v2604 = vpop.f32.mrb[0].mxu0
        %v2605 = vadd.f32 %v2380, %v2604
        %v2606 = vpop.f32.mrb[0].mxu0
        %2607 = vmatprep.mubr.bf16.mxu0 0
        %2608 = vmatmul.mubr.bf16.gmra.mrb[0].mxu0 %v1631
        %v2609 = vpop.f32.mrb[0].mxu0
        %v2610 = vadd.f32 %v2385, %v2609
        %v2611 = vpop.f32.mrb[0].mxu0
        %v2612 = vpop.f32.mrb[0].mxu0
        %v2613 = vadd.f32 %v2388, %v2612
        %v2614 = vpop.f32.mrb[0].mxu0
        %2615 = vmatprep.mubr.bf16.mxu0 0
        %2616 = vmatmul.mubr.bf16.gmra.mrb[0].mxu0 %v1636
        %v2617 = vpop.f32.mrb[0].mxu0
        %v2618 = vadd.f32 %v2393, %v2617
        %v2619 = vpop.f32.mrb[0].mxu0
        %v2620 = vpop.f32.mrb[0].mxu0
        %v2621 = vadd.f32 %v2396, %v2620
        %v2622 = vpop.f32.mrb[0].mxu0
        %2623 = vmatprep.mubr.bf16.mxu0 0
        %2624 = vmatmul.mubr.bf16.gmra.mrb[0].mxu0 %v1641
        %v2625 = vpop.f32.mrb[0].mxu0
        %v2626 = vadd.f32 %v2401, %v2625
        %v2627 = vpop.f32.mrb[0].mxu0
        %v2628 = vpop.f32.mrb[0].mxu0
        %v2629 = vadd.f32 %v2404, %v2628
        %v2630 = vpop.f32.mrb[0].mxu0
        %2631 = vmatprep.mubr.bf16.mxu0 0
        %2632 = vmatmul.mubr.bf16.gmra.mrb[0].mxu0 %v1646
        %v2633 = vpop.f32.mrb[0].mxu0
        %v2634 = vadd.f32 %v2409, %v2633
        %v2635 = vpop.f32.mrb[0].mxu0
        %v2636 = vpop.f32.mrb[0].mxu0
        %v2637 = vadd.f32 %v2412, %v2636
        %v2638 = vpop.f32.mrb[0].mxu0
        %2639 = vmatprep.mubr.bf16.mxu0 0
        %2640 = vmatmul.mubr.bf16.gmra.mrb[0].mxu0 %v1651
        %v2641 = vpop.f32.mrb[0].mxu0
        %v2642 = vadd.f32 %v2417, %v2641
        %v2643 = vpop.f32.mrb[0].mxu0
        %v2644 = vpop.f32.mrb[0].mxu0
        %v2645 = vadd.f32 %v2420, %v2644
        %v2646 = vpop.f32.mrb[0].mxu0
        %2647 = vmatprep.mubr.bf16.mxu0 0
        %2648 = vmatmul.mubr.bf16.gmra.mrb[0].mxu0 %v1656
        %v2649 = vpop.f32.mrb[0].mxu0
        %v2650 = vadd.f32 %v2425, %v2649
        %v2651 = vpop.f32.mrb[0].mxu0
        %v2652 = vpop.f32.mrb[0].mxu0
        %v2653 = vadd.f32 %v2428, %v2652
        %v2654 = vpop.f32.mrb[0].mxu0
        %2655 = vmatprep.mubr.bf16.mxu0 0
        %2656 = vmatmul.mubr.bf16.gmra.mrb[0].mxu0 %v1661
        %v2657 = vpop.f32.mrb[0].mxu0
        %v2658 = vadd.f32 %v2433, %v2657
        %v2659 = vpop.f32.mrb[0].mxu0
        %v2660 = vpop.f32.mrb[0].mxu0
        %v2661 = vadd.f32 %v2436, %v2660
        %v2662 = vpop.f32.mrb[0].mxu0
        %2663 = vdwg.mxu0
        %v2664 = vmax.f32 %v2474, 0.0
        %v2665 = vmax.f32 %v2477, 0.0
        %v2666 = vmax.f32 %v2482, 0.0
        %v2667 = vmax.f32 %v2485, 0.0
        %v2668 = vmax.f32 %v2490, 0.0
        %v2669 = vmax.f32 %v2493, 0.0
        %v2670 = vmax.f32 %v2498, 0.0
        %v2671 = vmax.f32 %v2501, 0.0
        %v2672 = vmax.f32 %v2506, 0.0
        %v2673 = vmax.f32 %v2509, 0.0
        %v2674 = vmax.f32 %v2514, 0.0
        %v2675 = vmax.f32 %v2517, 0.0
        %v2676 = vmax.f32 %v2522, 0.0
        %v2677 = vmax.f32 %v2525, 0.0
        %v2678 = vmax.f32 %v2530, 0.0
        %v2679 = vmax.f32 %v2533, 0.0
        %v2680 = vmax.f32 %v2538, 0.0
        %v2681 = vmax.f32 %v2541, 0.0
        %v2682 = vmax.f32 %v2546, 0.0
        %v2683 = vmax.f32 %v2549, 0.0
        %v2684 = vmax.f32 %v2554, 0.0
        %v2685 = vmax.f32 %v2557, 0.0
        %v2686 = vmax.f32 %v2562, 0.0
        %v2687 = vmax.f32 %v2565, 0.0
        %v2688 = vmax.f32 %v2570, 0.0
        %v2689 = vmax.f32 %v2573, 0.0
        %v2690 = vmax.f32 %v2578, 0.0
        %v2691 = vmax.f32 %v2581, 0.0
        %v2692 = vmax.f32 %v2586, 0.0
        %v2693 = vmax.f32 %v2589, 0.0
        %v2694 = vmax.f32 %v2594, 0.0
        %v2695 = vmax.f32 %v2597, 0.0
        %v2696 = vmax.f32 %v2602, 0.0
        %v2697 = vmax.f32 %v2605, 0.0
        %v2698 = vmax.f32 %v2610, 0.0
        %v2699 = vmax.f32 %v2613, 0.0
        %v2700 = vmax.f32 %v2618, 0.0
        %v2701 = vmax.f32 %v2621, 0.0
        %v2702 = vmax.f32 %v2626, 0.0
        %v2703 = vmax.f32 %v2629, 0.0
        %v2704 = vmax.f32 %v2634, 0.0
        %v2705 = vmax.f32 %v2637, 0.0
        %v2706 = vmax.f32 %v2642, 0.0
        %v2707 = vmax.f32 %v2645, 0.0
        %v2708 = vmax.f32 %v2650, 0.0
        %v2709 = vmax.f32 %v2653, 0.0
        %v2710 = vmax.f32 %v2658, 0.0
        %v2711 = vmax.f32 %v2661, 0.0
        %vm2712 = vcmask 523264
        %2713 = vst.msk [vmem:[#allocation6] sm:$0xff] %vm2712, %v2664
        %2714 = vst.msk [vmem:[#allocation6 + $0x8] sm:$0xff] %vm2712, %v2665
        %2715 = vst.msk [vmem:[#allocation6 + $0x10] sm:$0xff] %vm2712, %v2666
        %2716 = vst.msk [vmem:[#allocation6 + $0x18] sm:$0xff] %vm2712, %v2667
        %2717 = vst.msk [vmem:[#allocation6 + $0x20] sm:$0xff] %vm2712, %v2668
        %2718 = vst.msk [vmem:[#allocation6 + $0x28] sm:$0xff] %vm2712, %v2669
        %2719 = vst.msk [vmem:[#allocation6 + $0x30] sm:$0xff] %vm2712, %v2670
        %2720 = vst.msk [vmem:[#allocation6 + $0x38] sm:$0xff] %vm2712, %v2671
        %2721 = vst.msk [vmem:[#allocation6 + $0x40] sm:$0xff] %vm2712, %v2672
        %2722 = vst.msk [vmem:[#allocation6 + $0x48] sm:$0xff] %vm2712, %v2673
        %2723 = vst.msk [vmem:[#allocation6 + $0x50] sm:$0xff] %vm2712, %v2674
        %2724 = vst.msk [vmem:[#allocation6 + $0x58] sm:$0xff] %vm2712, %v2675
        %2725 = vst.msk [vmem:[#allocation6 + $0x60] sm:$0xff] %vm2712, %v2676
        %2726 = vst.msk [vmem:[#allocation6 + $0x68] sm:$0xff] %vm2712, %v2677
        %2727 = vst.msk [vmem:[#allocation6 + $0x70] sm:$0xff] %vm2712, %v2678
        %2728 = vst.msk [vmem:[#allocation6 + $0x78] sm:$0xff] %vm2712, %v2679
        %2729 = vst.msk [vmem:[#allocation6 + $0x80] sm:$0xff] %vm2712, %v2680
        %2730 = vst.msk [vmem:[#allocation6 + $0x88] sm:$0xff] %vm2712, %v2681
        %2731 = vst.msk [vmem:[#allocation6 + $0x90] sm:$0xff] %vm2712, %v2682
        %2732 = vst.msk [vmem:[#allocation6 + $0x98] sm:$0xff] %vm2712, %v2683
        %2733 = vst.msk [vmem:[#allocation6 + $0xa0] sm:$0xff] %vm2712, %v2684
        %2734 = vst.msk [vmem:[#allocation6 + $0xa8] sm:$0xff] %vm2712, %v2685
        %2735 = vst.msk [vmem:[#allocation6 + $0xb0] sm:$0xff] %vm2712, %v2686
        %2736 = vst.msk [vmem:[#allocation6 + $0xb8] sm:$0xff] %vm2712, %v2687
        %2737 = vst.msk [vmem:[#allocation6 + $0xc0] sm:$0xff] %vm2712, %v2688
        %2738 = vst.msk [vmem:[#allocation6 + $0xc8] sm:$0xff] %vm2712, %v2689
        %2739 = vst.msk [vmem:[#allocation6 + $0xd0] sm:$0xff] %vm2712, %v2690
        %2740 = vst.msk [vmem:[#allocation6 + $0xd8] sm:$0xff] %vm2712, %v2691
        %2741 = vst.msk [vmem:[#allocation6 + $0xe0] sm:$0xff] %vm2712, %v2692
        %2742 = vst.msk [vmem:[#allocation6 + $0xe8] sm:$0xff] %vm2712, %v2693
        %2743 = vst.msk [vmem:[#allocation6 + $0xf0] sm:$0xff] %vm2712, %v2694
        %2744 = vst.msk [vmem:[#allocation6 + $0xf8] sm:$0xff] %vm2712, %v2695
        %2745 = vst.msk [vmem:[#allocation6 + $0x100] sm:$0xff] %vm2712, %v2696
        %2746 = vst.msk [vmem:[#allocation6 + $0x108] sm:$0xff] %vm2712, %v2697
        %2747 = vst.msk [vmem:[#allocation6 + $0x110] sm:$0xff] %vm2712, %v2698
        %2748 = vst.msk [vmem:[#allocation6 + $0x118] sm:$0xff] %vm2712, %v2699
        %2749 = vst.msk [vmem:[#allocation6 + $0x120] sm:$0xff] %vm2712, %v2700
        %2750 = vst.msk [vmem:[#allocation6 + $0x128] sm:$0xff] %vm2712, %v2701
        %2751 = vst.msk [vmem:[#allocation6 + $0x130] sm:$0xff] %vm2712, %v2702
        %2752 = vst.msk [vmem:[#allocation6 + $0x138] sm:$0xff] %vm2712, %v2703
        %2753 = vst.msk [vmem:[#allocation6 + $0x140] sm:$0xff] %vm2712, %v2704
        %2754 = vst.msk [vmem:[#allocation6 + $0x148] sm:$0xff] %vm2712, %v2705
        %2755 = vst.msk [vmem:[#allocation6 + $0x150] sm:$0xff] %vm2712, %v2706
        %2756 = vst.msk [vmem:[#allocation6 + $0x158] sm:$0xff] %vm2712, %v2707
        %2757 = vst.msk [vmem:[#allocation6 + $0x160] sm:$0xff] %vm2712, %v2708
        %2758 = vst.msk [vmem:[#allocation6 + $0x168] sm:$0xff] %vm2712, %v2709
        %2759 = vst.msk [vmem:[#allocation6 + $0x170] sm:$0xff] %vm2712, %v2710
        %2760 = vst.msk [vmem:[#allocation6 + $0x178] sm:$0xff] %vm2712, %v2711
        %2761 = vst.msk [vmem:[#allocation6 + $0x180] sm:$0xff] %vm2712, 0.0
        %v2762 = vld [vmem:[#allocation6 + $0x1] sm:$0xff]
        %v2763 = vld [vmem:[#allocation6 + $0x9] sm:$0xff]
        %v2764 = vld [vmem:[#allocation6 + $0x11] sm:$0xff]
        %v2765 = vld [vmem:[#allocation6 + $0x19] sm:$0xff]
        %v2766 = vld [vmem:[#allocation6 + $0x21] sm:$0xff]
        %v2767 = vld [vmem:[#allocation6 + $0x29] sm:$0xff]
        %v2768 = vld [vmem:[#allocation6 + $0x31] sm:$0xff]
        %v2769 = vld [vmem:[#allocation6 + $0x39] sm:$0xff]
        %v2770 = vld [vmem:[#allocation6 + $0x41] sm:$0xff]
        %v2771 = vld [vmem:[#allocation6 + $0x49] sm:$0xff]
        %v2772 = vld [vmem:[#allocation6 + $0x51] sm:$0xff]
        %v2773 = vld [vmem:[#allocation6 + $0x59] sm:$0xff]
        %v2774 = vld [vmem:[#allocation6 + $0x61] sm:$0xff]
        %v2775 = vld [vmem:[#allocation6 + $0x69] sm:$0xff]
        %v2776 = vld [vmem:[#allocation6 + $0x71] sm:$0xff]
        %v2777 = vld [vmem:[#allocation6 + $0x79] sm:$0xff]
        %v2778 = vld [vmem:[#allocation6 + $0x81] sm:$0xff]
        %v2779 = vld [vmem:[#allocation6 + $0x89] sm:$0xff]
        %v2780 = vld [vmem:[#allocation6 + $0x91] sm:$0xff]
        %v2781 = vld [vmem:[#allocation6 + $0x99] sm:$0xff]
        %v2782 = vld [vmem:[#allocation6 + $0xa1] sm:$0xff]
        %v2783 = vld [vmem:[#allocation6 + $0xa9] sm:$0xff]
        %v2784 = vld [vmem:[#allocation6 + $0xb1] sm:$0xff]
        %v2785 = vld [vmem:[#allocation6 + $0xb9] sm:$0xff]
        %v2786 = vld [vmem:[#allocation6 + $0xc1] sm:$0xff]
        %v2787 = vld [vmem:[#allocation6 + $0xc9] sm:$0xff]
        %v2788 = vld [vmem:[#allocation6 + $0xd1] sm:$0xff]
        %v2789 = vld [vmem:[#allocation6 + $0xd9] sm:$0xff]
        %v2790 = vld [vmem:[#allocation6 + $0xe1] sm:$0xff]
        %v2791 = vld [vmem:[#allocation6 + $0xe9] sm:$0xff]
        %v2792 = vld [vmem:[#allocation6 + $0xf1] sm:$0xff]
        %v2793 = vld [vmem:[#allocation6 + $0xf9] sm:$0xff]
        %v2794 = vld [vmem:[#allocation6 + $0x101] sm:$0xff]
        %v2795 = vld [vmem:[#allocation6 + $0x109] sm:$0xff]
        %v2796 = vld [vmem:[#allocation6 + $0x111] sm:$0xff]
        %v2797 = vld [vmem:[#allocation6 + $0x119] sm:$0xff]
        %v2798 = vld [vmem:[#allocation6 + $0x121] sm:$0xff]
        %v2799 = vld [vmem:[#allocation6 + $0x129] sm:$0xff]
        %v2800 = vld [vmem:[#allocation6 + $0x131] sm:$0xff]
        %v2801 = vld [vmem:[#allocation6 + $0x139] sm:$0xff]
        %v2802 = vld [vmem:[#allocation6 + $0x141] sm:$0xff]
        %v2803 = vld [vmem:[#allocation6 + $0x149] sm:$0xff]
        %v2804 = vld [vmem:[#allocation6 + $0x151] sm:$0xff]
        %v2805 = vld [vmem:[#allocation6 + $0x159] sm:$0xff]
        %v2806 = vld [vmem:[#allocation6 + $0x161] sm:$0xff]
        %v2807 = vld [vmem:[#allocation6 + $0x169] sm:$0xff]
        %v2808 = vld [vmem:[#allocation6 + $0x171] sm:$0xff]
        %v2809 = vld [vmem:[#allocation6 + $0x179] sm:$0xff]
        %v2810 = vmax.f32 %v2664, %v2762
        %v2811 = vmax.f32 %v2665, %v2763
        %v2812 = vmax.f32 %v2666, %v2764
        %v2813 = vmax.f32 %v2667, %v2765
        %v2814 = vmax.f32 %v2668, %v2766
        %v2815 = vmax.f32 %v2669, %v2767
        %v2816 = vmax.f32 %v2670, %v2768
        %v2817 = vmax.f32 %v2671, %v2769
        %v2818 = vmax.f32 %v2672, %v2770
        %v2819 = vmax.f32 %v2673, %v2771
        %v2820 = vmax.f32 %v2674, %v2772
        %v2821 = vmax.f32 %v2675, %v2773
        %v2822 = vmax.f32 %v2676, %v2774
        %v2823 = vmax.f32 %v2677, %v2775
        %v2824 = vmax.f32 %v2678, %v2776
        %v2825 = vmax.f32 %v2679, %v2777
        %v2826 = vmax.f32 %v2680, %v2778
        %v2827 = vmax.f32 %v2681, %v2779
        %v2828 = vmax.f32 %v2682, %v2780
        %v2829 = vmax.f32 %v2683, %v2781
        %v2830 = vmax.f32 %v2684, %v2782
        %v2831 = vmax.f32 %v2685, %v2783
        %v2832 = vmax.f32 %v2686, %v2784
        %v2833 = vmax.f32 %v2687, %v2785
        %v2834 = vmax.f32 %v2688, %v2786
        %v2835 = vmax.f32 %v2689, %v2787
        %v2836 = vmax.f32 %v2690, %v2788
        %v2837 = vmax.f32 %v2691, %v2789
        %v2838 = vmax.f32 %v2692, %v2790
        %v2839 = vmax.f32 %v2693, %v2791
        %v2840 = vmax.f32 %v2694, %v2792
        %v2841 = vmax.f32 %v2695, %v2793
        %v2842 = vmax.f32 %v2696, %v2794
        %v2843 = vmax.f32 %v2697, %v2795
        %v2844 = vmax.f32 %v2698, %v2796
        %v2845 = vmax.f32 %v2699, %v2797
        %v2846 = vmax.f32 %v2700, %v2798
        %v2847 = vmax.f32 %v2701, %v2799
        %v2848 = vmax.f32 %v2702, %v2800
        %v2849 = vmax.f32 %v2703, %v2801
        %v2850 = vmax.f32 %v2704, %v2802
        %v2851 = vmax.f32 %v2705, %v2803
        %v2852 = vmax.f32 %v2706, %v2804
        %v2853 = vmax.f32 %v2707, %v2805
        %v2854 = vmax.f32 %v2708, %v2806
        %v2855 = vmax.f32 %v2709, %v2807
        %v2856 = vmax.f32 %v2710, %v2808
        %v2857 = vmax.f32 %v2711, %v2809
        %v2858 = vld [vmem:[#allocation6 + $0x2] sm:$0xff]
        %v2859 = vld [vmem:[#allocation6 + $0xa] sm:$0xff]
        %v2860 = vld [vmem:[#allocation6 + $0x12] sm:$0xff]
        %v2861 = vld [vmem:[#allocation6 + $0x1a] sm:$0xff]
        %v2862 = vld [vmem:[#allocation6 + $0x22] sm:$0xff]
        %v2863 = vld [vmem:[#allocation6 + $0x2a] sm:$0xff]
        %v2864 = vld [vmem:[#allocation6 + $0x32] sm:$0xff]
        %v2865 = vld [vmem:[#allocation6 + $0x3a] sm:$0xff]
        %v2866 = vld [vmem:[#allocation6 + $0x42] sm:$0xff]
        %v2867 = vld [vmem:[#allocation6 + $0x4a] sm:$0xff]
        %v2868 = vld [vmem:[#allocation6 + $0x52] sm:$0xff]
        %v2869 = vld [vmem:[#allocation6 + $0x5a] sm:$0xff]
        %v2870 = vld [vmem:[#allocation6 + $0x62] sm:$0xff]
        %v2871 = vld [vmem:[#allocation6 + $0x6a] sm:$0xff]
        %v2872 = vld [vmem:[#allocation6 + $0x72] sm:$0xff]
        %v2873 = vld [vmem:[#allocation6 + $0x7a] sm:$0xff]
        %v2874 = vld [vmem:[#allocation6 + $0x82] sm:$0xff]
        %v2875 = vld [vmem:[#allocation6 + $0x8a] sm:$0xff]
        %v2876 = vld [vmem:[#allocation6 + $0x92] sm:$0xff]
        %v2877 = vld [vmem:[#allocation6 + $0x9a] sm:$0xff]
        %v2878 = vld [vmem:[#allocation6 + $0xa2] sm:$0xff]
        %v2879 = vld [vmem:[#allocation6 + $0xaa] sm:$0xff]
        %v2880 = vld [vmem:[#allocation6 + $0xb2] sm:$0xff]
        %v2881 = vld [vmem:[#allocation6 + $0xba] sm:$0xff]
        %v2882 = vld [vmem:[#allocation6 + $0xc2] sm:$0xff]
        %v2883 = vld [vmem:[#allocation6 + $0xca] sm:$0xff]
        %v2884 = vld [vmem:[#allocation6 + $0xd2] sm:$0xff]
        %v2885 = vld [vmem:[#allocation6 + $0xda] sm:$0xff]
        %v2886 = vld [vmem:[#allocation6 + $0xe2] sm:$0xff]
        %v2887 = vld [vmem:[#allocation6 + $0xea] sm:$0xff]
        %v2888 = vld [vmem:[#allocation6 + $0xf2] sm:$0xff]
        %v2889 = vld [vmem:[#allocation6 + $0xfa] sm:$0xff]
        %v2890 = vld [vmem:[#allocation6 + $0x102] sm:$0xff]
        %v2891 = vld [vmem:[#allocation6 + $0x10a] sm:$0xff]
        %v2892 = vld [vmem:[#allocation6 + $0x112] sm:$0xff]
        %v2893 = vld [vmem:[#allocation6 + $0x11a] sm:$0xff]
        %v2894 = vld [vmem:[#allocation6 + $0x122] sm:$0xff]
        %v2895 = vld [vmem:[#allocation6 + $0x12a] sm:$0xff]
        %v2896 = vld [vmem:[#allocation6 + $0x132] sm:$0xff]
        %v2897 = vld [vmem:[#allocation6 + $0x13a] sm:$0xff]
        %v2898 = vld [vmem:[#allocation6 + $0x142] sm:$0xff]
        %v2899 = vld [vmem:[#allocation6 + $0x14a] sm:$0xff]
        %v2900 = vld [vmem:[#allocation6 + $0x152] sm:$0xff]
        %v2901 = vld [vmem:[#allocation6 + $0x15a] sm:$0xff]
        %v2902 = vld [vmem:[#allocation6 + $0x162] sm:$0xff]
        %v2903 = vld [vmem:[#allocation6 + $0x16a] sm:$0xff]
        %v2904 = vld [vmem:[#allocation6 + $0x172] sm:$0xff]
        %v2905 = vld [vmem:[#allocation6 + $0x17a] sm:$0xff]
        %v2906 = vmax.f32 %v2810, %v2858
        %v2907 = vmax.f32 %v2811, %v2859
        %v2908 = vmax.f32 %v2812, %v2860
        %v2909 = vmax.f32 %v2813, %v2861
        %v2910 = vmax.f32 %v2814, %v2862
        %v2911 = vmax.f32 %v2815, %v2863
        %v2912 = vmax.f32 %v2816, %v2864
        %v2913 = vmax.f32 %v2817, %v2865
        %v2914 = vmax.f32 %v2818, %v2866
        %v2915 = vmax.f32 %v2819, %v2867
        %v2916 = vmax.f32 %v2820, %v2868
        %v2917 = vmax.f32 %v2821, %v2869
        %v2918 = vmax.f32 %v2822, %v2870
        %v2919 = vmax.f32 %v2823, %v2871
        %v2920 = vmax.f32 %v2824, %v2872
        %v2921 = vmax.f32 %v2825, %v2873
        %v2922 = vmax.f32 %v2826, %v2874
        %v2923 = vmax.f32 %v2827, %v2875
        %v2924 = vmax.f32 %v2828, %v2876
        %v2925 = vmax.f32 %v2829, %v2877
        %v2926 = vmax.f32 %v2830, %v2878
        %v2927 = vmax.f32 %v2831, %v2879
        %v2928 = vmax.f32 %v2832, %v2880
        %v2929 = vmax.f32 %v2833, %v2881
        %v2930 = vmax.f32 %v2834, %v2882
        %v2931 = vmax.f32 %v2835, %v2883
        %v2932 = vmax.f32 %v2836, %v2884
        %v2933 = vmax.f32 %v2837, %v2885
        %v2934 = vmax.f32 %v2838, %v2886
        %v2935 = vmax.f32 %v2839, %v2887
        %v2936 = vmax.f32 %v2840, %v2888
        %v2937 = vmax.f32 %v2841, %v2889
        %v2938 = vmax.f32 %v2842, %v2890
        %v2939 = vmax.f32 %v2843, %v2891
        %v2940 = vmax.f32 %v2844, %v2892
        %v2941 = vmax.f32 %v2845, %v2893
        %v2942 = vmax.f32 %v2846, %v2894
        %v2943 = vmax.f32 %v2847, %v2895
        %v2944 = vmax.f32 %v2848, %v2896
        %v2945 = vmax.f32 %v2849, %v2897
        %v2946 = vmax.f32 %v2850, %v2898
        %v2947 = vmax.f32 %v2851, %v2899
        %v2948 = vmax.f32 %v2852, %v2900
        %v2949 = vmax.f32 %v2853, %v2901
        %v2950 = vmax.f32 %v2854, %v2902
        %v2951 = vmax.f32 %v2855, %v2903
        %v2952 = vmax.f32 %v2856, %v2904
        %v2953 = vmax.f32 %v2857, %v2905
        %v2954 = vld [vmem:[#allocation6 + $0x3] sm:$0xff]
        %v2955 = vld [vmem:[#allocation6 + $0xb] sm:$0xff]
        %v2956 = vld [vmem:[#allocation6 + $0x13] sm:$0xff]
        %v2957 = vld [vmem:[#allocation6 + $0x1b] sm:$0xff]
        %v2958 = vld [vmem:[#allocation6 + $0x23] sm:$0xff]
        %v2959 = vld [vmem:[#allocation6 + $0x2b] sm:$0xff]
        %v2960 = vld [vmem:[#allocation6 + $0x33] sm:$0xff]
        %v2961 = vld [vmem:[#allocation6 + $0x3b] sm:$0xff]
        %v2962 = vld [vmem:[#allocation6 + $0x43] sm:$0xff]
        %v2963 = vld [vmem:[#allocation6 + $0x4b] sm:$0xff]
        %v2964 = vld [vmem:[#allocation6 + $0x53] sm:$0xff]
        %v2965 = vld [vmem:[#allocation6 + $0x5b] sm:$0xff]
        %v2966 = vld [vmem:[#allocation6 + $0x63] sm:$0xff]
        %v2967 = vld [vmem:[#allocation6 + $0x6b] sm:$0xff]
        %v2968 = vld [vmem:[#allocation6 + $0x73] sm:$0xff]
        %v2969 = vld [vmem:[#allocation6 + $0x7b] sm:$0xff]
        %v2970 = vld [vmem:[#allocation6 + $0x83] sm:$0xff]
        %v2971 = vld [vmem:[#allocation6 + $0x8b] sm:$0xff]
        %v2972 = vld [vmem:[#allocation6 + $0x93] sm:$0xff]
        %v2973 = vld [vmem:[#allocation6 + $0x9b] sm:$0xff]
        %v2974 = vld [vmem:[#allocation6 + $0xa3] sm:$0xff]
        %v2975 = vld [vmem:[#allocation6 + $0xab] sm:$0xff]
        %v2976 = vld [vmem:[#allocation6 + $0xb3] sm:$0xff]
        %v2977 = vld [vmem:[#allocation6 + $0xbb] sm:$0xff]
        %v2978 = vld [vmem:[#allocation6 + $0xc3] sm:$0xff]
        %v2979 = vld [vmem:[#allocation6 + $0xcb] sm:$0xff]
        %v2980 = vld [vmem:[#allocation6 + $0xd3] sm:$0xff]
        %v2981 = vld [vmem:[#allocation6 + $0xdb] sm:$0xff]
        %v2982 = vld [vmem:[#allocation6 + $0xe3] sm:$0xff]
        %v2983 = vld [vmem:[#allocation6 + $0xeb] sm:$0xff]
        %v2984 = vld [vmem:[#allocation6 + $0xf3] sm:$0xff]
        %v2985 = vld [vmem:[#allocation6 + $0xfb] sm:$0xff]
        %v2986 = vld [vmem:[#allocation6 + $0x103] sm:$0xff]
        %v2987 = vld [vmem:[#allocation6 + $0x10b] sm:$0xff]
        %v2988 = vld [vmem:[#allocation6 + $0x113] sm:$0xff]
        %v2989 = vld [vmem:[#allocation6 + $0x11b] sm:$0xff]
        %v2990 = vld [vmem:[#allocation6 + $0x123] sm:$0xff]
        %v2991 = vld [vmem:[#allocation6 + $0x12b] sm:$0xff]
        %v2992 = vld [vmem:[#allocation6 + $0x133] sm:$0xff]
        %v2993 = vld [vmem:[#allocation6 + $0x13b] sm:$0xff]
        %v2994 = vld [vmem:[#allocation6 + $0x143] sm:$0xff]
        %v2995 = vld [vmem:[#allocation6 + $0x14b] sm:$0xff]
        %v2996 = vld [vmem:[#allocation6 + $0x153] sm:$0xff]
        %v2997 = vld [vmem:[#allocation6 + $0x15b] sm:$0xff]
        %v2998 = vld [vmem:[#allocation6 + $0x163] sm:$0xff]
        %v2999 = vld [vmem:[#allocation6 + $0x16b] sm:$0xff]
        %v3000 = vld [vmem:[#allocation6 + $0x173] sm:$0xff]
        %v3001 = vld [vmem:[#allocation6 + $0x17b] sm:$0xff]
        %v3002 = vmax.f32 %v2906, %v2954
        %v3003 = vmax.f32 %v2907, %v2955
        %v3004 = vmax.f32 %v2908, %v2956
        %v3005 = vmax.f32 %v2909, %v2957
        %v3006 = vmax.f32 %v2910, %v2958
        %v3007 = vmax.f32 %v2911, %v2959
        %v3008 = vmax.f32 %v2912, %v2960
        %v3009 = vmax.f32 %v2913, %v2961
        %v3010 = vmax.f32 %v2914, %v2962
        %v3011 = vmax.f32 %v2915, %v2963
        %v3012 = vmax.f32 %v2916, %v2964
        %v3013 = vmax.f32 %v2917, %v2965
        %v3014 = vmax.f32 %v2918, %v2966
        %v3015 = vmax.f32 %v2919, %v2967
        %v3016 = vmax.f32 %v2920, %v2968
        %v3017 = vmax.f32 %v2921, %v2969
        %v3018 = vmax.f32 %v2922, %v2970
        %v3019 = vmax.f32 %v2923, %v2971
        %v3020 = vmax.f32 %v2924, %v2972
        %v3021 = vmax.f32 %v2925, %v2973
        %v3022 = vmax.f32 %v2926, %v2974
        %v3023 = vmax.f32 %v2927, %v2975
        %v3024 = vmax.f32 %v2928, %v2976
        %v3025 = vmax.f32 %v2929, %v2977
        %v3026 = vmax.f32 %v2930, %v2978
        %v3027 = vmax.f32 %v2931, %v2979
        %v3028 = vmax.f32 %v2932, %v2980
        %v3029 = vmax.f32 %v2933, %v2981
        %v3030 = vmax.f32 %v2934, %v2982
        %v3031 = vmax.f32 %v2935, %v2983
        %v3032 = vmax.f32 %v2936, %v2984
        %v3033 = vmax.f32 %v2937, %v2985
        %v3034 = vmax.f32 %v2938, %v2986
        %v3035 = vmax.f32 %v2939, %v2987
        %v3036 = vmax.f32 %v2940, %v2988
        %v3037 = vmax.f32 %v2941, %v2989
        %v3038 = vmax.f32 %v2942, %v2990
        %v3039 = vmax.f32 %v2943, %v2991
        %v3040 = vmax.f32 %v2944, %v2992
        %v3041 = vmax.f32 %v2945, %v2993
        %v3042 = vmax.f32 %v2946, %v2994
        %v3043 = vmax.f32 %v2947, %v2995
        %v3044 = vmax.f32 %v2948, %v2996
        %v3045 = vmax.f32 %v2949, %v2997
        %v3046 = vmax.f32 %v2950, %v2998
        %v3047 = vmax.f32 %v2951, %v2999
        %v3048 = vmax.f32 %v2952, %v3000
        %v3049 = vmax.f32 %v2953, %v3001
        %v3050 = vld [vmem:[%s9] sm:$0xff]
        %v3051 = vld [vmem:[%s9 + $0x8] sm:$0xf]
        %v3052 = vld [vmem:[%s9 + $0xc] sm:$0xff]
        %v3053 = vld [vmem:[%s9 + $0x14] sm:$0xf]
        %v3054 = vld [vmem:[%s9 + $0x18] sm:$0xff]
        %v3055 = vld [vmem:[%s9 + $0x20] sm:$0xf]
        %v3056 = vld [vmem:[%s9 + $0x24] sm:$0xff]
        %v3057 = vld [vmem:[%s9 + $0x2c] sm:$0xf]
        %v3058 = vld [vmem:[%s9 + $0x30] sm:$0xff]
        %v3059 = vld [vmem:[%s9 + $0x38] sm:$0xf]
        %v3060 = vld [vmem:[%s9 + $0x3c] sm:$0xff]
        %v3061 = vld [vmem:[%s9 + $0x44] sm:$0xf]
        %v3062 = vld [vmem:[%s9 + $0x48] sm:$0xff]
        %v3063 = vld [vmem:[%s9 + $0x50] sm:$0xf]
        %v3064 = vld [vmem:[%s9 + $0x54] sm:$0xff]
        %v3065 = vld [vmem:[%s9 + $0x5c] sm:$0xf]
        %v3066 = vld [vmem:[%s9 + $0x60] sm:$0xff]
        %v3067 = vld [vmem:[%s9 + $0x68] sm:$0xf]
        %v3068 = vld [vmem:[%s9 + $0x6c] sm:$0xff]
        %v3069 = vld [vmem:[%s9 + $0x74] sm:$0xf]
        %v3070 = vld [vmem:[%s9 + $0x78] sm:$0xff]
        %v3071 = vld [vmem:[%s9 + $0x80] sm:$0xf]
        %v3072 = vld [vmem:[%s9 + $0x84] sm:$0xff]
        %v3073 = vld [vmem:[%s9 + $0x8c] sm:$0xf]
        %v3074 = vpack.c.bf16 %v3003, %v3002
        %v3075 = vpack.c.bf16 %v3005, %v3004
        %v3076 = vpack.c.bf16 %v3007, %v3006
        %v3077 = vpack.c.bf16 %v3009, %v3008
        %v3078 = vpack.c.bf16 %v3011, %v3010
        %v3079 = vpack.c.bf16 %v3013, %v3012
        %v3080 = vpack.c.bf16 %v3015, %v3014
        %v3081 = vpack.c.bf16 %v3017, %v3016
        %v3082 = vpack.c.bf16 %v3019, %v3018
        %v3083 = vpack.c.bf16 %v3021, %v3020
        %v3084 = vpack.c.bf16 %v3023, %v3022
        %v3085 = vpack.c.bf16 %v3025, %v3024
        %v3086 = vpack.c.bf16 %v3027, %v3026
        %v3087 = vpack.c.bf16 %v3029, %v3028
        %v3088 = vpack.c.bf16 %v3031, %v3030
        %v3089 = vpack.c.bf16 %v3033, %v3032
        %v3090 = vpack.c.bf16 %v3035, %v3034
        %v3091 = vpack.c.bf16 %v3037, %v3036
        %v3092 = vpack.c.bf16 %v3039, %v3038
        %v3093 = vpack.c.bf16 %v3041, %v3040
        %v3094 = vpack.c.bf16 %v3043, %v3042
        %v3095 = vpack.c.bf16 %v3045, %v3044
        %v3096 = vpack.c.bf16 %v3047, %v3046
        %v3097 = vpack.c.bf16 %v3049, %v3048
        %v3122 = vunpack.c.l.b16 %v3050
        %v3123 = vunpack.c.h.b16 %v3050
        %v3124 = vunpack.c.l.b16 %v3051
        %v3125 = vunpack.c.l.b16 %v3052
        %v3126 = vunpack.c.h.b16 %v3052
        %v3127 = vunpack.c.l.b16 %v3053
        %v3128 = vunpack.c.l.b16 %v3054
        %v3129 = vunpack.c.h.b16 %v3054
        %v3130 = vunpack.c.l.b16 %v3055
        %v3131 = vunpack.c.l.b16 %v3056
        %v3132 = vunpack.c.h.b16 %v3056
        %v3133 = vunpack.c.l.b16 %v3057
        %v3134 = vunpack.c.l.b16 %v3058
        %v3135 = vunpack.c.h.b16 %v3058
        %v3136 = vunpack.c.l.b16 %v3059
        %v3137 = vunpack.c.l.b16 %v3060
        %v3138 = vunpack.c.h.b16 %v3060
        %v3139 = vunpack.c.l.b16 %v3061
        %v3140 = vunpack.c.l.b16 %v3062
        %v3141 = vunpack.c.h.b16 %v3062
        %v3142 = vunpack.c.l.b16 %v3063
        %v3143 = vunpack.c.l.b16 %v3064
        %v3144 = vunpack.c.h.b16 %v3064
        %v3145 = vunpack.c.l.b16 %v3065
        %v3146 = vunpack.c.l.b16 %v3066
        %v3147 = vunpack.c.h.b16 %v3066
        %v3148 = vunpack.c.l.b16 %v3067
        %v3149 = vunpack.c.l.b16 %v3068
        %v3150 = vunpack.c.h.b16 %v3068
        %v3151 = vunpack.c.l.b16 %v3069
        %v3152 = vunpack.c.l.b16 %v3070
        %v3153 = vunpack.c.h.b16 %v3070
        %v3154 = vunpack.c.l.b16 %v3071
        %v3155 = vunpack.c.l.b16 %v3072
        %v3156 = vunpack.c.h.b16 %v3072
        %v3157 = vunpack.c.l.b16 %v3073
        %v3158 = vpack.c.b16 %v3125, %v3122
        %v3159 = vpack.c.b16 %v3126, %v3123
        %v3160 = vpack.c.b16 %v3127, %v3124
        %v3161 = vpack.c.b16 %v3131, %v3128
        %v3162 = vpack.c.b16 %v3132, %v3129
        %v3163 = vpack.c.b16 %v3133, %v3130
        %v3164 = vpack.c.b16 %v3137, %v3134
        %v3165 = vpack.c.b16 %v3138, %v3135
        %v3166 = vpack.c.b16 %v3139, %v3136
        %v3167 = vpack.c.b16 %v3143, %v3140
        %v3168 = vpack.c.b16 %v3144, %v3141
        %v3169 = vpack.c.b16 %v3145, %v3142
        %v3170 = vpack.c.b16 %v3149, %v3146
        %v3171 = vpack.c.b16 %v3150, %v3147
        %v3172 = vpack.c.b16 %v3151, %v3148
        %v3173 = vpack.c.b16 %v3155, %v3152
        %v3174 = vpack.c.b16 %v3156, %v3153
        %v3175 = vpack.c.b16 %v3157, %v3154
        %3194 = vmatprep.subr.bf16.mxu0 0
        %3195 = vmatpush1.bf16.msra.mxu0 %v3074
        %3196 = vmatprep.subr.bf16.mxu0 0
        %3197 = vmatpush1.bf16.msra.mxu0 %v3075
        %3198 = vmatprep.subr.bf16.mxu0 0
        %3199 = vmatpush1.bf16.msra.mxu0 %v3076
        %3200 = vmatprep.subr.bf16.mxu0 0
        %3201 = vmatpush1.bf16.msra.mxu0 %v3077
        %3202 = vmatprep.subr.bf16.mxu0 0
        %3203 = vmatpush1.bf16.msra.mxu0 %v3078
        %3204 = vmatprep.subr.bf16.mxu0 0
        %3205 = vmatpush1.bf16.msra.mxu0 %v3079
        %3206 = vmatprep.subr.bf16.mxu0 0
        %3207 = vmatpush1.bf16.msra.mxu0 %v3080
        %3208 = vmatprep.subr.bf16.mxu0 0
        %3209 = vmatpush1.bf16.msra.mxu0 %v3081
        %3210 = vmatprep.subr.bf16.mxu0 0
        %3211 = vmatpush1.bf16.msra.mxu0 %v3082
        %3212 = vmatprep.subr.bf16.mxu0 0
        %3213 = vmatpush1.bf16.msra.mxu0 %v3083
        %3214 = vmatprep.subr.bf16.mxu0 0
        %3215 = vmatpush1.bf16.msra.mxu0 %v3084
        %3216 = vmatprep.subr.bf16.mxu0 0
        %3217 = vmatpush1.bf16.msra.mxu0 %v3085
        %3218 = vmatprep.subr.bf16.mxu0 0
        %3219 = vmatpush1.bf16.msra.mxu0 %v3086
        %3220 = vmatprep.subr.bf16.mxu0 0
        %3221 = vmatpush1.bf16.msra.mxu0 %v3087
        %3222 = vmatprep.subr.bf16.mxu0 0
        %3223 = vmatpush1.bf16.msra.mxu0 %v3088
        %3224 = vmatprep.subr.bf16.mxu0 0
        %3225 = vmatpush1.bf16.msra.mxu0 %v3089
        %3226 = vmatprep.mubr.bf16.mxu0 %v3159
        %3227 = vmatmul.mubr.bf16.gmra.mrb[0].mxu0 %v3158
        %v3228 = vpop.f32.mrb[0].mxu0
        %v3229 = vadd.f32 0.0, %v3228
        %v3230 = vpop.f32.mrb[0].mxu0
        %v3231 = vpop.f32.mrb[0].mxu0
        %v3232 = vadd.f32 0.0, %v3231
        %v3233 = vpop.f32.mrb[0].mxu0
        %3234 = vmatprep.mubr.bf16.mxu0 %v3162
        %3235 = vmatmul.mubr.bf16.gmra.mrb[0].mxu0 %v3161
        %v3236 = vpop.f32.mrb[0].mxu0
        %v3237 = vadd.f32 0.0, %v3236
        %v3238 = vpop.f32.mrb[0].mxu0
        %v3239 = vpop.f32.mrb[0].mxu0
        %v3240 = vadd.f32 0.0, %v3239
        %v3241 = vpop.f32.mrb[0].mxu0
        %3242 = vmatprep.mubr.bf16.mxu0 %v3165
        %3243 = vmatmul.mubr.bf16.gmra.mrb[0].mxu0 %v3164
        %v3244 = vpop.f32.mrb[0].mxu0
        %v3245 = vadd.f32 0.0, %v3244
        %v3246 = vpop.f32.mrb[0].mxu0
        %v3247 = vpop.f32.mrb[0].mxu0
        %v3248 = vadd.f32 0.0, %v3247
        %v3249 = vpop.f32.mrb[0].mxu0
        %3250 = vmatprep.mubr.bf16.mxu0 %v3168
        %3251 = vmatmul.mubr.bf16.gmra.mrb[0].mxu0 %v3167
        %v3252 = vpop.f32.mrb[0].mxu0
        %v3253 = vadd.f32 0.0, %v3252
        %v3254 = vpop.f32.mrb[0].mxu0
        %v3255 = vpop.f32.mrb[0].mxu0
        %v3256 = vadd.f32 0.0, %v3255
        %v3257 = vpop.f32.mrb[0].mxu0
        %3258 = vmatprep.mubr.bf16.mxu0 %v3171
        %3259 = vmatmul.mubr.bf16.gmra.mrb[0].mxu0 %v3170
        %v3260 = vpop.f32.mrb[0].mxu0
        %v3261 = vadd.f32 0.0, %v3260
        %v3262 = vpop.f32.mrb[0].mxu0
        %v3263 = vpop.f32.mrb[0].mxu0
        %v3264 = vadd.f32 0.0, %v3263
        %v3265 = vpop.f32.mrb[0].mxu0
        %3266 = vmatprep.mubr.bf16.mxu0 %v3174
        %3267 = vmatmul.mubr.bf16.gmra.mrb[0].mxu0 %v3173
        %v3268 = vpop.f32.mrb[0].mxu0
        %v3269 = vadd.f32 0.0, %v3268
        %v3270 = vpop.f32.mrb[0].mxu0
        %v3271 = vpop.f32.mrb[0].mxu0
        %v3272 = vadd.f32 0.0, %v3271
        %v3273 = vpop.f32.mrb[0].mxu0
        %3274 = vdwg.mxu0
        %3275 = vmatprep.subr.bf16.mxu0 0
        %3276 = vmatpush1.bf16.msra.mxu0 %v3090
        %3277 = vmatprep.subr.bf16.mxu0 0
        %3278 = vmatpush1.bf16.msra.mxu0 %v3091
        %3279 = vmatprep.subr.bf16.mxu0 0
        %3280 = vmatpush1.bf16.msra.mxu0 %v3092
        %3281 = vmatprep.subr.bf16.mxu0 0
        %3282 = vmatpush1.bf16.msra.mxu0 %v3093
        %3283 = vmatprep.subr.bf16.mxu0 0
        %3284 = vmatpush1.bf16.msra.mxu0 %v3094
        %3285 = vmatprep.subr.bf16.mxu0 0
        %3286 = vmatpush1.bf16.msra.mxu0 %v3095
        %3287 = vmatprep.subr.bf16.mxu0 0
        %3288 = vmatpush1.bf16.msra.mxu0 %v3096
        %3289 = vmatprep.subr.bf16.mxu0 0
        %3290 = vmatpush1.bf16.msra.mxu0 %v3097
        %3291 = vmatprep.subr.bf16.mxu0 0
        %3292 = vmatpush1.bf16.msra.mxu0 0
        %3293 = vmatprep.subr.bf16.mxu0 0
        %3294 = vmatpush1.bf16.msra.mxu0 0
        %3295 = vmatprep.subr.bf16.mxu0 0
        %3296 = vmatpush1.bf16.msra.mxu0 0
        %3297 = vmatprep.subr.bf16.mxu0 0
        %3298 = vmatpush1.bf16.msra.mxu0 0
        %3299 = vmatprep.subr.bf16.mxu0 0
        %3300 = vmatpush1.bf16.msra.mxu0 0
        %3301 = vmatprep.subr.bf16.mxu0 0
        %3302 = vmatpush1.bf16.msra.mxu0 0
        %3303 = vmatprep.subr.bf16.mxu0 0
        %3304 = vmatpush1.bf16.msra.mxu0 0
        %3305 = vmatprep.subr.bf16.mxu0 0
        %3306 = vmatpush1.bf16.msra.mxu0 0
        %3307 = vmatprep.mubr.bf16.mxu0 0
        %3308 = vmatmul.mubr.bf16.gmra.mrb[0].mxu0 %v3160
        %v3309 = vpop.f32.mrb[0].mxu0
        %v3310 = vadd.f32 %v3229, %v3309
        %v3311 = vpop.f32.mrb[0].mxu0
        %v3312 = vpop.f32.mrb[0].mxu0
        %v3313 = vadd.f32 %v3232, %v3312
        %v3314 = vpop.f32.mrb[0].mxu0
        %3315 = vmatprep.mubr.bf16.mxu0 0
        %3316 = vmatmul.mubr.bf16.gmra.mrb[0].mxu0 %v3163
        %v3317 = vpop.f32.mrb[0].mxu0
        %v3318 = vadd.f32 %v3237, %v3317
        %v3319 = vpop.f32.mrb[0].mxu0
        %v3320 = vpop.f32.mrb[0].mxu0
        %v3321 = vadd.f32 %v3240, %v3320
        %v3322 = vpop.f32.mrb[0].mxu0
        %3323 = vmatprep.mubr.bf16.mxu0 0
        %3324 = vmatmul.mubr.bf16.gmra.mrb[0].mxu0 %v3166
        %v3325 = vpop.f32.mrb[0].mxu0
        %v3326 = vadd.f32 %v3245, %v3325
        %v3327 = vpop.f32.mrb[0].mxu0
        %v3328 = vpop.f32.mrb[0].mxu0
        %v3329 = vadd.f32 %v3248, %v3328
        %v3330 = vpop.f32.mrb[0].mxu0
        %3331 = vmatprep.mubr.bf16.mxu0 0
        %3332 = vmatmul.mubr.bf16.gmra.mrb[0].mxu0 %v3169
        %v3333 = vpop.f32.mrb[0].mxu0
        %v3334 = vadd.f32 %v3253, %v3333
        %v3335 = vpop.f32.mrb[0].mxu0
        %v3336 = vpop.f32.mrb[0].mxu0
        %v3337 = vadd.f32 %v3256, %v3336
        %v3338 = vpop.f32.mrb[0].mxu0
        %3339 = vmatprep.mubr.bf16.mxu0 0
        %3340 = vmatmul.mubr.bf16.gmra.mrb[0].mxu0 %v3172
        %v3341 = vpop.f32.mrb[0].mxu0
        %v3342 = vadd.f32 %v3261, %v3341
        %v3343 = vpop.f32.mrb[0].mxu0
        %v3344 = vpop.f32.mrb[0].mxu0
        %v3345 = vadd.f32 %v3264, %v3344
        %v3346 = vpop.f32.mrb[0].mxu0
        %3347 = vmatprep.mubr.bf16.mxu0 0
        %3348 = vmatmul.mubr.bf16.gmra.mrb[0].mxu0 %v3175
        %v3349 = vpop.f32.mrb[0].mxu0
        %v3350 = vadd.f32 %v3269, %v3349
        %v3351 = vpop.f32.mrb[0].mxu0
        %v3352 = vpop.f32.mrb[0].mxu0
        %v3353 = vadd.f32 %v3272, %v3352
        %v3354 = vpop.f32.mrb[0].mxu0
        %3355 = vdwg.mxu0
        %v3356 = vpack.c.bf16 %v3313, %v3310
        %v3357 = vpack.c.bf16 %v3321, %v3318
        %v3358 = vpack.c.bf16 %v3329, %v3326
        %v3359 = vpack.c.bf16 %v3337, %v3334
        %v3360 = vpack.c.bf16 %v3345, %v3342
        %v3361 = vpack.c.bf16 %v3353, %v3350
        %3362 = vst [vmem:[#allocation3] sm:$0x1] 0
        %3363 = vst [vmem:[#allocation3 + $0x8] sm:$0x1] 0
        %vm3364 = vcmask 516096
        %3365 = vst.msk [vmem:[#allocation3 + $0x10] sm:$0x1] %vm3364, 0
        %3366 = vst [vmem:[#allocation3 + $0x78] sm:$0x80] 0
        %3367 = vst [vmem:[#allocation3 + $0x80] sm:$0x80] 0
        %vm3368 = vcmask 523271
        %3369 = vst.msk [vmem:[#allocation3 + $0x88] sm:$0x80] %vm3368, 0
        %v3376 = vrot.slane %v3356, 7
        %v3377 = vrot.slane %v3357, 7
        %v3378 = vsel %vm958, %v3376, %v3377
        %v3379 = vrot.slane %v3358, 7
        %v3380 = vsel %vm958, %v3377, %v3379
        %v3381 = vrot.slane %v3359, 7
        %v3382 = vsel %vm958, %v3379, %v3381
        %v3383 = vrot.slane %v3360, 7
        %v3384 = vsel %vm958, %v3381, %v3383
        %v3385 = vrot.slane %v3361, 7
        %v3386 = vsel %vm958, %v3383, %v3385
        %vm3393 = vcmask 523265
        %3394 = vst.msk [vmem:[#allocation3] sm:$0xfe] %vm3393, %v3376
        %3395 = vst.msk [vmem:[#allocation3 + $0x18] sm:$0xff] %vm2712, %v3378
        %3396 = vst.msk [vmem:[#allocation3 + $0x30] sm:$0xff] %vm2712, %v3380
        %3397 = vst.msk [vmem:[#allocation3 + $0x48] sm:$0xff] %vm2712, %v3382
        %3398 = vst.msk [vmem:[#allocation3 + $0x60] sm:$0xff] %vm2712, %v3384
        %3399 = vst.msk [vmem:[#allocation3 + $0x78] sm:$0xff] %vm2712, %v3386
        %v3401 = vshrl.u32 %v3356, 16
        %v3403 = vrot.slane %v3401, 7
        %v3404 = vshll.u32 %v3356, 16
        %v3406 = vor.u32 %v3403, %v3404
        %v3408 = vshrl.u32 %v3357, 16
        %v3410 = vrot.slane %v3408, 7
        %v3411 = vshll.u32 %v3357, 16
        %v3413 = vor.u32 %v3410, %v3411
        %v3414 = vsel %vm1054, %v3403, %v3413
        %v3416 = vshrl.u32 %v3358, 16
        %v3418 = vrot.slane %v3416, 7
        %v3419 = vshll.u32 %v3358, 16
        %v3421 = vor.u32 %v3418, %v3419
        %v3422 = vsel %vm1054, %v3410, %v3421
        %v3424 = vshrl.u32 %v3359, 16
        %v3426 = vrot.slane %v3424, 7
        %v3427 = vshll.u32 %v3359, 16
        %v3429 = vor.u32 %v3426, %v3427
        %v3430 = vsel %vm1054, %v3418, %v3429
        %v3432 = vshrl.u32 %v3360, 16
        %v3434 = vrot.slane %v3432, 7
        %v3435 = vshll.u32 %v3360, 16
        %v3437 = vor.u32 %v3434, %v3435
        %v3438 = vsel %vm1054, %v3426, %v3437
        %v3440 = vshrl.u32 %v3361, 16
        %v3442 = vrot.slane %v3440, 7
        %v3443 = vshll.u32 %v3361, 16
        %v3445 = vor.u32 %v3442, %v3443
        %v3446 = vsel %vm1054, %v3434, %v3445
        %3447 = vrot.lane.b32.xlu0 %v3406, 64
        %v3448 = vpop.permute.xlu0 %3447
        %3449 = vrot.lane.b32.xlu0 %v3414, 64
        %v3450 = vpop.permute.xlu0 %3449
        %3451 = vrot.lane.b32.xlu0 %v3422, 64
        %v3452 = vpop.permute.xlu0 %3451
        %3453 = vrot.lane.b32.xlu0 %v3430, 64
        %v3454 = vpop.permute.xlu0 %3453
        %3455 = vrot.lane.b32.xlu0 %v3438, 64
        %v3456 = vpop.permute.xlu0 %3455
        %3457 = vrot.lane.b32.xlu0 %v3446, 64
        %v3458 = vpop.permute.xlu0 %3457
        %vm3465 = vcmask 1048064
        %vm3466 = vmand %vm3465, %vm1271
        %v3467 = vld [vmem:[#allocation3] sm:$0xff]
        %v3468 = vsel %vm3466, %v3448, %v3467
        %3469 = vst [vmem:[#allocation3] sm:$0xff] %v3468
        %vm3470 = vcmask 1048064
        %3471 = vst.msk [vmem:[#allocation3 + $0x18] sm:$0xff] %vm3470, %v3450
        %3472 = vst.msk [vmem:[#allocation3 + $0x30] sm:$0xff] %vm3470, %v3452
        %3473 = vst.msk [vmem:[#allocation3 + $0x48] sm:$0xff] %vm3470, %v3454
        %3474 = vst.msk [vmem:[#allocation3 + $0x60] sm:$0xff] %vm3470, %v3456
        %3475 = vst.msk [vmem:[#allocation3 + $0x78] sm:$0xff] %vm3470, %v3458
        %3476 = vst.msk [vmem:[#allocation3 + $0x8] sm:$0xff] %vm2712, %v3356
        %3477 = vst.msk [vmem:[#allocation3 + $0x20] sm:$0xff] %vm2712, %v3357
        %3478 = vst.msk [vmem:[#allocation3 + $0x38] sm:$0xff] %vm2712, %v3358
        %3479 = vst.msk [vmem:[#allocation3 + $0x50] sm:$0xff] %vm2712, %v3359
        %3480 = vst.msk [vmem:[#allocation3 + $0x68] sm:$0xff] %vm2712, %v3360
        %3481 = vst.msk [vmem:[#allocation3 + $0x80] sm:$0xff] %vm2712, %v3361
        %v3482 = vrot.slane %v3404, 1
        %v3483 = vor.u32 %v3401, %v3482
        %v3484 = vrot.slane %v3411, 1
        %v3485 = vsel %vm1323, %v3483, %v3484
        %v3486 = vor.u32 %v3408, %v3484
        %v3487 = vrot.slane %v3419, 1
        %v3488 = vsel %vm1323, %v3486, %v3487
        %v3489 = vor.u32 %v3416, %v3487
        %v3490 = vrot.slane %v3427, 1
        %v3491 = vsel %vm1323, %v3489, %v3490
        %v3492 = vor.u32 %v3424, %v3490
        %v3493 = vrot.slane %v3435, 1
        %v3494 = vsel %vm1323, %v3492, %v3493
        %v3495 = vor.u32 %v3432, %v3493
        %v3496 = vrot.slane %v3443, 1
        %v3497 = vsel %vm1323, %v3495, %v3496
        %v3498 = vor.u32 %v3440, %v3496
        %3499 = vrot.lane.b32.xlu0 %v3485, 64
        %v3500 = vpop.permute.xlu0 %3499
        %3501 = vrot.lane.b32.xlu0 %v3488, 64
        %v3502 = vpop.permute.xlu0 %3501
        %3503 = vrot.lane.b32.xlu0 %v3491, 64
        %v3504 = vpop.permute.xlu0 %3503
        %3505 = vrot.lane.b32.xlu0 %v3494, 64
        %v3506 = vpop.permute.xlu0 %3505
        %3507 = vrot.lane.b32.xlu0 %v3497, 64
        %v3508 = vpop.permute.xlu0 %3507
        %3509 = vrot.lane.b32.xlu0 %v3498, 64
        %v3510 = vpop.permute.xlu0 %3509
        %3517 = vst.msk [vmem:[#allocation3 + $0x8] sm:$0xff] %vm3470, %v3500
        %3518 = vst.msk [vmem:[#allocation3 + $0x20] sm:$0xff] %vm3470, %v3502
        %3519 = vst.msk [vmem:[#allocation3 + $0x38] sm:$0xff] %vm3470, %v3504
        %3520 = vst.msk [vmem:[#allocation3 + $0x50] sm:$0xff] %vm3470, %v3506
        %3521 = vst.msk [vmem:[#allocation3 + $0x68] sm:$0xff] %vm3470, %v3508
        %vm3522 = vmand %vm3465, %vm1323
        %v3523 = vld [vmem:[#allocation3 + $0x80] sm:$0xff]
        %v3524 = vsel %vm3522, %v3510, %v3523
        %3525 = vst [vmem:[#allocation3 + $0x80] sm:$0xff] %v3524
        %v3526 = vrot.slane %v3356, 1
        %v3527 = vrot.slane %v3357, 1
        %v3528 = vsel %vm1446, %v3526, %v3527
        %v3529 = vrot.slane %v3358, 1
        %v3530 = vsel %vm1446, %v3527, %v3529
        %v3531 = vrot.slane %v3359, 1
        %v3532 = vsel %vm1446, %v3529, %v3531
        %v3533 = vrot.slane %v3360, 1
        %v3534 = vsel %vm1446, %v3531, %v3533
        %v3535 = vrot.slane %v3361, 1
        %v3536 = vsel %vm1446, %v3533, %v3535
        %3543 = vst.msk [vmem:[#allocation3 + $0x10] sm:$0xff] %vm2712, %v3528
        %3544 = vst.msk [vmem:[#allocation3 + $0x28] sm:$0xff] %vm2712, %v3530
        %3545 = vst.msk [vmem:[#allocation3 + $0x40] sm:$0xff] %vm2712, %v3532
        %3546 = vst.msk [vmem:[#allocation3 + $0x58] sm:$0xff] %vm2712, %v3534
        %3547 = vst.msk [vmem:[#allocation3 + $0x70] sm:$0xff] %vm2712, %v3536
        %vm3548 = vcmask 522240
        %3549 = vst.msk [vmem:[#allocation3 + $0x88] sm:$0x7f] %vm3548, %v3535
        %v3550 = vld [vmem:[#allocation3] sm:$0xff]
        %v3551 = vld [vmem:[#allocation3 + $0x8] sm:$0xff]
        %v3552 = vld [vmem:[#allocation3 + $0x10] sm:$0xff]
        %v3553 = vld [vmem:[#allocation3 + $0x18] sm:$0xff]
        %v3554 = vld [vmem:[#allocation3 + $0x20] sm:$0xff]
        %v3555 = vld [vmem:[#allocation3 + $0x28] sm:$0xff]
        %v3556 = vld [vmem:[#allocation3 + $0x30] sm:$0xff]
        %v3557 = vld [vmem:[#allocation3 + $0x38] sm:$0xff]
        %v3558 = vld [vmem:[#allocation3 + $0x40] sm:$0xff]
        %v3559 = vld [vmem:[#allocation3 + $0x48] sm:$0xff]
        %v3560 = vld [vmem:[#allocation3 + $0x50] sm:$0xff]
        %v3561 = vld [vmem:[#allocation3 + $0x58] sm:$0xff]
        %v3562 = vld [vmem:[#allocation3 + $0x60] sm:$0xff]
        %v3563 = vld [vmem:[#allocation3 + $0x68] sm:$0xff]
        %v3564 = vld [vmem:[#allocation3 + $0x70] sm:$0xff]
        %v3565 = vld [vmem:[#allocation3 + $0x78] sm:$0xff]
        %v3566 = vld [vmem:[#allocation3 + $0x80] sm:$0xff]
        %v3567 = vld [vmem:[#allocation3 + $0x88] sm:$0xff]
        %v3568 = vld [vmem:[#allocation17] sm:$0xf]
        %v3569 = vld [vmem:[#allocation17 + $0x4] sm:$0xf]
        %v3570 = vld [vmem:[#allocation17 + $0x8] sm:$0xf]
        %v3571 = vld [vmem:[#allocation17 + $0xc] sm:$0xf]
        %v3572 = vld [vmem:[#allocation17 + $0x10] sm:$0xf]
        %v3573 = vld [vmem:[#allocation17 + $0x14] sm:$0xf]
        %v3574 = vld [vmem:[#allocation17 + $0x18] sm:$0xf]
        %v3575 = vld [vmem:[#allocation17 + $0x1c] sm:$0xf]
        %v3576 = vld [vmem:[#allocation17 + $0x20] sm:$0xf]
        %v3577 = vld [vmem:[#allocation17 + $0x24] sm:$0xf]
        %v3578 = vld [vmem:[#allocation17 + $0x28] sm:$0xf]
        %v3579 = vld [vmem:[#allocation17 + $0x2c] sm:$0xf]
        %v3580 = vld [vmem:[#allocation17 + $0x30] sm:$0xf]
        %v3581 = vld [vmem:[#allocation17 + $0x34] sm:$0xf]
        %v3582 = vld [vmem:[#allocation17 + $0x38] sm:$0xf]
        %v3583 = vld [vmem:[#allocation17 + $0x3c] sm:$0xf]
        %v3584 = vld [vmem:[#allocation17 + $0x40] sm:$0xf]
        %v3585 = vld [vmem:[#allocation17 + $0x44] sm:$0xf]
        %v3586 = vld [vmem:[#allocation17 + $0x48] sm:$0xf]
        %v3587 = vld [vmem:[#allocation17 + $0x4c] sm:$0xf]
        %v3588 = vld [vmem:[#allocation17 + $0x50] sm:$0xf]
        %v3589 = vld [vmem:[#allocation17 + $0x54] sm:$0xf]
        %v3590 = vld [vmem:[#allocation17 + $0x58] sm:$0xf]
        %v3591 = vld [vmem:[#allocation17 + $0x5c] sm:$0xf]
        %v3592 = vld [vmem:[#allocation17 + $0x60] sm:$0xf]
        %v3593 = vld [vmem:[#allocation17 + $0x64] sm:$0xf]
        %v3594 = vld [vmem:[#allocation17 + $0x68] sm:$0xf]
        %v3595 = vld [vmem:[#allocation17 + $0x6c] sm:$0xf]
        %v3596 = vld [vmem:[#allocation17 + $0x70] sm:$0xf]
        %v3597 = vld [vmem:[#allocation17 + $0x74] sm:$0xf]
        %v3598 = vld [vmem:[#allocation17 + $0x78] sm:$0xf]
        %v3599 = vld [vmem:[#allocation17 + $0x7c] sm:$0xf]
        %v3600 = vld [vmem:[#allocation17 + $0x80] sm:$0xf]
        %v3601 = vld [vmem:[#allocation17 + $0x84] sm:$0xf]
        %v3602 = vld [vmem:[#allocation17 + $0x88] sm:$0xf]
        %v3603 = vld [vmem:[#allocation17 + $0x8c] sm:$0xf]
        %v3604 = vld [vmem:[#allocation17 + $0x90] sm:$0xf]
        %v3605 = vld [vmem:[#allocation17 + $0x94] sm:$0xf]
        %v3606 = vld [vmem:[#allocation17 + $0x98] sm:$0xf]
        %v3607 = vld [vmem:[#allocation17 + $0x9c] sm:$0xf]
        %v3608 = vld [vmem:[#allocation18] sm:$0x1]
        %v3610 = vlaneseq
        %v3611 = vshrl.u32 %v3610, 7
        %v3612 = vsub.s32 0, %v3611
        %v3613 = vrot.slane %v3608, %v3612
        %v3655 = vunpack.c.l.b16 %v3568
        %v3656 = vunpack.c.l.b16 %v3569
        %v3657 = vunpack.c.l.b16 %v3570
        %v3658 = vunpack.c.l.b16 %v3571
        %v3659 = vunpack.c.l.b16 %v3572
        %v3660 = vunpack.c.l.b16 %v3573
        %v3661 = vunpack.c.l.b16 %v3574
        %v3662 = vunpack.c.l.b16 %v3575
        %v3663 = vunpack.c.l.b16 %v3576
        %v3664 = vunpack.c.l.b16 %v3577
        %v3665 = vunpack.c.l.b16 %v3578
        %v3666 = vunpack.c.l.b16 %v3579
        %v3667 = vunpack.c.l.b16 %v3580
        %v3668 = vunpack.c.l.b16 %v3581
        %v3669 = vunpack.c.l.b16 %v3582
        %v3670 = vunpack.c.l.b16 %v3583
        %v3671 = vunpack.c.l.b16 %v3584
        %v3672 = vunpack.c.l.b16 %v3585
        %v3673 = vunpack.c.l.b16 %v3586
        %v3674 = vunpack.c.l.b16 %v3587
        %v3675 = vunpack.c.l.b16 %v3588
        %v3676 = vunpack.c.l.b16 %v3589
        %v3677 = vunpack.c.l.b16 %v3590
        %v3678 = vunpack.c.l.b16 %v3591
        %v3679 = vunpack.c.l.b16 %v3592
        %v3680 = vunpack.c.l.b16 %v3593
        %v3681 = vunpack.c.l.b16 %v3594
        %v3682 = vunpack.c.l.b16 %v3595
        %v3683 = vunpack.c.l.b16 %v3596
        %v3684 = vunpack.c.l.b16 %v3597
        %v3685 = vunpack.c.l.b16 %v3598
        %v3686 = vunpack.c.l.b16 %v3599
        %v3687 = vunpack.c.l.b16 %v3600
        %v3688 = vunpack.c.l.b16 %v3601
        %v3689 = vunpack.c.l.b16 %v3602
        %v3690 = vunpack.c.l.b16 %v3603
        %v3691 = vunpack.c.l.b16 %v3604
        %v3692 = vunpack.c.l.b16 %v3605
        %v3693 = vunpack.c.l.b16 %v3606
        %v3694 = vunpack.c.l.b16 %v3607
        %v3695 = vpack.c.b16 %v3656, %v3655
        %v3696 = vpack.c.b16 %v3658, %v3657
        %v3697 = vpack.c.b16 %v3660, %v3659
        %v3698 = vpack.c.b16 %v3662, %v3661
        %v3699 = vpack.c.b16 %v3664, %v3663
        %v3700 = vpack.c.b16 %v3666, %v3665
        %v3701 = vpack.c.b16 %v3668, %v3667
        %v3702 = vpack.c.b16 %v3670, %v3669
        %v3703 = vpack.c.b16 %v3672, %v3671
        %v3704 = vpack.c.b16 %v3674, %v3673
        %v3705 = vpack.c.b16 %v3676, %v3675
        %v3706 = vpack.c.b16 %v3678, %v3677
        %v3707 = vpack.c.b16 %v3680, %v3679
        %v3708 = vpack.c.b16 %v3682, %v3681
        %v3709 = vpack.c.b16 %v3684, %v3683
        %v3710 = vpack.c.b16 %v3686, %v3685
        %v3711 = vpack.c.b16 %v3688, %v3687
        %v3712 = vpack.c.b16 %v3690, %v3689
        %v3713 = vpack.c.b16 %v3692, %v3691
        %v3714 = vpack.c.b16 %v3694, %v3693
        %v3736 = vsel %vm2712, %v3552, 0
        %v3739 = vsel %vm2712, %v3555, 0
        %v3742 = vsel %vm2712, %v3558, 0
        %v3745 = vsel %vm2712, %v3561, 0
        %v3748 = vsel %vm2712, %v3564, 0
        %v3751 = vsel %vm2712, %v3567, 0
        %3753 = vmatprep.subr.bf16.mxu0 0
        %3754 = vmatpush1.bf16.msra.mxu0 %v3695
        %3755 = vmatprep.subr.bf16.mxu0 0
        %3756 = vmatpush1.bf16.msra.mxu0 %v3696
        %3757 = vmatprep.subr.bf16.mxu0 0
        %3758 = vmatpush1.bf16.msra.mxu0 %v3697
        %3759 = vmatprep.subr.bf16.mxu0 0
        %3760 = vmatpush1.bf16.msra.mxu0 %v3698
        %3761 = vmatprep.subr.bf16.mxu0 0
        %3762 = vmatpush1.bf16.msra.mxu0 %v3699
        %3763 = vmatprep.subr.bf16.mxu0 0
        %3764 = vmatpush1.bf16.msra.mxu0 %v3700
        %3765 = vmatprep.subr.bf16.mxu0 0
        %3766 = vmatpush1.bf16.msra.mxu0 %v3701
        %3767 = vmatprep.subr.bf16.mxu0 0
        %3768 = vmatpush1.bf16.msra.mxu0 %v3702
        %3769 = vmatprep.subr.bf16.mxu0 0
        %3770 = vmatpush1.bf16.msra.mxu0 %v3703
        %3771 = vmatprep.subr.bf16.mxu0 0
        %3772 = vmatpush1.bf16.msra.mxu0 %v3704
        %3773 = vmatprep.subr.bf16.mxu0 0
        %3774 = vmatpush1.bf16.msra.mxu0 %v3705
        %3775 = vmatprep.subr.bf16.mxu0 0
        %3776 = vmatpush1.bf16.msra.mxu0 %v3706
        %3777 = vmatprep.subr.bf16.mxu0 0
        %3778 = vmatpush1.bf16.msra.mxu0 %v3707
        %3779 = vmatprep.subr.bf16.mxu0 0
        %3780 = vmatpush1.bf16.msra.mxu0 %v3708
        %3781 = vmatprep.subr.bf16.mxu0 0
        %3782 = vmatpush1.bf16.msra.mxu0 %v3709
        %3783 = vmatprep.subr.bf16.mxu0 0
        %3784 = vmatpush1.bf16.msra.mxu0 %v3710
        %3785 = vmatprep.mubr.bf16.mxu0 %v3551
        %3786 = vmatmul.mubr.bf16.gmra.mrb[0].mxu0 %v3550
        %v3787 = vpop.f32.mrb[0].mxu0
        %v3788 = vadd.f32 %v3613, %v3787
        %v3789 = vpop.f32.mrb[0].mxu0
        %v3790 = vpop.f32.mrb[0].mxu0
        %v3791 = vadd.f32 %v3613, %v3790
        %v3792 = vpop.f32.mrb[0].mxu0
        %3793 = vmatprep.mubr.bf16.mxu0 %v3554
        %3794 = vmatmul.mubr.bf16.gmra.mrb[0].mxu0 %v3553
        %v3795 = vpop.f32.mrb[0].mxu0
        %v3796 = vadd.f32 %v3613, %v3795
        %v3797 = vpop.f32.mrb[0].mxu0
        %v3798 = vpop.f32.mrb[0].mxu0
        %v3799 = vadd.f32 %v3613, %v3798
        %v3800 = vpop.f32.mrb[0].mxu0
        %3801 = vmatprep.mubr.bf16.mxu0 %v3557
        %3802 = vmatmul.mubr.bf16.gmra.mrb[0].mxu0 %v3556
        %v3803 = vpop.f32.mrb[0].mxu0
        %v3804 = vadd.f32 %v3613, %v3803
        %v3805 = vpop.f32.mrb[0].mxu0
        %v3806 = vpop.f32.mrb[0].mxu0
        %v3807 = vadd.f32 %v3613, %v3806
        %v3808 = vpop.f32.mrb[0].mxu0
        %3809 = vmatprep.mubr.bf16.mxu0 %v3560
        %3810 = vmatmul.mubr.bf16.gmra.mrb[0].mxu0 %v3559
        %v3811 = vpop.f32.mrb[0].mxu0
        %v3812 = vadd.f32 %v3613, %v3811
        %v3813 = vpop.f32.mrb[0].mxu0
        %v3814 = vpop.f32.mrb[0].mxu0
        %v3815 = vadd.f32 %v3613, %v3814
        %v3816 = vpop.f32.mrb[0].mxu0
        %3817 = vmatprep.mubr.bf16.mxu0 %v3563
        %3818 = vmatmul.mubr.bf16.gmra.mrb[0].mxu0 %v3562
        %v3819 = vpop.f32.mrb[0].mxu0
        %v3820 = vadd.f32 %v3613, %v3819
        %v3821 = vpop.f32.mrb[0].mxu0
        %v3822 = vpop.f32.mrb[0].mxu0
        %v3823 = vadd.f32 %v3613, %v3822
        %v3824 = vpop.f32.mrb[0].mxu0
        %3825 = vmatprep.mubr.bf16.mxu0 %v3566
        %3826 = vmatmul.mubr.bf16.gmra.mrb[0].mxu0 %v3565
        %v3827 = vpop.f32.mrb[0].mxu0
        %v3828 = vadd.f32 %v3613, %v3827
        %v3829 = vpop.f32.mrb[0].mxu0
        %v3830 = vpop.f32.mrb[0].mxu0
        %v3831 = vadd.f32 %v3613, %v3830
        %v3832 = vpop.f32.mrb[0].mxu0
        %3833 = vdwg.mxu0
        %3834 = vmatprep.subr.bf16.mxu0 0
        %3835 = vmatpush1.bf16.msra.mxu0 %v3711
        %3836 = vmatprep.subr.bf16.mxu0 0
        %3837 = vmatpush1.bf16.msra.mxu0 %v3712
        %3838 = vmatprep.subr.bf16.mxu0 0
        %3839 = vmatpush1.bf16.msra.mxu0 %v3713
        %3840 = vmatprep.subr.bf16.mxu0 0
        %3841 = vmatpush1.bf16.msra.mxu0 %v3714
        %3842 = vmatprep.subr.bf16.mxu0 0
        %3843 = vmatpush1.bf16.msra.mxu0 0
        %3844 = vmatprep.subr.bf16.mxu0 0
        %3845 = vmatpush1.bf16.msra.mxu0 0
        %3846 = vmatprep.subr.bf16.mxu0 0
        %3847 = vmatpush1.bf16.msra.mxu0 0
        %3848 = vmatprep.subr.bf16.mxu0 0
        %3849 = vmatpush1.bf16.msra.mxu0 0
        %3850 = vmatprep.subr.bf16.mxu0 0
        %3851 = vmatpush1.bf16.msra.mxu0 0
        %3852 = vmatprep.subr.bf16.mxu0 0
        %3853 = vmatpush1.bf16.msra.mxu0 0
        %3854 = vmatprep.subr.bf16.mxu0 0
        %3855 = vmatpush1.bf16.msra.mxu0 0
        %3856 = vmatprep.subr.bf16.mxu0 0
        %3857 = vmatpush1.bf16.msra.mxu0 0
        %3858 = vmatprep.subr.bf16.mxu0 0
        %3859 = vmatpush1.bf16.msra.mxu0 0
        %3860 = vmatprep.subr.bf16.mxu0 0
        %3861 = vmatpush1.bf16.msra.mxu0 0
        %3862 = vmatprep.subr.bf16.mxu0 0
        %3863 = vmatpush1.bf16.msra.mxu0 0
        %3864 = vmatprep.subr.bf16.mxu0 0
        %3865 = vmatpush1.bf16.msra.mxu0 0
        %3866 = vmatprep.mubr.bf16.mxu0 0
        %3867 = vmatmul.mubr.bf16.gmra.mrb[0].mxu0 %v3736
        %v3868 = vpop.f32.mrb[0].mxu0
        %v3869 = vadd.f32 %v3788, %v3868
        %v3870 = vpop.f32.mrb[0].mxu0
        %v3871 = vpop.f32.mrb[0].mxu0
        %v3872 = vadd.f32 %v3791, %v3871
        %v3873 = vpop.f32.mrb[0].mxu0
        %3874 = vmatprep.mubr.bf16.mxu0 0
        %3875 = vmatmul.mubr.bf16.gmra.mrb[0].mxu0 %v3739
        %v3876 = vpop.f32.mrb[0].mxu0
        %v3877 = vadd.f32 %v3796, %v3876
        %v3878 = vpop.f32.mrb[0].mxu0
        %v3879 = vpop.f32.mrb[0].mxu0
        %v3880 = vadd.f32 %v3799, %v3879
        %v3881 = vpop.f32.mrb[0].mxu0
        %3882 = vmatprep.mubr.bf16.mxu0 0
        %3883 = vmatmul.mubr.bf16.gmra.mrb[0].mxu0 %v3742
        %v3884 = vpop.f32.mrb[0].mxu0
        %v3885 = vadd.f32 %v3804, %v3884
        %v3886 = vpop.f32.mrb[0].mxu0
        %v3887 = vpop.f32.mrb[0].mxu0
        %v3888 = vadd.f32 %v3807, %v3887
        %v3889 = vpop.f32.mrb[0].mxu0
        %3890 = vmatprep.mubr.bf16.mxu0 0
        %3891 = vmatmul.mubr.bf16.gmra.mrb[0].mxu0 %v3745
        %v3892 = vpop.f32.mrb[0].mxu0
        %v3893 = vadd.f32 %v3812, %v3892
        %v3894 = vpop.f32.mrb[0].mxu0
        %v3895 = vpop.f32.mrb[0].mxu0
        %v3896 = vadd.f32 %v3815, %v3895
        %v3897 = vpop.f32.mrb[0].mxu0
        %3898 = vmatprep.mubr.bf16.mxu0 0
        %3899 = vmatmul.mubr.bf16.gmra.mrb[0].mxu0 %v3748
        %v3900 = vpop.f32.mrb[0].mxu0
        %v3901 = vadd.f32 %v3820, %v3900
        %v3902 = vpop.f32.mrb[0].mxu0
        %v3903 = vpop.f32.mrb[0].mxu0
        %v3904 = vadd.f32 %v3823, %v3903
        %v3905 = vpop.f32.mrb[0].mxu0
        %3906 = vmatprep.mubr.bf16.mxu0 0
        %3907 = vmatmul.mubr.bf16.gmra.mrb[0].mxu0 %v3751
        %v3908 = vpop.f32.mrb[0].mxu0
        %v3909 = vadd.f32 %v3828, %v3908
        %v3910 = vpop.f32.mrb[0].mxu0
        %v3911 = vpop.f32.mrb[0].mxu0
        %v3912 = vadd.f32 %v3831, %v3911
        %v3913 = vpop.f32.mrb[0].mxu0
        %3914 = vdwg.mxu0
        %v3915 = vmax.f32 %v3869, 0.0
        %v3916 = vmax.f32 %v3872, 0.0
        %v3917 = vmax.f32 %v3877, 0.0
        %v3918 = vmax.f32 %v3880, 0.0
        %v3919 = vmax.f32 %v3885, 0.0
        %v3920 = vmax.f32 %v3888, 0.0
        %v3921 = vmax.f32 %v3893, 0.0
        %v3922 = vmax.f32 %v3896, 0.0
        %v3923 = vmax.f32 %v3901, 0.0
        %v3924 = vmax.f32 %v3904, 0.0
        %v3925 = vmax.f32 %v3909, 0.0
        %v3926 = vmax.f32 %v3912, 0.0
        %3927 = vst [vmem:[#allocation7] sm:$0xff] %v3915
        %3928 = vst [vmem:[#allocation7 + $0x8] sm:$0xff] %v3916
        %3929 = vst [vmem:[#allocation7 + $0x10] sm:$0xff] %v3917
        %3930 = vst [vmem:[#allocation7 + $0x18] sm:$0xff] %v3918
        %3931 = vst [vmem:[#allocation7 + $0x20] sm:$0xff] %v3919
        %3932 = vst [vmem:[#allocation7 + $0x28] sm:$0xff] %v3920
        %3933 = vst [vmem:[#allocation7 + $0x30] sm:$0xff] %v3921
        %3934 = vst [vmem:[#allocation7 + $0x38] sm:$0xff] %v3922
        %3935 = vst [vmem:[#allocation7 + $0x40] sm:$0xff] %v3923
        %3936 = vst [vmem:[#allocation7 + $0x48] sm:$0xff] %v3924
        %3937 = vst [vmem:[#allocation7 + $0x50] sm:$0xff] %v3925
        %3938 = vst [vmem:[#allocation7 + $0x58] sm:$0xff] %v3926
        %3939 = vst [vmem:[#allocation7 + $0x60] sm:$0xff] 0.0
        %v3940 = vld [vmem:[#allocation7 + $0x1] sm:$0xff]
        %v3941 = vld [vmem:[#allocation7 + $0x9] sm:$0xff]
        %v3942 = vld [vmem:[#allocation7 + $0x11] sm:$0xff]
        %v3943 = vld [vmem:[#allocation7 + $0x19] sm:$0xff]
        %v3944 = vld [vmem:[#allocation7 + $0x21] sm:$0xff]
        %v3945 = vld [vmem:[#allocation7 + $0x29] sm:$0xff]
        %v3946 = vld [vmem:[#allocation7 + $0x31] sm:$0xff]
        %v3947 = vld [vmem:[#allocation7 + $0x39] sm:$0xff]
        %v3948 = vld [vmem:[#allocation7 + $0x41] sm:$0xff]
        %v3949 = vld [vmem:[#allocation7 + $0x49] sm:$0xff]
        %v3950 = vld [vmem:[#allocation7 + $0x51] sm:$0xff]
        %v3951 = vld [vmem:[#allocation7 + $0x59] sm:$0xff]
        %v3952 = vmax.f32 %v3915, %v3940
        %v3953 = vmax.f32 %v3916, %v3941
        %v3954 = vmax.f32 %v3917, %v3942
        %v3955 = vmax.f32 %v3918, %v3943
        %v3956 = vmax.f32 %v3919, %v3944
        %v3957 = vmax.f32 %v3920, %v3945
        %v3958 = vmax.f32 %v3921, %v3946
        %v3959 = vmax.f32 %v3922, %v3947
        %v3960 = vmax.f32 %v3923, %v3948
        %v3961 = vmax.f32 %v3924, %v3949
        %v3962 = vmax.f32 %v3925, %v3950
        %v3963 = vmax.f32 %v3926, %v3951
        %v3964 = vld [vmem:[#allocation7 + $0x2] sm:$0xff]
        %v3965 = vld [vmem:[#allocation7 + $0xa] sm:$0xff]
        %v3966 = vld [vmem:[#allocation7 + $0x12] sm:$0xff]
        %v3967 = vld [vmem:[#allocation7 + $0x1a] sm:$0xff]
        %v3968 = vld [vmem:[#allocation7 + $0x22] sm:$0xff]
        %v3969 = vld [vmem:[#allocation7 + $0x2a] sm:$0xff]
        %v3970 = vld [vmem:[#allocation7 + $0x32] sm:$0xff]
        %v3971 = vld [vmem:[#allocation7 + $0x3a] sm:$0xff]
        %v3972 = vld [vmem:[#allocation7 + $0x42] sm:$0xff]
        %v3973 = vld [vmem:[#allocation7 + $0x4a] sm:$0xff]
        %v3974 = vld [vmem:[#allocation7 + $0x52] sm:$0xff]
        %v3975 = vld [vmem:[#allocation7 + $0x5a] sm:$0xff]
        %v3976 = vmax.f32 %v3952, %v3964
        %v3977 = vmax.f32 %v3953, %v3965
        %v3978 = vmax.f32 %v3954, %v3966
        %v3979 = vmax.f32 %v3955, %v3967
        %v3980 = vmax.f32 %v3956, %v3968
        %v3981 = vmax.f32 %v3957, %v3969
        %v3982 = vmax.f32 %v3958, %v3970
        %v3983 = vmax.f32 %v3959, %v3971
        %v3984 = vmax.f32 %v3960, %v3972
        %v3985 = vmax.f32 %v3961, %v3973
        %v3986 = vmax.f32 %v3962, %v3974
        %v3987 = vmax.f32 %v3963, %v3975
        %v3988 = vld [vmem:[#allocation7 + $0x3] sm:$0xff]
        %v3989 = vld [vmem:[#allocation7 + $0xb] sm:$0xff]
        %v3990 = vld [vmem:[#allocation7 + $0x13] sm:$0xff]
        %v3991 = vld [vmem:[#allocation7 + $0x1b] sm:$0xff]
        %v3992 = vld [vmem:[#allocation7 + $0x23] sm:$0xff]
        %v3993 = vld [vmem:[#allocation7 + $0x2b] sm:$0xff]
        %v3994 = vld [vmem:[#allocation7 + $0x33] sm:$0xff]
        %v3995 = vld [vmem:[#allocation7 + $0x3b] sm:$0xff]
        %v3996 = vld [vmem:[#allocation7 + $0x43] sm:$0xff]
        %v3997 = vld [vmem:[#allocation7 + $0x4b] sm:$0xff]
        %v3998 = vld [vmem:[#allocation7 + $0x53] sm:$0xff]
        %v3999 = vld [vmem:[#allocation7 + $0x5b] sm:$0xff]
        %v4000 = vmax.f32 %v3976, %v3988
        %v4001 = vmax.f32 %v3977, %v3989
        %v4002 = vmax.f32 %v3978, %v3990
        %v4003 = vmax.f32 %v3979, %v3991
        %v4004 = vmax.f32 %v3980, %v3992
        %v4005 = vmax.f32 %v3981, %v3993
        %v4006 = vmax.f32 %v3982, %v3994
        %v4007 = vmax.f32 %v3983, %v3995
        %v4008 = vmax.f32 %v3984, %v3996
        %v4009 = vmax.f32 %v3985, %v3997
        %v4010 = vmax.f32 %v3986, %v3998
        %v4011 = vmax.f32 %v3987, %v3999
        %v4012 = vld [vmem:[#allocation24] sm:$0xf]
        %v4013 = vld [vmem:[#allocation24 + $0x4] sm:$0xf]
        %v4014 = vld [vmem:[#allocation24 + $0x8] sm:$0xf]
        %v4015 = vpack.c.bf16 %v4001, %v4000
        %v4016 = vpack.c.bf16 %v4003, %v4002
        %v4017 = vpack.c.bf16 %v4005, %v4004
        %v4018 = vpack.c.bf16 %v4007, %v4006
        %v4019 = vpack.c.bf16 %v4009, %v4008
        %v4020 = vpack.c.bf16 %v4011, %v4010
        %v4024 = vunpack.c.l.b16 %v4012
        %v4025 = vunpack.c.l.b16 %v4013
        %v4026 = vunpack.c.l.b16 %v4014
        %v4027 = vpack.c.b16 %v4025, %v4024
        %v4028 = vpack.c.b16 %v4026, %v4026
        %vm4029 = vcmask 785408
        %v4031 = vsel %vm4029, %v4027, 0
        %v4034 = vsel %vm4029, %v4028, 0
        %4036 = vmatprep.subr.bf16.mxu0 0
        %4037 = vmatpush1.bf16.msra.mxu0 %v4015
        %4038 = vmatprep.subr.bf16.mxu0 0
        %4039 = vmatpush1.bf16.msra.mxu0 %v4016
        %4040 = vmatprep.subr.bf16.mxu0 0
        %4041 = vmatpush1.bf16.msra.mxu0 %v4017
        %4042 = vmatprep.subr.bf16.mxu0 0
        %4043 = vmatpush1.bf16.msra.mxu0 %v4018
        %4044 = vmatprep.subr.bf16.mxu0 0
        %4045 = vmatpush1.bf16.msra.mxu0 %v4019
        %4046 = vmatprep.subr.bf16.mxu0 0
        %4047 = vmatpush1.bf16.msra.mxu0 %v4020
        %4048 = vmatprep.subr.bf16.mxu0 0
        %4049 = vmatpush1.bf16.msra.mxu0 0
        %4050 = vmatprep.subr.bf16.mxu0 0
        %4051 = vmatpush1.bf16.msra.mxu0 0
        %4052 = vmatprep.subr.bf16.mxu0 0
        %4053 = vmatpush1.bf16.msra.mxu0 0
        %4054 = vmatprep.subr.bf16.mxu0 0
        %4055 = vmatpush1.bf16.msra.mxu0 0
        %4056 = vmatprep.subr.bf16.mxu0 0
        %4057 = vmatpush1.bf16.msra.mxu0 0
        %4058 = vmatprep.subr.bf16.mxu0 0
        %4059 = vmatpush1.bf16.msra.mxu0 0
        %4060 = vmatprep.subr.bf16.mxu0 0
        %4061 = vmatpush1.bf16.msra.mxu0 0
        %4062 = vmatprep.subr.bf16.mxu0 0
        %4063 = vmatpush1.bf16.msra.mxu0 0
        %4064 = vmatprep.subr.bf16.mxu0 0
        %4065 = vmatpush1.bf16.msra.mxu0 0
        %4066 = vmatprep.subr.bf16.mxu0 0
        %4067 = vmatpush1.bf16.msra.mxu0 0
        %4068 = vmatprep.mubr.bf16.mxu0 0
        %4069 = vmatmul.mubr.bf16.gmra.mrb[0].mxu0 %v4031
        %v4070 = vpop.f32.mrb[0].mxu0
        %v4071 = vadd.f32 0.0, %v4070
        %v4072 = vpop.f32.mrb[0].mxu0
        %v4073 = vpop.f32.mrb[0].mxu0
        %v4074 = vadd.f32 0.0, %v4073
        %v4075 = vpop.f32.mrb[0].mxu0
        %4076 = vmatprep.mubr.bf16.mxu0 0
        %4077 = vmatmul.mubr.bf16.gmra.mrb[0].mxu0 %v4034
        %v4078 = vpop.f32.mrb[0].mxu0
        %v4079 = vadd.f32 0.0, %v4078
        %v4080 = vpop.f32.mrb[0].mxu0
        %v4081 = vpop.f32.mrb[0].mxu0
        %v4082 = vpop.f32.mrb[0].mxu0
        %4083 = vdwg.mxu0
        %v4084 = vpack.c.bf16 %v4074, %v4071
        %v4085 = vpack.c.bf16 %v4079, %v4079
        %4086 = vst [vmem:[#allocation4] sm:$0x11] 0
        %4087 = vst [vmem:[#allocation4 + $0x8] sm:$0x11] 0
        %4088 = vst [vmem:[#allocation4 + $0x10] sm:$0x1] 0
        %4089 = vst [vmem:[#allocation4 + $0x28] sm:$0x88] 0
        %4090 = vst [vmem:[#allocation4 + $0x30] sm:$0x88] 0
        %4091 = vst [vmem:[#allocation4 + $0x38] sm:$0x8] 0
        %v4094 = vunpack.c.l.b16 %v4084
        %v4095 = vunpack.c.h.b16 %v4084
        %v4096 = vunpack.c.l.b16 %v4085
        %v4097 = vpack.c.b16 %v4094, %v4094
        %v4098 = vpack.c.b16 %v4095, %v4095
        %v4099 = vpack.c.b16 %v4096, %v4096
        %vm4100 = vcmask 1044484
        %vm4101 = vmor %vm958, %vm4100
        %v4102 = vrot.slane %v4097, 7
        %v4103 = vrot.slane %v4102, 4
        %v4104 = vrot.slane %v4098, 7
        %v4105 = vsel %vm4101, %v4103, %v4104
        %v4106 = vrot.slane %v4104, 4
        %v4107 = vrot.slane %v4099, 7
        %v4108 = vsel %vm4101, %v4106, %v4107
        %4112 = vst [vmem:[#allocation4] sm:$0xe] %v4102
        %4113 = vst [vmem:[#allocation4 + $0x14] sm:$0xf] %v4105
        %4114 = vst [vmem:[#allocation4 + $0x28] sm:$0xf] %v4108
        %vm4115 = vsmask.f32 4368
        %vm4116 = vmor %vm1054, %vm4115
        %v4118 = vshrl.u32 %v4097, 16
        %v4120 = vrot.slane %v4118, 7
        %v4121 = vshll.u32 %v4097, 16
        %v4123 = vor.u32 %v4120, %v4121
        %v4124 = vrot.slane %v4120, 4
        %v4126 = vshrl.u32 %v4098, 16
        %v4128 = vrot.slane %v4126, 7
        %v4129 = vshll.u32 %v4098, 16
        %v4131 = vor.u32 %v4128, %v4129
        %v4132 = vsel %vm4116, %v4124, %v4131
        %v4133 = vrot.slane %v4128, 4
        %v4135 = vshrl.u32 %v4099, 16
        %v4137 = vrot.slane %v4135, 7
        %v4138 = vshll.u32 %v4099, 16
        %v4140 = vor.u32 %v4137, %v4138
        %v4141 = vsel %vm4116, %v4133, %v4140
        %vm4145 = vcmask 1043456
        %vm4146 = vmand %vm4145, %vm1271
        %v4147 = vld [vmem:[#allocation4 + $0x4] sm:$0xf]
        %v4148 = vsel %vm4146, %v4123, %v4147
        %4149 = vst [vmem:[#allocation4 + $0x4] sm:$0xf] %v4148
        %4150 = vst [vmem:[#allocation4 + $0x18] sm:$0xf] %v4132
        %4151 = vst [vmem:[#allocation4 + $0x2c] sm:$0xf] %v4141
        %4155 = vst [vmem:[#allocation4 + $0x8] sm:$0xf] %v4097
        %4156 = vst [vmem:[#allocation4 + $0x1c] sm:$0xf] %v4098
        %4157 = vst [vmem:[#allocation4 + $0x30] sm:$0xf] %v4099
        %vm4158 = vsmask.f32 3328
        %vm4159 = vsmask.f32 7440
        %vm4160 = vmor %vm4158, %vm4159
        %v4161 = vrot.slane %v4118, 4
        %v4162 = vrot.slane %v4121, 5
        %v4163 = vor.u32 %v4161, %v4162
        %v4164 = vrot.slane %v4163, 4
        %v4165 = vrot.slane %v4129, 5
        %v4166 = vsel %vm4160, %v4164, %v4165
        %v4167 = vrot.slane %v4126, 4
        %v4168 = vor.u32 %v4167, %v4165
        %v4169 = vrot.slane %v4168, 4
        %v4170 = vrot.slane %v4138, 5
        %v4171 = vsel %vm4160, %v4169, %v4170
        %v4172 = vrot.slane %v4135, 4
        %v4173 = vor.u32 %v4172, %v4170
        %v4174 = vrot.slane %v4173, 4
        %4178 = vst [vmem:[#allocation4 + $0xc] sm:$0xf] %v4166
        %4179 = vst [vmem:[#allocation4 + $0x20] sm:$0xf] %v4171
        %vm4180 = vmand %vm4145, %vm4158
        %v4181 = vld [vmem:[#allocation4 + $0x34] sm:$0xf]
        %v4182 = vsel %vm4180, %v4174, %v4181
        %4183 = vst [vmem:[#allocation4 + $0x34] sm:$0xf] %v4182
        %vm4184 = vcmask 1042432
        %vm4185 = vcmask 1046532
        %vm4186 = vmor %vm4184, %vm4185
        %v4187 = vrot.slane %v4097, 5
        %v4188 = vrot.slane %v4187, 4
        %v4189 = vrot.slane %v4098, 5
        %v4190 = vsel %vm4186, %v4188, %v4189
        %v4191 = vrot.slane %v4189, 4
        %v4192 = vrot.slane %v4099, 5
        %v4193 = vsel %vm4186, %v4191, %v4192
        %v4194 = vrot.slane %v4192, 4
        %4198 = vst [vmem:[#allocation4 + $0x10] sm:$0xf] %v4190
        %4199 = vst [vmem:[#allocation4 + $0x24] sm:$0xf] %v4193
        %4200 = vst [vmem:[#allocation4 + $0x38] sm:$0x7] %v4194
        %v4201 = vld [vmem:[#allocation4] sm:$0xff]
        %v4202 = vld [vmem:[#allocation4 + $0x8] sm:$0xff]
        %v4203 = vld [vmem:[#allocation4 + $0x10] sm:$0xf]
        %v4204 = vld [vmem:[#allocation4 + $0x14] sm:$0xff]
        %v4205 = vld [vmem:[#allocation4 + $0x1c] sm:$0xff]
        %v4206 = vld [vmem:[#allocation4 + $0x24] sm:$0xf]
        %v4207 = vld [vmem:[#allocation4 + $0x28] sm:$0xff]
        %v4208 = vld [vmem:[#allocation4 + $0x30] sm:$0xff]
        %v4209 = vld [vmem:[#allocation4 + $0x38] sm:$0xf]
        %v4210 = vld [vmem:[#allocation20] sm:$0xff]
        %v4211 = vld [vmem:[#allocation20 + $0x8] sm:$0xff]
        %v4212 = vld [vmem:[#allocation20 + $0x10] sm:$0xff]
        %v4213 = vld [vmem:[#allocation20 + $0x18] sm:$0xff]
        %v4214 = vld [vmem:[#allocation20 + $0x20] sm:$0xff]
        %v4215 = vld [vmem:[#allocation20 + $0x28] sm:$0xff]
        %v4216 = vld [vmem:[#allocation20 + $0x30] sm:$0xff]
        %v4217 = vld [vmem:[#allocation20 + $0x38] sm:$0xff]
        %v4218 = vld [vmem:[#allocation20 + $0x40] sm:$0xff]
        %v4219 = vld [vmem:[#allocation20 + $0x48] sm:$0xff]
        %v4220 = vld [vmem:[#allocation20 + $0x50] sm:$0xff]
        %v4221 = vld [vmem:[#allocation20 + $0x58] sm:$0xff]
        %v4222 = vld [vmem:[#allocation20 + $0x60] sm:$0xff]
        %v4223 = vld [vmem:[#allocation20 + $0x68] sm:$0xff]
        %v4224 = vld [vmem:[#allocation20 + $0x70] sm:$0xff]
        %v4225 = vld [vmem:[#allocation20 + $0x78] sm:$0xff]
        %v4226 = vld [vmem:[#allocation20 + $0x80] sm:$0xff]
        %v4227 = vld [vmem:[#allocation20 + $0x88] sm:$0xff]
        %v4228 = vld [vmem:[#allocation20 + $0x90] sm:$0xff]
        %v4229 = vld [vmem:[#allocation20 + $0x98] sm:$0xff]
        %v4230 = vld [vmem:[#allocation20 + $0xa0] sm:$0xff]
        %v4231 = vld [vmem:[#allocation20 + $0xa8] sm:$0xff]
        %v4232 = vld [vmem:[#allocation20 + $0xb0] sm:$0xff]
        %v4233 = vld [vmem:[#allocation20 + $0xb8] sm:$0xff]
        %v4234 = vld [vmem:[#allocation20 + $0xc0] sm:$0xff]
        %v4235 = vld [vmem:[#allocation20 + $0xc8] sm:$0xff]
        %v4236 = vld [vmem:[#allocation20 + $0xd0] sm:$0xff]
        %v4237 = vld [vmem:[#allocation20 + $0xd8] sm:$0xff]
        %v4238 = vld [vmem:[#allocation20 + $0xe0] sm:$0xff]
        %v4239 = vld [vmem:[#allocation20 + $0xe8] sm:$0xff]
        %v4240 = vld [vmem:[#allocation20 + $0xf0] sm:$0xff]
        %v4241 = vld [vmem:[#allocation20 + $0xf8] sm:$0xff]
        %v4242 = vld [vmem:[#allocation20 + $0x100] sm:$0xff]
        %v4243 = vld [vmem:[#allocation20 + $0x108] sm:$0xff]
        %v4244 = vld [vmem:[#allocation20 + $0x110] sm:$0xff]
        %v4245 = vld [vmem:[#allocation20 + $0x118] sm:$0xff]
        %v4246 = vld [vmem:[#allocation20 + $0x120] sm:$0xff]
        %v4247 = vld [vmem:[#allocation20 + $0x128] sm:$0xff]
        %v4248 = vld [vmem:[#allocation20 + $0x130] sm:$0xff]
        %v4249 = vld [vmem:[#allocation20 + $0x138] sm:$0xff]
        %v4250 = vld [vmem:[#allocation20 + $0x140] sm:$0xff]
        %v4251 = vld [vmem:[#allocation20 + $0x148] sm:$0xff]
        %v4252 = vld [vmem:[#allocation20 + $0x150] sm:$0xff]
        %v4253 = vld [vmem:[#allocation20 + $0x158] sm:$0xff]
        %v4254 = vld [vmem:[#allocation20 + $0x160] sm:$0xff]
        %v4255 = vld [vmem:[#allocation20 + $0x168] sm:$0xff]
        %v4256 = vld [vmem:[#allocation20 + $0x170] sm:$0xff]
        %v4257 = vld [vmem:[#allocation20 + $0x178] sm:$0xff]
        %v4258 = vld [vmem:[#allocation20 + $0x180] sm:$0xff]
        %v4259 = vld [vmem:[#allocation20 + $0x188] sm:$0xff]
        %v4260 = vld [vmem:[#allocation20 + $0x190] sm:$0xff]
        %v4261 = vld [vmem:[#allocation20 + $0x198] sm:$0xff]
        %v4262 = vld [vmem:[#allocation20 + $0x1a0] sm:$0xff]
        %v4263 = vld [vmem:[#allocation20 + $0x1a8] sm:$0xff]
        %v4264 = vld [vmem:[#allocation20 + $0x1b0] sm:$0xff]
        %v4265 = vld [vmem:[#allocation20 + $0x1b8] sm:$0xff]
        %v4266 = vld [vmem:[#allocation20 + $0x1c0] sm:$0xff]
        %v4267 = vld [vmem:[#allocation20 + $0x1c8] sm:$0xff]
        %v4268 = vld [vmem:[#allocation20 + $0x1d0] sm:$0xff]
        %v4269 = vld [vmem:[#allocation20 + $0x1d8] sm:$0xff]
        %v4270 = vld [vmem:[#allocation20 + $0x1e0] sm:$0xff]
        %v4271 = vld [vmem:[#allocation20 + $0x1e8] sm:$0xff]
        %v4272 = vld [vmem:[#allocation20 + $0x1f0] sm:$0xff]
        %v4273 = vld [vmem:[#allocation20 + $0x1f8] sm:$0xff]
        %v4274 = vld [vmem:[#allocation20 + $0x200] sm:$0xff]
        %v4275 = vld [vmem:[#allocation20 + $0x208] sm:$0xff]
        %v4276 = vld [vmem:[#allocation20 + $0x210] sm:$0xff]
        %v4277 = vld [vmem:[#allocation20 + $0x218] sm:$0xff]
        %v4278 = vld [vmem:[#allocation20 + $0x220] sm:$0xff]
        %v4279 = vld [vmem:[#allocation20 + $0x228] sm:$0xff]
        %v4280 = vld [vmem:[#allocation20 + $0x230] sm:$0xff]
        %v4281 = vld [vmem:[#allocation20 + $0x238] sm:$0xff]
        %v4282 = vld [vmem:[#allocation20 + $0x240] sm:$0xff]
        %v4283 = vld [vmem:[#allocation20 + $0x248] sm:$0xff]
        %v4284 = vld [vmem:[#allocation20 + $0x250] sm:$0xff]
        %v4285 = vld [vmem:[#allocation20 + $0x258] sm:$0xff]
        %v4286 = vld [vmem:[#allocation20 + $0x260] sm:$0xff]
        %v4287 = vld [vmem:[#allocation20 + $0x268] sm:$0xff]
        %v4288 = vld [vmem:[#allocation20 + $0x270] sm:$0xff]
        %v4289 = vld [vmem:[#allocation20 + $0x278] sm:$0xff]
        %v4290 = vld [vmem:[#allocation21] sm:$0x3]
        %v4292 = vlaneseq
        %v4293 = vshrl.u32 %v4292, 7
        %v4294 = vsub.s32 0, %v4293
        %v4295 = vrot.slane %v4290, %v4294
        %v4296 = vlaneseq
        %v4297 = vshrl.u32 %v4296, 7
        %v4298 = vsub.s32 1, %v4297
        %v4299 = vrot.slane %v4290, %v4298
        %v4311 = vunpack.c.l.b16 %v4201
        %v4312 = vunpack.c.h.b16 %v4201
        %v4313 = vunpack.c.l.b16 %v4202
        %v4314 = vunpack.c.h.b16 %v4202
        %v4315 = vunpack.c.l.b16 %v4203
        %v4316 = vunpack.c.l.b16 %v4204
        %v4317 = vunpack.c.h.b16 %v4204
        %v4318 = vunpack.c.l.b16 %v4205
        %v4319 = vunpack.c.h.b16 %v4205
        %v4320 = vunpack.c.l.b16 %v4206
        %v4321 = vunpack.c.l.b16 %v4207
        %v4322 = vunpack.c.h.b16 %v4207
        %v4323 = vunpack.c.l.b16 %v4208
        %v4324 = vunpack.c.h.b16 %v4208
        %v4325 = vunpack.c.l.b16 %v4209
        %v4326 = vpack.c.b16 %v4316, %v4311
        %v4327 = vpack.c.b16 %v4317, %v4312
        %v4328 = vpack.c.b16 %v4318, %v4313
        %v4329 = vpack.c.b16 %v4319, %v4314
        %v4330 = vpack.c.b16 %v4320, %v4315
        %v4331 = vpack.c.b16 %v4321, %v4321
        %v4332 = vpack.c.b16 %v4322, %v4322
        %v4333 = vpack.c.b16 %v4323, %v4323
        %v4334 = vpack.c.b16 %v4324, %v4324
        %v4335 = vpack.c.b16 %v4325, %v4325
        %v4426 = vunpack.c.l.b16 %v4210
        %v4427 = vunpack.c.h.b16 %v4210
        %v4428 = vunpack.c.l.b16 %v4211
        %v4429 = vunpack.c.h.b16 %v4211
        %v4430 = vunpack.c.l.b16 %v4212
        %v4431 = vunpack.c.h.b16 %v4212
        %v4432 = vunpack.c.l.b16 %v4213
        %v4433 = vunpack.c.h.b16 %v4213
        %v4434 = vunpack.c.l.b16 %v4214
        %v4435 = vunpack.c.h.b16 %v4214
        %v4436 = vunpack.c.l.b16 %v4215
        %v4437 = vunpack.c.h.b16 %v4215
        %v4438 = vunpack.c.l.b16 %v4216
        %v4439 = vunpack.c.h.b16 %v4216
        %v4440 = vunpack.c.l.b16 %v4217
        %v4441 = vunpack.c.h.b16 %v4217
        %v4442 = vunpack.c.l.b16 %v4218
        %v4443 = vunpack.c.h.b16 %v4218
        %v4444 = vunpack.c.l.b16 %v4219
        %v4445 = vunpack.c.h.b16 %v4219
        %v4446 = vunpack.c.l.b16 %v4220
        %v4447 = vunpack.c.h.b16 %v4220
        %v4448 = vunpack.c.l.b16 %v4221
        %v4449 = vunpack.c.h.b16 %v4221
        %v4450 = vunpack.c.l.b16 %v4222
        %v4451 = vunpack.c.h.b16 %v4222
        %v4452 = vunpack.c.l.b16 %v4223
        %v4453 = vunpack.c.h.b16 %v4223
        %v4454 = vunpack.c.l.b16 %v4224
        %v4455 = vunpack.c.h.b16 %v4224
        %v4456 = vunpack.c.l.b16 %v4225
        %v4457 = vunpack.c.h.b16 %v4225
        %v4458 = vunpack.c.l.b16 %v4226
        %v4459 = vunpack.c.h.b16 %v4226
        %v4460 = vunpack.c.l.b16 %v4227
        %v4461 = vunpack.c.h.b16 %v4227
        %v4462 = vunpack.c.l.b16 %v4228
        %v4463 = vunpack.c.h.b16 %v4228
        %v4464 = vunpack.c.l.b16 %v4229
        %v4465 = vunpack.c.h.b16 %v4229
        %v4466 = vunpack.c.l.b16 %v4230
        %v4467 = vunpack.c.h.b16 %v4230
        %v4468 = vunpack.c.l.b16 %v4231
        %v4469 = vunpack.c.h.b16 %v4231
        %v4470 = vunpack.c.l.b16 %v4232
        %v4471 = vunpack.c.h.b16 %v4232
        %v4472 = vunpack.c.l.b16 %v4233
        %v4473 = vunpack.c.h.b16 %v4233
        %v4474 = vunpack.c.l.b16 %v4234
        %v4475 = vunpack.c.h.b16 %v4234
        %v4476 = vunpack.c.l.b16 %v4235
        %v4477 = vunpack.c.h.b16 %v4235
        %v4478 = vunpack.c.l.b16 %v4236
        %v4479 = vunpack.c.h.b16 %v4236
        %v4480 = vunpack.c.l.b16 %v4237
        %v4481 = vunpack.c.h.b16 %v4237
        %v4482 = vunpack.c.l.b16 %v4238
        %v4483 = vunpack.c.h.b16 %v4238
        %v4484 = vunpack.c.l.b16 %v4239
        %v4485 = vunpack.c.h.b16 %v4239
        %v4486 = vunpack.c.l.b16 %v4240
        %v4487 = vunpack.c.h.b16 %v4240
        %v4488 = vunpack.c.l.b16 %v4241
        %v4489 = vunpack.c.h.b16 %v4241
        %v4490 = vunpack.c.l.b16 %v4242
        %v4491 = vunpack.c.h.b16 %v4242
        %v4492 = vunpack.c.l.b16 %v4243
        %v4493 = vunpack.c.h.b16 %v4243
        %v4494 = vunpack.c.l.b16 %v4244
        %v4495 = vunpack.c.h.b16 %v4244
        %v4496 = vunpack.c.l.b16 %v4245
        %v4497 = vunpack.c.h.b16 %v4245
        %v4498 = vunpack.c.l.b16 %v4246
        %v4499 = vunpack.c.h.b16 %v4246
        %v4500 = vunpack.c.l.b16 %v4247
        %v4501 = vunpack.c.h.b16 %v4247
        %v4502 = vunpack.c.l.b16 %v4248
        %v4503 = vunpack.c.h.b16 %v4248
        %v4504 = vunpack.c.l.b16 %v4249
        %v4505 = vunpack.c.h.b16 %v4249
        %v4506 = vunpack.c.l.b16 %v4250
        %v4507 = vunpack.c.h.b16 %v4250
        %v4508 = vunpack.c.l.b16 %v4251
        %v4509 = vunpack.c.h.b16 %v4251
        %v4510 = vunpack.c.l.b16 %v4252
        %v4511 = vunpack.c.h.b16 %v4252
        %v4512 = vunpack.c.l.b16 %v4253
        %v4513 = vunpack.c.h.b16 %v4253
        %v4514 = vunpack.c.l.b16 %v4254
        %v4515 = vunpack.c.h.b16 %v4254
        %v4516 = vunpack.c.l.b16 %v4255
        %v4517 = vunpack.c.h.b16 %v4255
        %v4518 = vunpack.c.l.b16 %v4256
        %v4519 = vunpack.c.h.b16 %v4256
        %v4520 = vunpack.c.l.b16 %v4257
        %v4521 = vunpack.c.h.b16 %v4257
        %v4522 = vunpack.c.l.b16 %v4258
        %v4523 = vunpack.c.h.b16 %v4258
        %v4524 = vunpack.c.l.b16 %v4259
        %v4525 = vunpack.c.h.b16 %v4259
        %v4526 = vunpack.c.l.b16 %v4260
        %v4527 = vunpack.c.h.b16 %v4260
        %v4528 = vunpack.c.l.b16 %v4261
        %v4529 = vunpack.c.h.b16 %v4261
        %v4530 = vunpack.c.l.b16 %v4262
        %v4531 = vunpack.c.h.b16 %v4262
        %v4532 = vunpack.c.l.b16 %v4263
        %v4533 = vunpack.c.h.b16 %v4263
        %v4534 = vunpack.c.l.b16 %v4264
        %v4535 = vunpack.c.h.b16 %v4264
        %v4536 = vunpack.c.l.b16 %v4265
        %v4537 = vunpack.c.h.b16 %v4265
        %v4538 = vunpack.c.l.b16 %v4266
        %v4539 = vunpack.c.h.b16 %v4266
        %v4540 = vunpack.c.l.b16 %v4267
        %v4541 = vunpack.c.h.b16 %v4267
        %v4542 = vunpack.c.l.b16 %v4268
        %v4543 = vunpack.c.h.b16 %v4268
        %v4544 = vunpack.c.l.b16 %v4269
        %v4545 = vunpack.c.h.b16 %v4269
        %v4546 = vunpack.c.l.b16 %v4270
        %v4547 = vunpack.c.h.b16 %v4270
        %v4548 = vunpack.c.l.b16 %v4271
        %v4549 = vunpack.c.h.b16 %v4271
        %v4550 = vunpack.c.l.b16 %v4272
        %v4551 = vunpack.c.h.b16 %v4272
        %v4552 = vunpack.c.l.b16 %v4273
        %v4553 = vunpack.c.h.b16 %v4273
        %v4554 = vunpack.c.l.b16 %v4274
        %v4555 = vunpack.c.h.b16 %v4274
        %v4556 = vunpack.c.l.b16 %v4275
        %v4557 = vunpack.c.h.b16 %v4275
        %v4558 = vunpack.c.l.b16 %v4276
        %v4559 = vunpack.c.h.b16 %v4276
        %v4560 = vunpack.c.l.b16 %v4277
        %v4561 = vunpack.c.h.b16 %v4277
        %v4562 = vunpack.c.l.b16 %v4278
        %v4563 = vunpack.c.h.b16 %v4278
        %v4564 = vunpack.c.l.b16 %v4279
        %v4565 = vunpack.c.h.b16 %v4279
        %v4566 = vunpack.c.l.b16 %v4280
        %v4567 = vunpack.c.h.b16 %v4280
        %v4568 = vunpack.c.l.b16 %v4281
        %v4569 = vunpack.c.h.b16 %v4281
        %v4570 = vunpack.c.l.b16 %v4282
        %v4571 = vunpack.c.h.b16 %v4282
        %v4572 = vunpack.c.l.b16 %v4283
        %v4573 = vunpack.c.h.b16 %v4283
        %v4574 = vunpack.c.l.b16 %v4284
        %v4575 = vunpack.c.h.b16 %v4284
        %v4576 = vunpack.c.l.b16 %v4285
        %v4577 = vunpack.c.h.b16 %v4285
        %v4578 = vunpack.c.l.b16 %v4286
        %v4579 = vunpack.c.h.b16 %v4286
        %v4580 = vunpack.c.l.b16 %v4287
        %v4581 = vunpack.c.h.b16 %v4287
        %v4582 = vunpack.c.l.b16 %v4288
        %v4583 = vunpack.c.h.b16 %v4288
        %v4584 = vunpack.c.l.b16 %v4289
        %v4585 = vunpack.c.h.b16 %v4289
        %v4586 = vpack.c.b16 %v4428, %v4426
        %v4587 = vpack.c.b16 %v4429, %v4427
        %v4588 = vpack.c.b16 %v4432, %v4430
        %v4589 = vpack.c.b16 %v4433, %v4431
        %v4590 = vpack.c.b16 %v4436, %v4434
        %v4591 = vpack.c.b16 %v4437, %v4435
        %v4592 = vpack.c.b16 %v4440, %v4438
        %v4593 = vpack.c.b16 %v4441, %v4439
        %v4594 = vpack.c.b16 %v4444, %v4442
        %v4595 = vpack.c.b16 %v4445, %v4443
        %v4596 = vpack.c.b16 %v4448, %v4446
        %v4597 = vpack.c.b16 %v4449, %v4447
        %v4598 = vpack.c.b16 %v4452, %v4450
        %v4599 = vpack.c.b16 %v4453, %v4451
        %v4600 = vpack.c.b16 %v4456, %v4454
        %v4601 = vpack.c.b16 %v4457, %v4455
        %v4602 = vpack.c.b16 %v4460, %v4458
        %v4603 = vpack.c.b16 %v4461, %v4459
        %v4604 = vpack.c.b16 %v4464, %v4462
        %v4605 = vpack.c.b16 %v4465, %v4463
        %v4606 = vpack.c.b16 %v4468, %v4466
        %v4607 = vpack.c.b16 %v4469, %v4467
        %v4608 = vpack.c.b16 %v4472, %v4470
        %v4609 = vpack.c.b16 %v4473, %v4471
        %v4610 = vpack.c.b16 %v4476, %v4474
        %v4611 = vpack.c.b16 %v4477, %v4475
        %v4612 = vpack.c.b16 %v4480, %v4478
        %v4613 = vpack.c.b16 %v4481, %v4479
        %v4614 = vpack.c.b16 %v4484, %v4482
        %v4615 = vpack.c.b16 %v4485, %v4483
        %v4616 = vpack.c.b16 %v4488, %v4486
        %v4617 = vpack.c.b16 %v4489, %v4487
        %v4618 = vpack.c.b16 %v4492, %v4490
        %v4619 = vpack.c.b16 %v4493, %v4491
        %v4620 = vpack.c.b16 %v4496, %v4494
        %v4621 = vpack.c.b16 %v4497, %v4495
        %v4622 = vpack.c.b16 %v4500, %v4498
        %v4623 = vpack.c.b16 %v4501, %v4499
        %v4624 = vpack.c.b16 %v4504, %v4502
        %v4625 = vpack.c.b16 %v4505, %v4503
        %v4626 = vpack.c.b16 %v4508, %v4506
        %v4627 = vpack.c.b16 %v4509, %v4507
        %v4628 = vpack.c.b16 %v4512, %v4510
        %v4629 = vpack.c.b16 %v4513, %v4511
        %v4630 = vpack.c.b16 %v4516, %v4514
        %v4631 = vpack.c.b16 %v4517, %v4515
        %v4632 = vpack.c.b16 %v4520, %v4518
        %v4633 = vpack.c.b16 %v4521, %v4519
        %v4634 = vpack.c.b16 %v4524, %v4522
        %v4635 = vpack.c.b16 %v4525, %v4523
        %v4636 = vpack.c.b16 %v4528, %v4526
        %v4637 = vpack.c.b16 %v4529, %v4527
        %v4638 = vpack.c.b16 %v4532, %v4530
        %v4639 = vpack.c.b16 %v4533, %v4531
        %v4640 = vpack.c.b16 %v4536, %v4534
        %v4641 = vpack.c.b16 %v4537, %v4535
        %v4642 = vpack.c.b16 %v4540, %v4538
        %v4643 = vpack.c.b16 %v4541, %v4539
        %v4644 = vpack.c.b16 %v4544, %v4542
        %v4645 = vpack.c.b16 %v4545, %v4543
        %v4646 = vpack.c.b16 %v4548, %v4546
        %v4647 = vpack.c.b16 %v4549, %v4547
        %v4648 = vpack.c.b16 %v4552, %v4550
        %v4649 = vpack.c.b16 %v4553, %v4551
        %v4650 = vpack.c.b16 %v4556, %v4554
        %v4651 = vpack.c.b16 %v4557, %v4555
        %v4652 = vpack.c.b16 %v4560, %v4558
        %v4653 = vpack.c.b16 %v4561, %v4559
        %v4654 = vpack.c.b16 %v4564, %v4562
        %v4655 = vpack.c.b16 %v4565, %v4563
        %v4656 = vpack.c.b16 %v4568, %v4566
        %v4657 = vpack.c.b16 %v4569, %v4567
        %v4658 = vpack.c.b16 %v4572, %v4570
        %v4659 = vpack.c.b16 %v4573, %v4571
        %v4660 = vpack.c.b16 %v4576, %v4574
        %v4661 = vpack.c.b16 %v4577, %v4575
        %v4662 = vpack.c.b16 %v4580, %v4578
        %v4663 = vpack.c.b16 %v4581, %v4579
        %v4664 = vpack.c.b16 %v4584, %v4582
        %v4665 = vpack.c.b16 %v4585, %v4583
        %4746 = vmatprep.subr.bf16.mxu0 %v4587
        %4747 = vmatpush1.bf16.msra.mxu0 %v4586
        %4748 = vmatprep.subr.bf16.mxu0 %v4589
        %4749 = vmatpush1.bf16.msra.mxu0 %v4588
        %4750 = vmatprep.subr.bf16.mxu0 %v4591
        %4751 = vmatpush1.bf16.msra.mxu0 %v4590
        %4752 = vmatprep.subr.bf16.mxu0 %v4593
        %4753 = vmatpush1.bf16.msra.mxu0 %v4592
        %4754 = vmatprep.subr.bf16.mxu0 %v4595
        %4755 = vmatpush1.bf16.msra.mxu0 %v4594
        %4756 = vmatprep.subr.bf16.mxu0 %v4597
        %4757 = vmatpush1.bf16.msra.mxu0 %v4596
        %4758 = vmatprep.subr.bf16.mxu0 %v4599
        %4759 = vmatpush1.bf16.msra.mxu0 %v4598
        %4760 = vmatprep.subr.bf16.mxu0 %v4601
        %4761 = vmatpush1.bf16.msra.mxu0 %v4600
        %4762 = vmatprep.subr.bf16.mxu0 %v4603
        %4763 = vmatpush1.bf16.msra.mxu0 %v4602
        %4764 = vmatprep.subr.bf16.mxu0 %v4605
        %4765 = vmatpush1.bf16.msra.mxu0 %v4604
        %4766 = vmatprep.subr.bf16.mxu0 %v4607
        %4767 = vmatpush1.bf16.msra.mxu0 %v4606
        %4768 = vmatprep.subr.bf16.mxu0 %v4609
        %4769 = vmatpush1.bf16.msra.mxu0 %v4608
        %4770 = vmatprep.subr.bf16.mxu0 %v4611
        %4771 = vmatpush1.bf16.msra.mxu0 %v4610
        %4772 = vmatprep.subr.bf16.mxu0 %v4613
        %4773 = vmatpush1.bf16.msra.mxu0 %v4612
        %4774 = vmatprep.subr.bf16.mxu0 %v4615
        %4775 = vmatpush1.bf16.msra.mxu0 %v4614
        %4776 = vmatprep.subr.bf16.mxu0 %v4617
        %4777 = vmatpush1.bf16.msra.mxu0 %v4616
        %4778 = vmatprep.mubr.bf16.mxu0 %v4327
        %4779 = vmatmul.mubr.bf16.gmra.mrb[0].mxu0 %v4326
        %v4780 = vpop.f32.mrb[0].mxu0
        %v4781 = vadd.f32 %v4295, %v4780
        %v4782 = vpop.f32.mrb[0].mxu0
        %v4783 = vadd.f32 %v4299, %v4782
        %v4784 = vpop.f32.mrb[0].mxu0
        %v4785 = vadd.f32 %v4295, %v4784
        %v4786 = vpop.f32.mrb[0].mxu0
        %v4787 = vadd.f32 %v4299, %v4786
        %4788 = vmatprep.mubr.bf16.mxu0 %v4332
        %4789 = vmatmul.mubr.bf16.gmra.mrb[0].mxu0 %v4331
        %v4790 = vpop.f32.mrb[0].mxu0
        %v4791 = vadd.f32 %v4295, %v4790
        %v4792 = vpop.f32.mrb[0].mxu0
        %v4793 = vadd.f32 %v4299, %v4792
        %v4794 = vpop.f32.mrb[0].mxu0
        %v4795 = vpop.f32.mrb[0].mxu0
        %4796 = vdwg.mxu0
        %4797 = vmatprep.subr.bf16.mxu0 %v4619
        %4798 = vmatpush1.bf16.msra.mxu0 %v4618
        %4799 = vmatprep.subr.bf16.mxu0 %v4621
        %4800 = vmatpush1.bf16.msra.mxu0 %v4620
        %4801 = vmatprep.subr.bf16.mxu0 %v4623
        %4802 = vmatpush1.bf16.msra.mxu0 %v4622
        %4803 = vmatprep.subr.bf16.mxu0 %v4625
        %4804 = vmatpush1.bf16.msra.mxu0 %v4624
        %4805 = vmatprep.subr.bf16.mxu0 %v4627
        %4806 = vmatpush1.bf16.msra.mxu0 %v4626
        %4807 = vmatprep.subr.bf16.mxu0 %v4629
        %4808 = vmatpush1.bf16.msra.mxu0 %v4628
        %4809 = vmatprep.subr.bf16.mxu0 %v4631
        %4810 = vmatpush1.bf16.msra.mxu0 %v4630
        %4811 = vmatprep.subr.bf16.mxu0 %v4633
        %4812 = vmatpush1.bf16.msra.mxu0 %v4632
        %4813 = vmatprep.subr.bf16.mxu0 %v4635
        %4814 = vmatpush1.bf16.msra.mxu0 %v4634
        %4815 = vmatprep.subr.bf16.mxu0 %v4637
        %4816 = vmatpush1.bf16.msra.mxu0 %v4636
        %4817 = vmatprep.subr.bf16.mxu0 %v4639
        %4818 = vmatpush1.bf16.msra.mxu0 %v4638
        %4819 = vmatprep.subr.bf16.mxu0 %v4641
        %4820 = vmatpush1.bf16.msra.mxu0 %v4640
        %4821 = vmatprep.subr.bf16.mxu0 %v4643
        %4822 = vmatpush1.bf16.msra.mxu0 %v4642
        %4823 = vmatprep.subr.bf16.mxu0 %v4645
        %4824 = vmatpush1.bf16.msra.mxu0 %v4644
        %4825 = vmatprep.subr.bf16.mxu0 %v4647
        %4826 = vmatpush1.bf16.msra.mxu0 %v4646
        %4827 = vmatprep.subr.bf16.mxu0 %v4649
        %4828 = vmatpush1.bf16.msra.mxu0 %v4648
        %4829 = vmatprep.mubr.bf16.mxu0 %v4329
        %4830 = vmatmul.mubr.bf16.gmra.mrb[0].mxu0 %v4328
        %v4831 = vpop.f32.mrb[0].mxu0
        %v4832 = vadd.f32 %v4781, %v4831
        %v4833 = vpop.f32.mrb[0].mxu0
        %v4834 = vadd.f32 %v4783, %v4833
        %v4835 = vpop.f32.mrb[0].mxu0
        %v4836 = vadd.f32 %v4785, %v4835
        %v4837 = vpop.f32.mrb[0].mxu0
        %v4838 = vadd.f32 %v4787, %v4837
        %4839 = vmatprep.mubr.bf16.mxu0 %v4334
        %4840 = vmatmul.mubr.bf16.gmra.mrb[0].mxu0 %v4333
        %v4841 = vpop.f32.mrb[0].mxu0
        %v4842 = vadd.f32 %v4791, %v4841
        %v4843 = vpop.f32.mrb[0].mxu0
        %v4844 = vadd.f32 %v4793, %v4843
        %v4845 = vpop.f32.mrb[0].mxu0
        %v4846 = vpop.f32.mrb[0].mxu0
        %4847 = vdwg.mxu0
        %4848 = vmatprep.subr.bf16.mxu0 %v4651
        %4849 = vmatpush1.bf16.msra.mxu0 %v4650
        %4850 = vmatprep.subr.bf16.mxu0 %v4653
        %4851 = vmatpush1.bf16.msra.mxu0 %v4652
        %4852 = vmatprep.subr.bf16.mxu0 %v4655
        %4853 = vmatpush1.bf16.msra.mxu0 %v4654
        %4854 = vmatprep.subr.bf16.mxu0 %v4657
        %4855 = vmatpush1.bf16.msra.mxu0 %v4656
        %4856 = vmatprep.subr.bf16.mxu0 %v4659
        %4857 = vmatpush1.bf16.msra.mxu0 %v4658
        %4858 = vmatprep.subr.bf16.mxu0 %v4661
        %4859 = vmatpush1.bf16.msra.mxu0 %v4660
        %4860 = vmatprep.subr.bf16.mxu0 %v4663
        %4861 = vmatpush1.bf16.msra.mxu0 %v4662
        %4862 = vmatprep.subr.bf16.mxu0 %v4665
        %4863 = vmatpush1.bf16.msra.mxu0 %v4664
        %4864 = vmatprep.subr.bf16.mxu0 0
        %4865 = vmatpush1.bf16.msra.mxu0 0
        %4866 = vmatprep.subr.bf16.mxu0 0
        %4867 = vmatpush1.bf16.msra.mxu0 0
        %4868 = vmatprep.subr.bf16.mxu0 0
        %4869 = vmatpush1.bf16.msra.mxu0 0
        %4870 = vmatprep.subr.bf16.mxu0 0
        %4871 = vmatpush1.bf16.msra.mxu0 0
        %4872 = vmatprep.subr.bf16.mxu0 0
        %4873 = vmatpush1.bf16.msra.mxu0 0
        %4874 = vmatprep.subr.bf16.mxu0 0
        %4875 = vmatpush1.bf16.msra.mxu0 0
        %4876 = vmatprep.subr.bf16.mxu0 0
        %4877 = vmatpush1.bf16.msra.mxu0 0
        %4878 = vmatprep.subr.bf16.mxu0 0
        %4879 = vmatpush1.bf16.msra.mxu0 0
        %4880 = vmatprep.mubr.bf16.mxu0 0
        %4881 = vmatmul.mubr.bf16.gmra.mrb[0].mxu0 %v4330
        %v4882 = vpop.f32.mrb[0].mxu0
        %v4883 = vadd.f32 %v4832, %v4882
        %v4884 = vpop.f32.mrb[0].mxu0
        %v4885 = vadd.f32 %v4834, %v4884
        %v4886 = vpop.f32.mrb[0].mxu0
        %v4887 = vadd.f32 %v4836, %v4886
        %v4888 = vpop.f32.mrb[0].mxu0
        %v4889 = vadd.f32 %v4838, %v4888
        %4890 = vmatprep.mubr.bf16.mxu0 0
        %4891 = vmatmul.mubr.bf16.gmra.mrb[0].mxu0 %v4335
        %v4892 = vpop.f32.mrb[0].mxu0
        %v4893 = vadd.f32 %v4842, %v4892
        %v4894 = vpop.f32.mrb[0].mxu0
        %v4895 = vadd.f32 %v4844, %v4894
        %v4896 = vpop.f32.mrb[0].mxu0
        %v4897 = vpop.f32.mrb[0].mxu0
        %4898 = vdwg.mxu0
        %v4899 = vmax.f32 %v4883, 0.0
        %v4900 = vmax.f32 %v4885, 0.0
        %v4901 = vmax.f32 %v4887, 0.0
        %v4902 = vmax.f32 %v4889, 0.0
        %v4903 = vmax.f32 %v4893, 0.0
        %v4904 = vmax.f32 %v4895, 0.0
        %4905 = vst [vmem:[#allocation8] sm:$0xff] %v4899
        %4906 = vst [vmem:[#allocation8 + $0x8] sm:$0xff] %v4900
        %4907 = vst [vmem:[#allocation8 + $0x10] sm:$0xff] %v4901
        %4908 = vst [vmem:[#allocation8 + $0x18] sm:$0xff] %v4902
        %4909 = vst [vmem:[#allocation8 + $0x20] sm:$0xff] %v4903
        %4910 = vst [vmem:[#allocation8 + $0x28] sm:$0xff] %v4904
        %4911 = vst [vmem:[#allocation8 + $0x30] sm:$0xff] 0.0
        %4912 = vst [vmem:[#allocation8 + $0x38] sm:$0xff] 0.0
        %v4913 = vld [vmem:[#allocation8] sm:$0xfe]
        %v4914 = vld [vmem:[#allocation8 + $0x8] sm:$0xfe]
        %v4915 = vld [vmem:[#allocation8 + $0x10] sm:$0xff]
        %v4916 = vld [vmem:[#allocation8 + $0x18] sm:$0xff]
        %v4917 = vld [vmem:[#allocation8 + $0x20] sm:$0xff]
        %v4918 = vld [vmem:[#allocation8 + $0x28] sm:$0xff]
        %v4919 = vld [vmem:[#allocation8 + $0x30] sm:$0x1]
        %v4920 = vld [vmem:[#allocation8 + $0x38] sm:$0x1]
        %vm4929 = vcmask 1046528
        %v4930 = vrot.slane %v4913, 1
        %v4931 = vrot.slane %v4915, 1
        %v4932 = vsel %vm4929, %v4930, %v4931
        %v4933 = vrot.slane %v4914, 1
        %v4934 = vrot.slane %v4916, 1
        %v4935 = vsel %vm4929, %v4933, %v4934
        %v4936 = vrot.slane %v4917, 1
        %v4937 = vsel %vm4929, %v4931, %v4936
        %v4938 = vrot.slane %v4918, 1
        %v4939 = vsel %vm4929, %v4934, %v4938
        %v4940 = vrot.slane %v4919, 1
        %v4941 = vsel %vm4929, %v4936, %v4940
        %v4942 = vrot.slane %v4920, 1
        %v4943 = vsel %vm4929, %v4938, %v4942
        %v4950 = vmax.f32 %v4899, %v4932
        %v4951 = vmax.f32 %v4900, %v4935
        %v4952 = vmax.f32 %v4901, %v4937
        %v4953 = vmax.f32 %v4902, %v4939
        %v4954 = vmax.f32 %v4903, %v4941
        %v4955 = vmax.f32 %v4904, %v4943
        %v4956 = vld [vmem:[#allocation8] sm:$0xfc]
        %v4957 = vld [vmem:[#allocation8 + $0x8] sm:$0xfc]
        %v4958 = vld [vmem:[#allocation8 + $0x30] sm:$0x3]
        %v4959 = vld [vmem:[#allocation8 + $0x38] sm:$0x3]
        %vm4964 = vcmask 1045504
        %v4965 = vrot.slane %v4956, 2
        %v4966 = vrot.slane %v4915, 2
        %v4967 = vsel %vm4964, %v4965, %v4966
        %v4968 = vrot.slane %v4957, 2
        %v4969 = vrot.slane %v4916, 2
        %v4970 = vsel %vm4964, %v4968, %v4969
        %v4971 = vrot.slane %v4917, 2
        %v4972 = vsel %vm4964, %v4966, %v4971
        %v4973 = vrot.slane %v4918, 2
        %v4974 = vsel %vm4964, %v4969, %v4973
        %v4975 = vrot.slane %v4958, 2
        %v4976 = vsel %vm4964, %v4971, %v4975
        %v4977 = vrot.slane %v4959, 2
        %v4978 = vsel %vm4964, %v4973, %v4977
        %v4985 = vmax.f32 %v4950, %v4967
        %v4986 = vmax.f32 %v4951, %v4970
        %v4987 = vmax.f32 %v4952, %v4972
        %v4988 = vmax.f32 %v4953, %v4974
        %v4989 = vmax.f32 %v4954, %v4976
        %v4990 = vmax.f32 %v4955, %v4978
        %v4991 = vld [vmem:[#allocation8] sm:$0xf8]
        %v4992 = vld [vmem:[#allocation8 + $0x8] sm:$0xf8]
        %v4993 = vld [vmem:[#allocation8 + $0x30] sm:$0x7]
        %v4994 = vld [vmem:[#allocation8 + $0x38] sm:$0x7]
        %vm4999 = vcmask 1044480
        %v5000 = vrot.slane %v4991, 3
        %v5001 = vrot.slane %v4915, 3
        %v5002 = vsel %vm4999, %v5000, %v5001
        %v5003 = vrot.slane %v4992, 3
        %v5004 = vrot.slane %v4916, 3
        %v5005 = vsel %vm4999, %v5003, %v5004
        %v5006 = vrot.slane %v4917, 3
        %v5007 = vsel %vm4999, %v5001, %v5006
        %v5008 = vrot.slane %v4918, 3
        %v5009 = vsel %vm4999, %v5004, %v5008
        %v5010 = vrot.slane %v4993, 3
        %v5011 = vsel %vm4999, %v5006, %v5010
        %v5012 = vrot.slane %v4994, 3
        %v5013 = vsel %vm4999, %v5008, %v5012
        %v5020 = vmax.f32 %v4985, %v5002
        %v5021 = vmax.f32 %v4986, %v5005
        %v5022 = vmax.f32 %v4987, %v5007
        %v5023 = vmax.f32 %v4988, %v5009
        %v5024 = vmax.f32 %v4989, %v5011
        %v5025 = vmax.f32 %v4990, %v5013
        %v5026 = vld [vmem:[#allocation26] sm:$0x7]
        %v5027 = vpack.c.bf16 %v5022, %v5020
        %v5028 = vpack.c.bf16 %v5023, %v5021
        %v5029 = vpack.c.bf16 %v5024, %v5024
        %v5030 = vpack.c.bf16 %v5025, %v5025
        %vm5031 = vcmask 195584
        %v5033 = vsel %vm5031, %v5026, 0
        %vm5035 = vcmask 1043456
        %v5037 = vsel %vm5035, %v5029, 0
        %v5040 = vsel %vm5035, %v5030, 0
        %5042 = vmatprep.subr.bf16.mxu0 %v5028
        %5043 = vmatpush1.bf16.msra.mxu0 %v5027
        %5044 = vmatprep.subr.bf16.mxu0 %v5040
        %5045 = vmatpush1.bf16.msra.mxu0 %v5037
        %5046 = vmatprep.subr.bf16.mxu0 0
        %5047 = vmatpush1.bf16.msra.mxu0 0
        %5048 = vmatprep.subr.bf16.mxu0 0
        %5049 = vmatpush1.bf16.msra.mxu0 0
        %5050 = vmatprep.subr.bf16.mxu0 0
        %5051 = vmatpush1.bf16.msra.mxu0 0
        %5052 = vmatprep.subr.bf16.mxu0 0
        %5053 = vmatpush1.bf16.msra.mxu0 0
        %5054 = vmatprep.subr.bf16.mxu0 0
        %5055 = vmatpush1.bf16.msra.mxu0 0
        %5056 = vmatprep.subr.bf16.mxu0 0
        %5057 = vmatpush1.bf16.msra.mxu0 0
        %5058 = vmatprep.subr.bf16.mxu0 0
        %5059 = vmatpush1.bf16.msra.mxu0 0
        %5060 = vmatprep.subr.bf16.mxu0 0
        %5061 = vmatpush1.bf16.msra.mxu0 0
        %5062 = vmatprep.subr.bf16.mxu0 0
        %5063 = vmatpush1.bf16.msra.mxu0 0
        %5064 = vmatprep.subr.bf16.mxu0 0
        %5065 = vmatpush1.bf16.msra.mxu0 0
        %5066 = vmatprep.subr.bf16.mxu0 0
        %5067 = vmatpush1.bf16.msra.mxu0 0
        %5068 = vmatprep.subr.bf16.mxu0 0
        %5069 = vmatpush1.bf16.msra.mxu0 0
        %5070 = vmatprep.subr.bf16.mxu0 0
        %5071 = vmatpush1.bf16.msra.mxu0 0
        %5072 = vmatprep.subr.bf16.mxu0 0
        %5073 = vmatpush1.bf16.msra.mxu0 0
        %5074 = vmatprep.mubr.bf16.mxu0 0
        %5075 = vmatmul.mubr.bf16.gmra.mrb[0].mxu0 %v5033
        %v5076 = vpop.f32.mrb[0].mxu0
        %v5077 = vadd.f32 0.0, %v5076
        %v5078 = vpop.f32.mrb[0].mxu0
        %v5079 = vadd.f32 0.0, %v5078
        %v5080 = vpop.f32.mrb[0].mxu0
        %v5081 = vpop.f32.mrb[0].mxu0
        %5082 = vdwg.mxu0
        %s5083 = smul.u32 4, 160
        %s5084 = smul.u32 %s5083, 4
        %s5085 = sshll.u32 %s5084, 4
        %5086 = dma.done [#allocation11], %s5085
        %v5087 = vpack.c.bf16 %v5077, %v5077
        %v5088 = vpack.c.bf16 %v5079, %v5079
        %5089 = vst [vmem:[#allocation5] sm:$0x11] 0
        %5090 = vst [vmem:[#allocation5 + $0x8] sm:$0x11] 0
        %5091 = vst [vmem:[#allocation5 + $0x10] sm:$0x11] 0
        %5092 = vst [vmem:[#allocation5 + $0x18] sm:$0x11] 0
        %5093 = vst [vmem:[#allocation5 + $0x20] sm:$0x11] 0
        %5094 = vst [vmem:[#allocation5] sm:$0x44] 0
        %5095 = vst [vmem:[#allocation5 + $0x8] sm:$0x44] 0
        %5096 = vst [vmem:[#allocation5 + $0x10] sm:$0x44] 0
        %5097 = vst [vmem:[#allocation5 + $0x18] sm:$0x44] 0
        %5098 = vst [vmem:[#allocation5 + $0x20] sm:$0x44] 0
        %v5101 = vunpack.c.l.b16 %v5087
        %v5102 = vunpack.c.l.b16 %v5088
        %v5103 = vpack.c.b16 %v5102, %v5101
        %v5104 = vrot.slane %v5103, 7
        %5106 = vst [vmem:[#allocation5] sm:$0x66] %v5104
        %v5108 = vshrl.u32 %v5103, 16
        %v5110 = vrot.slane %v5108, 7
        %v5111 = vshll.u32 %v5103, 16
        %v5113 = vor.u32 %v5110, %v5111
        %vm5115 = vmand %vm4184, %vm1271
        %vm5116 = vsmask.f32 7954
        %vm5117 = vmand %vm4185, %vm5116
        %vm5118 = vmor %vm5117, %vm5115
        %v5119 = vld [vmem:[#allocation5 + $0x8] sm:$0x77]
        %v5120 = vsel %vm5118, %v5113, %v5119
        %5121 = vst [vmem:[#allocation5 + $0x8] sm:$0x77] %v5120
        %5123 = vst [vmem:[#allocation5 + $0x10] sm:$0x77] %v5103
        %v5124 = vrot.slane %v5108, 4
        %v5125 = vrot.slane %v5111, 5
        %v5126 = vor.u32 %v5124, %v5125
        %v5127 = vrot.slane %v5126, 4
        %vm5129 = vsmask.f32 2304
        %vm5130 = vmand %vm4184, %vm5129
        %vm5131 = vsmask.f32 6400
        %vm5132 = vmand %vm4185, %vm5131
        %vm5133 = vmor %vm5132, %vm5130
        %v5134 = vld [vmem:[#allocation5 + $0x18] sm:$0x77]
        %v5135 = vsel %vm5133, %v5127, %v5134
        %5136 = vst [vmem:[#allocation5 + $0x18] sm:$0x77] %v5135
        %v5137 = vrot.slane %v5103, 5
        %v5138 = vrot.slane %v5137, 4
        %5140 = vst [vmem:[#allocation5 + $0x20] sm:$0x33] %v5138
        %v5141 = vld [vmem:[#allocation5] sm:$0x77]
        %v5142 = vld [vmem:[#allocation5 + $0x8] sm:$0x77]
        %v5143 = vld [vmem:[#allocation5 + $0x10] sm:$0x77]
        %v5144 = vld [vmem:[#allocation5 + $0x18] sm:$0x77]
        %v5145 = vld [vmem:[#allocation5 + $0x20] sm:$0x77]
        %v5146 = vld [vmem:[#allocation9] sm:$0xff]
        %v5147 = vld [vmem:[#allocation9 + $0x8] sm:$0xff]
        %v5148 = vld [vmem:[#allocation9 + $0x10] sm:$0xff]
        %v5149 = vld [vmem:[#allocation9 + $0x18] sm:$0xff]
        %v5150 = vld [vmem:[#allocation9 + $0x20] sm:$0xff]
        %v5151 = vld [vmem:[#allocation9 + $0x28] sm:$0xff]
        %v5152 = vld [vmem:[#allocation9 + $0x30] sm:$0xff]
        %v5153 = vld [vmem:[#allocation9 + $0x38] sm:$0xff]
        %v5154 = vld [vmem:[#allocation9 + $0x40] sm:$0xff]
        %v5155 = vld [vmem:[#allocation9 + $0x48] sm:$0xff]
        %v5156 = vld [vmem:[#allocation9 + $0x50] sm:$0xff]
        %v5157 = vld [vmem:[#allocation9 + $0x58] sm:$0xff]
        %v5158 = vld [vmem:[#allocation9 + $0x60] sm:$0xff]
        %v5159 = vld [vmem:[#allocation9 + $0x68] sm:$0xff]
        %v5160 = vld [vmem:[#allocation9 + $0x70] sm:$0xff]
        %v5161 = vld [vmem:[#allocation9 + $0x78] sm:$0xff]
        %v5162 = vld [vmem:[#allocation9 + $0x80] sm:$0xff]
        %v5163 = vld [vmem:[#allocation9 + $0x88] sm:$0xff]
        %v5164 = vld [vmem:[#allocation9 + $0x90] sm:$0xff]
        %v5165 = vld [vmem:[#allocation9 + $0x98] sm:$0xff]
        %v5166 = vld [vmem:[#allocation9 + $0xa0] sm:$0xff]
        %v5167 = vld [vmem:[#allocation9 + $0xa8] sm:$0xff]
        %v5168 = vld [vmem:[#allocation9 + $0xb0] sm:$0xff]
        %v5169 = vld [vmem:[#allocation9 + $0xb8] sm:$0xff]
        %v5170 = vld [vmem:[#allocation9 + $0xc0] sm:$0xff]
        %v5171 = vld [vmem:[#allocation9 + $0xc8] sm:$0xff]
        %v5172 = vld [vmem:[#allocation9 + $0xd0] sm:$0xff]
        %v5173 = vld [vmem:[#allocation9 + $0xd8] sm:$0xff]
        %v5174 = vld [vmem:[#allocation9 + $0xe0] sm:$0xff]
        %v5175 = vld [vmem:[#allocation9 + $0xe8] sm:$0xff]
        %v5176 = vld [vmem:[#allocation9 + $0xf0] sm:$0xff]
        %v5177 = vld [vmem:[#allocation9 + $0xf8] sm:$0xff]
        %v5178 = vld [vmem:[#allocation9 + $0x100] sm:$0xff]
        %v5179 = vld [vmem:[#allocation9 + $0x108] sm:$0xff]
        %v5180 = vld [vmem:[#allocation9 + $0x110] sm:$0xff]
        %v5181 = vld [vmem:[#allocation9 + $0x118] sm:$0xff]
        %v5182 = vld [vmem:[#allocation9 + $0x120] sm:$0xff]
        %v5183 = vld [vmem:[#allocation9 + $0x128] sm:$0xff]
        %v5184 = vld [vmem:[#allocation9 + $0x130] sm:$0xff]
        %v5185 = vld [vmem:[#allocation9 + $0x138] sm:$0xff]
        %v5186 = vld [vmem:[#allocation9 + $0x140] sm:$0xff]
        %v5187 = vld [vmem:[#allocation9 + $0x148] sm:$0xff]
        %v5188 = vld [vmem:[#allocation9 + $0x150] sm:$0xff]
        %v5189 = vld [vmem:[#allocation9 + $0x158] sm:$0xff]
        %v5190 = vld [vmem:[#allocation9 + $0x160] sm:$0xff]
        %v5191 = vld [vmem:[#allocation9 + $0x168] sm:$0xff]
        %v5192 = vld [vmem:[#allocation9 + $0x170] sm:$0xff]
        %v5193 = vld [vmem:[#allocation9 + $0x178] sm:$0xff]
        %v5194 = vld [vmem:[#allocation9 + $0x180] sm:$0xff]
        %v5195 = vld [vmem:[#allocation9 + $0x188] sm:$0xff]
        %v5196 = vld [vmem:[#allocation9 + $0x190] sm:$0xff]
        %v5197 = vld [vmem:[#allocation9 + $0x198] sm:$0xff]
        %v5198 = vld [vmem:[#allocation9 + $0x1a0] sm:$0xff]
        %v5199 = vld [vmem:[#allocation9 + $0x1a8] sm:$0xff]
        %v5200 = vld [vmem:[#allocation9 + $0x1b0] sm:$0xff]
        %v5201 = vld [vmem:[#allocation9 + $0x1b8] sm:$0xff]
        %v5202 = vld [vmem:[#allocation9 + $0x1c0] sm:$0xff]
        %v5203 = vld [vmem:[#allocation9 + $0x1c8] sm:$0xff]
        %v5204 = vld [vmem:[#allocation9 + $0x1d0] sm:$0xff]
        %v5205 = vld [vmem:[#allocation9 + $0x1d8] sm:$0xff]
        %v5206 = vld [vmem:[#allocation9 + $0x1e0] sm:$0xff]
        %v5207 = vld [vmem:[#allocation9 + $0x1e8] sm:$0xff]
        %v5208 = vld [vmem:[#allocation9 + $0x1f0] sm:$0xff]
        %v5209 = vld [vmem:[#allocation9 + $0x1f8] sm:$0xff]
        %v5210 = vld [vmem:[#allocation9 + $0x200] sm:$0xff]
        %v5211 = vld [vmem:[#allocation9 + $0x208] sm:$0xff]
        %v5212 = vld [vmem:[#allocation9 + $0x210] sm:$0xff]
        %v5213 = vld [vmem:[#allocation9 + $0x218] sm:$0xff]
        %v5214 = vld [vmem:[#allocation9 + $0x220] sm:$0xff]
        %v5215 = vld [vmem:[#allocation9 + $0x228] sm:$0xff]
        %v5216 = vld [vmem:[#allocation9 + $0x230] sm:$0xff]
        %v5217 = vld [vmem:[#allocation9 + $0x238] sm:$0xff]
        %v5218 = vld [vmem:[#allocation9 + $0x240] sm:$0xff]
        %v5219 = vld [vmem:[#allocation9 + $0x248] sm:$0xff]
        %v5220 = vld [vmem:[#allocation9 + $0x250] sm:$0xff]
        %v5221 = vld [vmem:[#allocation9 + $0x258] sm:$0xff]
        %v5222 = vld [vmem:[#allocation9 + $0x260] sm:$0xff]
        %v5223 = vld [vmem:[#allocation9 + $0x268] sm:$0xff]
        %v5224 = vld [vmem:[#allocation9 + $0x270] sm:$0xff]
        %v5225 = vld [vmem:[#allocation9 + $0x278] sm:$0xff]
        %v5226 = vld [vmem:[#allocation9 + $0x280] sm:$0xff]
        %v5227 = vld [vmem:[#allocation9 + $0x288] sm:$0xff]
        %v5228 = vld [vmem:[#allocation9 + $0x290] sm:$0xff]
        %v5229 = vld [vmem:[#allocation9 + $0x298] sm:$0xff]
        %v5230 = vld [vmem:[#allocation9 + $0x2a0] sm:$0xff]
        %v5231 = vld [vmem:[#allocation9 + $0x2a8] sm:$0xff]
        %v5232 = vld [vmem:[#allocation9 + $0x2b0] sm:$0xff]
        %v5233 = vld [vmem:[#allocation9 + $0x2b8] sm:$0xff]
        %v5234 = vld [vmem:[#allocation9 + $0x2c0] sm:$0xff]
        %v5235 = vld [vmem:[#allocation9 + $0x2c8] sm:$0xff]
        %v5236 = vld [vmem:[#allocation9 + $0x2d0] sm:$0xff]
        %v5237 = vld [vmem:[#allocation9 + $0x2d8] sm:$0xff]
        %v5238 = vld [vmem:[#allocation9 + $0x2e0] sm:$0xff]
        %v5239 = vld [vmem:[#allocation9 + $0x2e8] sm:$0xff]
        %v5240 = vld [vmem:[#allocation9 + $0x2f0] sm:$0xff]
        %v5241 = vld [vmem:[#allocation9 + $0x2f8] sm:$0xff]
        %v5242 = vld [vmem:[#allocation9 + $0x300] sm:$0xff]
        %v5243 = vld [vmem:[#allocation9 + $0x308] sm:$0xff]
        %v5244 = vld [vmem:[#allocation9 + $0x310] sm:$0xff]
        %v5245 = vld [vmem:[#allocation9 + $0x318] sm:$0xff]
        %v5246 = vld [vmem:[#allocation9 + $0x320] sm:$0xff]
        %v5247 = vld [vmem:[#allocation9 + $0x328] sm:$0xff]
        %v5248 = vld [vmem:[#allocation9 + $0x330] sm:$0xff]
        %v5249 = vld [vmem:[#allocation9 + $0x338] sm:$0xff]
        %v5250 = vld [vmem:[#allocation9 + $0x340] sm:$0xff]
        %v5251 = vld [vmem:[#allocation9 + $0x348] sm:$0xff]
        %v5252 = vld [vmem:[#allocation9 + $0x350] sm:$0xff]
        %v5253 = vld [vmem:[#allocation9 + $0x358] sm:$0xff]
        %v5254 = vld [vmem:[#allocation9 + $0x360] sm:$0xff]
        %v5255 = vld [vmem:[#allocation9 + $0x368] sm:$0xff]
        %v5256 = vld [vmem:[#allocation9 + $0x370] sm:$0xff]
        %v5257 = vld [vmem:[#allocation9 + $0x378] sm:$0xff]
        %v5258 = vld [vmem:[#allocation9 + $0x380] sm:$0xff]
        %v5259 = vld [vmem:[#allocation9 + $0x388] sm:$0xff]
        %v5260 = vld [vmem:[#allocation9 + $0x390] sm:$0xff]
        %v5261 = vld [vmem:[#allocation9 + $0x398] sm:$0xff]
        %v5262 = vld [vmem:[#allocation9 + $0x3a0] sm:$0xff]
        %v5263 = vld [vmem:[#allocation9 + $0x3a8] sm:$0xff]
        %v5264 = vld [vmem:[#allocation9 + $0x3b0] sm:$0xff]
        %v5265 = vld [vmem:[#allocation9 + $0x3b8] sm:$0xff]
        %v5266 = vld [vmem:[#allocation9 + $0x3c0] sm:$0xff]
        %v5267 = vld [vmem:[#allocation9 + $0x3c8] sm:$0xff]
        %v5268 = vld [vmem:[#allocation9 + $0x3d0] sm:$0xff]
        %v5269 = vld [vmem:[#allocation9 + $0x3d8] sm:$0xff]
        %v5270 = vld [vmem:[#allocation9 + $0x3e0] sm:$0xff]
        %v5271 = vld [vmem:[#allocation9 + $0x3e8] sm:$0xff]
        %v5272 = vld [vmem:[#allocation9 + $0x3f0] sm:$0xff]
        %v5273 = vld [vmem:[#allocation9 + $0x3f8] sm:$0xff]
        %v5274 = vld [vmem:[#allocation9 + $0x400] sm:$0xff]
        %v5275 = vld [vmem:[#allocation9 + $0x408] sm:$0xff]
        %v5276 = vld [vmem:[#allocation9 + $0x410] sm:$0xff]
        %v5277 = vld [vmem:[#allocation9 + $0x418] sm:$0xff]
        %v5278 = vld [vmem:[#allocation9 + $0x420] sm:$0xff]
        %v5279 = vld [vmem:[#allocation9 + $0x428] sm:$0xff]
        %v5280 = vld [vmem:[#allocation9 + $0x430] sm:$0xff]
        %v5281 = vld [vmem:[#allocation9 + $0x438] sm:$0xff]
        %v5282 = vld [vmem:[#allocation9 + $0x440] sm:$0xff]
        %v5283 = vld [vmem:[#allocation9 + $0x448] sm:$0xff]
        %v5284 = vld [vmem:[#allocation9 + $0x450] sm:$0xff]
        %v5285 = vld [vmem:[#allocation9 + $0x458] sm:$0xff]
        %v5286 = vld [vmem:[#allocation9 + $0x460] sm:$0xff]
        %v5287 = vld [vmem:[#allocation9 + $0x468] sm:$0xff]
        %v5288 = vld [vmem:[#allocation9 + $0x470] sm:$0xff]
        %v5289 = vld [vmem:[#allocation9 + $0x478] sm:$0xff]
        %v5290 = vld [vmem:[#allocation9 + $0x480] sm:$0xff]
        %v5291 = vld [vmem:[#allocation9 + $0x488] sm:$0xff]
        %v5292 = vld [vmem:[#allocation9 + $0x490] sm:$0xff]
        %v5293 = vld [vmem:[#allocation9 + $0x498] sm:$0xff]
        %v5294 = vld [vmem:[#allocation9 + $0x4a0] sm:$0xff]
        %v5295 = vld [vmem:[#allocation9 + $0x4a8] sm:$0xff]
        %v5296 = vld [vmem:[#allocation9 + $0x4b0] sm:$0xff]
        %v5297 = vld [vmem:[#allocation9 + $0x4b8] sm:$0xff]
        %v5298 = vld [vmem:[#allocation9 + $0x4c0] sm:$0xff]
        %v5299 = vld [vmem:[#allocation9 + $0x4c8] sm:$0xff]
        %v5300 = vld [vmem:[#allocation9 + $0x4d0] sm:$0xff]
        %v5301 = vld [vmem:[#allocation9 + $0x4d8] sm:$0xff]
        %v5302 = vld [vmem:[#allocation9 + $0x4e0] sm:$0xff]
        %v5303 = vld [vmem:[#allocation9 + $0x4e8] sm:$0xff]
        %v5304 = vld [vmem:[#allocation9 + $0x4f0] sm:$0xff]
        %v5305 = vld [vmem:[#allocation9 + $0x4f8] sm:$0xff]
        %v5306 = vld [vmem:[#allocation9 + $0x500] sm:$0xff]
        %v5307 = vld [vmem:[#allocation9 + $0x508] sm:$0xff]
        %v5308 = vld [vmem:[#allocation9 + $0x510] sm:$0xff]
        %v5309 = vld [vmem:[#allocation9 + $0x518] sm:$0xff]
        %v5310 = vld [vmem:[#allocation9 + $0x520] sm:$0xff]
        %v5311 = vld [vmem:[#allocation9 + $0x528] sm:$0xff]
        %v5312 = vld [vmem:[#allocation9 + $0x530] sm:$0xff]
        %v5313 = vld [vmem:[#allocation9 + $0x538] sm:$0xff]
        %v5314 = vld [vmem:[#allocation9 + $0x540] sm:$0xff]
        %v5315 = vld [vmem:[#allocation9 + $0x548] sm:$0xff]
        %v5316 = vld [vmem:[#allocation9 + $0x550] sm:$0xff]
        %v5317 = vld [vmem:[#allocation9 + $0x558] sm:$0xff]
        %v5318 = vld [vmem:[#allocation9 + $0x560] sm:$0xff]
        %v5319 = vld [vmem:[#allocation9 + $0x568] sm:$0xff]
        %v5320 = vld [vmem:[#allocation9 + $0x570] sm:$0xff]
        %v5321 = vld [vmem:[#allocation9 + $0x578] sm:$0xff]
        %v5322 = vld [vmem:[#allocation9 + $0x580] sm:$0xff]
        %v5323 = vld [vmem:[#allocation9 + $0x588] sm:$0xff]
        %v5324 = vld [vmem:[#allocation9 + $0x590] sm:$0xff]
        %v5325 = vld [vmem:[#allocation9 + $0x598] sm:$0xff]
        %v5326 = vld [vmem:[#allocation9 + $0x5a0] sm:$0xff]
        %v5327 = vld [vmem:[#allocation9 + $0x5a8] sm:$0xff]
        %v5328 = vld [vmem:[#allocation9 + $0x5b0] sm:$0xff]
        %v5329 = vld [vmem:[#allocation9 + $0x5b8] sm:$0xff]
        %v5330 = vld [vmem:[#allocation9 + $0x5c0] sm:$0xff]
        %v5331 = vld [vmem:[#allocation9 + $0x5c8] sm:$0xff]
        %v5332 = vld [vmem:[#allocation9 + $0x5d0] sm:$0xff]
        %v5333 = vld [vmem:[#allocation9 + $0x5d8] sm:$0xff]
        %v5334 = vld [vmem:[#allocation9 + $0x5e0] sm:$0xff]
        %v5335 = vld [vmem:[#allocation9 + $0x5e8] sm:$0xff]
        %v5336 = vld [vmem:[#allocation9 + $0x5f0] sm:$0xff]
        %v5337 = vld [vmem:[#allocation9 + $0x5f8] sm:$0xff]
        %v5338 = vld [vmem:[#allocation9 + $0x600] sm:$0xff]
        %v5339 = vld [vmem:[#allocation9 + $0x608] sm:$0xff]
        %v5340 = vld [vmem:[#allocation9 + $0x610] sm:$0xff]
        %v5341 = vld [vmem:[#allocation9 + $0x618] sm:$0xff]
        %v5342 = vld [vmem:[#allocation9 + $0x620] sm:$0xff]
        %v5343 = vld [vmem:[#allocation9 + $0x628] sm:$0xff]
        %v5344 = vld [vmem:[#allocation9 + $0x630] sm:$0xff]
        %v5345 = vld [vmem:[#allocation9 + $0x638] sm:$0xff]
        %v5346 = vld [vmem:[#allocation9 + $0x640] sm:$0xff]
        %v5347 = vld [vmem:[#allocation9 + $0x648] sm:$0xff]
        %v5348 = vld [vmem:[#allocation9 + $0x650] sm:$0xff]
        %v5349 = vld [vmem:[#allocation9 + $0x658] sm:$0xff]
        %v5350 = vld [vmem:[#allocation9 + $0x660] sm:$0xff]
        %v5351 = vld [vmem:[#allocation9 + $0x668] sm:$0xff]
        %v5352 = vld [vmem:[#allocation9 + $0x670] sm:$0xff]
        %v5353 = vld [vmem:[#allocation9 + $0x678] sm:$0xff]
        %v5354 = vld [vmem:[#allocation9 + $0x680] sm:$0xff]
        %v5355 = vld [vmem:[#allocation9 + $0x688] sm:$0xff]
        %v5356 = vld [vmem:[#allocation9 + $0x690] sm:$0xff]
        %v5357 = vld [vmem:[#allocation9 + $0x698] sm:$0xff]
        %v5358 = vld [vmem:[#allocation9 + $0x6a0] sm:$0xff]
        %v5359 = vld [vmem:[#allocation9 + $0x6a8] sm:$0xff]
        %v5360 = vld [vmem:[#allocation9 + $0x6b0] sm:$0xff]
        %v5361 = vld [vmem:[#allocation9 + $0x6b8] sm:$0xff]
        %v5362 = vld [vmem:[#allocation9 + $0x6c0] sm:$0xff]
        %v5363 = vld [vmem:[#allocation9 + $0x6c8] sm:$0xff]
        %v5364 = vld [vmem:[#allocation9 + $0x6d0] sm:$0xff]
        %v5365 = vld [vmem:[#allocation9 + $0x6d8] sm:$0xff]
        %v5366 = vld [vmem:[#allocation9 + $0x6e0] sm:$0xff]
        %v5367 = vld [vmem:[#allocation9 + $0x6e8] sm:$0xff]
        %v5368 = vld [vmem:[#allocation9 + $0x6f0] sm:$0xff]
        %v5369 = vld [vmem:[#allocation9 + $0x6f8] sm:$0xff]
        %v5370 = vld [vmem:[#allocation9 + $0x700] sm:$0xff]
        %v5371 = vld [vmem:[#allocation9 + $0x708] sm:$0xff]
        %v5372 = vld [vmem:[#allocation9 + $0x710] sm:$0xff]
        %v5373 = vld [vmem:[#allocation9 + $0x718] sm:$0xff]
        %v5374 = vld [vmem:[#allocation9 + $0x720] sm:$0xff]
        %v5375 = vld [vmem:[#allocation9 + $0x728] sm:$0xff]
        %v5376 = vld [vmem:[#allocation9 + $0x730] sm:$0xff]
        %v5377 = vld [vmem:[#allocation9 + $0x738] sm:$0xff]
        %v5378 = vld [vmem:[#allocation9 + $0x740] sm:$0xff]
        %v5379 = vld [vmem:[#allocation9 + $0x748] sm:$0xff]
        %v5380 = vld [vmem:[#allocation9 + $0x750] sm:$0xff]
        %v5381 = vld [vmem:[#allocation9 + $0x758] sm:$0xff]
        %v5382 = vld [vmem:[#allocation9 + $0x760] sm:$0xff]
        %v5383 = vld [vmem:[#allocation9 + $0x768] sm:$0xff]
        %v5384 = vld [vmem:[#allocation9 + $0x770] sm:$0xff]
        %v5385 = vld [vmem:[#allocation9 + $0x778] sm:$0xff]
        %v5386 = vld [vmem:[#allocation9 + $0x780] sm:$0xff]
        %v5387 = vld [vmem:[#allocation9 + $0x788] sm:$0xff]
        %v5388 = vld [vmem:[#allocation9 + $0x790] sm:$0xff]
        %v5389 = vld [vmem:[#allocation9 + $0x798] sm:$0xff]
        %v5390 = vld [vmem:[#allocation9 + $0x7a0] sm:$0xff]
        %v5391 = vld [vmem:[#allocation9 + $0x7a8] sm:$0xff]
        %v5392 = vld [vmem:[#allocation9 + $0x7b0] sm:$0xff]
        %v5393 = vld [vmem:[#allocation9 + $0x7b8] sm:$0xff]
        %v5394 = vld [vmem:[#allocation9 + $0x7c0] sm:$0xff]
        %v5395 = vld [vmem:[#allocation9 + $0x7c8] sm:$0xff]
        %v5396 = vld [vmem:[#allocation9 + $0x7d0] sm:$0xff]
        %v5397 = vld [vmem:[#allocation9 + $0x7d8] sm:$0xff]
        %v5398 = vld [vmem:[#allocation9 + $0x7e0] sm:$0xff]
        %v5399 = vld [vmem:[#allocation9 + $0x7e8] sm:$0xff]
        %v5400 = vld [vmem:[#allocation9 + $0x7f0] sm:$0xff]
        %v5401 = vld [vmem:[#allocation9 + $0x7f8] sm:$0xff]
        %v5402 = vld [vmem:[#allocation9 + $0x800] sm:$0xff]
        %v5403 = vld [vmem:[#allocation9 + $0x808] sm:$0xff]
        %v5404 = vld [vmem:[#allocation9 + $0x810] sm:$0xff]
        %v5405 = vld [vmem:[#allocation9 + $0x818] sm:$0xff]
        %v5406 = vld [vmem:[#allocation9 + $0x820] sm:$0xff]
        %v5407 = vld [vmem:[#allocation9 + $0x828] sm:$0xff]
        %v5408 = vld [vmem:[#allocation9 + $0x830] sm:$0xff]
        %v5409 = vld [vmem:[#allocation9 + $0x838] sm:$0xff]
        %v5410 = vld [vmem:[#allocation9 + $0x840] sm:$0xff]
        %v5411 = vld [vmem:[#allocation9 + $0x848] sm:$0xff]
        %v5412 = vld [vmem:[#allocation9 + $0x850] sm:$0xff]
        %v5413 = vld [vmem:[#allocation9 + $0x858] sm:$0xff]
        %v5414 = vld [vmem:[#allocation9 + $0x860] sm:$0xff]
        %v5415 = vld [vmem:[#allocation9 + $0x868] sm:$0xff]
        %v5416 = vld [vmem:[#allocation9 + $0x870] sm:$0xff]
        %v5417 = vld [vmem:[#allocation9 + $0x878] sm:$0xff]
        %v5418 = vld [vmem:[#allocation9 + $0x880] sm:$0xff]
        %v5419 = vld [vmem:[#allocation9 + $0x888] sm:$0xff]
        %v5420 = vld [vmem:[#allocation9 + $0x890] sm:$0xff]
        %v5421 = vld [vmem:[#allocation9 + $0x898] sm:$0xff]
        %v5422 = vld [vmem:[#allocation9 + $0x8a0] sm:$0xff]
        %v5423 = vld [vmem:[#allocation9 + $0x8a8] sm:$0xff]
        %v5424 = vld [vmem:[#allocation9 + $0x8b0] sm:$0xff]
        %v5425 = vld [vmem:[#allocation9 + $0x8b8] sm:$0xff]
        %v5426 = vld [vmem:[#allocation9 + $0x8c0] sm:$0xff]
        %v5427 = vld [vmem:[#allocation9 + $0x8c8] sm:$0xff]
        %v5428 = vld [vmem:[#allocation9 + $0x8d0] sm:$0xff]
        %v5429 = vld [vmem:[#allocation9 + $0x8d8] sm:$0xff]
        %v5430 = vld [vmem:[#allocation9 + $0x8e0] sm:$0xff]
        %v5431 = vld [vmem:[#allocation9 + $0x8e8] sm:$0xff]
        %v5432 = vld [vmem:[#allocation9 + $0x8f0] sm:$0xff]
        %v5433 = vld [vmem:[#allocation9 + $0x8f8] sm:$0xff]
        %v5434 = vld [vmem:[#allocation9 + $0x900] sm:$0xff]
        %v5435 = vld [vmem:[#allocation9 + $0x908] sm:$0xff]
        %v5436 = vld [vmem:[#allocation9 + $0x910] sm:$0xff]
        %v5437 = vld [vmem:[#allocation9 + $0x918] sm:$0xff]
        %v5438 = vld [vmem:[#allocation9 + $0x920] sm:$0xff]
        %v5439 = vld [vmem:[#allocation9 + $0x928] sm:$0xff]
        %v5440 = vld [vmem:[#allocation9 + $0x930] sm:$0xff]
        %v5441 = vld [vmem:[#allocation9 + $0x938] sm:$0xff]
        %v5442 = vld [vmem:[#allocation9 + $0x940] sm:$0xff]
        %v5443 = vld [vmem:[#allocation9 + $0x948] sm:$0xff]
        %v5444 = vld [vmem:[#allocation9 + $0x950] sm:$0xff]
        %v5445 = vld [vmem:[#allocation9 + $0x958] sm:$0xff]
        %v5446 = vld [vmem:[#allocation9 + $0x960] sm:$0xff]
        %v5447 = vld [vmem:[#allocation9 + $0x968] sm:$0xff]
        %v5448 = vld [vmem:[#allocation9 + $0x970] sm:$0xff]
        %v5449 = vld [vmem:[#allocation9 + $0x978] sm:$0xff]
        %v5450 = vld [vmem:[#allocation9 + $0x980] sm:$0xff]
        %v5451 = vld [vmem:[#allocation9 + $0x988] sm:$0xff]
        %v5452 = vld [vmem:[#allocation9 + $0x990] sm:$0xff]
        %v5453 = vld [vmem:[#allocation9 + $0x998] sm:$0xff]
        %v5454 = vld [vmem:[#allocation9 + $0x9a0] sm:$0xff]
        %v5455 = vld [vmem:[#allocation9 + $0x9a8] sm:$0xff]
        %v5456 = vld [vmem:[#allocation9 + $0x9b0] sm:$0xff]
        %v5457 = vld [vmem:[#allocation9 + $0x9b8] sm:$0xff]
        %v5458 = vld [vmem:[#allocation9 + $0x9c0] sm:$0xff]
        %v5459 = vld [vmem:[#allocation9 + $0x9c8] sm:$0xff]
        %v5460 = vld [vmem:[#allocation9 + $0x9d0] sm:$0xff]
        %v5461 = vld [vmem:[#allocation9 + $0x9d8] sm:$0xff]
        %v5462 = vld [vmem:[#allocation9 + $0x9e0] sm:$0xff]
        %v5463 = vld [vmem:[#allocation9 + $0x9e8] sm:$0xff]
        %v5464 = vld [vmem:[#allocation9 + $0x9f0] sm:$0xff]
        %v5465 = vld [vmem:[#allocation9 + $0x9f8] sm:$0xff]
        %v5466 = vld [vmem:[#allocation23] sm:$0xf]
        %v5468 = vlaneseq
        %v5469 = vshrl.u32 %v5468, 7
        %v5470 = vsub.s32 0, %v5469
        %v5471 = vrot.slane %v5466, %v5470
        %v5472 = vlaneseq
        %v5473 = vshrl.u32 %v5472, 7
        %v5474 = vsub.s32 1, %v5473
        %v5475 = vrot.slane %v5466, %v5474
        %v5476 = vlaneseq
        %v5477 = vshrl.u32 %v5476, 7
        %v5478 = vsub.s32 2, %v5477
        %v5479 = vrot.slane %v5466, %v5478
        %v5480 = vlaneseq
        %v5481 = vshrl.u32 %v5480, 7
        %v5482 = vsub.s32 3, %v5481
        %v5483 = vrot.slane %v5466, %v5482
        %v5493 = vunpack.c.l.b16 %v5141
        %v5494 = vunpack.c.h.b16 %v5141
        %v5495 = vunpack.c.l.b16 %v5142
        %v5496 = vunpack.c.h.b16 %v5142
        %v5497 = vunpack.c.l.b16 %v5143
        %v5498 = vunpack.c.h.b16 %v5143
        %v5499 = vunpack.c.l.b16 %v5144
        %v5500 = vunpack.c.h.b16 %v5144
        %v5501 = vunpack.c.l.b16 %v5145
        %v5502 = vunpack.c.h.b16 %v5145
        %v5503 = vpack.c.b16 %v5493, %v5493
        %v5504 = vpack.c.b16 %v5494, %v5494
        %v5505 = vpack.c.b16 %v5495, %v5495
        %v5506 = vpack.c.b16 %v5496, %v5496
        %v5507 = vpack.c.b16 %v5497, %v5497
        %v5508 = vpack.c.b16 %v5498, %v5498
        %v5509 = vpack.c.b16 %v5499, %v5499
        %v5510 = vpack.c.b16 %v5500, %v5500
        %v5511 = vpack.c.b16 %v5501, %v5501
        %v5512 = vpack.c.b16 %v5502, %v5502
        %5523 = vmatprep.subr.bf16.mxu0 %v5147
        %5524 = vmatpush1.bf16.msra.mxu0 %v5146
        %5525 = vmatprep.subr.bf16.mxu0 %v5151
        %5526 = vmatpush1.bf16.msra.mxu0 %v5150
        %5527 = vmatprep.subr.bf16.mxu0 %v5155
        %5528 = vmatpush1.bf16.msra.mxu0 %v5154
        %5529 = vmatprep.subr.bf16.mxu0 %v5159
        %5530 = vmatpush1.bf16.msra.mxu0 %v5158
        %5531 = vmatprep.subr.bf16.mxu0 %v5163
        %5532 = vmatpush1.bf16.msra.mxu0 %v5162
        %5533 = vmatprep.subr.bf16.mxu0 %v5167
        %5534 = vmatpush1.bf16.msra.mxu0 %v5166
        %5535 = vmatprep.subr.bf16.mxu0 %v5171
        %5536 = vmatpush1.bf16.msra.mxu0 %v5170
        %5537 = vmatprep.subr.bf16.mxu0 %v5175
        %5538 = vmatpush1.bf16.msra.mxu0 %v5174
        %5539 = vmatprep.subr.bf16.mxu0 %v5179
        %5540 = vmatpush1.bf16.msra.mxu0 %v5178
        %5541 = vmatprep.subr.bf16.mxu0 %v5183
        %5542 = vmatpush1.bf16.msra.mxu0 %v5182
        %5543 = vmatprep.subr.bf16.mxu0 %v5187
        %5544 = vmatpush1.bf16.msra.mxu0 %v5186
        %5545 = vmatprep.subr.bf16.mxu0 %v5191
        %5546 = vmatpush1.bf16.msra.mxu0 %v5190
        %5547 = vmatprep.subr.bf16.mxu0 %v5195
        %5548 = vmatpush1.bf16.msra.mxu0 %v5194
        %5549 = vmatprep.subr.bf16.mxu0 %v5199
        %5550 = vmatpush1.bf16.msra.mxu0 %v5198
        %5551 = vmatprep.subr.bf16.mxu0 %v5203
        %5552 = vmatpush1.bf16.msra.mxu0 %v5202
        %5553 = vmatprep.subr.bf16.mxu0 %v5207
        %5554 = vmatpush1.bf16.msra.mxu0 %v5206
        %5555 = vmatprep.mubr.bf16.mxu0 %v5504
        %5556 = vmatmul.mubr.bf16.gmra.mrb[0].mxu0 %v5503
        %v5557 = vpop.f32.mrb[0].mxu0
        %v5558 = vadd.f32 %v5471, %v5557
        %v5559 = vpop.f32.mrb[0].mxu0
        %v5560 = vadd.f32 %v5475, %v5559
        %v5561 = vpop.f32.mrb[0].mxu0
        %v5562 = vpop.f32.mrb[0].mxu0
        %5563 = vdwg.mxu0
        %5564 = vmatprep.subr.bf16.mxu0 %v5211
        %5565 = vmatpush1.bf16.msra.mxu0 %v5210
        %5566 = vmatprep.subr.bf16.mxu0 %v5215
        %5567 = vmatpush1.bf16.msra.mxu0 %v5214
        %5568 = vmatprep.subr.bf16.mxu0 %v5219
        %5569 = vmatpush1.bf16.msra.mxu0 %v5218
        %5570 = vmatprep.subr.bf16.mxu0 %v5223
        %5571 = vmatpush1.bf16.msra.mxu0 %v5222
        %5572 = vmatprep.subr.bf16.mxu0 %v5227
        %5573 = vmatpush1.bf16.msra.mxu0 %v5226
        %5574 = vmatprep.subr.bf16.mxu0 %v5231
        %5575 = vmatpush1.bf16.msra.mxu0 %v5230
        %5576 = vmatprep.subr.bf16.mxu0 %v5235
        %5577 = vmatpush1.bf16.msra.mxu0 %v5234
        %5578 = vmatprep.subr.bf16.mxu0 %v5239
        %5579 = vmatpush1.bf16.msra.mxu0 %v5238
        %5580 = vmatprep.subr.bf16.mxu0 %v5243
        %5581 = vmatpush1.bf16.msra.mxu0 %v5242
        %5582 = vmatprep.subr.bf16.mxu0 %v5247
        %5583 = vmatpush1.bf16.msra.mxu0 %v5246
        %5584 = vmatprep.subr.bf16.mxu0 %v5251
        %5585 = vmatpush1.bf16.msra.mxu0 %v5250
        %5586 = vmatprep.subr.bf16.mxu0 %v5255
        %5587 = vmatpush1.bf16.msra.mxu0 %v5254
        %5588 = vmatprep.subr.bf16.mxu0 %v5259
        %5589 = vmatpush1.bf16.msra.mxu0 %v5258
        %5590 = vmatprep.subr.bf16.mxu0 %v5263
        %5591 = vmatpush1.bf16.msra.mxu0 %v5262
        %5592 = vmatprep.subr.bf16.mxu0 %v5267
        %5593 = vmatpush1.bf16.msra.mxu0 %v5266
        %5594 = vmatprep.subr.bf16.mxu0 %v5271
        %5595 = vmatpush1.bf16.msra.mxu0 %v5270
        %5596 = vmatprep.mubr.bf16.mxu0 %v5506
        %5597 = vmatmul.mubr.bf16.gmra.mrb[0].mxu0 %v5505
        %v5598 = vpop.f32.mrb[0].mxu0
        %v5599 = vadd.f32 %v5558, %v5598
        %v5600 = vpop.f32.mrb[0].mxu0
        %v5601 = vadd.f32 %v5560, %v5600
        %v5602 = vpop.f32.mrb[0].mxu0
        %v5603 = vpop.f32.mrb[0].mxu0
        %5604 = vdwg.mxu0
        %5605 = vmatprep.subr.bf16.mxu0 %v5275
        %5606 = vmatpush1.bf16.msra.mxu0 %v5274
        %5607 = vmatprep.subr.bf16.mxu0 %v5279
        %5608 = vmatpush1.bf16.msra.mxu0 %v5278
        %5609 = vmatprep.subr.bf16.mxu0 %v5283
        %5610 = vmatpush1.bf16.msra.mxu0 %v5282
        %5611 = vmatprep.subr.bf16.mxu0 %v5287
        %5612 = vmatpush1.bf16.msra.mxu0 %v5286
        %5613 = vmatprep.subr.bf16.mxu0 %v5291
        %5614 = vmatpush1.bf16.msra.mxu0 %v5290
        %5615 = vmatprep.subr.bf16.mxu0 %v5295
        %5616 = vmatpush1.bf16.msra.mxu0 %v5294
        %5617 = vmatprep.subr.bf16.mxu0 %v5299
        %5618 = vmatpush1.bf16.msra.mxu0 %v5298
        %5619 = vmatprep.subr.bf16.mxu0 %v5303
        %5620 = vmatpush1.bf16.msra.mxu0 %v5302
        %5621 = vmatprep.subr.bf16.mxu0 %v5307
        %5622 = vmatpush1.bf16.msra.mxu0 %v5306
        %5623 = vmatprep.subr.bf16.mxu0 %v5311
        %5624 = vmatpush1.bf16.msra.mxu0 %v5310
        %5625 = vmatprep.subr.bf16.mxu0 %v5315
        %5626 = vmatpush1.bf16.msra.mxu0 %v5314
        %5627 = vmatprep.subr.bf16.mxu0 %v5319
        %5628 = vmatpush1.bf16.msra.mxu0 %v5318
        %5629 = vmatprep.subr.bf16.mxu0 %v5323
        %5630 = vmatpush1.bf16.msra.mxu0 %v5322
        %5631 = vmatprep.subr.bf16.mxu0 %v5327
        %5632 = vmatpush1.bf16.msra.mxu0 %v5326
        %5633 = vmatprep.subr.bf16.mxu0 %v5331
        %5634 = vmatpush1.bf16.msra.mxu0 %v5330
        %5635 = vmatprep.subr.bf16.mxu0 %v5335
        %5636 = vmatpush1.bf16.msra.mxu0 %v5334
        %5637 = vmatprep.mubr.bf16.mxu0 %v5508
        %5638 = vmatmul.mubr.bf16.gmra.mrb[0].mxu0 %v5507
        %v5639 = vpop.f32.mrb[0].mxu0
        %v5640 = vadd.f32 %v5599, %v5639
        %v5641 = vpop.f32.mrb[0].mxu0
        %v5642 = vadd.f32 %v5601, %v5641
        %v5643 = vpop.f32.mrb[0].mxu0
        %v5644 = vpop.f32.mrb[0].mxu0
        %5645 = vdwg.mxu0
        %5646 = vmatprep.subr.bf16.mxu0 %v5339
        %5647 = vmatpush1.bf16.msra.mxu0 %v5338
        %5648 = vmatprep.subr.bf16.mxu0 %v5343
        %5649 = vmatpush1.bf16.msra.mxu0 %v5342
        %5650 = vmatprep.subr.bf16.mxu0 %v5347
        %5651 = vmatpush1.bf16.msra.mxu0 %v5346
        %5652 = vmatprep.subr.bf16.mxu0 %v5351
        %5653 = vmatpush1.bf16.msra.mxu0 %v5350
        %5654 = vmatprep.subr.bf16.mxu0 %v5355
        %5655 = vmatpush1.bf16.msra.mxu0 %v5354
        %5656 = vmatprep.subr.bf16.mxu0 %v5359
        %5657 = vmatpush1.bf16.msra.mxu0 %v5358
        %5658 = vmatprep.subr.bf16.mxu0 %v5363
        %5659 = vmatpush1.bf16.msra.mxu0 %v5362
        %5660 = vmatprep.subr.bf16.mxu0 %v5367
        %5661 = vmatpush1.bf16.msra.mxu0 %v5366
        %5662 = vmatprep.subr.bf16.mxu0 %v5371
        %5663 = vmatpush1.bf16.msra.mxu0 %v5370
        %5664 = vmatprep.subr.bf16.mxu0 %v5375
        %5665 = vmatpush1.bf16.msra.mxu0 %v5374
        %5666 = vmatprep.subr.bf16.mxu0 %v5379
        %5667 = vmatpush1.bf16.msra.mxu0 %v5378
        %5668 = vmatprep.subr.bf16.mxu0 %v5383
        %5669 = vmatpush1.bf16.msra.mxu0 %v5382
        %5670 = vmatprep.subr.bf16.mxu0 %v5387
        %5671 = vmatpush1.bf16.msra.mxu0 %v5386
        %5672 = vmatprep.subr.bf16.mxu0 %v5391
        %5673 = vmatpush1.bf16.msra.mxu0 %v5390
        %5674 = vmatprep.subr.bf16.mxu0 %v5395
        %5675 = vmatpush1.bf16.msra.mxu0 %v5394
        %5676 = vmatprep.subr.bf16.mxu0 %v5399
        %5677 = vmatpush1.bf16.msra.mxu0 %v5398
        %5678 = vmatprep.mubr.bf16.mxu0 %v5510
        %5679 = vmatmul.mubr.bf16.gmra.mrb[0].mxu0 %v5509
        %v5680 = vpop.f32.mrb[0].mxu0
        %v5681 = vadd.f32 %v5640, %v5680
        %v5682 = vpop.f32.mrb[0].mxu0
        %v5683 = vadd.f32 %v5642, %v5682
        %v5684 = vpop.f32.mrb[0].mxu0
        %v5685 = vpop.f32.mrb[0].mxu0
        %5686 = vdwg.mxu0
        %5687 = vmatprep.subr.bf16.mxu0 %v5403
        %5688 = vmatpush1.bf16.msra.mxu0 %v5402
        %5689 = vmatprep.subr.bf16.mxu0 %v5407
        %5690 = vmatpush1.bf16.msra.mxu0 %v5406
        %5691 = vmatprep.subr.bf16.mxu0 %v5411
        %5692 = vmatpush1.bf16.msra.mxu0 %v5410
        %5693 = vmatprep.subr.bf16.mxu0 %v5415
        %5694 = vmatpush1.bf16.msra.mxu0 %v5414
        %5695 = vmatprep.subr.bf16.mxu0 %v5419
        %5696 = vmatpush1.bf16.msra.mxu0 %v5418
        %5697 = vmatprep.subr.bf16.mxu0 %v5423
        %5698 = vmatpush1.bf16.msra.mxu0 %v5422
        %5699 = vmatprep.subr.bf16.mxu0 %v5427
        %5700 = vmatpush1.bf16.msra.mxu0 %v5426
        %5701 = vmatprep.subr.bf16.mxu0 %v5431
        %5702 = vmatpush1.bf16.msra.mxu0 %v5430
        %5703 = vmatprep.subr.bf16.mxu0 %v5435
        %5704 = vmatpush1.bf16.msra.mxu0 %v5434
        %5705 = vmatprep.subr.bf16.mxu0 %v5439
        %5706 = vmatpush1.bf16.msra.mxu0 %v5438
        %5707 = vmatprep.subr.bf16.mxu0 %v5443
        %5708 = vmatpush1.bf16.msra.mxu0 %v5442
        %5709 = vmatprep.subr.bf16.mxu0 %v5447
        %5710 = vmatpush1.bf16.msra.mxu0 %v5446
        %5711 = vmatprep.subr.bf16.mxu0 %v5451
        %5712 = vmatpush1.bf16.msra.mxu0 %v5450
        %5713 = vmatprep.subr.bf16.mxu0 %v5455
        %5714 = vmatpush1.bf16.msra.mxu0 %v5454
        %5715 = vmatprep.subr.bf16.mxu0 %v5459
        %5716 = vmatpush1.bf16.msra.mxu0 %v5458
        %5717 = vmatprep.subr.bf16.mxu0 %v5463
        %5718 = vmatpush1.bf16.msra.mxu0 %v5462
        %5719 = vmatprep.mubr.bf16.mxu0 %v5512
        %5720 = vmatmul.mubr.bf16.gmra.mrb[0].mxu0 %v5511
        %v5721 = vpop.f32.mrb[0].mxu0
        %v5722 = vadd.f32 %v5681, %v5721
        %v5723 = vpop.f32.mrb[0].mxu0
        %v5724 = vadd.f32 %v5683, %v5723
        %v5725 = vpop.f32.mrb[0].mxu0
        %v5726 = vpop.f32.mrb[0].mxu0
        %5727 = vdwg.mxu0
        %5728 = vmatprep.subr.bf16.mxu0 %v5149
        %5729 = vmatpush1.bf16.msra.mxu0 %v5148
        %5730 = vmatprep.subr.bf16.mxu0 %v5153
        %5731 = vmatpush1.bf16.msra.mxu0 %v5152
        %5732 = vmatprep.subr.bf16.mxu0 %v5157
        %5733 = vmatpush1.bf16.msra.mxu0 %v5156
        %5734 = vmatprep.subr.bf16.mxu0 %v5161
        %5735 = vmatpush1.bf16.msra.mxu0 %v5160
        %5736 = vmatprep.subr.bf16.mxu0 %v5165
        %5737 = vmatpush1.bf16.msra.mxu0 %v5164
        %5738 = vmatprep.subr.bf16.mxu0 %v5169
        %5739 = vmatpush1.bf16.msra.mxu0 %v5168
        %5740 = vmatprep.subr.bf16.mxu0 %v5173
        %5741 = vmatpush1.bf16.msra.mxu0 %v5172
        %5742 = vmatprep.subr.bf16.mxu0 %v5177
        %5743 = vmatpush1.bf16.msra.mxu0 %v5176
        %5744 = vmatprep.subr.bf16.mxu0 %v5181
        %5745 = vmatpush1.bf16.msra.mxu0 %v5180
        %5746 = vmatprep.subr.bf16.mxu0 %v5185
        %5747 = vmatpush1.bf16.msra.mxu0 %v5184
        %5748 = vmatprep.subr.bf16.mxu0 %v5189
        %5749 = vmatpush1.bf16.msra.mxu0 %v5188
        %5750 = vmatprep.subr.bf16.mxu0 %v5193
        %5751 = vmatpush1.bf16.msra.mxu0 %v5192
        %5752 = vmatprep.subr.bf16.mxu0 %v5197
        %5753 = vmatpush1.bf16.msra.mxu0 %v5196
        %5754 = vmatprep.subr.bf16.mxu0 %v5201
        %5755 = vmatpush1.bf16.msra.mxu0 %v5200
        %5756 = vmatprep.subr.bf16.mxu0 %v5205
        %5757 = vmatpush1.bf16.msra.mxu0 %v5204
        %5758 = vmatprep.subr.bf16.mxu0 %v5209
        %5759 = vmatpush1.bf16.msra.mxu0 %v5208
        %5760 = vmatprep.mubr.bf16.mxu0 %v5504
        %5761 = vmatmul.mubr.bf16.gmra.mrb[0].mxu0 %v5503
        %v5762 = vpop.f32.mrb[0].mxu0
        %v5763 = vadd.f32 %v5479, %v5762
        %v5764 = vpop.f32.mrb[0].mxu0
        %v5765 = vadd.f32 %v5483, %v5764
        %v5766 = vpop.f32.mrb[0].mxu0
        %v5767 = vpop.f32.mrb[0].mxu0
        %5768 = vdwg.mxu0
        %5769 = vmatprep.subr.bf16.mxu0 %v5213
        %5770 = vmatpush1.bf16.msra.mxu0 %v5212
        %5771 = vmatprep.subr.bf16.mxu0 %v5217
        %5772 = vmatpush1.bf16.msra.mxu0 %v5216
        %5773 = vmatprep.subr.bf16.mxu0 %v5221
        %5774 = vmatpush1.bf16.msra.mxu0 %v5220
        %5775 = vmatprep.subr.bf16.mxu0 %v5225
        %5776 = vmatpush1.bf16.msra.mxu0 %v5224
        %5777 = vmatprep.subr.bf16.mxu0 %v5229
        %5778 = vmatpush1.bf16.msra.mxu0 %v5228
        %5779 = vmatprep.subr.bf16.mxu0 %v5233
        %5780 = vmatpush1.bf16.msra.mxu0 %v5232
        %5781 = vmatprep.subr.bf16.mxu0 %v5237
        %5782 = vmatpush1.bf16.msra.mxu0 %v5236
        %5783 = vmatprep.subr.bf16.mxu0 %v5241
        %5784 = vmatpush1.bf16.msra.mxu0 %v5240
        %5785 = vmatprep.subr.bf16.mxu0 %v5245
        %5786 = vmatpush1.bf16.msra.mxu0 %v5244
        %5787 = vmatprep.subr.bf16.mxu0 %v5249
        %5788 = vmatpush1.bf16.msra.mxu0 %v5248
        %5789 = vmatprep.subr.bf16.mxu0 %v5253
        %5790 = vmatpush1.bf16.msra.mxu0 %v5252
        %5791 = vmatprep.subr.bf16.mxu0 %v5257
        %5792 = vmatpush1.bf16.msra.mxu0 %v5256
        %5793 = vmatprep.subr.bf16.mxu0 %v5261
        %5794 = vmatpush1.bf16.msra.mxu0 %v5260
        %5795 = vmatprep.subr.bf16.mxu0 %v5265
        %5796 = vmatpush1.bf16.msra.mxu0 %v5264
        %5797 = vmatprep.subr.bf16.mxu0 %v5269
        %5798 = vmatpush1.bf16.msra.mxu0 %v5268
        %5799 = vmatprep.subr.bf16.mxu0 %v5273
        %5800 = vmatpush1.bf16.msra.mxu0 %v5272
        %5801 = vmatprep.mubr.bf16.mxu0 %v5506
        %5802 = vmatmul.mubr.bf16.gmra.mrb[0].mxu0 %v5505
        %v5803 = vpop.f32.mrb[0].mxu0
        %v5804 = vadd.f32 %v5763, %v5803
        %v5805 = vpop.f32.mrb[0].mxu0
        %v5806 = vadd.f32 %v5765, %v5805
        %v5807 = vpop.f32.mrb[0].mxu0
        %v5808 = vpop.f32.mrb[0].mxu0
        %5809 = vdwg.mxu0
        %5810 = vmatprep.subr.bf16.mxu0 %v5277
        %5811 = vmatpush1.bf16.msra.mxu0 %v5276
        %5812 = vmatprep.subr.bf16.mxu0 %v5281
        %5813 = vmatpush1.bf16.msra.mxu0 %v5280
        %5814 = vmatprep.subr.bf16.mxu0 %v5285
        %5815 = vmatpush1.bf16.msra.mxu0 %v5284
        %5816 = vmatprep.subr.bf16.mxu0 %v5289
        %5817 = vmatpush1.bf16.msra.mxu0 %v5288
        %5818 = vmatprep.subr.bf16.mxu0 %v5293
        %5819 = vmatpush1.bf16.msra.mxu0 %v5292
        %5820 = vmatprep.subr.bf16.mxu0 %v5297
        %5821 = vmatpush1.bf16.msra.mxu0 %v5296
        %5822 = vmatprep.subr.bf16.mxu0 %v5301
        %5823 = vmatpush1.bf16.msra.mxu0 %v5300
        %5824 = vmatprep.subr.bf16.mxu0 %v5305
        %5825 = vmatpush1.bf16.msra.mxu0 %v5304
        %5826 = vmatprep.subr.bf16.mxu0 %v5309
        %5827 = vmatpush1.bf16.msra.mxu0 %v5308
        %5828 = vmatprep.subr.bf16.mxu0 %v5313
        %5829 = vmatpush1.bf16.msra.mxu0 %v5312
        %5830 = vmatprep.subr.bf16.mxu0 %v5317
        %5831 = vmatpush1.bf16.msra.mxu0 %v5316
        %5832 = vmatprep.subr.bf16.mxu0 %v5321
        %5833 = vmatpush1.bf16.msra.mxu0 %v5320
        %5834 = vmatprep.subr.bf16.mxu0 %v5325
        %5835 = vmatpush1.bf16.msra.mxu0 %v5324
        %5836 = vmatprep.subr.bf16.mxu0 %v5329
        %5837 = vmatpush1.bf16.msra.mxu0 %v5328
        %5838 = vmatprep.subr.bf16.mxu0 %v5333
        %5839 = vmatpush1.bf16.msra.mxu0 %v5332
        %5840 = vmatprep.subr.bf16.mxu0 %v5337
        %5841 = vmatpush1.bf16.msra.mxu0 %v5336
        %5842 = vmatprep.mubr.bf16.mxu0 %v5508
        %5843 = vmatmul.mubr.bf16.gmra.mrb[0].mxu0 %v5507
        %v5844 = vpop.f32.mrb[0].mxu0
        %v5845 = vadd.f32 %v5804, %v5844
        %v5846 = vpop.f32.mrb[0].mxu0
        %v5847 = vadd.f32 %v5806, %v5846
        %v5848 = vpop.f32.mrb[0].mxu0
        %v5849 = vpop.f32.mrb[0].mxu0
        %5850 = vdwg.mxu0
        %5851 = vmatprep.subr.bf16.mxu0 %v5341
        %5852 = vmatpush1.bf16.msra.mxu0 %v5340
        %5853 = vmatprep.subr.bf16.mxu0 %v5345
        %5854 = vmatpush1.bf16.msra.mxu0 %v5344
        %5855 = vmatprep.subr.bf16.mxu0 %v5349
        %5856 = vmatpush1.bf16.msra.mxu0 %v5348
        %5857 = vmatprep.subr.bf16.mxu0 %v5353
        %5858 = vmatpush1.bf16.msra.mxu0 %v5352
        %5859 = vmatprep.subr.bf16.mxu0 %v5357
        %5860 = vmatpush1.bf16.msra.mxu0 %v5356
        %5861 = vmatprep.subr.bf16.mxu0 %v5361
        %5862 = vmatpush1.bf16.msra.mxu0 %v5360
        %5863 = vmatprep.subr.bf16.mxu0 %v5365
        %5864 = vmatpush1.bf16.msra.mxu0 %v5364
        %5865 = vmatprep.subr.bf16.mxu0 %v5369
        %5866 = vmatpush1.bf16.msra.mxu0 %v5368
        %5867 = vmatprep.subr.bf16.mxu0 %v5373
        %5868 = vmatpush1.bf16.msra.mxu0 %v5372
        %5869 = vmatprep.subr.bf16.mxu0 %v5377
        %5870 = vmatpush1.bf16.msra.mxu0 %v5376
        %5871 = vmatprep.subr.bf16.mxu0 %v5381
        %5872 = vmatpush1.bf16.msra.mxu0 %v5380
        %5873 = vmatprep.subr.bf16.mxu0 %v5385
        %5874 = vmatpush1.bf16.msra.mxu0 %v5384
        %5875 = vmatprep.subr.bf16.mxu0 %v5389
        %5876 = vmatpush1.bf16.msra.mxu0 %v5388
        %5877 = vmatprep.subr.bf16.mxu0 %v5393
        %5878 = vmatpush1.bf16.msra.mxu0 %v5392
        %5879 = vmatprep.subr.bf16.mxu0 %v5397
        %5880 = vmatpush1.bf16.msra.mxu0 %v5396
        %5881 = vmatprep.subr.bf16.mxu0 %v5401
        %5882 = vmatpush1.bf16.msra.mxu0 %v5400
        %5883 = vmatprep.mubr.bf16.mxu0 %v5510
        %5884 = vmatmul.mubr.bf16.gmra.mrb[0].mxu0 %v5509
        %v5885 = vpop.f32.mrb[0].mxu0
        %v5886 = vadd.f32 %v5845, %v5885
        %v5887 = vpop.f32.mrb[0].mxu0
        %v5888 = vadd.f32 %v5847, %v5887
        %v5889 = vpop.f32.mrb[0].mxu0
        %v5890 = vpop.f32.mrb[0].mxu0
        %5891 = vdwg.mxu0
        %5892 = vmatprep.subr.bf16.mxu0 %v5405
        %5893 = vmatpush1.bf16.msra.mxu0 %v5404
        %5894 = vmatprep.subr.bf16.mxu0 %v5409
        %5895 = vmatpush1.bf16.msra.mxu0 %v5408
        %5896 = vmatprep.subr.bf16.mxu0 %v5413
        %5897 = vmatpush1.bf16.msra.mxu0 %v5412
        %5898 = vmatprep.subr.bf16.mxu0 %v5417
        %5899 = vmatpush1.bf16.msra.mxu0 %v5416
        %5900 = vmatprep.subr.bf16.mxu0 %v5421
        %5901 = vmatpush1.bf16.msra.mxu0 %v5420
        %5902 = vmatprep.subr.bf16.mxu0 %v5425
        %5903 = vmatpush1.bf16.msra.mxu0 %v5424
        %5904 = vmatprep.subr.bf16.mxu0 %v5429
        %5905 = vmatpush1.bf16.msra.mxu0 %v5428
        %5906 = vmatprep.subr.bf16.mxu0 %v5433
        %5907 = vmatpush1.bf16.msra.mxu0 %v5432
        %5908 = vmatprep.subr.bf16.mxu0 %v5437
        %5909 = vmatpush1.bf16.msra.mxu0 %v5436
        %5910 = vmatprep.subr.bf16.mxu0 %v5441
        %5911 = vmatpush1.bf16.msra.mxu0 %v5440
        %5912 = vmatprep.subr.bf16.mxu0 %v5445
        %5913 = vmatpush1.bf16.msra.mxu0 %v5444
        %5914 = vmatprep.subr.bf16.mxu0 %v5449
        %5915 = vmatpush1.bf16.msra.mxu0 %v5448
        %5916 = vmatprep.subr.bf16.mxu0 %v5453
        %5917 = vmatpush1.bf16.msra.mxu0 %v5452
        %5918 = vmatprep.subr.bf16.mxu0 %v5457
        %5919 = vmatpush1.bf16.msra.mxu0 %v5456
        %5920 = vmatprep.subr.bf16.mxu0 %v5461
        %5921 = vmatpush1.bf16.msra.mxu0 %v5460
        %5922 = vmatprep.subr.bf16.mxu0 %v5465
        %5923 = vmatpush1.bf16.msra.mxu0 %v5464
        %5924 = vmatprep.mubr.bf16.mxu0 %v5512
        %5925 = vmatmul.mubr.bf16.gmra.mrb[0].mxu0 %v5511
        %v5926 = vpop.f32.mrb[0].mxu0
        %v5927 = vadd.f32 %v5886, %v5926
        %v5928 = vpop.f32.mrb[0].mxu0
        %v5929 = vadd.f32 %v5888, %v5928
        %v5930 = vpop.f32.mrb[0].mxu0
        %v5931 = vpop.f32.mrb[0].mxu0
        %5932 = vdwg.mxu0
        %v5933 = vmax.f32 %v5722, 0.0
        %v5934 = vmax.f32 %v5724, 0.0
        %v5935 = vmax.f32 %v5927, 0.0
        %v5936 = vmax.f32 %v5929, 0.0
        %v5937 = vsel %vm4964, %v5933, -inf
        %v5938 = vrot.slane %v5937, 4
        %v5939 = vmax.f32 %v5937, %v5938
        %v5940 = vrot.slane %v5939, 2
        %v5941 = vmax.f32 %v5939, %v5940
        %v5942 = vrot.slane %v5941, 1
        %v5943 = vmax.f32 %v5941, %v5942
        %v5944 = vsel %vm4964, %v5934, -inf
        %v5945 = vrot.slane %v5944, 4
        %v5946 = vmax.f32 %v5944, %v5945
        %v5947 = vrot.slane %v5946, 2
        %v5948 = vmax.f32 %v5946, %v5947
        %v5949 = vrot.slane %v5948, 1
        %v5950 = vmax.f32 %v5948, %v5949
        %v5951 = vsel %vm4964, %v5935, -inf
        %v5952 = vrot.slane %v5951, 4
        %v5953 = vmax.f32 %v5951, %v5952
        %v5954 = vrot.slane %v5953, 2
        %v5955 = vmax.f32 %v5953, %v5954
        %v5956 = vrot.slane %v5955, 1
        %v5957 = vmax.f32 %v5955, %v5956
        %v5958 = vsel %vm4964, %v5936, -inf
        %v5959 = vrot.slane %v5958, 4
        %v5960 = vmax.f32 %v5958, %v5959
        %v5961 = vrot.slane %v5960, 2
        %v5962 = vmax.f32 %v5960, %v5961
        %v5963 = vrot.slane %v5962, 1
        %v5964 = vmax.f32 %v5962, %v5963
        %s5965 = smul.u32 4, 64
        %s5966 = smul.u32 %s5965, 2
        %s5967 = sshll.u32 %s5966, 4
        %5968 = dma.done %s721, %s5967
        %v5969 = vpack.c.bf16 %v5943, %v5943
        %v5970 = vpack.c.bf16 %v5950, %v5950
        %v5971 = vpack.c.bf16 %v5957, %v5957
        %v5972 = vpack.c.bf16 %v5964, %v5964
        %v5973 = vld [vmem:[#allocation10] sm:$0xff]
        %v5974 = vld [vmem:[#allocation10 + $0x8] sm:$0xff]
        %v5975 = vld [vmem:[#allocation10 + $0x10] sm:$0xff]
        %v5976 = vld [vmem:[#allocation10 + $0x18] sm:$0xff]
        %v5977 = vld [vmem:[#allocation10 + $0x20] sm:$0xff]
        %v5978 = vld [vmem:[#allocation10 + $0x28] sm:$0xff]
        %v5979 = vld [vmem:[#allocation10 + $0x30] sm:$0xff]
        %v5980 = vld [vmem:[#allocation10 + $0x38] sm:$0xff]
        %v5981 = vld [vmem:[#allocation10 + $0x40] sm:$0xff]
        %v5982 = vld [vmem:[#allocation10 + $0x48] sm:$0xff]
        %v5983 = vld [vmem:[#allocation10 + $0x50] sm:$0xff]
        %v5984 = vld [vmem:[#allocation10 + $0x58] sm:$0xff]
        %v5985 = vld [vmem:[#allocation10 + $0x60] sm:$0xff]
        %v5986 = vld [vmem:[#allocation10 + $0x68] sm:$0xff]
        %v5987 = vld [vmem:[#allocation10 + $0x70] sm:$0xff]
        %v5988 = vld [vmem:[#allocation10 + $0x78] sm:$0xff]
        %v5989 = vld [vmem:[#allocation10 + $0x80] sm:$0xff]
        %v5990 = vld [vmem:[#allocation10 + $0x88] sm:$0xff]
        %v5991 = vld [vmem:[#allocation10 + $0x90] sm:$0xff]
        %v5992 = vld [vmem:[#allocation10 + $0x98] sm:$0xff]
        %v5993 = vld [vmem:[#allocation10 + $0xa0] sm:$0xff]
        %v5994 = vld [vmem:[#allocation10 + $0xa8] sm:$0xff]
        %v5995 = vld [vmem:[#allocation10 + $0xb0] sm:$0xff]
        %v5996 = vld [vmem:[#allocation10 + $0xb8] sm:$0xff]
        %v5997 = vld [vmem:[#allocation10 + $0xc0] sm:$0xff]
        %v5998 = vld [vmem:[#allocation10 + $0xc8] sm:$0xff]
        %v5999 = vld [vmem:[#allocation10 + $0xd0] sm:$0xff]
        %v6000 = vld [vmem:[#allocation10 + $0xd8] sm:$0xff]
        %v6001 = vld [vmem:[#allocation10 + $0xe0] sm:$0xff]
        %v6002 = vld [vmem:[#allocation10 + $0xe8] sm:$0xff]
        %v6003 = vld [vmem:[#allocation10 + $0xf0] sm:$0xff]
        %v6004 = vld [vmem:[#allocation10 + $0xf8] sm:$0xff]
        %v6005 = vld [vmem:[#allocation10 + $0x100] sm:$0xff]
        %v6006 = vld [vmem:[#allocation10 + $0x108] sm:$0xff]
        %v6007 = vld [vmem:[#allocation10 + $0x110] sm:$0xff]
        %v6008 = vld [vmem:[#allocation10 + $0x118] sm:$0xff]
        %v6009 = vld [vmem:[#allocation10 + $0x120] sm:$0xff]
        %v6010 = vld [vmem:[#allocation10 + $0x128] sm:$0xff]
        %v6011 = vld [vmem:[#allocation10 + $0x130] sm:$0xff]
        %v6012 = vld [vmem:[#allocation10 + $0x138] sm:$0xff]
        %v6013 = vld [vmem:[#allocation10 + $0x140] sm:$0xff]
        %v6014 = vld [vmem:[#allocation10 + $0x148] sm:$0xff]
        %v6015 = vld [vmem:[#allocation10 + $0x150] sm:$0xff]
        %v6016 = vld [vmem:[#allocation10 + $0x158] sm:$0xff]
        %v6017 = vld [vmem:[#allocation10 + $0x160] sm:$0xff]
        %v6018 = vld [vmem:[#allocation10 + $0x168] sm:$0xff]
        %v6019 = vld [vmem:[#allocation10 + $0x170] sm:$0xff]
        %v6020 = vld [vmem:[#allocation10 + $0x178] sm:$0xff]
        %v6021 = vld [vmem:[#allocation10 + $0x180] sm:$0xff]
        %v6022 = vld [vmem:[#allocation10 + $0x188] sm:$0xff]
        %v6023 = vld [vmem:[#allocation10 + $0x190] sm:$0xff]
        %v6024 = vld [vmem:[#allocation10 + $0x198] sm:$0xff]
        %v6025 = vld [vmem:[#allocation10 + $0x1a0] sm:$0xff]
        %v6026 = vld [vmem:[#allocation10 + $0x1a8] sm:$0xff]
        %v6027 = vld [vmem:[#allocation10 + $0x1b0] sm:$0xff]
        %v6028 = vld [vmem:[#allocation10 + $0x1b8] sm:$0xff]
        %v6029 = vld [vmem:[#allocation10 + $0x1c0] sm:$0xff]
        %v6030 = vld [vmem:[#allocation10 + $0x1c8] sm:$0xff]
        %v6031 = vld [vmem:[#allocation10 + $0x1d0] sm:$0xff]
        %v6032 = vld [vmem:[#allocation10 + $0x1d8] sm:$0xff]
        %v6033 = vld [vmem:[#allocation10 + $0x1e0] sm:$0xff]
        %v6034 = vld [vmem:[#allocation10 + $0x1e8] sm:$0xff]
        %v6035 = vld [vmem:[#allocation10 + $0x1f0] sm:$0xff]
        %v6036 = vld [vmem:[#allocation10 + $0x1f8] sm:$0xff]
        %v6037 = vld [vmem:[#allocation27] sm:$0x3]
        %v6039 = vlaneseq
        %v6040 = vshrl.u32 %v6039, 7
        %v6041 = vsub.s32 0, %v6040
        %v6042 = vrot.slane %v6037, %v6041
        %v6043 = vlaneseq
        %v6044 = vshrl.u32 %v6043, 7
        %v6045 = vsub.s32 1, %v6044
        %v6046 = vrot.slane %v6037, %v6045
        %6049 = vmatprep.subr.bf16.mxu0 %v5974
        %6050 = vmatpush1.bf16.msra.mxu0 %v5973
        %6051 = vmatprep.subr.bf16.mxu0 %v5976
        %6052 = vmatpush1.bf16.msra.mxu0 %v5975
        %6053 = vmatprep.subr.bf16.mxu0 %v5978
        %6054 = vmatpush1.bf16.msra.mxu0 %v5977
        %6055 = vmatprep.subr.bf16.mxu0 %v5980
        %6056 = vmatpush1.bf16.msra.mxu0 %v5979
        %6057 = vmatprep.subr.bf16.mxu0 %v5982
        %6058 = vmatpush1.bf16.msra.mxu0 %v5981
        %6059 = vmatprep.subr.bf16.mxu0 %v5984
        %6060 = vmatpush1.bf16.msra.mxu0 %v5983
        %6061 = vmatprep.subr.bf16.mxu0 %v5986
        %6062 = vmatpush1.bf16.msra.mxu0 %v5985
        %6063 = vmatprep.subr.bf16.mxu0 %v5988
        %6064 = vmatpush1.bf16.msra.mxu0 %v5987
        %6065 = vmatprep.subr.bf16.mxu0 %v5990
        %6066 = vmatpush1.bf16.msra.mxu0 %v5989
        %6067 = vmatprep.subr.bf16.mxu0 %v5992
        %6068 = vmatpush1.bf16.msra.mxu0 %v5991
        %6069 = vmatprep.subr.bf16.mxu0 %v5994
        %6070 = vmatpush1.bf16.msra.mxu0 %v5993
        %6071 = vmatprep.subr.bf16.mxu0 %v5996
        %6072 = vmatpush1.bf16.msra.mxu0 %v5995
        %6073 = vmatprep.subr.bf16.mxu0 %v5998
        %6074 = vmatpush1.bf16.msra.mxu0 %v5997
        %6075 = vmatprep.subr.bf16.mxu0 %v6000
        %6076 = vmatpush1.bf16.msra.mxu0 %v5999
        %6077 = vmatprep.subr.bf16.mxu0 %v6002
        %6078 = vmatpush1.bf16.msra.mxu0 %v6001
        %6079 = vmatprep.subr.bf16.mxu0 %v6004
        %6080 = vmatpush1.bf16.msra.mxu0 %v6003
        %6081 = vmatprep.mubr.bf16.mxu0 %v5970
        %6082 = vmatmul.mubr.bf16.gmra.mrb[0].mxu0 %v5969
        %v6083 = vpop.f32.mrb[0].mxu0
        %v6084 = vadd.f32 %v6042, %v6083
        %v6085 = vpop.f32.mrb[0].mxu0
        %v6086 = vadd.f32 %v6046, %v6085
        %v6087 = vpop.f32.mrb[0].mxu0
        %v6088 = vpop.f32.mrb[0].mxu0
        %6089 = vdwg.mxu0
        %6090 = vmatprep.subr.bf16.mxu0 %v6006
        %6091 = vmatpush1.bf16.msra.mxu0 %v6005
        %6092 = vmatprep.subr.bf16.mxu0 %v6008
        %6093 = vmatpush1.bf16.msra.mxu0 %v6007
        %6094 = vmatprep.subr.bf16.mxu0 %v6010
        %6095 = vmatpush1.bf16.msra.mxu0 %v6009
        %6096 = vmatprep.subr.bf16.mxu0 %v6012
        %6097 = vmatpush1.bf16.msra.mxu0 %v6011
        %6098 = vmatprep.subr.bf16.mxu0 %v6014
        %6099 = vmatpush1.bf16.msra.mxu0 %v6013
        %6100 = vmatprep.subr.bf16.mxu0 %v6016
        %6101 = vmatpush1.bf16.msra.mxu0 %v6015
        %6102 = vmatprep.subr.bf16.mxu0 %v6018
        %6103 = vmatpush1.bf16.msra.mxu0 %v6017
        %6104 = vmatprep.subr.bf16.mxu0 %v6020
        %6105 = vmatpush1.bf16.msra.mxu0 %v6019
        %6106 = vmatprep.subr.bf16.mxu0 %v6022
        %6107 = vmatpush1.bf16.msra.mxu0 %v6021
        %6108 = vmatprep.subr.bf16.mxu0 %v6024
        %6109 = vmatpush1.bf16.msra.mxu0 %v6023
        %6110 = vmatprep.subr.bf16.mxu0 %v6026
        %6111 = vmatpush1.bf16.msra.mxu0 %v6025
        %6112 = vmatprep.subr.bf16.mxu0 %v6028
        %6113 = vmatpush1.bf16.msra.mxu0 %v6027
        %6114 = vmatprep.subr.bf16.mxu0 %v6030
        %6115 = vmatpush1.bf16.msra.mxu0 %v6029
        %6116 = vmatprep.subr.bf16.mxu0 %v6032
        %6117 = vmatpush1.bf16.msra.mxu0 %v6031
        %6118 = vmatprep.subr.bf16.mxu0 %v6034
        %6119 = vmatpush1.bf16.msra.mxu0 %v6033
        %6120 = vmatprep.subr.bf16.mxu0 %v6036
        %6121 = vmatpush1.bf16.msra.mxu0 %v6035
        %6122 = vmatprep.mubr.bf16.mxu0 %v5972
        %6123 = vmatmul.mubr.bf16.gmra.mrb[0].mxu0 %v5971
        %v6124 = vpop.f32.mrb[0].mxu0
        %v6125 = vadd.f32 %v6084, %v6124
        %v6126 = vpop.f32.mrb[0].mxu0
        %v6127 = vadd.f32 %v6086, %v6126
        %v6128 = vpop.f32.mrb[0].mxu0
        %v6129 = vpop.f32.mrb[0].mxu0
        %6130 = vdwg.mxu0
        %v6131 = vmax.f32 %v6125, 0.0
        %v6132 = vmax.f32 %v6127, 0.0
        %v6133 = vpack.c.bf16 %v6131, %v6131
        %v6134 = vpack.c.bf16 %v6132, %v6132
        %v6135 = vld [vmem:[%s14] sm:$0xf]
        %v6136 = vld [vmem:[%s14 + $0x4] sm:$0xf]
        %v6137 = vld [vmem:[%s14 + $0x8] sm:$0xf]
        %v6138 = vld [vmem:[%s14 + $0xc] sm:$0xf]
        %v6139 = vld [vmem:[%s14 + $0x10] sm:$0xf]
        %v6140 = vld [vmem:[%s14 + $0x14] sm:$0xf]
        %v6141 = vld [vmem:[%s14 + $0x18] sm:$0xf]
        %v6142 = vld [vmem:[%s14 + $0x1c] sm:$0xf]
        %v6143 = vld [vmem:[%s14 + $0x20] sm:$0xf]
        %v6144 = vld [vmem:[%s14 + $0x24] sm:$0xf]
        %v6145 = vld [vmem:[%s14 + $0x28] sm:$0xf]
        %v6146 = vld [vmem:[%s14 + $0x2c] sm:$0xf]
        %v6147 = vld [vmem:[%s14 + $0x30] sm:$0xf]
        %v6148 = vld [vmem:[%s14 + $0x34] sm:$0xf]
        %v6149 = vld [vmem:[%s14 + $0x38] sm:$0xf]
        %v6150 = vld [vmem:[%s14 + $0x3c] sm:$0xf]
        %v6151 = vld [vmem:[%s14 + $0x40] sm:$0xf]
        %v6152 = vld [vmem:[%s14 + $0x44] sm:$0xf]
        %v6153 = vld [vmem:[%s14 + $0x48] sm:$0xf]
        %v6154 = vld [vmem:[%s14 + $0x4c] sm:$0xf]
        %v6155 = vld [vmem:[%s14 + $0x50] sm:$0xf]
        %v6156 = vld [vmem:[%s14 + $0x54] sm:$0xf]
        %v6157 = vld [vmem:[%s14 + $0x58] sm:$0xf]
        %v6158 = vld [vmem:[%s14 + $0x5c] sm:$0xf]
        %v6159 = vld [vmem:[%s14 + $0x60] sm:$0xf]
        %v6160 = vld [vmem:[%s14 + $0x64] sm:$0xf]
        %v6161 = vld [vmem:[%s14 + $0x68] sm:$0xf]
        %v6162 = vld [vmem:[%s14 + $0x6c] sm:$0xf]
        %v6163 = vld [vmem:[%s14 + $0x70] sm:$0xf]
        %v6164 = vld [vmem:[%s14 + $0x74] sm:$0xf]
        %v6165 = vld [vmem:[%s14 + $0x78] sm:$0xf]
        %v6166 = vld [vmem:[%s14 + $0x7c] sm:$0xf]
        %v6167 = vld [vmem:[#allocation29] sm:$0x1]
        %v6200 = vunpack.c.l.b16 %v6135
        %v6201 = vunpack.c.l.b16 %v6136
        %v6202 = vunpack.c.l.b16 %v6137
        %v6203 = vunpack.c.l.b16 %v6138
        %v6204 = vunpack.c.l.b16 %v6139
        %v6205 = vunpack.c.l.b16 %v6140
        %v6206 = vunpack.c.l.b16 %v6141
        %v6207 = vunpack.c.l.b16 %v6142
        %v6208 = vunpack.c.l.b16 %v6143
        %v6209 = vunpack.c.l.b16 %v6144
        %v6210 = vunpack.c.l.b16 %v6145
        %v6211 = vunpack.c.l.b16 %v6146
        %v6212 = vunpack.c.l.b16 %v6147
        %v6213 = vunpack.c.l.b16 %v6148
        %v6214 = vunpack.c.l.b16 %v6149
        %v6215 = vunpack.c.l.b16 %v6150
        %v6216 = vunpack.c.l.b16 %v6151
        %v6217 = vunpack.c.l.b16 %v6152
        %v6218 = vunpack.c.l.b16 %v6153
        %v6219 = vunpack.c.l.b16 %v6154
        %v6220 = vunpack.c.l.b16 %v6155
        %v6221 = vunpack.c.l.b16 %v6156
        %v6222 = vunpack.c.l.b16 %v6157
        %v6223 = vunpack.c.l.b16 %v6158
        %v6224 = vunpack.c.l.b16 %v6159
        %v6225 = vunpack.c.l.b16 %v6160
        %v6226 = vunpack.c.l.b16 %v6161
        %v6227 = vunpack.c.l.b16 %v6162
        %v6228 = vunpack.c.l.b16 %v6163
        %v6229 = vunpack.c.l.b16 %v6164
        %v6230 = vunpack.c.l.b16 %v6165
        %v6231 = vunpack.c.l.b16 %v6166
        %v6232 = vpack.c.b16 %v6201, %v6200
        %v6233 = vpack.c.b16 %v6203, %v6202
        %v6234 = vpack.c.b16 %v6205, %v6204
        %v6235 = vpack.c.b16 %v6207, %v6206
        %v6236 = vpack.c.b16 %v6209, %v6208
        %v6237 = vpack.c.b16 %v6211, %v6210
        %v6238 = vpack.c.b16 %v6213, %v6212
        %v6239 = vpack.c.b16 %v6215, %v6214
        %v6240 = vpack.c.b16 %v6217, %v6216
        %v6241 = vpack.c.b16 %v6219, %v6218
        %v6242 = vpack.c.b16 %v6221, %v6220
        %v6243 = vpack.c.b16 %v6223, %v6222
        %v6244 = vpack.c.b16 %v6225, %v6224
        %v6245 = vpack.c.b16 %v6227, %v6226
        %v6246 = vpack.c.b16 %v6229, %v6228
        %v6247 = vpack.c.b16 %v6231, %v6230
        %6264 = vmatprep.subr.bf16.mxu0 0
        %6265 = vmatpush1.bf16.msra.mxu0 %v6232
        %6266 = vmatprep.subr.bf16.mxu0 0
        %6267 = vmatpush1.bf16.msra.mxu0 %v6233
        %6268 = vmatprep.subr.bf16.mxu0 0
        %6269 = vmatpush1.bf16.msra.mxu0 %v6234
        %6270 = vmatprep.subr.bf16.mxu0 0
        %6271 = vmatpush1.bf16.msra.mxu0 %v6235
        %6272 = vmatprep.subr.bf16.mxu0 0
        %6273 = vmatpush1.bf16.msra.mxu0 %v6236
        %6274 = vmatprep.subr.bf16.mxu0 0
        %6275 = vmatpush1.bf16.msra.mxu0 %v6237
        %6276 = vmatprep.subr.bf16.mxu0 0
        %6277 = vmatpush1.bf16.msra.mxu0 %v6238
        %6278 = vmatprep.subr.bf16.mxu0 0
        %6279 = vmatpush1.bf16.msra.mxu0 %v6239
        %6280 = vmatprep.subr.bf16.mxu0 0
        %6281 = vmatpush1.bf16.msra.mxu0 %v6240
        %6282 = vmatprep.subr.bf16.mxu0 0
        %6283 = vmatpush1.bf16.msra.mxu0 %v6241
        %6284 = vmatprep.subr.bf16.mxu0 0
        %6285 = vmatpush1.bf16.msra.mxu0 %v6242
        %6286 = vmatprep.subr.bf16.mxu0 0
        %6287 = vmatpush1.bf16.msra.mxu0 %v6243
        %6288 = vmatprep.subr.bf16.mxu0 0
        %6289 = vmatpush1.bf16.msra.mxu0 %v6244
        %6290 = vmatprep.subr.bf16.mxu0 0
        %6291 = vmatpush1.bf16.msra.mxu0 %v6245
        %6292 = vmatprep.subr.bf16.mxu0 0
        %6293 = vmatpush1.bf16.msra.mxu0 %v6246
        %6294 = vmatprep.subr.bf16.mxu0 0
        %6295 = vmatpush1.bf16.msra.mxu0 %v6247
        %6296 = vmatprep.mubr.bf16.mxu0 %v6134
        %6297 = vmatmul.mubr.bf16.gmra.mrb[0].mxu0 %v6133
        %v6298 = vpop.f32.mrb[0].mxu0
        %v6299 = vadd.f32 %v6167, %v6298
        %v6300 = vpop.f32.mrb[0].mxu0
        %v6301 = vpop.f32.mrb[0].mxu0
        %v6302 = vpop.f32.mrb[0].mxu0
        %6303 = vdwg.mxu0
        %v6304 = vmax.f32 %v6299, 0.0
        %v6305 = vpack.c.bf16 %v6304, %v6304
        %v6306 = vld [vmem:[%s16] sm:$0xf]
        %v6307 = vld [vmem:[%s16 + $0x4] sm:$0xf]
        %v6308 = vld [vmem:[%s16 + $0x8] sm:$0xf]
        %v6309 = vld [vmem:[%s16 + $0xc] sm:$0xf]
        %v6310 = vld [vmem:[#allocation30] sm:$0x1]
        %v6315 = vunpack.c.l.b16 %v6306
        %v6316 = vunpack.c.l.b16 %v6307
        %v6317 = vunpack.c.l.b16 %v6308
        %v6318 = vunpack.c.l.b16 %v6309
        %v6319 = vpack.c.b16 %v6316, %v6315
        %v6320 = vpack.c.b16 %v6318, %v6317
        %vm6323 = vcmask 261120
        %v6325 = vsel %vm6323, %v6305, 0
        %6327 = vmatprep.subr.bf16.mxu0 0
        %6328 = vmatpush1.bf16.msra.mxu0 %v6319
        %6329 = vmatprep.subr.bf16.mxu0 0
        %6330 = vmatpush1.bf16.msra.mxu0 %v6320
        %6331 = vmatprep.subr.bf16.mxu0 0
        %6332 = vmatpush1.bf16.msra.mxu0 0
        %6333 = vmatprep.subr.bf16.mxu0 0
        %6334 = vmatpush1.bf16.msra.mxu0 0
        %6335 = vmatprep.subr.bf16.mxu0 0
        %6336 = vmatpush1.bf16.msra.mxu0 0
        %6337 = vmatprep.subr.bf16.mxu0 0
        %6338 = vmatpush1.bf16.msra.mxu0 0
        %6339 = vmatprep.subr.bf16.mxu0 0
        %6340 = vmatpush1.bf16.msra.mxu0 0
        %6341 = vmatprep.subr.bf16.mxu0 0
        %6342 = vmatpush1.bf16.msra.mxu0 0
        %6343 = vmatprep.subr.bf16.mxu0 0
        %6344 = vmatpush1.bf16.msra.mxu0 0
        %6345 = vmatprep.subr.bf16.mxu0 0
        %6346 = vmatpush1.bf16.msra.mxu0 0
        %6347 = vmatprep.subr.bf16.mxu0 0
        %6348 = vmatpush1.bf16.msra.mxu0 0
        %6349 = vmatprep.subr.bf16.mxu0 0
        %6350 = vmatpush1.bf16.msra.mxu0 0
        %6351 = vmatprep.subr.bf16.mxu0 0
        %6352 = vmatpush1.bf16.msra.mxu0 0
        %6353 = vmatprep.subr.bf16.mxu0 0
        %6354 = vmatpush1.bf16.msra.mxu0 0
        %6355 = vmatprep.subr.bf16.mxu0 0
        %6356 = vmatpush1.bf16.msra.mxu0 0
        %6357 = vmatprep.subr.bf16.mxu0 0
        %6358 = vmatpush1.bf16.msra.mxu0 0
        %6359 = vmatprep.mubr.bf16.mxu0 0
        %6360 = vmatmul.mubr.bf16.gmra.mrb[0].mxu0 %v6325
        %v6361 = vpop.f32.mrb[0].mxu0
        %v6362 = vadd.f32 %v6310, %v6361
        %v6363 = vpop.f32.mrb[0].mxu0
        %v6364 = vpop.f32.mrb[0].mxu0
        %v6365 = vpop.f32.mrb[0].mxu0
        %6366 = vdwg.mxu0
        %vm6367 = vcmask 57344
        %6368 = vst.msk [vmem:[%s684] sm:$0x1] %vm6367, %v6362
        %s6369 = sand.u32 %s390, 1
        %s6370 = scalar_lea.sflag [#allocation14], %s6369
        %s6371 = sand.u32 %s390, 1
        %s6372 = scalar_lea.vmem [#allocation32], %s6371
        // Predicated region
        $region133: #{forward.1} parent=83 // pred_check
          %p6373 = pneg %p400
        $region134: #{forward.1} parent=83 // pred_check_branch
          %6375 = sbr.rel (%p6373) target = $region136
        $region135: #{forward.1} parent=83 // pred_region
          %s6377 = ssub.s32 16, 16
          %6378 = vsyncadd %s6370, %s6377
          %s6379 = smul.addr %s41, 16
          %s6380 = scalar_lea.hbm %s18, %s6379
          %s6382 = sshll.u32 %s6372, 4
          %s6383 = int_to_ptr.vmem [resolvable:$true] %s6382
          %6385 = dma.vmem_to_hbm [thread:$0]  %s6383, 16, %s6380, %s6370
        $region136: #{forward.1} parent=83 // pred_fallthru
          _
      $region84: #{forward.1} parent=5 // pred_fallthru
        _
      %p6386 = scmp.le.s32.totalorder 2, %s36
      // Predicated region
      $region137: #{forward.1} parent=5 // pred_check
        %p6387 = pneg %p6386
      $region138: #{forward.1} parent=5 // pred_check_branch
        %6389 = sbr.rel (%p6387) target = $region140
      $region139: #{forward.1} parent=5 // pred_region
        %s6390 = ssub.s32 %s36, 2
        // Predicated region
        $region141: #{forward.1} parent=139 // pred_check
          %p6391 = pneg %p406
        $region142: #{forward.1} parent=139 // pred_check_branch
          %6393 = sbr.rel (%p6391) target = $region144
        $region143: #{forward.1} parent=139 // pred_region
          %s6394 = sand.u32 %s391, 1
          %s6395 = scalar_lea.sflag [#allocation14], %s6394
          %s6396 = sand.u32 %s391, 1
          %s6397 = scalar_lea.vmem [#allocation32], %s6396
          %6398 = dma.done %s6395, 16
        $region144: #{forward.1} parent=139 // pred_fallthru
          _
      $region140: #{forward.1} parent=5 // pred_fallthru
        _
    $region6: #{forward.1} parent=1 // loop_footer
      %s40 = sadd.s32 1, %s36
    $region7: #{forward.1} parent=1 // loop_footer_branch
      %35 = sbr.rel target = $region3
    $region8: #{forward.1} parent=1 // loop_exit
      _
    %6399 = vsyncpa [#allocation13], 1
    %s6400 = scalar_lea.sflag [#allocation13], 1
    %6401 = vsyncpa %s6400, 1
    %6402 = vsyncpa [#allocation16], 1
    %6403 = vsyncpa [#allocation19], 1
    %6404 = vsyncpa [#allocation22], 1
    %6405 = vsyncpa [#allocation25], 1
    %6406 = vsyncpa [#allocation28], 1
    %6407 = vsyncpa [#allocation31], 1
    %6408 = vsyncpa [#allocation14], 1
    %s6409 = scalar_lea.sflag [#allocation14], 1
    %6410 = vsyncpa %s6409, 1
  %6411 = vsyncmov [#allocation11]
  %s6412 = vpop.sfrf %6411
  %p6413 = scmp.eq.s32.totalorder %s6412, 0
  %p6414 = pneg %p6413
  %6416 = shalt.err (%p6414)
  %s6417 = scalar_lea.sflag [#allocation11], 1
  %6418 = vsyncmov %s6417
  %s6419 = vpop.sfrf %6418
  %p6420 = scmp.eq.s32.totalorder %s6419, 0
  %p6421 = pneg %p6420
  %6423 = shalt.err (%p6421)

</llo_original>
